<compile_context>
chip_gen: v7x
topology: tpu7x:2x2x1
jax: 0.10.0
libtpu: 0.0.40
codegen_flags: <defaults>
</compile_context>

<pallas_src>
import jax
import jax.numpy as jnp
from jax import lax
from jax.experimental import pallas as pl
from jax.experimental.pallas import tpu as pltpu

F_FEATURES = 128          # synthetic cnn_2d num_features
HIDDEN_1D = 32            # config.hidden_size_1d
N_PREDICT = 1             # config.n_predict_frames
K1, STRIDE1 = 13, 2       # ThreeLayerConv1DUnit.fc
K2 = 7                    # ThreeLayerConv1DUnit.fc2
K3 = 5                    # ThreeLayerConv1DUnit.fc3
BN_EPS = 1e-5


def _round_up(v, m):
    return ((v + m - 1) // m) * m


# ---------------------------------------------------------------------------
# Fused kernel: backbone (conv3x3-as-matmul + ReLU + per-frame GAP) + full
# ThreeLayerConv1DUnit + mean(dim=2) + Linear, one batch element per grid step.
# ---------------------------------------------------------------------------
def make_fused_kernel(seq_len, frame_pad, n_valid_patches, hidden):
    l_feat = F_FEATURES
    l1_full = l_feat - K1 + 1                 # 116  (stride-1 conv1 length)
    l1 = (l_feat - K1) // STRIDE1 + 1         # 58   (stride-2 conv1 length)
    pc = (l1 - 3) // 3 + 1                    # 19   (pooled cols)
    mr, mc = hidden - 2, l1 - 2               # 30, 56 sliding 3x3-max extents
    l2 = pc - K2 + 1                          # 13   (conv2 out length)
    l3 = l2 - K3 + 1                          # 9    (conv3 out length)
    inv_area = 1.0 / float(n_valid_patches)   # 1/196 (GAP over real patches only)

    def kernel(p_ref, wm_ref, w1_ref, s1_ref, sr_ref, sc_ref,
               w2_ref, w3_ref, vec_ref, out_ref):
        # ---- backbone: one big conv-as-matmul + ReLU + per-frame GAP --------
        p = p_ref[0]                                                 # [seq*200, 32] bf16
        h = jnp.dot(p, wm_ref[...], preferred_element_type=jnp.float32)
        h = jnp.maximum(h, 0.0)                                      # [seq*200, 128] f32
        frame_sums = [
            jnp.sum(h[t * frame_pad:(t + 1) * frame_pad, :], axis=0, keepdims=True)
            for t in range(seq_len)
        ]
        f = jnp.concatenate(frame_sums, axis=0) * inv_area           # [seq, 128]

        vec = vec_ref[...]                                           # [64, 8] packed params

        # ---- fc: Conv1d(seq -> 32, k=13, stride=2, no bias) as ONE matmul ----
        f1 = jnp.concatenate([f[:, dk:dk + l1_full] for dk in range(K1)], axis=0)  # [403,116]
        h1 = jnp.dot(w1_ref[...], f1, preferred_element_type=jnp.float32)          # [32, 116]
        h1 = jnp.dot(h1, s1_ref[...], preferred_element_type=jnp.float32)          # [32, 58]
        h1 = h1 + vec[0:hidden, 0:1]              # folded BN1 shift (scale is in w1)

        # ---- pl: MaxPool2d(3) over the (32, 58) plane -> (10, 19) -----------
        m = h1[0:mr, 0:mc]
        for di in range(3):
            for dj in range(3):
                if di == 0 and dj == 0:
                    continue
                m = jnp.maximum(m, h1[di:di + mr, dj:dj + mc])
        pooled = jnp.dot(sr_ref[...], m, preferred_element_type=jnp.float32)       # [10, 56]
        pooled = jnp.dot(pooled, sc_ref[...], preferred_element_type=jnp.float32)  # [10, 19]

        # ---- fc2: Conv1d(10 -> 64, k=7, no bias) as ONE matmul ---------------
        f2 = jnp.concatenate([pooled[:, dk:dk + l2] for dk in range(K2)], axis=0)  # [70, 13]
        h2 = jnp.dot(w2_ref[...], f2, preferred_element_type=jnp.float32)          # [64, 13]
        h2 = h2 + vec[:, 1:2]                     # folded BN2 shift

        # ---- fc3: Conv1d(64 -> 64, k=5, no bias) as ONE matmul ---------------
        f3 = jnp.concatenate([h2[:, dk:dk + l3] for dk in range(K3)], axis=0)      # [320, 9]
        h3 = jnp.dot(w3_ref[...], f3, preferred_element_type=jnp.float32)          # [64, 9]
        h3 = h3 + vec[:, 2:3]                     # folded BN3 shift

        # ---- mean(dim=2) + Linear(64 -> 1) -----------------------------------
        feat = jnp.mean(h3, axis=1, keepdims=True)                   # [64, 1]
        res = jnp.sum(feat * vec[:, 3:4], keepdims=True)             # [1, 1]  (fc weight)
        res = res + vec[0:1, 4:5]                                    # fc bias
        out_ref[...] = res.reshape(1, 1, 1)

    return kernel


# ---------------------------------------------------------------------------
# Forward: im2col glue (bf16, per-frame padded) -> single fused pallas_call.
# ---------------------------------------------------------------------------
def model_forward(x, kp):
    bs, c, seq_len, w, h = x.shape
    hout, wout = w - 2, h - 2
    n_patch = hout * wout
    frame_pad = _round_up(n_patch, 8)           # 196 -> 200 (sublane aligned)
    ck = c * 9
    ck_pad = kp["wmat"].shape[0]                # 27 -> 32

    # im2col (channel-major tap order, matching wmat), frames padded with zero rows.
    x5 = jnp.transpose(x, (0, 2, 1, 3, 4))                      # [bs, seq, C, W, H]
    taps = jnp.stack([x5[:, :, :, ki:ki + hout, kj:kj + wout]
                      for ki in range(3) for kj in range(3)], axis=3)
    patches = taps.reshape(bs, seq_len, ck, n_patch)
    patches = jnp.transpose(patches, (0, 1, 3, 2))              # [bs, seq, P, ck]
    patches = jnp.pad(patches, ((0, 0), (0, 0),
                                (0, frame_pad - n_patch), (0, ck_pad - ck)))
    patches = patches.reshape(bs, seq_len * frame_pad, ck_pad).astype(jnp.bfloat16)

    kernel = make_fused_kernel(seq_len, frame_pad, n_patch, HIDDEN_1D)
    out = pl.pallas_call(
        kernel,
        out_shape=jax.ShapeDtypeStruct((bs, 1, 1), jnp.float32),
        grid=(bs,),
        in_specs=[
            pl.BlockSpec((1, seq_len * frame_pad, ck_pad), lambda b: (b, 0, 0)),
            pl.BlockSpec(kp["wmat"].shape, lambda b: (0, 0)),
            pl.BlockSpec(kp["w1flat"].shape, lambda b: (0, 0)),
            pl.BlockSpec(kp["s1"].shape, lambda b: (0, 0)),
            pl.BlockSpec(kp["sr"].shape, lambda b: (0, 0)),
            pl.BlockSpec(kp["sc"].shape, lambda b: (0, 0)),
            pl.BlockSpec(kp["w2flat"].shape, lambda b: (0, 0)),
            pl.BlockSpec(kp["w3flat"].shape, lambda b: (0, 0)),
            pl.BlockSpec(kp["vec"].shape, lambda b: (0, 0)),
        ],
        out_specs=pl.BlockSpec((1, 1, 1), lambda b: (b, 0, 0)),
        compiler_params=pltpu.CompilerParams(
            dimension_semantics=("parallel",),          # shards batch over TCs on v7x
            vmem_limit_bytes=32 * 1024 * 1024,          # ~5 MB live; safe on v7x 64 MiB
        ),
    )(patches, kp["wmat"], kp["w1flat"], kp["s1"], kp["sr"], kp["sc"],
      kp["w2flat"], kp["w3flat"], kp["vec"])
    return out.reshape(bs, N_PREDICT)


# ---------------------------------------------------------------------------
# Parameter preprocessing (BN-eval folding + packing, done once in JAX glue).
# ---------------------------------------------------------------------------
def pack_params(params):
    c_in = params["wconv"].shape[1]
    ck = c_in * 9
    ck_pad = _round_up(ck, 8)

    wmat = params["wconv"].reshape(F_FEATURES, ck).T                    # [ck, F]
    wmat = jnp.pad(wmat, ((0, ck_pad - ck), (0, 0))).astype(jnp.bfloat16)

    def fold(wname, g, b, rm, rv):
        scale = g / jnp.sqrt(rv + BN_EPS)
        return params[wname] * scale[:, None, None], b - rm * scale

    w1f, sh1 = fold("w1", params["g1"], params["b1"], params["rm1"], params["rv1"])
    w2f, sh2 = fold("w2", params["g2"], params["b2"], params["rm2"], params["rv2"])
    w3f, sh3 = fold("w3", params["g3"], params["b3"], params["rm3"], params["rv3"])

    # (out, in, k) -> (out, k*in), row index = k*C_in + c_in  (matches in-kernel im2col)
    w1flat = jnp.transpose(w1f, (0, 2, 1)).reshape(w1f.shape[0], -1)    # [32, 13*seq]
    w2flat = jnp.transpose(w2f, (0, 2, 1)).reshape(w2f.shape[0], -1)    # [64, 70]
    w3flat = jnp.transpose(w3f, (0, 2, 1)).reshape(w3f.shape[0], -1)    # [64, 320]

    # exact 0/1 selection matrices: stride-2 column pick + MaxPool2d(3) grid pick
    l1_full = F_FEATURES - K1 + 1
    l1 = (F_FEATURES - K1) // STRIDE1 + 1
    pr = (HIDDEN_1D - 3) // 3 + 1
    pc = (l1 - 3) // 3 + 1
    s1 = (jnp.arange(l1_full)[:, None] == STRIDE1 * jnp.arange(l1)[None, :]).astype(jnp.float32)
    sr = (3 * jnp.arange(pr)[:, None] == jnp.arange(HIDDEN_1D - 2)[None, :]).astype(jnp.float32)
    sc = (jnp.arange(l1 - 2)[:, None] == 3 * jnp.arange(pc)[None, :]).astype(jnp.float32)

    c2 = 2 * HIDDEN_1D
    vec = jnp.zeros((c2, 8), jnp.float32)
    vec = vec.at[:HIDDEN_1D, 0].set(sh1)            # BN1 shift
    vec = vec.at[:, 1].set(sh2)                     # BN2 shift
    vec = vec.at[:, 2].set(sh3)                     # BN3 shift
    vec = vec.at[:, 3].set(params["fcw"][0])        # final Linear weight (64,)
    vec = vec.at[0, 4].set(params["fcb"][0])        # final Linear bias

    return {"wmat": wmat, "w1flat": w1flat, "s1": s1, "sr": sr, "sc": sc,
            "w2flat": w2flat, "w3flat": w3flat, "vec": vec}


# ---------------------------------------------------------------------------
# Deterministic parameter init (shapes implied by the module's __init__)
# ---------------------------------------------------------------------------
def init_params(key, c_in, seq_len):
    ks = jax.random.split(key, 10)
    f, h1 = F_FEATURES, HIDDEN_1D
    c2_in = (h1 - 3) // 3 + 1          # channels after MaxPool2d(3) on the (32, L) plane
    p = {}
    p["wconv"] = 0.05 * jax.random.normal(ks[0], (f, c_in, 3, 3), jnp.float32)
    p["w1"] = 0.05 * jax.random.normal(ks[1], (h1, seq_len, K1), jnp.float32)
    p["w2"] = 0.10 * jax.random.normal(ks[2], (2 * h1, c2_in, K2), jnp.float32)
    p["w3"] = 0.05 * jax.random.normal(ks[3], (2 * h1, 2 * h1, K3), jnp.float32)

    def bn_params(k, c):
        ka, kb, kc, kd = jax.random.split(k, 4)
        g = jax.random.uniform(ka, (c,), jnp.float32, 0.5, 1.5)
        b = 0.1 * jax.random.normal(kb, (c,), jnp.float32)
        rm = 0.1 * jax.random.normal(kc, (c,), jnp.float32)
        rv = jax.random.uniform(kd, (c,), jnp.float32, 0.5, 1.5)
        return g, b, rm, rv

    p["g1"], p["b1"], p["rm1"], p["rv1"] = bn_params(ks[4], h1)
    p["g2"], p["b2"], p["rm2"], p["rv2"] = bn_params(ks[5], 2 * h1)
    p["g3"], p["b3"], p["rm3"], p["rv3"] = bn_params(ks[6], 2 * h1)
    p["fcw"] = 0.1 * jax.random.normal(ks[7], (N_PREDICT, 2 * h1), jnp.float32)
    p["fcb"] = 0.1 * jax.random.normal(ks[8], (N_PREDICT,), jnp.float32)
    return p


# ---------------------------------------------------------------------------
# Pure-JAX reference (independent path: lax.conv / lax.reduce_window, unfused BN)
# ---------------------------------------------------------------------------
def reference_forward(x, params):
    bs, c, seq_len, w, h = x.shape
    n = bs * seq_len
    x4 = jnp.transpose(x, (0, 2, 1, 3, 4)).reshape(n, c, w, h)
    # match the kernel's bf16 backbone inputs (f32 accumulation on both paths)
    xb = x4.astype(jnp.bfloat16).astype(jnp.float32)
    wb = params["wconv"].astype(jnp.bfloat16).astype(jnp.float32)
    feat2d = lax.conv_general_dilated(xb, wb, (1, 1), "VALID",
                                      dimension_numbers=("NCHW", "OIHW", "NCHW"))
    feat2d = jnp.maximum(feat2d, 0.0).mean(axis=(2, 3))               # [N, F]
    f = feat2d.reshape(bs, seq_len, F_FEATURES)

    def conv1d(xx, wgt, stride):
        return lax.conv_general_dilated(xx, wgt, (stride,), "VALID",
                                        dimension_numbers=("NCH", "OIH", "NCH"))

    def bn(hh, g, b, rm, rv):
        g, b, rm, rv = (a.reshape(1, -1, 1) for a in (g, b, rm, rv))
        return (hh - rm) / jnp.sqrt(rv + BN_EPS) * g + b

    h1 = bn(conv1d(f, params["w1"], STRIDE1),
            params["g1"], params["b1"], params["rm1"], params["rv1"])
    pooled = lax.reduce_window(h1, -jnp.inf, lax.max, (1, 3, 3), (1, 3, 3), "VALID")
    h2 = bn(conv1d(pooled, params["w2"], 1),
            params["g2"], params["b2"], params["rm2"], params["rv2"])
    h3 = bn(conv1d(h2, params["w3"], 1),
            params["g3"], params["b3"], params["rm3"], params["rv3"])
    pooled_mean = h3.mean(axis=2)                                     # [bs, 64]
    return pooled_mean @ params["fcw"].T + params["fcb"].reshape(1, -1)


if __name__ == "__main__":
    key = jax.random.PRNGKey(0)
    kx, kp_key = jax.random.split(key)
    bs, c, seq_len, w, h = 2, 3, 31, 16, 16      # seq_len = config.n_frames = 31
    x = jax.random.normal(kx, (bs, c, seq_len, w, h), jnp.float32)
    params = init_params(kp_key, c, seq_len)
    kparams = pack_params(params)

    fwd = jax.jit(lambda xx: model_forward(xx, kparams))
    out = jax.block_until_ready(fwd(x))

    ref = reference_forward(x, params)
    assert out.shape == (bs, N_PREDICT), out.shape
    if not jnp.allclose(out, ref, atol=5e-3, rtol=5e-3):
        raise AssertionError(f"mismatch: pallas={out} ref={ref}")
    print("KERNEL_OK")
</pallas_src>

<mosaic_0001>
module attributes {stable_mosaic.version = 11 : i64} {
  func.func @kernel(%arg0: i32, %arg1: memref<1x6200x32xbf16, #tpu.memory_space<vmem>>, %arg2: memref<32x128xbf16, #tpu.memory_space<vmem>>, %arg3: memref<32x403xf32, #tpu.memory_space<vmem>>, %arg4: memref<116x58xf32, #tpu.memory_space<vmem>>, %arg5: memref<10x30xf32, #tpu.memory_space<vmem>>, %arg6: memref<56x19xf32, #tpu.memory_space<vmem>>, %arg7: memref<64x70xf32, #tpu.memory_space<vmem>>, %arg8: memref<64x320xf32, #tpu.memory_space<vmem>>, %arg9: memref<64x8xf32, #tpu.memory_space<vmem>>, %arg10: memref<1x1x1xf32, #tpu.memory_space<vmem>>) attributes {dimension_semantics = [#tpu.dimension_semantics<parallel>], iteration_bounds = array<i64: 2>, scalar_prefetch = 0 : i64, scratch_operands = 0 : i64, tpu.core_type = #tpu.core_type<tc>, window_params = [{transform_indices = @transform_0, window_bounds = array<i64: 1, 6200, 32>}, {pipeline_mode = #tpu.pipeline_mode<synchronous>, transform_indices = @transform_1, window_bounds = array<i64: 32, 128>}, {pipeline_mode = #tpu.pipeline_mode<synchronous>, transform_indices = @transform_2, window_bounds = array<i64: 32, 403>}, {pipeline_mode = #tpu.pipeline_mode<synchronous>, transform_indices = @transform_3, window_bounds = array<i64: 116, 58>}, {pipeline_mode = #tpu.pipeline_mode<synchronous>, transform_indices = @transform_4, window_bounds = array<i64: 10, 30>}, {pipeline_mode = #tpu.pipeline_mode<synchronous>, transform_indices = @transform_5, window_bounds = array<i64: 56, 19>}, {pipeline_mode = #tpu.pipeline_mode<synchronous>, transform_indices = @transform_6, window_bounds = array<i64: 64, 70>}, {pipeline_mode = #tpu.pipeline_mode<synchronous>, transform_indices = @transform_7, window_bounds = array<i64: 64, 320>}, {pipeline_mode = #tpu.pipeline_mode<synchronous>, transform_indices = @transform_8, window_bounds = array<i64: 64, 8>}, {transform_indices = @transform_9, window_bounds = array<i64: 1, 1, 1>}]} {
    %c0 = arith.constant 0 : index
    %c0_0 = arith.constant 0 : index
    %c0_1 = arith.constant 0 : index
    %0 = vector.load %arg1[%c0, %c0_0, %c0_1] : memref<1x6200x32xbf16, #tpu.memory_space<vmem>>, vector<1x6200x32xbf16>
    %1 = vector.shape_cast %0 : vector<1x6200x32xbf16> to vector<6200x32xbf16>
    %c0_2 = arith.constant 0 : index
    %c0_3 = arith.constant 0 : index
    %2 = vector.load %arg2[%c0_2, %c0_3] : memref<32x128xbf16, #tpu.memory_space<vmem>>, vector<32x128xbf16>
    %cst = arith.constant dense<0.000000e+00> : vector<6200x128xf32>
    %3 = tpu.matmul %1, %2, %cst {dimension_numbers = #tpu.dot_dimension_numbers<[1], [0], [0], [1], [0, 0, 1, 1], [], []>} : vector<6200x32xbf16>, vector<32x128xbf16>, vector<6200x128xf32> -> vector<6200x128xf32>
    %cst_4 = arith.constant 0.000000e+00 : f32
    %4 = vector.broadcast %cst_4 : f32 to vector<6200x128xf32>
    %5 = arith.maximumf %3, %4 : vector<6200x128xf32>
    %6 = vector.extract_strided_slice %5 {offsets = [0, 0], sizes = [200, 128], strides = [1, 1]} : vector<6200x128xf32> to vector<200x128xf32>
    %cst_5 = arith.constant dense<0.000000e+00> : vector<128xf32>
    %7 = vector.multi_reduction <add>, %6, %cst_5 [0] : vector<200x128xf32> to vector<128xf32>
    %8 = vector.shape_cast %7 : vector<128xf32> to vector<1x128xf32>
    %9 = vector.extract_strided_slice %5 {offsets = [200, 0], sizes = [200, 128], strides = [1, 1]} : vector<6200x128xf32> to vector<200x128xf32>
    %cst_6 = arith.constant dense<0.000000e+00> : vector<128xf32>
    %10 = vector.multi_reduction <add>, %9, %cst_6 [0] : vector<200x128xf32> to vector<128xf32>
    %11 = vector.shape_cast %10 : vector<128xf32> to vector<1x128xf32>
    %12 = vector.extract_strided_slice %5 {offsets = [400, 0], sizes = [200, 128], strides = [1, 1]} : vector<6200x128xf32> to vector<200x128xf32>
    %cst_7 = arith.constant dense<0.000000e+00> : vector<128xf32>
    %13 = vector.multi_reduction <add>, %12, %cst_7 [0] : vector<200x128xf32> to vector<128xf32>
    %14 = vector.shape_cast %13 : vector<128xf32> to vector<1x128xf32>
    %15 = vector.extract_strided_slice %5 {offsets = [600, 0], sizes = [200, 128], strides = [1, 1]} : vector<6200x128xf32> to vector<200x128xf32>
    %cst_8 = arith.constant dense<0.000000e+00> : vector<128xf32>
    %16 = vector.multi_reduction <add>, %15, %cst_8 [0] : vector<200x128xf32> to vector<128xf32>
    %17 = vector.shape_cast %16 : vector<128xf32> to vector<1x128xf32>
    %18 = vector.extract_strided_slice %5 {offsets = [800, 0], sizes = [200, 128], strides = [1, 1]} : vector<6200x128xf32> to vector<200x128xf32>
    %cst_9 = arith.constant dense<0.000000e+00> : vector<128xf32>
    %19 = vector.multi_reduction <add>, %18, %cst_9 [0] : vector<200x128xf32> to vector<128xf32>
    %20 = vector.shape_cast %19 : vector<128xf32> to vector<1x128xf32>
    %21 = vector.extract_strided_slice %5 {offsets = [1000, 0], sizes = [200, 128], strides = [1, 1]} : vector<6200x128xf32> to vector<200x128xf32>
    %cst_10 = arith.constant dense<0.000000e+00> : vector<128xf32>
    %22 = vector.multi_reduction <add>, %21, %cst_10 [0] : vector<200x128xf32> to vector<128xf32>
    %23 = vector.shape_cast %22 : vector<128xf32> to vector<1x128xf32>
    %24 = vector.extract_strided_slice %5 {offsets = [1200, 0], sizes = [200, 128], strides = [1, 1]} : vector<6200x128xf32> to vector<200x128xf32>
    %cst_11 = arith.constant dense<0.000000e+00> : vector<128xf32>
    %25 = vector.multi_reduction <add>, %24, %cst_11 [0] : vector<200x128xf32> to vector<128xf32>
    %26 = vector.shape_cast %25 : vector<128xf32> to vector<1x128xf32>
    %27 = vector.extract_strided_slice %5 {offsets = [1400, 0], sizes = [200, 128], strides = [1, 1]} : vector<6200x128xf32> to vector<200x128xf32>
    %cst_12 = arith.constant dense<0.000000e+00> : vector<128xf32>
    %28 = vector.multi_reduction <add>, %27, %cst_12 [0] : vector<200x128xf32> to vector<128xf32>
    %29 = vector.shape_cast %28 : vector<128xf32> to vector<1x128xf32>
    %30 = vector.extract_strided_slice %5 {offsets = [1600, 0], sizes = [200, 128], strides = [1, 1]} : vector<6200x128xf32> to vector<200x128xf32>
    %cst_13 = arith.constant dense<0.000000e+00> : vector<128xf32>
    %31 = vector.multi_reduction <add>, %30, %cst_13 [0] : vector<200x128xf32> to vector<128xf32>
    %32 = vector.shape_cast %31 : vector<128xf32> to vector<1x128xf32>
    %33 = vector.extract_strided_slice %5 {offsets = [1800, 0], sizes = [200, 128], strides = [1, 1]} : vector<6200x128xf32> to vector<200x128xf32>
    %cst_14 = arith.constant dense<0.000000e+00> : vector<128xf32>
    %34 = vector.multi_reduction <add>, %33, %cst_14 [0] : vector<200x128xf32> to vector<128xf32>
    %35 = vector.shape_cast %34 : vector<128xf32> to vector<1x128xf32>
    %36 = vector.extract_strided_slice %5 {offsets = [2000, 0], sizes = [200, 128], strides = [1, 1]} : vector<6200x128xf32> to vector<200x128xf32>
    %cst_15 = arith.constant dense<0.000000e+00> : vector<128xf32>
    %37 = vector.multi_reduction <add>, %36, %cst_15 [0] : vector<200x128xf32> to vector<128xf32>
    %38 = vector.shape_cast %37 : vector<128xf32> to vector<1x128xf32>
    %39 = vector.extract_strided_slice %5 {offsets = [2200, 0], sizes = [200, 128], strides = [1, 1]} : vector<6200x128xf32> to vector<200x128xf32>
    %cst_16 = arith.constant dense<0.000000e+00> : vector<128xf32>
    %40 = vector.multi_reduction <add>, %39, %cst_16 [0] : vector<200x128xf32> to vector<128xf32>
    %41 = vector.shape_cast %40 : vector<128xf32> to vector<1x128xf32>
    %42 = vector.extract_strided_slice %5 {offsets = [2400, 0], sizes = [200, 128], strides = [1, 1]} : vector<6200x128xf32> to vector<200x128xf32>
    %cst_17 = arith.constant dense<0.000000e+00> : vector<128xf32>
    %43 = vector.multi_reduction <add>, %42, %cst_17 [0] : vector<200x128xf32> to vector<128xf32>
    %44 = vector.shape_cast %43 : vector<128xf32> to vector<1x128xf32>
    %45 = vector.extract_strided_slice %5 {offsets = [2600, 0], sizes = [200, 128], strides = [1, 1]} : vector<6200x128xf32> to vector<200x128xf32>
    %cst_18 = arith.constant dense<0.000000e+00> : vector<128xf32>
    %46 = vector.multi_reduction <add>, %45, %cst_18 [0] : vector<200x128xf32> to vector<128xf32>
    %47 = vector.shape_cast %46 : vector<128xf32> to vector<1x128xf32>
    %48 = vector.extract_strided_slice %5 {offsets = [2800, 0], sizes = [200, 128], strides = [1, 1]} : vector<6200x128xf32> to vector<200x128xf32>
    %cst_19 = arith.constant dense<0.000000e+00> : vector<128xf32>
    %49 = vector.multi_reduction <add>, %48, %cst_19 [0] : vector<200x128xf32> to vector<128xf32>
    %50 = vector.shape_cast %49 : vector<128xf32> to vector<1x128xf32>
    %51 = vector.extract_strided_slice %5 {offsets = [3000, 0], sizes = [200, 128], strides = [1, 1]} : vector<6200x128xf32> to vector<200x128xf32>
    %cst_20 = arith.constant dense<0.000000e+00> : vector<128xf32>
    %52 = vector.multi_reduction <add>, %51, %cst_20 [0] : vector<200x128xf32> to vector<128xf32>
    %53 = vector.shape_cast %52 : vector<128xf32> to vector<1x128xf32>
    %54 = vector.extract_strided_slice %5 {offsets = [3200, 0], sizes = [200, 128], strides = [1, 1]} : vector<6200x128xf32> to vector<200x128xf32>
    %cst_21 = arith.constant dense<0.000000e+00> : vector<128xf32>
    %55 = vector.multi_reduction <add>, %54, %cst_21 [0] : vector<200x128xf32> to vector<128xf32>
    %56 = vector.shape_cast %55 : vector<128xf32> to vector<1x128xf32>
    %57 = vector.extract_strided_slice %5 {offsets = [3400, 0], sizes = [200, 128], strides = [1, 1]} : vector<6200x128xf32> to vector<200x128xf32>
    %cst_22 = arith.constant dense<0.000000e+00> : vector<128xf32>
    %58 = vector.multi_reduction <add>, %57, %cst_22 [0] : vector<200x128xf32> to vector<128xf32>
    %59 = vector.shape_cast %58 : vector<128xf32> to vector<1x128xf32>
    %60 = vector.extract_strided_slice %5 {offsets = [3600, 0], sizes = [200, 128], strides = [1, 1]} : vector<6200x128xf32> to vector<200x128xf32>
    %cst_23 = arith.constant dense<0.000000e+00> : vector<128xf32>
    %61 = vector.multi_reduction <add>, %60, %cst_23 [0] : vector<200x128xf32> to vector<128xf32>
    %62 = vector.shape_cast %61 : vector<128xf32> to vector<1x128xf32>
    %63 = vector.extract_strided_slice %5 {offsets = [3800, 0], sizes = [200, 128], strides = [1, 1]} : vector<6200x128xf32> to vector<200x128xf32>
    %cst_24 = arith.constant dense<0.000000e+00> : vector<128xf32>
    %64 = vector.multi_reduction <add>, %63, %cst_24 [0] : vector<200x128xf32> to vector<128xf32>
    %65 = vector.shape_cast %64 : vector<128xf32> to vector<1x128xf32>
    %66 = vector.extract_strided_slice %5 {offsets = [4000, 0], sizes = [200, 128], strides = [1, 1]} : vector<6200x128xf32> to vector<200x128xf32>
    %cst_25 = arith.constant dense<0.000000e+00> : vector<128xf32>
    %67 = vector.multi_reduction <add>, %66, %cst_25 [0] : vector<200x128xf32> to vector<128xf32>
    %68 = vector.shape_cast %67 : vector<128xf32> to vector<1x128xf32>
    %69 = vector.extract_strided_slice %5 {offsets = [4200, 0], sizes = [200, 128], strides = [1, 1]} : vector<6200x128xf32> to vector<200x128xf32>
    %cst_26 = arith.constant dense<0.000000e+00> : vector<128xf32>
    %70 = vector.multi_reduction <add>, %69, %cst_26 [0] : vector<200x128xf32> to vector<128xf32>
    %71 = vector.shape_cast %70 : vector<128xf32> to vector<1x128xf32>
    %72 = vector.extract_strided_slice %5 {offsets = [4400, 0], sizes = [200, 128], strides = [1, 1]} : vector<6200x128xf32> to vector<200x128xf32>
    %cst_27 = arith.constant dense<0.000000e+00> : vector<128xf32>
    %73 = vector.multi_reduction <add>, %72, %cst_27 [0] : vector<200x128xf32> to vector<128xf32>
    %74 = vector.shape_cast %73 : vector<128xf32> to vector<1x128xf32>
    %75 = vector.extract_strided_slice %5 {offsets = [4600, 0], sizes = [200, 128], strides = [1, 1]} : vector<6200x128xf32> to vector<200x128xf32>
    %cst_28 = arith.constant dense<0.000000e+00> : vector<128xf32>
    %76 = vector.multi_reduction <add>, %75, %cst_28 [0] : vector<200x128xf32> to vector<128xf32>
    %77 = vector.shape_cast %76 : vector<128xf32> to vector<1x128xf32>
    %78 = vector.extract_strided_slice %5 {offsets = [4800, 0], sizes = [200, 128], strides = [1, 1]} : vector<6200x128xf32> to vector<200x128xf32>
    %cst_29 = arith.constant dense<0.000000e+00> : vector<128xf32>
    %79 = vector.multi_reduction <add>, %78, %cst_29 [0] : vector<200x128xf32> to vector<128xf32>
    %80 = vector.shape_cast %79 : vector<128xf32> to vector<1x128xf32>
    %81 = vector.extract_strided_slice %5 {offsets = [5000, 0], sizes = [200, 128], strides = [1, 1]} : vector<6200x128xf32> to vector<200x128xf32>
    %cst_30 = arith.constant dense<0.000000e+00> : vector<128xf32>
    %82 = vector.multi_reduction <add>, %81, %cst_30 [0] : vector<200x128xf32> to vector<128xf32>
    %83 = vector.shape_cast %82 : vector<128xf32> to vector<1x128xf32>
    %84 = vector.extract_strided_slice %5 {offsets = [5200, 0], sizes = [200, 128], strides = [1, 1]} : vector<6200x128xf32> to vector<200x128xf32>
    %cst_31 = arith.constant dense<0.000000e+00> : vector<128xf32>
    %85 = vector.multi_reduction <add>, %84, %cst_31 [0] : vector<200x128xf32> to vector<128xf32>
    %86 = vector.shape_cast %85 : vector<128xf32> to vector<1x128xf32>
    %87 = vector.extract_strided_slice %5 {offsets = [5400, 0], sizes = [200, 128], strides = [1, 1]} : vector<6200x128xf32> to vector<200x128xf32>
    %cst_32 = arith.constant dense<0.000000e+00> : vector<128xf32>
    %88 = vector.multi_reduction <add>, %87, %cst_32 [0] : vector<200x128xf32> to vector<128xf32>
    %89 = vector.shape_cast %88 : vector<128xf32> to vector<1x128xf32>
    %90 = vector.extract_strided_slice %5 {offsets = [5600, 0], sizes = [200, 128], strides = [1, 1]} : vector<6200x128xf32> to vector<200x128xf32>
    %cst_33 = arith.constant dense<0.000000e+00> : vector<128xf32>
    %91 = vector.multi_reduction <add>, %90, %cst_33 [0] : vector<200x128xf32> to vector<128xf32>
    %92 = vector.shape_cast %91 : vector<128xf32> to vector<1x128xf32>
    %93 = vector.extract_strided_slice %5 {offsets = [5800, 0], sizes = [200, 128], strides = [1, 1]} : vector<6200x128xf32> to vector<200x128xf32>
    %cst_34 = arith.constant dense<0.000000e+00> : vector<128xf32>
    %94 = vector.multi_reduction <add>, %93, %cst_34 [0] : vector<200x128xf32> to vector<128xf32>
    %95 = vector.shape_cast %94 : vector<128xf32> to vector<1x128xf32>
    %96 = vector.extract_strided_slice %5 {offsets = [6000, 0], sizes = [200, 128], strides = [1, 1]} : vector<6200x128xf32> to vector<200x128xf32>
    %cst_35 = arith.constant dense<0.000000e+00> : vector<128xf32>
    %97 = vector.multi_reduction <add>, %96, %cst_35 [0] : vector<200x128xf32> to vector<128xf32>
    %98 = vector.shape_cast %97 : vector<128xf32> to vector<1x128xf32>
    %99 = tpu.concatenate %8, %11, %14, %17, %20, %23, %26, %29, %32, %35, %38, %41, %44, %47, %50, %53 in 0 : vector<1x128xf32>, vector<1x128xf32>, vector<1x128xf32>, vector<1x128xf32>, vector<1x128xf32>, vector<1x128xf32>, vector<1x128xf32>, vector<1x128xf32>, vector<1x128xf32>, vector<1x128xf32>, vector<1x128xf32>, vector<1x128xf32>, vector<1x128xf32>, vector<1x128xf32>, vector<1x128xf32>, vector<1x128xf32> -> vector<16x128xf32>
    %100 = tpu.concatenate %56, %59, %62, %65, %68, %71, %74, %77, %80, %83, %86, %89, %92, %95, %98 in 0 : vector<1x128xf32>, vector<1x128xf32>, vector<1x128xf32>, vector<1x128xf32>, vector<1x128xf32>, vector<1x128xf32>, vector<1x128xf32>, vector<1x128xf32>, vector<1x128xf32>, vector<1x128xf32>, vector<1x128xf32>, vector<1x128xf32>, vector<1x128xf32>, vector<1x128xf32>, vector<1x128xf32> -> vector<15x128xf32>
    %101 = tpu.concatenate %99, %100 in 0 : vector<16x128xf32>, vector<15x128xf32> -> vector<31x128xf32>
    %cst_36 = arith.constant 0.00510204071 : f32
    %102 = vector.broadcast %cst_36 : f32 to vector<31x128xf32>
    %103 = arith.mulf %101, %102 : vector<31x128xf32>
    %c0_37 = arith.constant 0 : index
    %c0_38 = arith.constant 0 : index
    %104 = vector.load %arg9[%c0_37, %c0_38] : memref<64x8xf32, #tpu.memory_space<vmem>>, vector<64x8xf32>
    %105 = vector.extract_strided_slice %103 {offsets = [0, 0], sizes = [31, 116], strides = [1, 1]} : vector<31x128xf32> to vector<31x116xf32>
    %106 = vector.extract_strided_slice %103 {offsets = [0, 1], sizes = [31, 116], strides = [1, 1]} : vector<31x128xf32> to vector<31x116xf32>
    %107 = vector.extract_strided_slice %103 {offsets = [0, 2], sizes = [31, 116], strides = [1, 1]} : vector<31x128xf32> to vector<31x116xf32>
    %108 = vector.extract_strided_slice %103 {offsets = [0, 3], sizes = [31, 116], strides = [1, 1]} : vector<31x128xf32> to vector<31x116xf32>
    %109 = vector.extract_strided_slice %103 {offsets = [0, 4], sizes = [31, 116], strides = [1, 1]} : vector<31x128xf32> to vector<31x116xf32>
    %110 = vector.extract_strided_slice %103 {offsets = [0, 5], sizes = [31, 116], strides = [1, 1]} : vector<31x128xf32> to vector<31x116xf32>
    %111 = vector.extract_strided_slice %103 {offsets = [0, 6], sizes = [31, 116], strides = [1, 1]} : vector<31x128xf32> to vector<31x116xf32>
    %112 = vector.extract_strided_slice %103 {offsets = [0, 7], sizes = [31, 116], strides = [1, 1]} : vector<31x128xf32> to vector<31x116xf32>
    %113 = vector.extract_strided_slice %103 {offsets = [0, 8], sizes = [31, 116], strides = [1, 1]} : vector<31x128xf32> to vector<31x116xf32>
    %114 = vector.extract_strided_slice %103 {offsets = [0, 9], sizes = [31, 116], strides = [1, 1]} : vector<31x128xf32> to vector<31x116xf32>
    %115 = vector.extract_strided_slice %103 {offsets = [0, 10], sizes = [31, 116], strides = [1, 1]} : vector<31x128xf32> to vector<31x116xf32>
    %116 = vector.extract_strided_slice %103 {offsets = [0, 11], sizes = [31, 116], strides = [1, 1]} : vector<31x128xf32> to vector<31x116xf32>
    %117 = vector.extract_strided_slice %103 {offsets = [0, 12], sizes = [31, 116], strides = [1, 1]} : vector<31x128xf32> to vector<31x116xf32>
    %118 = tpu.concatenate %105, %106, %107, %108, %109, %110, %111, %112, %113, %114, %115, %116, %117 in 0 : vector<31x116xf32>, vector<31x116xf32>, vector<31x116xf32>, vector<31x116xf32>, vector<31x116xf32>, vector<31x116xf32>, vector<31x116xf32>, vector<31x116xf32>, vector<31x116xf32>, vector<31x116xf32>, vector<31x116xf32>, vector<31x116xf32>, vector<31x116xf32> -> vector<403x116xf32>
    %c0_39 = arith.constant 0 : index
    %c0_40 = arith.constant 0 : index
    %119 = vector.load %arg3[%c0_39, %c0_40] : memref<32x403xf32, #tpu.memory_space<vmem>>, vector<32x403xf32>
    %cst_41 = arith.constant dense<0.000000e+00> : vector<32x116xf32>
    %120 = tpu.matmul %119, %118, %cst_41 {dimension_numbers = #tpu.dot_dimension_numbers<[1], [0], [0], [1], [0, 0, 1, 1], [], []>} : vector<32x403xf32>, vector<403x116xf32>, vector<32x116xf32> -> vector<32x116xf32>
    %c0_42 = arith.constant 0 : index
    %c0_43 = arith.constant 0 : index
    %121 = vector.load %arg4[%c0_42, %c0_43] : memref<116x58xf32, #tpu.memory_space<vmem>>, vector<116x58xf32>
    %cst_44 = arith.constant dense<0.000000e+00> : vector<32x58xf32>
    %122 = tpu.matmul %120, %121, %cst_44 {dimension_numbers = #tpu.dot_dimension_numbers<[1], [0], [0], [1], [0, 0, 1, 1], [], []>} : vector<32x116xf32>, vector<116x58xf32>, vector<32x58xf32> -> vector<32x58xf32>
    %123 = vector.extract_strided_slice %104 {offsets = [0, 0], sizes = [32, 1], strides = [1, 1]} : vector<64x8xf32> to vector<32x1xf32>
    %124 = vector.broadcast %123 : vector<32x1xf32> to vector<32x58xf32>
    %125 = arith.addf %122, %124 : vector<32x58xf32>
    %126 = vector.extract_strided_slice %125 {offsets = [0, 0], sizes = [30, 56], strides = [1, 1]} : vector<32x58xf32> to vector<30x56xf32>
    %127 = vector.extract_strided_slice %125 {offsets = [0, 1], sizes = [30, 56], strides = [1, 1]} : vector<32x58xf32> to vector<30x56xf32>
    %128 = arith.maximumf %126, %127 : vector<30x56xf32>
    %129 = vector.extract_strided_slice %125 {offsets = [0, 2], sizes = [30, 56], strides = [1, 1]} : vector<32x58xf32> to vector<30x56xf32>
    %130 = arith.maximumf %128, %129 : vector<30x56xf32>
    %131 = vector.extract_strided_slice %125 {offsets = [1, 0], sizes = [30, 56], strides = [1, 1]} : vector<32x58xf32> to vector<30x56xf32>
    %132 = arith.maximumf %130, %131 : vector<30x56xf32>
    %133 = vector.extract_strided_slice %125 {offsets = [1, 1], sizes = [30, 56], strides = [1, 1]} : vector<32x58xf32> to vector<30x56xf32>
    %134 = arith.maximumf %132, %133 : vector<30x56xf32>
    %135 = vector.extract_strided_slice %125 {offsets = [1, 2], sizes = [30, 56], strides = [1, 1]} : vector<32x58xf32> to vector<30x56xf32>
    %136 = arith.maximumf %134, %135 : vector<30x56xf32>
    %137 = vector.extract_strided_slice %125 {offsets = [2, 0], sizes = [30, 56], strides = [1, 1]} : vector<32x58xf32> to vector<30x56xf32>
    %138 = arith.maximumf %136, %137 : vector<30x56xf32>
    %139 = vector.extract_strided_slice %125 {offsets = [2, 1], sizes = [30, 56], strides = [1, 1]} : vector<32x58xf32> to vector<30x56xf32>
    %140 = arith.maximumf %138, %139 : vector<30x56xf32>
    %141 = vector.extract_strided_slice %125 {offsets = [2, 2], sizes = [30, 56], strides = [1, 1]} : vector<32x58xf32> to vector<30x56xf32>
    %142 = arith.maximumf %140, %141 : vector<30x56xf32>
    %c0_45 = arith.constant 0 : index
    %c0_46 = arith.constant 0 : index
    %143 = vector.load %arg5[%c0_45, %c0_46] : memref<10x30xf32, #tpu.memory_space<vmem>>, vector<10x30xf32>
    %cst_47 = arith.constant dense<0.000000e+00> : vector<10x56xf32>
    %144 = tpu.matmul %143, %142, %cst_47 {dimension_numbers = #tpu.dot_dimension_numbers<[1], [0], [0], [1], [0, 0, 1, 1], [], []>} : vector<10x30xf32>, vector<30x56xf32>, vector<10x56xf32> -> vector<10x56xf32>
    %c0_48 = arith.constant 0 : index
    %c0_49 = arith.constant 0 : index
    %145 = vector.load %arg6[%c0_48, %c0_49] : memref<56x19xf32, #tpu.memory_space<vmem>>, vector<56x19xf32>
    %cst_50 = arith.constant dense<0.000000e+00> : vector<10x19xf32>
    %146 = tpu.matmul %144, %145, %cst_50 {dimension_numbers = #tpu.dot_dimension_numbers<[1], [0], [0], [1], [0, 0, 1, 1], [], []>} : vector<10x56xf32>, vector<56x19xf32>, vector<10x19xf32> -> vector<10x19xf32>
    %147 = vector.extract_strided_slice %146 {offsets = [0, 0], sizes = [10, 13], strides = [1, 1]} : vector<10x19xf32> to vector<10x13xf32>
    %148 = vector.extract_strided_slice %146 {offsets = [0, 1], sizes = [10, 13], strides = [1, 1]} : vector<10x19xf32> to vector<10x13xf32>
    %149 = vector.extract_strided_slice %146 {offsets = [0, 2], sizes = [10, 13], strides = [1, 1]} : vector<10x19xf32> to vector<10x13xf32>
    %150 = vector.extract_strided_slice %146 {offsets = [0, 3], sizes = [10, 13], strides = [1, 1]} : vector<10x19xf32> to vector<10x13xf32>
    %151 = vector.extract_strided_slice %146 {offsets = [0, 4], sizes = [10, 13], strides = [1, 1]} : vector<10x19xf32> to vector<10x13xf32>
    %152 = vector.extract_strided_slice %146 {offsets = [0, 5], sizes = [10, 13], strides = [1, 1]} : vector<10x19xf32> to vector<10x13xf32>
    %153 = vector.extract_strided_slice %146 {offsets = [0, 6], sizes = [10, 13], strides = [1, 1]} : vector<10x19xf32> to vector<10x13xf32>
    %154 = tpu.concatenate %147, %148, %149, %150, %151, %152, %153 in 0 : vector<10x13xf32>, vector<10x13xf32>, vector<10x13xf32>, vector<10x13xf32>, vector<10x13xf32>, vector<10x13xf32>, vector<10x13xf32> -> vector<70x13xf32>
    %c0_51 = arith.constant 0 : index
    %c0_52 = arith.constant 0 : index
    %155 = vector.load %arg7[%c0_51, %c0_52] : memref<64x70xf32, #tpu.memory_space<vmem>>, vector<64x70xf32>
    %cst_53 = arith.constant dense<0.000000e+00> : vector<64x13xf32>
    %156 = tpu.matmul %155, %154, %cst_53 {dimension_numbers = #tpu.dot_dimension_numbers<[1], [0], [0], [1], [0, 0, 1, 1], [], []>} : vector<64x70xf32>, vector<70x13xf32>, vector<64x13xf32> -> vector<64x13xf32>
    %157 = vector.extract_strided_slice %104 {offsets = [0, 1], sizes = [64, 1], strides = [1, 1]} : vector<64x8xf32> to vector<64x1xf32>
    %158 = vector.broadcast %157 : vector<64x1xf32> to vector<64x13xf32>
    %159 = arith.addf %156, %158 : vector<64x13xf32>
    %160 = vector.extract_strided_slice %159 {offsets = [0, 0], sizes = [64, 9], strides = [1, 1]} : vector<64x13xf32> to vector<64x9xf32>
    %161 = vector.extract_strided_slice %159 {offsets = [0, 1], sizes = [64, 9], strides = [1, 1]} : vector<64x13xf32> to vector<64x9xf32>
    %162 = vector.extract_strided_slice %159 {offsets = [0, 2], sizes = [64, 9], strides = [1, 1]} : vector<64x13xf32> to vector<64x9xf32>
    %163 = vector.extract_strided_slice %159 {offsets = [0, 3], sizes = [64, 9], strides = [1, 1]} : vector<64x13xf32> to vector<64x9xf32>
    %164 = vector.extract_strided_slice %159 {offsets = [0, 4], sizes = [64, 9], strides = [1, 1]} : vector<64x13xf32> to vector<64x9xf32>
    %165 = tpu.concatenate %160, %161, %162, %163, %164 in 0 : vector<64x9xf32>, vector<64x9xf32>, vector<64x9xf32>, vector<64x9xf32>, vector<64x9xf32> -> vector<320x9xf32>
    %c0_54 = arith.constant 0 : index
    %c0_55 = arith.constant 0 : index
    %166 = vector.load %arg8[%c0_54, %c0_55] : memref<64x320xf32, #tpu.memory_space<vmem>>, vector<64x320xf32>
    %cst_56 = arith.constant dense<0.000000e+00> : vector<64x9xf32>
    %167 = tpu.matmul %166, %165, %cst_56 {dimension_numbers = #tpu.dot_dimension_numbers<[1], [0], [0], [1], [0, 0, 1, 1], [], []>} : vector<64x320xf32>, vector<320x9xf32>, vector<64x9xf32> -> vector<64x9xf32>
    %168 = vector.extract_strided_slice %104 {offsets = [0, 2], sizes = [64, 1], strides = [1, 1]} : vector<64x8xf32> to vector<64x1xf32>
    %169 = vector.broadcast %168 : vector<64x1xf32> to vector<64x9xf32>
    %170 = arith.addf %167, %169 : vector<64x9xf32>
    %cst_57 = arith.constant dense<0.000000e+00> : vector<64xf32>
    %171 = vector.multi_reduction <add>, %170, %cst_57 [1] : vector<64x9xf32> to vector<64xf32>
    %172 = vector.shape_cast %171 : vector<64xf32> to vector<64x1xf32>
    %cst_58 = arith.constant 9.000000e+00 : f32
    %173 = vector.broadcast %cst_58 : f32 to vector<64x1xf32>
    %174 = arith.divf %172, %173 : vector<64x1xf32>
    %175 = vector.extract_strided_slice %104 {offsets = [0, 3], sizes = [64, 1], strides = [1, 1]} : vector<64x8xf32> to vector<64x1xf32>
    %176 = arith.mulf %174, %175 : vector<64x1xf32>
    %177 = vector.shape_cast %176 : vector<64x1xf32> to vector<1x64x1xf32>
    %cst_59 = arith.constant dense<0.000000e+00> : vector<1xf32>
    %178 = vector.multi_reduction <add>, %177, %cst_59 [1, 2] : vector<1x64x1xf32> to vector<1xf32>
    %179 = vector.shape_cast %178 : vector<1xf32> to vector<1x1x1xf32>
    %180 = vector.extract %179[0, 0, 0] : f32 from vector<1x1x1xf32>
    %181 = vector.broadcast %180 : f32 to vector<1x1xf32>
    %182 = vector.extract_strided_slice %104 {offsets = [0, 4], sizes = [1, 1], strides = [1, 1]} : vector<64x8xf32> to vector<1x1xf32>
    %183 = arith.addf %181, %182 : vector<1x1xf32>
    %184 = vector.shape_cast %183 : vector<1x1xf32> to vector<1x1x1xf32>
    %c0_60 = arith.constant 0 : index
    %c0_61 = arith.constant 0 : index
    %c0_62 = arith.constant 0 : index
    %185 = vector.load %arg10[%c0_60, %c0_61, %c0_62] : memref<1x1x1xf32, #tpu.memory_space<vmem>>, vector<1x1x1xf32>
    tpu.vector_store %arg10[%c0_60, %c0_61, %c0_62], %184 {strides = array<i32>} : memref<1x1x1xf32, #tpu.memory_space<vmem>>, vector<1x1x1xf32>,
    return
  }
  func.func @transform_0(%arg0: i32) -> (i32, i32, i32) {
    %c0_i32 = arith.constant 0 : i32
    %c0_i32_0 = arith.constant 0 : i32
    %c0_i32_1 = arith.constant 0 : i32
    return %arg0, %c0_i32, %c0_i32_0 : i32, i32, i32
  }
  func.func @transform_1(%arg0: i32) -> (i32, i32) {
    %c0_i32 = arith.constant 0 : i32
    %c0_i32_0 = arith.constant 0 : i32
    %c0_i32_1 = arith.constant 0 : i32
    return %c0_i32, %c0_i32_0 : i32, i32
  }
  func.func @transform_2(%arg0: i32) -> (i32, i32) {
    %c0_i32 = arith.constant 0 : i32
    %c0_i32_0 = arith.constant 0 : i32
    %c0_i32_1 = arith.constant 0 : i32
    return %c0_i32, %c0_i32_0 : i32, i32
  }
  func.func @transform_3(%arg0: i32) -> (i32, i32) {
    %c0_i32 = arith.constant 0 : i32
    %c0_i32_0 = arith.constant 0 : i32
    %c0_i32_1 = arith.constant 0 : i32
    return %c0_i32, %c0_i32_0 : i32, i32
  }
  func.func @transform_4(%arg0: i32) -> (i32, i32) {
    %c0_i32 = arith.constant 0 : i32
    %c0_i32_0 = arith.constant 0 : i32
    %c0_i32_1 = arith.constant 0 : i32
    return %c0_i32, %c0_i32_0 : i32, i32
  }
  func.func @transform_5(%arg0: i32) -> (i32, i32) {
    %c0_i32 = arith.constant 0 : i32
    %c0_i32_0 = arith.constant 0 : i32
    %c0_i32_1 = arith.constant 0 : i32
    return %c0_i32, %c0_i32_0 : i32, i32
  }
  func.func @transform_6(%arg0: i32) -> (i32, i32) {
    %c0_i32 = arith.constant 0 : i32
    %c0_i32_0 = arith.constant 0 : i32
    %c0_i32_1 = arith.constant 0 : i32
    return %c0_i32, %c0_i32_0 : i32, i32
  }
  func.func @transform_7(%arg0: i32) -> (i32, i32) {
    %c0_i32 = arith.constant 0 : i32
    %c0_i32_0 = arith.constant 0 : i32
    %c0_i32_1 = arith.constant 0 : i32
    return %c0_i32, %c0_i32_0 : i32, i32
  }
  func.func @transform_8(%arg0: i32) -> (i32, i32) {
    %c0_i32 = arith.constant 0 : i32
    %c0_i32_0 = arith.constant 0 : i32
    %c0_i32_1 = arith.constant 0 : i32
    return %c0_i32, %c0_i32_0 : i32, i32
  }
  func.func @transform_9(%arg0: i32) -> (i32, i32, i32) {
    %c0_i32 = arith.constant 0 : i32
    %c0_i32_0 = arith.constant 0 : i32
    %c0_i32_1 = arith.constant 0 : i32
    return %arg0, %c0_i32, %c0_i32_0 : i32, i32, i32
  }
}

</mosaic_0001>

<llo_original>
// kernel: _lambda_.1
$region0: #{_lambda_.1}
  #allocation0 [shape = 'u32[]', space=smem, size = 0x4, offset = 0x4, fixed_abs, tag = 'smem constant byte address 0x4 - core index']
  #allocation1 [shape = 'u32[144,128]{1,0:T(1,128)}', space=vmem, size = 0x12000, scoped, tag = 'internal scratch']
  %s0 = inlined_call_operand.vmem [shape: bf16[2,6200,32], index: 0, kind: input, shape index: {}]
  %s1 = inlined_call_operand.vmem [shape: bf16[32,128], index: 1, kind: input, shape index: {}]
  %s2 = inlined_call_operand.vmem [shape: f32[32,403], index: 2, kind: input, shape index: {}]
  %s3 = inlined_call_operand.vmem [shape: f32[116,58], index: 3, kind: input, shape index: {}]
  %s4 = inlined_call_operand.vmem [shape: f32[10,30], index: 4, kind: input, shape index: {}]
  %s5 = inlined_call_operand.vmem [shape: f32[56,19], index: 5, kind: input, shape index: {}]
  %s6 = inlined_call_operand.vmem [shape: f32[64,70], index: 6, kind: input, shape index: {}]
  %s7 = inlined_call_operand.vmem [shape: f32[64,320], index: 7, kind: input, shape index: {}]
  %s8 = inlined_call_operand.vmem [shape: f32[64,8], index: 8, kind: input, shape index: {}]
  %s9 = inlined_call_operand.vmem [shape: f32[2,1,1], index: 9, kind: output, shape index: {}]
  %s10 = sld [smem:[#allocation0]]
  $region69: #{_lambda_.1} parent=0
    _
  %s12 = ssub.s32 1, %s10
  %s13 = scalar_select 0, %s12, %s10
  loop: start=0, step=1, limit=4
  $region2: #{_lambda_.1} parent=0 // loop_pre_header
    _
  $region3: #{_lambda_.1} parent=0 // loop_header
    %s15 = sphi 0, %s19
    %p16 = scmp.ge.s32.totalorder %s15, 4
    %s25 = sphi 0, %s27
    %s28 = sphi 0, %s25
    %s29 = sphi 0, %s28
    %s45 = sphi 0, %s29
    %s49 = sphi 0, %s49
    %s51 = sphi 0, %s49
    %s52 = sphi 0, %s51
    %s66 = sphi 0, %s52
    %s70 = sphi 0, %s70
    %s72 = sphi 0, %s70
    %s73 = sphi 0, %s72
    %s87 = sphi 0, %s73
    %s91 = sphi 0, %s91
    %s93 = sphi 0, %s91
    %s94 = sphi 0, %s93
    %s108 = sphi 0, %s94
    %s112 = sphi 0, %s112
    %s114 = sphi 0, %s112
    %s115 = sphi 0, %s114
    %s129 = sphi 0, %s115
    %s133 = sphi 0, %s133
    %s135 = sphi 0, %s133
    %s136 = sphi 0, %s135
    %s150 = sphi 0, %s136
    %s154 = sphi 0, %s154
    %s156 = sphi 0, %s154
    %s157 = sphi 0, %s156
    %s171 = sphi 0, %s157
    %s175 = sphi 0, %s175
    %s177 = sphi 0, %s175
    %s178 = sphi 0, %s177
    %s192 = sphi 0, %s178
    %s196 = sphi 0, %s196
    %s198 = sphi 0, %s196
    %s199 = sphi 0, %s198
    %s213 = sphi 0, %s199
    %s219 = sphi 0, %s221
    %s222 = sphi 0, %s219
    %s223 = sphi 0, %s222
    %s239 = sphi 0, %s223
  $region4: #{_lambda_.1} parent=0 // loop_header_branch
    %18 = sbr.rel (%p16) target = $region8
  $region5: #{_lambda_.1} parent=0 // loop_body
    %s20 = ssub.s32 %s15, 1
    %s21 = ssub.s32 %s15, 2
    %s22 = sadd.s32 %s15, 1
    %s23 = ssub.s32 %s15, %s22
    %p24 = scmp.eq.s32.totalorder %s23, 0
    %s26 = sadd.s32 %s25, 1
    %s27 = scalar_select %p24, %s25, %s26
    %p30 = pneg %p24
    %p31 = scmp.eq.s32.totalorder %s15, 1
    %p32 = por %p30, %p31
    %p33 = scmp.ne.s32.totalorder %s25, %s28
    %p34 = scmp.eq.s32.totalorder %s15, 0
    %p35 = por %p33, %p34
    %p36 = scmp.ne.s32.totalorder %s25, %s28
    %p37 = scmp.eq.s32.totalorder %s20, 1
    %p38 = por %p36, %p37
    %p39 = scmp.ne.s32.totalorder %s28, %s29
    %p40 = scmp.eq.s32.totalorder %s20, 0
    %p41 = por %p39, %p40
    %p42 = scmp.ne.s32.totalorder %s28, %s29
    %p43 = scmp.eq.s32.totalorder %s21, 1
    %p44 = por %p42, %p43
    %p46 = scmp.ne.s32.totalorder %s29, %s45
    %p47 = scmp.eq.s32.totalorder %s21, 0
    %p48 = por %p46, %p47
    %s50 = sadd.s32 %s49, 1
    %p53 = scmp.eq.s32.totalorder %s15, 1
    %p54 = scmp.ne.s32.totalorder %s49, %s51
    %p55 = scmp.eq.s32.totalorder %s15, 0
    %p56 = por %p54, %p55
    %p57 = scmp.ne.s32.totalorder %s49, %s51
    %p58 = scmp.eq.s32.totalorder %s20, 1
    %p59 = por %p57, %p58
    %p60 = scmp.ne.s32.totalorder %s51, %s52
    %p61 = scmp.eq.s32.totalorder %s20, 0
    %p62 = por %p60, %p61
    %p63 = scmp.ne.s32.totalorder %s51, %s52
    %p64 = scmp.eq.s32.totalorder %s21, 1
    %p65 = por %p63, %p64
    %p67 = scmp.ne.s32.totalorder %s52, %s66
    %p68 = scmp.eq.s32.totalorder %s21, 0
    %p69 = por %p67, %p68
    %s71 = sadd.s32 %s70, 1
    %p74 = scmp.eq.s32.totalorder %s15, 1
    %p75 = scmp.ne.s32.totalorder %s70, %s72
    %p76 = scmp.eq.s32.totalorder %s15, 0
    %p77 = por %p75, %p76
    %p78 = scmp.ne.s32.totalorder %s70, %s72
    %p79 = scmp.eq.s32.totalorder %s20, 1
    %p80 = por %p78, %p79
    %p81 = scmp.ne.s32.totalorder %s72, %s73
    %p82 = scmp.eq.s32.totalorder %s20, 0
    %p83 = por %p81, %p82
    %p84 = scmp.ne.s32.totalorder %s72, %s73
    %p85 = scmp.eq.s32.totalorder %s21, 1
    %p86 = por %p84, %p85
    %p88 = scmp.ne.s32.totalorder %s73, %s87
    %p89 = scmp.eq.s32.totalorder %s21, 0
    %p90 = por %p88, %p89
    %s92 = sadd.s32 %s91, 1
    %p95 = scmp.eq.s32.totalorder %s15, 1
    %p96 = scmp.ne.s32.totalorder %s91, %s93
    %p97 = scmp.eq.s32.totalorder %s15, 0
    %p98 = por %p96, %p97
    %p99 = scmp.ne.s32.totalorder %s91, %s93
    %p100 = scmp.eq.s32.totalorder %s20, 1
    %p101 = por %p99, %p100
    %p102 = scmp.ne.s32.totalorder %s93, %s94
    %p103 = scmp.eq.s32.totalorder %s20, 0
    %p104 = por %p102, %p103
    %p105 = scmp.ne.s32.totalorder %s93, %s94
    %p106 = scmp.eq.s32.totalorder %s21, 1
    %p107 = por %p105, %p106
    %p109 = scmp.ne.s32.totalorder %s94, %s108
    %p110 = scmp.eq.s32.totalorder %s21, 0
    %p111 = por %p109, %p110
    %s113 = sadd.s32 %s112, 1
    %p116 = scmp.eq.s32.totalorder %s15, 1
    %p117 = scmp.ne.s32.totalorder %s112, %s114
    %p118 = scmp.eq.s32.totalorder %s15, 0
    %p119 = por %p117, %p118
    %p120 = scmp.ne.s32.totalorder %s112, %s114
    %p121 = scmp.eq.s32.totalorder %s20, 1
    %p122 = por %p120, %p121
    %p123 = scmp.ne.s32.totalorder %s114, %s115
    %p124 = scmp.eq.s32.totalorder %s20, 0
    %p125 = por %p123, %p124
    %p126 = scmp.ne.s32.totalorder %s114, %s115
    %p127 = scmp.eq.s32.totalorder %s21, 1
    %p128 = por %p126, %p127
    %p130 = scmp.ne.s32.totalorder %s115, %s129
    %p131 = scmp.eq.s32.totalorder %s21, 0
    %p132 = por %p130, %p131
    %s134 = sadd.s32 %s133, 1
    %p137 = scmp.eq.s32.totalorder %s15, 1
    %p138 = scmp.ne.s32.totalorder %s133, %s135
    %p139 = scmp.eq.s32.totalorder %s15, 0
    %p140 = por %p138, %p139
    %p141 = scmp.ne.s32.totalorder %s133, %s135
    %p142 = scmp.eq.s32.totalorder %s20, 1
    %p143 = por %p141, %p142
    %p144 = scmp.ne.s32.totalorder %s135, %s136
    %p145 = scmp.eq.s32.totalorder %s20, 0
    %p146 = por %p144, %p145
    %p147 = scmp.ne.s32.totalorder %s135, %s136
    %p148 = scmp.eq.s32.totalorder %s21, 1
    %p149 = por %p147, %p148
    %p151 = scmp.ne.s32.totalorder %s136, %s150
    %p152 = scmp.eq.s32.totalorder %s21, 0
    %p153 = por %p151, %p152
    %s155 = sadd.s32 %s154, 1
    %p158 = scmp.eq.s32.totalorder %s15, 1
    %p159 = scmp.ne.s32.totalorder %s154, %s156
    %p160 = scmp.eq.s32.totalorder %s15, 0
    %p161 = por %p159, %p160
    %p162 = scmp.ne.s32.totalorder %s154, %s156
    %p163 = scmp.eq.s32.totalorder %s20, 1
    %p164 = por %p162, %p163
    %p165 = scmp.ne.s32.totalorder %s156, %s157
    %p166 = scmp.eq.s32.totalorder %s20, 0
    %p167 = por %p165, %p166
    %p168 = scmp.ne.s32.totalorder %s156, %s157
    %p169 = scmp.eq.s32.totalorder %s21, 1
    %p170 = por %p168, %p169
    %p172 = scmp.ne.s32.totalorder %s157, %s171
    %p173 = scmp.eq.s32.totalorder %s21, 0
    %p174 = por %p172, %p173
    %s176 = sadd.s32 %s175, 1
    %p179 = scmp.eq.s32.totalorder %s15, 1
    %p180 = scmp.ne.s32.totalorder %s175, %s177
    %p181 = scmp.eq.s32.totalorder %s15, 0
    %p182 = por %p180, %p181
    %p183 = scmp.ne.s32.totalorder %s175, %s177
    %p184 = scmp.eq.s32.totalorder %s20, 1
    %p185 = por %p183, %p184
    %p186 = scmp.ne.s32.totalorder %s177, %s178
    %p187 = scmp.eq.s32.totalorder %s20, 0
    %p188 = por %p186, %p187
    %p189 = scmp.ne.s32.totalorder %s177, %s178
    %p190 = scmp.eq.s32.totalorder %s21, 1
    %p191 = por %p189, %p190
    %p193 = scmp.ne.s32.totalorder %s178, %s192
    %p194 = scmp.eq.s32.totalorder %s21, 0
    %p195 = por %p193, %p194
    %s197 = sadd.s32 %s196, 1
    %p200 = scmp.eq.s32.totalorder %s15, 1
    %p201 = scmp.ne.s32.totalorder %s196, %s198
    %p202 = scmp.eq.s32.totalorder %s15, 0
    %p203 = por %p201, %p202
    %p204 = scmp.ne.s32.totalorder %s196, %s198
    %p205 = scmp.eq.s32.totalorder %s20, 1
    %p206 = por %p204, %p205
    %p207 = scmp.ne.s32.totalorder %s198, %s199
    %p208 = scmp.eq.s32.totalorder %s20, 0
    %p209 = por %p207, %p208
    %p210 = scmp.ne.s32.totalorder %s198, %s199
    %p211 = scmp.eq.s32.totalorder %s21, 1
    %p212 = por %p210, %p211
    %p214 = scmp.ne.s32.totalorder %s199, %s213
    %p215 = scmp.eq.s32.totalorder %s21, 0
    %p216 = por %p214, %p215
    %s217 = ssub.s32 %s15, %s22
    %p218 = scmp.eq.s32.totalorder %s217, 0
    %s220 = sadd.s32 %s219, 1
    %s221 = scalar_select %p218, %s219, %s220
    %p224 = pneg %p218
    %p225 = scmp.eq.s32.totalorder %s15, 1
    %p226 = por %p224, %p225
    %p227 = scmp.ne.s32.totalorder %s219, %s222
    %p228 = scmp.eq.s32.totalorder %s15, 0
    %p229 = por %p227, %p228
    %p230 = scmp.ne.s32.totalorder %s219, %s222
    %p231 = scmp.eq.s32.totalorder %s20, 1
    %p232 = por %p230, %p231
    %p233 = scmp.ne.s32.totalorder %s222, %s223
    %p234 = scmp.eq.s32.totalorder %s20, 0
    %p235 = por %p233, %p234
    %p236 = scmp.ne.s32.totalorder %s222, %s223
    %p237 = scmp.eq.s32.totalorder %s21, 1
    %p238 = por %p236, %p237
    %p240 = scmp.ne.s32.totalorder %s223, %s239
    %p241 = scmp.eq.s32.totalorder %s21, 0
    %p242 = por %p240, %p241
    %p243 = scmp.le.s32.totalorder 1, %s15
    %p244 = scmp.lt.s32.totalorder %s15, 3
    %p245 = pnand %p243, %p244
    %p246 = pneg %p245
    // Predicated region
    $region9: #{_lambda_.1} parent=5 // pred_check
      _
    $region10: #{_lambda_.1} parent=5 // pred_check_branch
      %248 = sbr.rel (%p245) target = $region12
    $region11: #{_lambda_.1} parent=5 // pred_region
      %s249 = ssub.s32 %s15, 1
      // Predicated region
      $region13: #{_lambda_.1} parent=11 // pred_check
        %p250 = pneg %p62
      $region14: #{_lambda_.1} parent=11 // pred_check_branch
        %252 = sbr.rel (%p250) target = $region16
      $region15: #{_lambda_.1} parent=11 // pred_region
        _
      $region16: #{_lambda_.1} parent=11 // pred_fallthru
        _
      // Predicated region
      $region17: #{_lambda_.1} parent=11 // pred_check
        %p253 = pneg %p83
      $region18: #{_lambda_.1} parent=11 // pred_check_branch
        %255 = sbr.rel (%p253) target = $region20
      $region19: #{_lambda_.1} parent=11 // pred_region
        _
      $region20: #{_lambda_.1} parent=11 // pred_fallthru
        _
      // Predicated region
      $region21: #{_lambda_.1} parent=11 // pred_check
        %p256 = pneg %p104
      $region22: #{_lambda_.1} parent=11 // pred_check_branch
        %258 = sbr.rel (%p256) target = $region24
      $region23: #{_lambda_.1} parent=11 // pred_region
        _
      $region24: #{_lambda_.1} parent=11 // pred_fallthru
        _
      // Predicated region
      $region25: #{_lambda_.1} parent=11 // pred_check
        %p259 = pneg %p125
      $region26: #{_lambda_.1} parent=11 // pred_check_branch
        %261 = sbr.rel (%p259) target = $region28
      $region27: #{_lambda_.1} parent=11 // pred_region
        _
      $region28: #{_lambda_.1} parent=11 // pred_fallthru
        _
      // Predicated region
      $region29: #{_lambda_.1} parent=11 // pred_check
        %p262 = pneg %p146
      $region30: #{_lambda_.1} parent=11 // pred_check_branch
        %264 = sbr.rel (%p262) target = $region32
      $region31: #{_lambda_.1} parent=11 // pred_region
        _
      $region32: #{_lambda_.1} parent=11 // pred_fallthru
        _
      // Predicated region
      $region33: #{_lambda_.1} parent=11 // pred_check
        %p265 = pneg %p167
      $region34: #{_lambda_.1} parent=11 // pred_check_branch
        %267 = sbr.rel (%p265) target = $region36
      $region35: #{_lambda_.1} parent=11 // pred_region
        _
      $region36: #{_lambda_.1} parent=11 // pred_fallthru
        _
      // Predicated region
      $region37: #{_lambda_.1} parent=11 // pred_check
        %p268 = pneg %p188
      $region38: #{_lambda_.1} parent=11 // pred_check_branch
        %270 = sbr.rel (%p268) target = $region40
      $region39: #{_lambda_.1} parent=11 // pred_region
        _
      $region40: #{_lambda_.1} parent=11 // pred_fallthru
        _
      // Predicated region
      $region41: #{_lambda_.1} parent=11 // pred_check
        %p271 = pneg %p209
      $region42: #{_lambda_.1} parent=11 // pred_check_branch
        %273 = sbr.rel (%p271) target = $region44
      $region43: #{_lambda_.1} parent=11 // pred_region
        _
      $region44: #{_lambda_.1} parent=11 // pred_fallthru
        _
    $region12: #{_lambda_.1} parent=5 // pred_fallthru
      _
    %p274 = scmp.lt.s32.totalorder %s15, 2
    // Predicated region
    $region45: #{_lambda_.1} parent=5 // pred_check
      %p275 = pneg %p274
    $region46: #{_lambda_.1} parent=5 // pred_check_branch
      %277 = sbr.rel (%p275) target = $region48
    $region47: #{_lambda_.1} parent=5 // pred_region
      // Predicated region
      $region49: #{_lambda_.1} parent=47 // pred_check
        %p278 = pneg %p35
      $region50: #{_lambda_.1} parent=47 // pred_check_branch
        %280 = sbr.rel (%p278) target = $region52
      $region51: #{_lambda_.1} parent=47 // pred_region
        %p281 = scmp.lt.s32.totalorder %s15, 1
        %s282 = scalar_select %p281, %s15, 1
        %s283 = smul.addr %s282, 775
        %s284 = smul.addr %s283, 4
        %s285 = scalar_lea.vmem %s0, %s284
      $region52: #{_lambda_.1} parent=47 // pred_fallthru
        _
    $region48: #{_lambda_.1} parent=5 // pred_fallthru
      _
    %p286 = scmp.le.s32.totalorder 1, %s15
    %p287 = scmp.lt.s32.totalorder %s15, 3
    %p288 = pnand %p286, %p287
    %p289 = pneg %p288
    // Predicated region
    $region53: #{_lambda_.1} parent=5 // pred_check
      _
    $region54: #{_lambda_.1} parent=5 // pred_check_branch
      %291 = sbr.rel (%p288) target = $region56
    $region55: #{_lambda_.1} parent=5 // pred_region
      %s292 = ssub.s32 %s15, 1
      %p293 = scmp.lt.s32.totalorder %s20, 1
      %s294 = scalar_select %p293, %s20, 1
      %s295 = smul.addr %s294, 775
      %s296 = smul.addr %s295, 4
      %s297 = scalar_lea.vmem %s0, %s296
      %p298 = pneg %p41
      %p299 = pneg %p38
      %p300 = pneg %p62
      %p301 = pneg %p59
      %p302 = pneg %p83
      %p303 = pneg %p80
      %p304 = pneg %p104
      %p305 = pneg %p101
      %p306 = pneg %p125
      %p307 = pneg %p122
      %p308 = pneg %p146
      %p309 = pneg %p143
      %p310 = pneg %p167
      %p311 = pneg %p164
      %p312 = pneg %p188
      %p313 = pneg %p185
      %p314 = pneg %p209
      %p315 = pneg %p206
      %p316 = pneg %p235
      %p317 = pneg %p232
      %p318 = scmp.lt.s32.totalorder %s20, 1
      %s319 = scalar_select %p318, %s20, 1
      %s320 = scalar_lea.vmem %s9, %s319
      %p321 = scmp.lt.s32.totalorder %s20, 1
      %s322 = scalar_select %p321, %s20, 1
      %s323 = smul.addr %s322, 775
      %s324 = smul.addr %s323, 4
      %s325 = scalar_lea.vmem %s0, %s324
      %p326 = scmp.lt.s32.totalorder %s20, 1
      %s327 = scalar_select %p326, %s20, 1
      %s328 = scalar_lea.vmem %s9, %s327
      %v330 = vld [vmem:[%s325] sm:$0xf]
      %v331 = vld [vmem:[%s325 + $0x4] sm:$0xf]
      %v332 = vld [vmem:[%s325 + $0x8] sm:$0xf]
      %v333 = vld [vmem:[%s325 + $0xc] sm:$0xf]
      %v334 = vld [vmem:[%s325 + $0x10] sm:$0xf]
      %v335 = vld [vmem:[%s325 + $0x14] sm:$0xf]
      %v336 = vld [vmem:[%s325 + $0x18] sm:$0xf]
      %v337 = vld [vmem:[%s325 + $0x1c] sm:$0xf]
      %v338 = vld [vmem:[%s325 + $0x20] sm:$0xf]
      %v339 = vld [vmem:[%s325 + $0x24] sm:$0xf]
      %v340 = vld [vmem:[%s325 + $0x28] sm:$0xf]
      %v341 = vld [vmem:[%s325 + $0x2c] sm:$0xf]
      %v342 = vld [vmem:[%s325 + $0x30] sm:$0xf]
      %v343 = vld [vmem:[%s325 + $0x34] sm:$0xf]
      %v344 = vld [vmem:[%s325 + $0x38] sm:$0xf]
      %v345 = vld [vmem:[%s325 + $0x3c] sm:$0xf]
      %v346 = vld [vmem:[%s325 + $0x40] sm:$0xf]
      %v347 = vld [vmem:[%s325 + $0x44] sm:$0xf]
      %v348 = vld [vmem:[%s325 + $0x48] sm:$0xf]
      %v349 = vld [vmem:[%s325 + $0x4c] sm:$0xf]
      %v350 = vld [vmem:[%s325 + $0x50] sm:$0xf]
      %v351 = vld [vmem:[%s325 + $0x54] sm:$0xf]
      %v352 = vld [vmem:[%s325 + $0x58] sm:$0xf]
      %v353 = vld [vmem:[%s325 + $0x5c] sm:$0xf]
      %v354 = vld [vmem:[%s325 + $0x60] sm:$0xf]
      %v355 = vld [vmem:[%s325 + $0x64] sm:$0xf]
      %v356 = vld [vmem:[%s325 + $0x68] sm:$0xf]
      %v357 = vld [vmem:[%s325 + $0x6c] sm:$0xf]
      %v358 = vld [vmem:[%s325 + $0x70] sm:$0xf]
      %v359 = vld [vmem:[%s325 + $0x74] sm:$0xf]
      %v360 = vld [vmem:[%s325 + $0x78] sm:$0xf]
      %v361 = vld [vmem:[%s325 + $0x7c] sm:$0xf]
      %v362 = vld [vmem:[%s325 + $0x80] sm:$0xf]
      %v363 = vld [vmem:[%s325 + $0x84] sm:$0xf]
      %v364 = vld [vmem:[%s325 + $0x88] sm:$0xf]
      %v365 = vld [vmem:[%s325 + $0x8c] sm:$0xf]
      %v366 = vld [vmem:[%s325 + $0x90] sm:$0xf]
      %v367 = vld [vmem:[%s325 + $0x94] sm:$0xf]
      %v368 = vld [vmem:[%s325 + $0x98] sm:$0xf]
      %v369 = vld [vmem:[%s325 + $0x9c] sm:$0xf]
      %v370 = vld [vmem:[%s325 + $0xa0] sm:$0xf]
      %v371 = vld [vmem:[%s325 + $0xa4] sm:$0xf]
      %v372 = vld [vmem:[%s325 + $0xa8] sm:$0xf]
      %v373 = vld [vmem:[%s325 + $0xac] sm:$0xf]
      %v374 = vld [vmem:[%s325 + $0xb0] sm:$0xf]
      %v375 = vld [vmem:[%s325 + $0xb4] sm:$0xf]
      %v376 = vld [vmem:[%s325 + $0xb8] sm:$0xf]
      %v377 = vld [vmem:[%s325 + $0xbc] sm:$0xf]
      %v378 = vld [vmem:[%s325 + $0xc0] sm:$0xf]
      %v379 = vld [vmem:[%s325 + $0xc4] sm:$0xf]
      %v380 = vld [vmem:[%s325 + $0xc8] sm:$0xf]
      %v381 = vld [vmem:[%s325 + $0xcc] sm:$0xf]
      %v382 = vld [vmem:[%s325 + $0xd0] sm:$0xf]
      %v383 = vld [vmem:[%s325 + $0xd4] sm:$0xf]
      %v384 = vld [vmem:[%s325 + $0xd8] sm:$0xf]
      %v385 = vld [vmem:[%s325 + $0xdc] sm:$0xf]
      %v386 = vld [vmem:[%s325 + $0xe0] sm:$0xf]
      %v387 = vld [vmem:[%s325 + $0xe4] sm:$0xf]
      %v388 = vld [vmem:[%s325 + $0xe8] sm:$0xf]
      %v389 = vld [vmem:[%s325 + $0xec] sm:$0xf]
      %v390 = vld [vmem:[%s325 + $0xf0] sm:$0xf]
      %v391 = vld [vmem:[%s325 + $0xf4] sm:$0xf]
      %v392 = vld [vmem:[%s325 + $0xf8] sm:$0xf]
      %v393 = vld [vmem:[%s325 + $0xfc] sm:$0xf]
      %v394 = vld [vmem:[%s325 + $0x100] sm:$0xf]
      %v395 = vld [vmem:[%s325 + $0x104] sm:$0xf]
      %v396 = vld [vmem:[%s325 + $0x108] sm:$0xf]
      %v397 = vld [vmem:[%s325 + $0x10c] sm:$0xf]
      %v398 = vld [vmem:[%s325 + $0x110] sm:$0xf]
      %v399 = vld [vmem:[%s325 + $0x114] sm:$0xf]
      %v400 = vld [vmem:[%s325 + $0x118] sm:$0xf]
      %v401 = vld [vmem:[%s325 + $0x11c] sm:$0xf]
      %v402 = vld [vmem:[%s325 + $0x120] sm:$0xf]
      %v403 = vld [vmem:[%s325 + $0x124] sm:$0xf]
      %v404 = vld [vmem:[%s325 + $0x128] sm:$0xf]
      %v405 = vld [vmem:[%s325 + $0x12c] sm:$0xf]
      %v406 = vld [vmem:[%s325 + $0x130] sm:$0xf]
      %v407 = vld [vmem:[%s325 + $0x134] sm:$0xf]
      %v408 = vld [vmem:[%s325 + $0x138] sm:$0xf]
      %v409 = vld [vmem:[%s325 + $0x13c] sm:$0xf]
      %v410 = vld [vmem:[%s325 + $0x140] sm:$0xf]
      %v411 = vld [vmem:[%s325 + $0x144] sm:$0xf]
      %v412 = vld [vmem:[%s325 + $0x148] sm:$0xf]
      %v413 = vld [vmem:[%s325 + $0x14c] sm:$0xf]
      %v414 = vld [vmem:[%s325 + $0x150] sm:$0xf]
      %v415 = vld [vmem:[%s325 + $0x154] sm:$0xf]
      %v416 = vld [vmem:[%s325 + $0x158] sm:$0xf]
      %v417 = vld [vmem:[%s325 + $0x15c] sm:$0xf]
      %v418 = vld [vmem:[%s325 + $0x160] sm:$0xf]
      %v419 = vld [vmem:[%s325 + $0x164] sm:$0xf]
      %v420 = vld [vmem:[%s325 + $0x168] sm:$0xf]
      %v421 = vld [vmem:[%s325 + $0x16c] sm:$0xf]
      %v422 = vld [vmem:[%s325 + $0x170] sm:$0xf]
      %v423 = vld [vmem:[%s325 + $0x174] sm:$0xf]
      %v424 = vld [vmem:[%s325 + $0x178] sm:$0xf]
      %v425 = vld [vmem:[%s325 + $0x17c] sm:$0xf]
      %v426 = vld [vmem:[%s325 + $0x180] sm:$0xf]
      %v427 = vld [vmem:[%s325 + $0x184] sm:$0xf]
      %v428 = vld [vmem:[%s325 + $0x188] sm:$0xf]
      %v429 = vld [vmem:[%s325 + $0x18c] sm:$0xf]
      %v430 = vld [vmem:[%s325 + $0x190] sm:$0xf]
      %v431 = vld [vmem:[%s325 + $0x194] sm:$0xf]
      %v432 = vld [vmem:[%s325 + $0x198] sm:$0xf]
      %v433 = vld [vmem:[%s325 + $0x19c] sm:$0xf]
      %v434 = vld [vmem:[%s325 + $0x1a0] sm:$0xf]
      %v435 = vld [vmem:[%s325 + $0x1a4] sm:$0xf]
      %v436 = vld [vmem:[%s325 + $0x1a8] sm:$0xf]
      %v437 = vld [vmem:[%s325 + $0x1ac] sm:$0xf]
      %v438 = vld [vmem:[%s325 + $0x1b0] sm:$0xf]
      %v439 = vld [vmem:[%s325 + $0x1b4] sm:$0xf]
      %v440 = vld [vmem:[%s325 + $0x1b8] sm:$0xf]
      %v441 = vld [vmem:[%s325 + $0x1bc] sm:$0xf]
      %v442 = vld [vmem:[%s325 + $0x1c0] sm:$0xf]
      %v443 = vld [vmem:[%s325 + $0x1c4] sm:$0xf]
      %v444 = vld [vmem:[%s325 + $0x1c8] sm:$0xf]
      %v445 = vld [vmem:[%s325 + $0x1cc] sm:$0xf]
      %v446 = vld [vmem:[%s325 + $0x1d0] sm:$0xf]
      %v447 = vld [vmem:[%s325 + $0x1d4] sm:$0xf]
      %v448 = vld [vmem:[%s325 + $0x1d8] sm:$0xf]
      %v449 = vld [vmem:[%s325 + $0x1dc] sm:$0xf]
      %v450 = vld [vmem:[%s325 + $0x1e0] sm:$0xf]
      %v451 = vld [vmem:[%s325 + $0x1e4] sm:$0xf]
      %v452 = vld [vmem:[%s325 + $0x1e8] sm:$0xf]
      %v453 = vld [vmem:[%s325 + $0x1ec] sm:$0xf]
      %v454 = vld [vmem:[%s325 + $0x1f0] sm:$0xf]
      %v455 = vld [vmem:[%s325 + $0x1f4] sm:$0xf]
      %v456 = vld [vmem:[%s325 + $0x1f8] sm:$0xf]
      %v457 = vld [vmem:[%s325 + $0x1fc] sm:$0xf]
      %v458 = vld [vmem:[%s325 + $0x200] sm:$0xf]
      %v459 = vld [vmem:[%s325 + $0x204] sm:$0xf]
      %v460 = vld [vmem:[%s325 + $0x208] sm:$0xf]
      %v461 = vld [vmem:[%s325 + $0x20c] sm:$0xf]
      %v462 = vld [vmem:[%s325 + $0x210] sm:$0xf]
      %v463 = vld [vmem:[%s325 + $0x214] sm:$0xf]
      %v464 = vld [vmem:[%s325 + $0x218] sm:$0xf]
      %v465 = vld [vmem:[%s325 + $0x21c] sm:$0xf]
      %v466 = vld [vmem:[%s325 + $0x220] sm:$0xf]
      %v467 = vld [vmem:[%s325 + $0x224] sm:$0xf]
      %v468 = vld [vmem:[%s325 + $0x228] sm:$0xf]
      %v469 = vld [vmem:[%s325 + $0x22c] sm:$0xf]
      %v470 = vld [vmem:[%s325 + $0x230] sm:$0xf]
      %v471 = vld [vmem:[%s325 + $0x234] sm:$0xf]
      %v472 = vld [vmem:[%s325 + $0x238] sm:$0xf]
      %v473 = vld [vmem:[%s325 + $0x23c] sm:$0xf]
      %v474 = vld [vmem:[%s325 + $0x240] sm:$0xf]
      %v475 = vld [vmem:[%s325 + $0x244] sm:$0xf]
      %v476 = vld [vmem:[%s325 + $0x248] sm:$0xf]
      %v477 = vld [vmem:[%s325 + $0x24c] sm:$0xf]
      %v478 = vld [vmem:[%s325 + $0x250] sm:$0xf]
      %v479 = vld [vmem:[%s325 + $0x254] sm:$0xf]
      %v480 = vld [vmem:[%s325 + $0x258] sm:$0xf]
      %v481 = vld [vmem:[%s325 + $0x25c] sm:$0xf]
      %v482 = vld [vmem:[%s325 + $0x260] sm:$0xf]
      %v483 = vld [vmem:[%s325 + $0x264] sm:$0xf]
      %v484 = vld [vmem:[%s325 + $0x268] sm:$0xf]
      %v485 = vld [vmem:[%s325 + $0x26c] sm:$0xf]
      %v486 = vld [vmem:[%s325 + $0x270] sm:$0xf]
      %v487 = vld [vmem:[%s325 + $0x274] sm:$0xf]
      %v488 = vld [vmem:[%s325 + $0x278] sm:$0xf]
      %v489 = vld [vmem:[%s325 + $0x27c] sm:$0xf]
      %v490 = vld [vmem:[%s325 + $0x280] sm:$0xf]
      %v491 = vld [vmem:[%s325 + $0x284] sm:$0xf]
      %v492 = vld [vmem:[%s325 + $0x288] sm:$0xf]
      %v493 = vld [vmem:[%s325 + $0x28c] sm:$0xf]
      %v494 = vld [vmem:[%s325 + $0x290] sm:$0xf]
      %v495 = vld [vmem:[%s325 + $0x294] sm:$0xf]
      %v496 = vld [vmem:[%s325 + $0x298] sm:$0xf]
      %v497 = vld [vmem:[%s325 + $0x29c] sm:$0xf]
      %v498 = vld [vmem:[%s325 + $0x2a0] sm:$0xf]
      %v499 = vld [vmem:[%s325 + $0x2a4] sm:$0xf]
      %v500 = vld [vmem:[%s325 + $0x2a8] sm:$0xf]
      %v501 = vld [vmem:[%s325 + $0x2ac] sm:$0xf]
      %v502 = vld [vmem:[%s325 + $0x2b0] sm:$0xf]
      %v503 = vld [vmem:[%s325 + $0x2b4] sm:$0xf]
      %v504 = vld [vmem:[%s325 + $0x2b8] sm:$0xf]
      %v505 = vld [vmem:[%s325 + $0x2bc] sm:$0xf]
      %v506 = vld [vmem:[%s325 + $0x2c0] sm:$0xf]
      %v507 = vld [vmem:[%s325 + $0x2c4] sm:$0xf]
      %v508 = vld [vmem:[%s325 + $0x2c8] sm:$0xf]
      %v509 = vld [vmem:[%s325 + $0x2cc] sm:$0xf]
      %v510 = vld [vmem:[%s325 + $0x2d0] sm:$0xf]
      %v511 = vld [vmem:[%s325 + $0x2d4] sm:$0xf]
      %v512 = vld [vmem:[%s325 + $0x2d8] sm:$0xf]
      %v513 = vld [vmem:[%s325 + $0x2dc] sm:$0xf]
      %v514 = vld [vmem:[%s325 + $0x2e0] sm:$0xf]
      %v515 = vld [vmem:[%s325 + $0x2e4] sm:$0xf]
      %v516 = vld [vmem:[%s325 + $0x2e8] sm:$0xf]
      %v517 = vld [vmem:[%s325 + $0x2ec] sm:$0xf]
      %v518 = vld [vmem:[%s325 + $0x2f0] sm:$0xf]
      %v519 = vld [vmem:[%s325 + $0x2f4] sm:$0xf]
      %v520 = vld [vmem:[%s325 + $0x2f8] sm:$0xf]
      %v521 = vld [vmem:[%s325 + $0x2fc] sm:$0xf]
      %v522 = vld [vmem:[%s325 + $0x300] sm:$0xf]
      %v523 = vld [vmem:[%s325 + $0x304] sm:$0xf]
      %v524 = vld [vmem:[%s325 + $0x308] sm:$0xf]
      %v525 = vld [vmem:[%s325 + $0x30c] sm:$0xf]
      %v526 = vld [vmem:[%s325 + $0x310] sm:$0xf]
      %v527 = vld [vmem:[%s325 + $0x314] sm:$0xf]
      %v528 = vld [vmem:[%s325 + $0x318] sm:$0xf]
      %v529 = vld [vmem:[%s325 + $0x31c] sm:$0xf]
      %v530 = vld [vmem:[%s325 + $0x320] sm:$0xf]
      %v531 = vld [vmem:[%s325 + $0x324] sm:$0xf]
      %v532 = vld [vmem:[%s325 + $0x328] sm:$0xf]
      %v533 = vld [vmem:[%s325 + $0x32c] sm:$0xf]
      %v534 = vld [vmem:[%s325 + $0x330] sm:$0xf]
      %v535 = vld [vmem:[%s325 + $0x334] sm:$0xf]
      %v536 = vld [vmem:[%s325 + $0x338] sm:$0xf]
      %v537 = vld [vmem:[%s325 + $0x33c] sm:$0xf]
      %v538 = vld [vmem:[%s325 + $0x340] sm:$0xf]
      %v539 = vld [vmem:[%s325 + $0x344] sm:$0xf]
      %v540 = vld [vmem:[%s325 + $0x348] sm:$0xf]
      %v541 = vld [vmem:[%s325 + $0x34c] sm:$0xf]
      %v542 = vld [vmem:[%s325 + $0x350] sm:$0xf]
      %v543 = vld [vmem:[%s325 + $0x354] sm:$0xf]
      %v544 = vld [vmem:[%s325 + $0x358] sm:$0xf]
      %v545 = vld [vmem:[%s325 + $0x35c] sm:$0xf]
      %v546 = vld [vmem:[%s325 + $0x360] sm:$0xf]
      %v547 = vld [vmem:[%s325 + $0x364] sm:$0xf]
      %v548 = vld [vmem:[%s325 + $0x368] sm:$0xf]
      %v549 = vld [vmem:[%s325 + $0x36c] sm:$0xf]
      %v550 = vld [vmem:[%s325 + $0x370] sm:$0xf]
      %v551 = vld [vmem:[%s325 + $0x374] sm:$0xf]
      %v552 = vld [vmem:[%s325 + $0x378] sm:$0xf]
      %v553 = vld [vmem:[%s325 + $0x37c] sm:$0xf]
      %v554 = vld [vmem:[%s325 + $0x380] sm:$0xf]
      %v555 = vld [vmem:[%s325 + $0x384] sm:$0xf]
      %v556 = vld [vmem:[%s325 + $0x388] sm:$0xf]
      %v557 = vld [vmem:[%s325 + $0x38c] sm:$0xf]
      %v558 = vld [vmem:[%s325 + $0x390] sm:$0xf]
      %v559 = vld [vmem:[%s325 + $0x394] sm:$0xf]
      %v560 = vld [vmem:[%s325 + $0x398] sm:$0xf]
      %v561 = vld [vmem:[%s325 + $0x39c] sm:$0xf]
      %v562 = vld [vmem:[%s325 + $0x3a0] sm:$0xf]
      %v563 = vld [vmem:[%s325 + $0x3a4] sm:$0xf]
      %v564 = vld [vmem:[%s325 + $0x3a8] sm:$0xf]
      %v565 = vld [vmem:[%s325 + $0x3ac] sm:$0xf]
      %v566 = vld [vmem:[%s325 + $0x3b0] sm:$0xf]
      %v567 = vld [vmem:[%s325 + $0x3b4] sm:$0xf]
      %v568 = vld [vmem:[%s325 + $0x3b8] sm:$0xf]
      %v569 = vld [vmem:[%s325 + $0x3bc] sm:$0xf]
      %v570 = vld [vmem:[%s325 + $0x3c0] sm:$0xf]
      %v571 = vld [vmem:[%s325 + $0x3c4] sm:$0xf]
      %v572 = vld [vmem:[%s325 + $0x3c8] sm:$0xf]
      %v573 = vld [vmem:[%s325 + $0x3cc] sm:$0xf]
      %v574 = vld [vmem:[%s325 + $0x3d0] sm:$0xf]
      %v575 = vld [vmem:[%s325 + $0x3d4] sm:$0xf]
      %v576 = vld [vmem:[%s325 + $0x3d8] sm:$0xf]
      %v577 = vld [vmem:[%s325 + $0x3dc] sm:$0xf]
      %v578 = vld [vmem:[%s325 + $0x3e0] sm:$0xf]
      %v579 = vld [vmem:[%s325 + $0x3e4] sm:$0xf]
      %v580 = vld [vmem:[%s325 + $0x3e8] sm:$0xf]
      %v581 = vld [vmem:[%s325 + $0x3ec] sm:$0xf]
      %v582 = vld [vmem:[%s325 + $0x3f0] sm:$0xf]
      %v583 = vld [vmem:[%s325 + $0x3f4] sm:$0xf]
      %v584 = vld [vmem:[%s325 + $0x3f8] sm:$0xf]
      %v585 = vld [vmem:[%s325 + $0x3fc] sm:$0xf]
      %v586 = vld [vmem:[%s325 + $0x400] sm:$0xf]
      %v587 = vld [vmem:[%s325 + $0x404] sm:$0xf]
      %v588 = vld [vmem:[%s325 + $0x408] sm:$0xf]
      %v589 = vld [vmem:[%s325 + $0x40c] sm:$0xf]
      %v590 = vld [vmem:[%s325 + $0x410] sm:$0xf]
      %v591 = vld [vmem:[%s325 + $0x414] sm:$0xf]
      %v592 = vld [vmem:[%s325 + $0x418] sm:$0xf]
      %v593 = vld [vmem:[%s325 + $0x41c] sm:$0xf]
      %v594 = vld [vmem:[%s325 + $0x420] sm:$0xf]
      %v595 = vld [vmem:[%s325 + $0x424] sm:$0xf]
      %v596 = vld [vmem:[%s325 + $0x428] sm:$0xf]
      %v597 = vld [vmem:[%s325 + $0x42c] sm:$0xf]
      %v598 = vld [vmem:[%s325 + $0x430] sm:$0xf]
      %v599 = vld [vmem:[%s325 + $0x434] sm:$0xf]
      %v600 = vld [vmem:[%s325 + $0x438] sm:$0xf]
      %v601 = vld [vmem:[%s325 + $0x43c] sm:$0xf]
      %v602 = vld [vmem:[%s325 + $0x440] sm:$0xf]
      %v603 = vld [vmem:[%s325 + $0x444] sm:$0xf]
      %v604 = vld [vmem:[%s325 + $0x448] sm:$0xf]
      %v605 = vld [vmem:[%s325 + $0x44c] sm:$0xf]
      %v606 = vld [vmem:[%s325 + $0x450] sm:$0xf]
      %v607 = vld [vmem:[%s325 + $0x454] sm:$0xf]
      %v608 = vld [vmem:[%s325 + $0x458] sm:$0xf]
      %v609 = vld [vmem:[%s325 + $0x45c] sm:$0xf]
      %v610 = vld [vmem:[%s325 + $0x460] sm:$0xf]
      %v611 = vld [vmem:[%s325 + $0x464] sm:$0xf]
      %v612 = vld [vmem:[%s325 + $0x468] sm:$0xf]
      %v613 = vld [vmem:[%s325 + $0x46c] sm:$0xf]
      %v614 = vld [vmem:[%s325 + $0x470] sm:$0xf]
      %v615 = vld [vmem:[%s325 + $0x474] sm:$0xf]
      %v616 = vld [vmem:[%s325 + $0x478] sm:$0xf]
      %v617 = vld [vmem:[%s325 + $0x47c] sm:$0xf]
      %v618 = vld [vmem:[%s325 + $0x480] sm:$0xf]
      %v619 = vld [vmem:[%s325 + $0x484] sm:$0xf]
      %v620 = vld [vmem:[%s325 + $0x488] sm:$0xf]
      %v621 = vld [vmem:[%s325 + $0x48c] sm:$0xf]
      %v622 = vld [vmem:[%s325 + $0x490] sm:$0xf]
      %v623 = vld [vmem:[%s325 + $0x494] sm:$0xf]
      %v624 = vld [vmem:[%s325 + $0x498] sm:$0xf]
      %v625 = vld [vmem:[%s325 + $0x49c] sm:$0xf]
      %v626 = vld [vmem:[%s325 + $0x4a0] sm:$0xf]
      %v627 = vld [vmem:[%s325 + $0x4a4] sm:$0xf]
      %v628 = vld [vmem:[%s325 + $0x4a8] sm:$0xf]
      %v629 = vld [vmem:[%s325 + $0x4ac] sm:$0xf]
      %v630 = vld [vmem:[%s325 + $0x4b0] sm:$0xf]
      %v631 = vld [vmem:[%s325 + $0x4b4] sm:$0xf]
      %v632 = vld [vmem:[%s325 + $0x4b8] sm:$0xf]
      %v633 = vld [vmem:[%s325 + $0x4bc] sm:$0xf]
      %v634 = vld [vmem:[%s325 + $0x4c0] sm:$0xf]
      %v635 = vld [vmem:[%s325 + $0x4c4] sm:$0xf]
      %v636 = vld [vmem:[%s325 + $0x4c8] sm:$0xf]
      %v637 = vld [vmem:[%s325 + $0x4cc] sm:$0xf]
      %v638 = vld [vmem:[%s325 + $0x4d0] sm:$0xf]
      %v639 = vld [vmem:[%s325 + $0x4d4] sm:$0xf]
      %v640 = vld [vmem:[%s325 + $0x4d8] sm:$0xf]
      %v641 = vld [vmem:[%s325 + $0x4dc] sm:$0xf]
      %v642 = vld [vmem:[%s325 + $0x4e0] sm:$0xf]
      %v643 = vld [vmem:[%s325 + $0x4e4] sm:$0xf]
      %v644 = vld [vmem:[%s325 + $0x4e8] sm:$0xf]
      %v645 = vld [vmem:[%s325 + $0x4ec] sm:$0xf]
      %v646 = vld [vmem:[%s325 + $0x4f0] sm:$0xf]
      %v647 = vld [vmem:[%s325 + $0x4f4] sm:$0xf]
      %v648 = vld [vmem:[%s325 + $0x4f8] sm:$0xf]
      %v649 = vld [vmem:[%s325 + $0x4fc] sm:$0xf]
      %v650 = vld [vmem:[%s325 + $0x500] sm:$0xf]
      %v651 = vld [vmem:[%s325 + $0x504] sm:$0xf]
      %v652 = vld [vmem:[%s325 + $0x508] sm:$0xf]
      %v653 = vld [vmem:[%s325 + $0x50c] sm:$0xf]
      %v654 = vld [vmem:[%s325 + $0x510] sm:$0xf]
      %v655 = vld [vmem:[%s325 + $0x514] sm:$0xf]
      %v656 = vld [vmem:[%s325 + $0x518] sm:$0xf]
      %v657 = vld [vmem:[%s325 + $0x51c] sm:$0xf]
      %v658 = vld [vmem:[%s325 + $0x520] sm:$0xf]
      %v659 = vld [vmem:[%s325 + $0x524] sm:$0xf]
      %v660 = vld [vmem:[%s325 + $0x528] sm:$0xf]
      %v661 = vld [vmem:[%s325 + $0x52c] sm:$0xf]
      %v662 = vld [vmem:[%s325 + $0x530] sm:$0xf]
      %v663 = vld [vmem:[%s325 + $0x534] sm:$0xf]
      %v664 = vld [vmem:[%s325 + $0x538] sm:$0xf]
      %v665 = vld [vmem:[%s325 + $0x53c] sm:$0xf]
      %v666 = vld [vmem:[%s325 + $0x540] sm:$0xf]
      %v667 = vld [vmem:[%s325 + $0x544] sm:$0xf]
      %v668 = vld [vmem:[%s325 + $0x548] sm:$0xf]
      %v669 = vld [vmem:[%s325 + $0x54c] sm:$0xf]
      %v670 = vld [vmem:[%s325 + $0x550] sm:$0xf]
      %v671 = vld [vmem:[%s325 + $0x554] sm:$0xf]
      %v672 = vld [vmem:[%s325 + $0x558] sm:$0xf]
      %v673 = vld [vmem:[%s325 + $0x55c] sm:$0xf]
      %v674 = vld [vmem:[%s325 + $0x560] sm:$0xf]
      %v675 = vld [vmem:[%s325 + $0x564] sm:$0xf]
      %v676 = vld [vmem:[%s325 + $0x568] sm:$0xf]
      %v677 = vld [vmem:[%s325 + $0x56c] sm:$0xf]
      %v678 = vld [vmem:[%s325 + $0x570] sm:$0xf]
      %v679 = vld [vmem:[%s325 + $0x574] sm:$0xf]
      %v680 = vld [vmem:[%s325 + $0x578] sm:$0xf]
      %v681 = vld [vmem:[%s325 + $0x57c] sm:$0xf]
      %v682 = vld [vmem:[%s325 + $0x580] sm:$0xf]
      %v683 = vld [vmem:[%s325 + $0x584] sm:$0xf]
      %v684 = vld [vmem:[%s325 + $0x588] sm:$0xf]
      %v685 = vld [vmem:[%s325 + $0x58c] sm:$0xf]
      %v686 = vld [vmem:[%s325 + $0x590] sm:$0xf]
      %v687 = vld [vmem:[%s325 + $0x594] sm:$0xf]
      %v688 = vld [vmem:[%s325 + $0x598] sm:$0xf]
      %v689 = vld [vmem:[%s325 + $0x59c] sm:$0xf]
      %v690 = vld [vmem:[%s325 + $0x5a0] sm:$0xf]
      %v691 = vld [vmem:[%s325 + $0x5a4] sm:$0xf]
      %v692 = vld [vmem:[%s325 + $0x5a8] sm:$0xf]
      %v693 = vld [vmem:[%s325 + $0x5ac] sm:$0xf]
      %v694 = vld [vmem:[%s325 + $0x5b0] sm:$0xf]
      %v695 = vld [vmem:[%s325 + $0x5b4] sm:$0xf]
      %v696 = vld [vmem:[%s325 + $0x5b8] sm:$0xf]
      %v697 = vld [vmem:[%s325 + $0x5bc] sm:$0xf]
      %v698 = vld [vmem:[%s325 + $0x5c0] sm:$0xf]
      %v699 = vld [vmem:[%s325 + $0x5c4] sm:$0xf]
      %v700 = vld [vmem:[%s325 + $0x5c8] sm:$0xf]
      %v701 = vld [vmem:[%s325 + $0x5cc] sm:$0xf]
      %v702 = vld [vmem:[%s325 + $0x5d0] sm:$0xf]
      %v703 = vld [vmem:[%s325 + $0x5d4] sm:$0xf]
      %v704 = vld [vmem:[%s325 + $0x5d8] sm:$0xf]
      %v705 = vld [vmem:[%s325 + $0x5dc] sm:$0xf]
      %v706 = vld [vmem:[%s325 + $0x5e0] sm:$0xf]
      %v707 = vld [vmem:[%s325 + $0x5e4] sm:$0xf]
      %v708 = vld [vmem:[%s325 + $0x5e8] sm:$0xf]
      %v709 = vld [vmem:[%s325 + $0x5ec] sm:$0xf]
      %v710 = vld [vmem:[%s325 + $0x5f0] sm:$0xf]
      %v711 = vld [vmem:[%s325 + $0x5f4] sm:$0xf]
      %v712 = vld [vmem:[%s325 + $0x5f8] sm:$0xf]
      %v713 = vld [vmem:[%s325 + $0x5fc] sm:$0xf]
      %v714 = vld [vmem:[%s325 + $0x600] sm:$0xf]
      %v715 = vld [vmem:[%s325 + $0x604] sm:$0xf]
      %v716 = vld [vmem:[%s325 + $0x608] sm:$0xf]
      %v717 = vld [vmem:[%s325 + $0x60c] sm:$0xf]
      %v718 = vld [vmem:[%s325 + $0x610] sm:$0xf]
      %v719 = vld [vmem:[%s325 + $0x614] sm:$0xf]
      %v720 = vld [vmem:[%s325 + $0x618] sm:$0xf]
      %v721 = vld [vmem:[%s325 + $0x61c] sm:$0xf]
      %v722 = vld [vmem:[%s325 + $0x620] sm:$0xf]
      %v723 = vld [vmem:[%s325 + $0x624] sm:$0xf]
      %v724 = vld [vmem:[%s325 + $0x628] sm:$0xf]
      %v725 = vld [vmem:[%s325 + $0x62c] sm:$0xf]
      %v726 = vld [vmem:[%s325 + $0x630] sm:$0xf]
      %v727 = vld [vmem:[%s325 + $0x634] sm:$0xf]
      %v728 = vld [vmem:[%s325 + $0x638] sm:$0xf]
      %v729 = vld [vmem:[%s325 + $0x63c] sm:$0xf]
      %v730 = vld [vmem:[%s325 + $0x640] sm:$0xf]
      %v731 = vld [vmem:[%s325 + $0x644] sm:$0xf]
      %v732 = vld [vmem:[%s325 + $0x648] sm:$0xf]
      %v733 = vld [vmem:[%s325 + $0x64c] sm:$0xf]
      %v734 = vld [vmem:[%s325 + $0x650] sm:$0xf]
      %v735 = vld [vmem:[%s325 + $0x654] sm:$0xf]
      %v736 = vld [vmem:[%s325 + $0x658] sm:$0xf]
      %v737 = vld [vmem:[%s325 + $0x65c] sm:$0xf]
      %v738 = vld [vmem:[%s325 + $0x660] sm:$0xf]
      %v739 = vld [vmem:[%s325 + $0x664] sm:$0xf]
      %v740 = vld [vmem:[%s325 + $0x668] sm:$0xf]
      %v741 = vld [vmem:[%s325 + $0x66c] sm:$0xf]
      %v742 = vld [vmem:[%s325 + $0x670] sm:$0xf]
      %v743 = vld [vmem:[%s325 + $0x674] sm:$0xf]
      %v744 = vld [vmem:[%s325 + $0x678] sm:$0xf]
      %v745 = vld [vmem:[%s325 + $0x67c] sm:$0xf]
      %v746 = vld [vmem:[%s325 + $0x680] sm:$0xf]
      %v747 = vld [vmem:[%s325 + $0x684] sm:$0xf]
      %v748 = vld [vmem:[%s325 + $0x688] sm:$0xf]
      %v749 = vld [vmem:[%s325 + $0x68c] sm:$0xf]
      %v750 = vld [vmem:[%s325 + $0x690] sm:$0xf]
      %v751 = vld [vmem:[%s325 + $0x694] sm:$0xf]
      %v752 = vld [vmem:[%s325 + $0x698] sm:$0xf]
      %v753 = vld [vmem:[%s325 + $0x69c] sm:$0xf]
      %v754 = vld [vmem:[%s325 + $0x6a0] sm:$0xf]
      %v755 = vld [vmem:[%s325 + $0x6a4] sm:$0xf]
      %v756 = vld [vmem:[%s325 + $0x6a8] sm:$0xf]
      %v757 = vld [vmem:[%s325 + $0x6ac] sm:$0xf]
      %v758 = vld [vmem:[%s325 + $0x6b0] sm:$0xf]
      %v759 = vld [vmem:[%s325 + $0x6b4] sm:$0xf]
      %v760 = vld [vmem:[%s325 + $0x6b8] sm:$0xf]
      %v761 = vld [vmem:[%s325 + $0x6bc] sm:$0xf]
      %v762 = vld [vmem:[%s325 + $0x6c0] sm:$0xf]
      %v763 = vld [vmem:[%s325 + $0x6c4] sm:$0xf]
      %v764 = vld [vmem:[%s325 + $0x6c8] sm:$0xf]
      %v765 = vld [vmem:[%s325 + $0x6cc] sm:$0xf]
      %v766 = vld [vmem:[%s325 + $0x6d0] sm:$0xf]
      %v767 = vld [vmem:[%s325 + $0x6d4] sm:$0xf]
      %v768 = vld [vmem:[%s325 + $0x6d8] sm:$0xf]
      %v769 = vld [vmem:[%s325 + $0x6dc] sm:$0xf]
      %v770 = vld [vmem:[%s325 + $0x6e0] sm:$0xf]
      %v771 = vld [vmem:[%s325 + $0x6e4] sm:$0xf]
      %v772 = vld [vmem:[%s325 + $0x6e8] sm:$0xf]
      %v773 = vld [vmem:[%s325 + $0x6ec] sm:$0xf]
      %v774 = vld [vmem:[%s325 + $0x6f0] sm:$0xf]
      %v775 = vld [vmem:[%s325 + $0x6f4] sm:$0xf]
      %v776 = vld [vmem:[%s325 + $0x6f8] sm:$0xf]
      %v777 = vld [vmem:[%s325 + $0x6fc] sm:$0xf]
      %v778 = vld [vmem:[%s325 + $0x700] sm:$0xf]
      %v779 = vld [vmem:[%s325 + $0x704] sm:$0xf]
      %v780 = vld [vmem:[%s325 + $0x708] sm:$0xf]
      %v781 = vld [vmem:[%s325 + $0x70c] sm:$0xf]
      %v782 = vld [vmem:[%s325 + $0x710] sm:$0xf]
      %v783 = vld [vmem:[%s325 + $0x714] sm:$0xf]
      %v784 = vld [vmem:[%s325 + $0x718] sm:$0xf]
      %v785 = vld [vmem:[%s325 + $0x71c] sm:$0xf]
      %v786 = vld [vmem:[%s325 + $0x720] sm:$0xf]
      %v787 = vld [vmem:[%s325 + $0x724] sm:$0xf]
      %v788 = vld [vmem:[%s325 + $0x728] sm:$0xf]
      %v789 = vld [vmem:[%s325 + $0x72c] sm:$0xf]
      %v790 = vld [vmem:[%s325 + $0x730] sm:$0xf]
      %v791 = vld [vmem:[%s325 + $0x734] sm:$0xf]
      %v792 = vld [vmem:[%s325 + $0x738] sm:$0xf]
      %v793 = vld [vmem:[%s325 + $0x73c] sm:$0xf]
      %v794 = vld [vmem:[%s325 + $0x740] sm:$0xf]
      %v795 = vld [vmem:[%s325 + $0x744] sm:$0xf]
      %v796 = vld [vmem:[%s325 + $0x748] sm:$0xf]
      %v797 = vld [vmem:[%s325 + $0x74c] sm:$0xf]
      %v798 = vld [vmem:[%s325 + $0x750] sm:$0xf]
      %v799 = vld [vmem:[%s325 + $0x754] sm:$0xf]
      %v800 = vld [vmem:[%s325 + $0x758] sm:$0xf]
      %v801 = vld [vmem:[%s325 + $0x75c] sm:$0xf]
      %v802 = vld [vmem:[%s325 + $0x760] sm:$0xf]
      %v803 = vld [vmem:[%s325 + $0x764] sm:$0xf]
      %v804 = vld [vmem:[%s325 + $0x768] sm:$0xf]
      %v805 = vld [vmem:[%s325 + $0x76c] sm:$0xf]
      %v806 = vld [vmem:[%s325 + $0x770] sm:$0xf]
      %v807 = vld [vmem:[%s325 + $0x774] sm:$0xf]
      %v808 = vld [vmem:[%s325 + $0x778] sm:$0xf]
      %v809 = vld [vmem:[%s325 + $0x77c] sm:$0xf]
      %v810 = vld [vmem:[%s325 + $0x780] sm:$0xf]
      %v811 = vld [vmem:[%s325 + $0x784] sm:$0xf]
      %v812 = vld [vmem:[%s325 + $0x788] sm:$0xf]
      %v813 = vld [vmem:[%s325 + $0x78c] sm:$0xf]
      %v814 = vld [vmem:[%s325 + $0x790] sm:$0xf]
      %v815 = vld [vmem:[%s325 + $0x794] sm:$0xf]
      %v816 = vld [vmem:[%s325 + $0x798] sm:$0xf]
      %v817 = vld [vmem:[%s325 + $0x79c] sm:$0xf]
      %v818 = vld [vmem:[%s325 + $0x7a0] sm:$0xf]
      %v819 = vld [vmem:[%s325 + $0x7a4] sm:$0xf]
      %v820 = vld [vmem:[%s325 + $0x7a8] sm:$0xf]
      %v821 = vld [vmem:[%s325 + $0x7ac] sm:$0xf]
      %v822 = vld [vmem:[%s325 + $0x7b0] sm:$0xf]
      %v823 = vld [vmem:[%s325 + $0x7b4] sm:$0xf]
      %v824 = vld [vmem:[%s325 + $0x7b8] sm:$0xf]
      %v825 = vld [vmem:[%s325 + $0x7bc] sm:$0xf]
      %v826 = vld [vmem:[%s325 + $0x7c0] sm:$0xf]
      %v827 = vld [vmem:[%s325 + $0x7c4] sm:$0xf]
      %v828 = vld [vmem:[%s325 + $0x7c8] sm:$0xf]
      %v829 = vld [vmem:[%s325 + $0x7cc] sm:$0xf]
      %v830 = vld [vmem:[%s325 + $0x7d0] sm:$0xf]
      %v831 = vld [vmem:[%s325 + $0x7d4] sm:$0xf]
      %v832 = vld [vmem:[%s325 + $0x7d8] sm:$0xf]
      %v833 = vld [vmem:[%s325 + $0x7dc] sm:$0xf]
      %v834 = vld [vmem:[%s325 + $0x7e0] sm:$0xf]
      %v835 = vld [vmem:[%s325 + $0x7e4] sm:$0xf]
      %v836 = vld [vmem:[%s325 + $0x7e8] sm:$0xf]
      %v837 = vld [vmem:[%s325 + $0x7ec] sm:$0xf]
      %v838 = vld [vmem:[%s325 + $0x7f0] sm:$0xf]
      %v839 = vld [vmem:[%s325 + $0x7f4] sm:$0xf]
      %v840 = vld [vmem:[%s325 + $0x7f8] sm:$0xf]
      %v841 = vld [vmem:[%s325 + $0x7fc] sm:$0xf]
      %v842 = vld [vmem:[%s325 + $0x800] sm:$0xf]
      %v843 = vld [vmem:[%s325 + $0x804] sm:$0xf]
      %v844 = vld [vmem:[%s325 + $0x808] sm:$0xf]
      %v845 = vld [vmem:[%s325 + $0x80c] sm:$0xf]
      %v846 = vld [vmem:[%s325 + $0x810] sm:$0xf]
      %v847 = vld [vmem:[%s325 + $0x814] sm:$0xf]
      %v848 = vld [vmem:[%s325 + $0x818] sm:$0xf]
      %v849 = vld [vmem:[%s325 + $0x81c] sm:$0xf]
      %v850 = vld [vmem:[%s325 + $0x820] sm:$0xf]
      %v851 = vld [vmem:[%s325 + $0x824] sm:$0xf]
      %v852 = vld [vmem:[%s325 + $0x828] sm:$0xf]
      %v853 = vld [vmem:[%s325 + $0x82c] sm:$0xf]
      %v854 = vld [vmem:[%s325 + $0x830] sm:$0xf]
      %v855 = vld [vmem:[%s325 + $0x834] sm:$0xf]
      %v856 = vld [vmem:[%s325 + $0x838] sm:$0xf]
      %v857 = vld [vmem:[%s325 + $0x83c] sm:$0xf]
      %v858 = vld [vmem:[%s325 + $0x840] sm:$0xf]
      %v859 = vld [vmem:[%s325 + $0x844] sm:$0xf]
      %v860 = vld [vmem:[%s325 + $0x848] sm:$0xf]
      %v861 = vld [vmem:[%s325 + $0x84c] sm:$0xf]
      %v862 = vld [vmem:[%s325 + $0x850] sm:$0xf]
      %v863 = vld [vmem:[%s325 + $0x854] sm:$0xf]
      %v864 = vld [vmem:[%s325 + $0x858] sm:$0xf]
      %v865 = vld [vmem:[%s325 + $0x85c] sm:$0xf]
      %v866 = vld [vmem:[%s325 + $0x860] sm:$0xf]
      %v867 = vld [vmem:[%s325 + $0x864] sm:$0xf]
      %v868 = vld [vmem:[%s325 + $0x868] sm:$0xf]
      %v869 = vld [vmem:[%s325 + $0x86c] sm:$0xf]
      %v870 = vld [vmem:[%s325 + $0x870] sm:$0xf]
      %v871 = vld [vmem:[%s325 + $0x874] sm:$0xf]
      %v872 = vld [vmem:[%s325 + $0x878] sm:$0xf]
      %v873 = vld [vmem:[%s325 + $0x87c] sm:$0xf]
      %v874 = vld [vmem:[%s325 + $0x880] sm:$0xf]
      %v875 = vld [vmem:[%s325 + $0x884] sm:$0xf]
      %v876 = vld [vmem:[%s325 + $0x888] sm:$0xf]
      %v877 = vld [vmem:[%s325 + $0x88c] sm:$0xf]
      %v878 = vld [vmem:[%s325 + $0x890] sm:$0xf]
      %v879 = vld [vmem:[%s325 + $0x894] sm:$0xf]
      %v880 = vld [vmem:[%s325 + $0x898] sm:$0xf]
      %v881 = vld [vmem:[%s325 + $0x89c] sm:$0xf]
      %v882 = vld [vmem:[%s325 + $0x8a0] sm:$0xf]
      %v883 = vld [vmem:[%s325 + $0x8a4] sm:$0xf]
      %v884 = vld [vmem:[%s325 + $0x8a8] sm:$0xf]
      %v885 = vld [vmem:[%s325 + $0x8ac] sm:$0xf]
      %v886 = vld [vmem:[%s325 + $0x8b0] sm:$0xf]
      %v887 = vld [vmem:[%s325 + $0x8b4] sm:$0xf]
      %v888 = vld [vmem:[%s325 + $0x8b8] sm:$0xf]
      %v889 = vld [vmem:[%s325 + $0x8bc] sm:$0xf]
      %v890 = vld [vmem:[%s325 + $0x8c0] sm:$0xf]
      %v891 = vld [vmem:[%s325 + $0x8c4] sm:$0xf]
      %v892 = vld [vmem:[%s325 + $0x8c8] sm:$0xf]
      %v893 = vld [vmem:[%s325 + $0x8cc] sm:$0xf]
      %v894 = vld [vmem:[%s325 + $0x8d0] sm:$0xf]
      %v895 = vld [vmem:[%s325 + $0x8d4] sm:$0xf]
      %v896 = vld [vmem:[%s325 + $0x8d8] sm:$0xf]
      %v897 = vld [vmem:[%s325 + $0x8dc] sm:$0xf]
      %v898 = vld [vmem:[%s325 + $0x8e0] sm:$0xf]
      %v899 = vld [vmem:[%s325 + $0x8e4] sm:$0xf]
      %v900 = vld [vmem:[%s325 + $0x8e8] sm:$0xf]
      %v901 = vld [vmem:[%s325 + $0x8ec] sm:$0xf]
      %v902 = vld [vmem:[%s325 + $0x8f0] sm:$0xf]
      %v903 = vld [vmem:[%s325 + $0x8f4] sm:$0xf]
      %v904 = vld [vmem:[%s325 + $0x8f8] sm:$0xf]
      %v905 = vld [vmem:[%s325 + $0x8fc] sm:$0xf]
      %v906 = vld [vmem:[%s325 + $0x900] sm:$0xf]
      %v907 = vld [vmem:[%s325 + $0x904] sm:$0xf]
      %v908 = vld [vmem:[%s325 + $0x908] sm:$0xf]
      %v909 = vld [vmem:[%s325 + $0x90c] sm:$0xf]
      %v910 = vld [vmem:[%s325 + $0x910] sm:$0xf]
      %v911 = vld [vmem:[%s325 + $0x914] sm:$0xf]
      %v912 = vld [vmem:[%s325 + $0x918] sm:$0xf]
      %v913 = vld [vmem:[%s325 + $0x91c] sm:$0xf]
      %v914 = vld [vmem:[%s325 + $0x920] sm:$0xf]
      %v915 = vld [vmem:[%s325 + $0x924] sm:$0xf]
      %v916 = vld [vmem:[%s325 + $0x928] sm:$0xf]
      %v917 = vld [vmem:[%s325 + $0x92c] sm:$0xf]
      %v918 = vld [vmem:[%s325 + $0x930] sm:$0xf]
      %v919 = vld [vmem:[%s325 + $0x934] sm:$0xf]
      %v920 = vld [vmem:[%s325 + $0x938] sm:$0xf]
      %v921 = vld [vmem:[%s325 + $0x93c] sm:$0xf]
      %v922 = vld [vmem:[%s325 + $0x940] sm:$0xf]
      %v923 = vld [vmem:[%s325 + $0x944] sm:$0xf]
      %v924 = vld [vmem:[%s325 + $0x948] sm:$0xf]
      %v925 = vld [vmem:[%s325 + $0x94c] sm:$0xf]
      %v926 = vld [vmem:[%s325 + $0x950] sm:$0xf]
      %v927 = vld [vmem:[%s325 + $0x954] sm:$0xf]
      %v928 = vld [vmem:[%s325 + $0x958] sm:$0xf]
      %v929 = vld [vmem:[%s325 + $0x95c] sm:$0xf]
      %v930 = vld [vmem:[%s325 + $0x960] sm:$0xf]
      %v931 = vld [vmem:[%s325 + $0x964] sm:$0xf]
      %v932 = vld [vmem:[%s325 + $0x968] sm:$0xf]
      %v933 = vld [vmem:[%s325 + $0x96c] sm:$0xf]
      %v934 = vld [vmem:[%s325 + $0x970] sm:$0xf]
      %v935 = vld [vmem:[%s325 + $0x974] sm:$0xf]
      %v936 = vld [vmem:[%s325 + $0x978] sm:$0xf]
      %v937 = vld [vmem:[%s325 + $0x97c] sm:$0xf]
      %v938 = vld [vmem:[%s325 + $0x980] sm:$0xf]
      %v939 = vld [vmem:[%s325 + $0x984] sm:$0xf]
      %v940 = vld [vmem:[%s325 + $0x988] sm:$0xf]
      %v941 = vld [vmem:[%s325 + $0x98c] sm:$0xf]
      %v942 = vld [vmem:[%s325 + $0x990] sm:$0xf]
      %v943 = vld [vmem:[%s325 + $0x994] sm:$0xf]
      %v944 = vld [vmem:[%s325 + $0x998] sm:$0xf]
      %v945 = vld [vmem:[%s325 + $0x99c] sm:$0xf]
      %v946 = vld [vmem:[%s325 + $0x9a0] sm:$0xf]
      %v947 = vld [vmem:[%s325 + $0x9a4] sm:$0xf]
      %v948 = vld [vmem:[%s325 + $0x9a8] sm:$0xf]
      %v949 = vld [vmem:[%s325 + $0x9ac] sm:$0xf]
      %v950 = vld [vmem:[%s325 + $0x9b0] sm:$0xf]
      %v951 = vld [vmem:[%s325 + $0x9b4] sm:$0xf]
      %v952 = vld [vmem:[%s325 + $0x9b8] sm:$0xf]
      %v953 = vld [vmem:[%s325 + $0x9bc] sm:$0xf]
      %v954 = vld [vmem:[%s325 + $0x9c0] sm:$0xf]
      %v955 = vld [vmem:[%s325 + $0x9c4] sm:$0xf]
      %v956 = vld [vmem:[%s325 + $0x9c8] sm:$0xf]
      %v957 = vld [vmem:[%s325 + $0x9cc] sm:$0xf]
      %v958 = vld [vmem:[%s325 + $0x9d0] sm:$0xf]
      %v959 = vld [vmem:[%s325 + $0x9d4] sm:$0xf]
      %v960 = vld [vmem:[%s325 + $0x9d8] sm:$0xf]
      %v961 = vld [vmem:[%s325 + $0x9dc] sm:$0xf]
      %v962 = vld [vmem:[%s325 + $0x9e0] sm:$0xf]
      %v963 = vld [vmem:[%s325 + $0x9e4] sm:$0xf]
      %v964 = vld [vmem:[%s325 + $0x9e8] sm:$0xf]
      %v965 = vld [vmem:[%s325 + $0x9ec] sm:$0xf]
      %v966 = vld [vmem:[%s325 + $0x9f0] sm:$0xf]
      %v967 = vld [vmem:[%s325 + $0x9f4] sm:$0xf]
      %v968 = vld [vmem:[%s325 + $0x9f8] sm:$0xf]
      %v969 = vld [vmem:[%s325 + $0x9fc] sm:$0xf]
      %v970 = vld [vmem:[%s325 + $0xa00] sm:$0xf]
      %v971 = vld [vmem:[%s325 + $0xa04] sm:$0xf]
      %v972 = vld [vmem:[%s325 + $0xa08] sm:$0xf]
      %v973 = vld [vmem:[%s325 + $0xa0c] sm:$0xf]
      %v974 = vld [vmem:[%s325 + $0xa10] sm:$0xf]
      %v975 = vld [vmem:[%s325 + $0xa14] sm:$0xf]
      %v976 = vld [vmem:[%s325 + $0xa18] sm:$0xf]
      %v977 = vld [vmem:[%s325 + $0xa1c] sm:$0xf]
      %v978 = vld [vmem:[%s325 + $0xa20] sm:$0xf]
      %v979 = vld [vmem:[%s325 + $0xa24] sm:$0xf]
      %v980 = vld [vmem:[%s325 + $0xa28] sm:$0xf]
      %v981 = vld [vmem:[%s325 + $0xa2c] sm:$0xf]
      %v982 = vld [vmem:[%s325 + $0xa30] sm:$0xf]
      %v983 = vld [vmem:[%s325 + $0xa34] sm:$0xf]
      %v984 = vld [vmem:[%s325 + $0xa38] sm:$0xf]
      %v985 = vld [vmem:[%s325 + $0xa3c] sm:$0xf]
      %v986 = vld [vmem:[%s325 + $0xa40] sm:$0xf]
      %v987 = vld [vmem:[%s325 + $0xa44] sm:$0xf]
      %v988 = vld [vmem:[%s325 + $0xa48] sm:$0xf]
      %v989 = vld [vmem:[%s325 + $0xa4c] sm:$0xf]
      %v990 = vld [vmem:[%s325 + $0xa50] sm:$0xf]
      %v991 = vld [vmem:[%s325 + $0xa54] sm:$0xf]
      %v992 = vld [vmem:[%s325 + $0xa58] sm:$0xf]
      %v993 = vld [vmem:[%s325 + $0xa5c] sm:$0xf]
      %v994 = vld [vmem:[%s325 + $0xa60] sm:$0xf]
      %v995 = vld [vmem:[%s325 + $0xa64] sm:$0xf]
      %v996 = vld [vmem:[%s325 + $0xa68] sm:$0xf]
      %v997 = vld [vmem:[%s325 + $0xa6c] sm:$0xf]
      %v998 = vld [vmem:[%s325 + $0xa70] sm:$0xf]
      %v999 = vld [vmem:[%s325 + $0xa74] sm:$0xf]
      %v1000 = vld [vmem:[%s325 + $0xa78] sm:$0xf]
      %v1001 = vld [vmem:[%s325 + $0xa7c] sm:$0xf]
      %v1002 = vld [vmem:[%s325 + $0xa80] sm:$0xf]
      %v1003 = vld [vmem:[%s325 + $0xa84] sm:$0xf]
      %v1004 = vld [vmem:[%s325 + $0xa88] sm:$0xf]
      %v1005 = vld [vmem:[%s325 + $0xa8c] sm:$0xf]
      %v1006 = vld [vmem:[%s325 + $0xa90] sm:$0xf]
      %v1007 = vld [vmem:[%s325 + $0xa94] sm:$0xf]
      %v1008 = vld [vmem:[%s325 + $0xa98] sm:$0xf]
      %v1009 = vld [vmem:[%s325 + $0xa9c] sm:$0xf]
      %v1010 = vld [vmem:[%s325 + $0xaa0] sm:$0xf]
      %v1011 = vld [vmem:[%s325 + $0xaa4] sm:$0xf]
      %v1012 = vld [vmem:[%s325 + $0xaa8] sm:$0xf]
      %v1013 = vld [vmem:[%s325 + $0xaac] sm:$0xf]
      %v1014 = vld [vmem:[%s325 + $0xab0] sm:$0xf]
      %v1015 = vld [vmem:[%s325 + $0xab4] sm:$0xf]
      %v1016 = vld [vmem:[%s325 + $0xab8] sm:$0xf]
      %v1017 = vld [vmem:[%s325 + $0xabc] sm:$0xf]
      %v1018 = vld [vmem:[%s325 + $0xac0] sm:$0xf]
      %v1019 = vld [vmem:[%s325 + $0xac4] sm:$0xf]
      %v1020 = vld [vmem:[%s325 + $0xac8] sm:$0xf]
      %v1021 = vld [vmem:[%s325 + $0xacc] sm:$0xf]
      %v1022 = vld [vmem:[%s325 + $0xad0] sm:$0xf]
      %v1023 = vld [vmem:[%s325 + $0xad4] sm:$0xf]
      %v1024 = vld [vmem:[%s325 + $0xad8] sm:$0xf]
      %v1025 = vld [vmem:[%s325 + $0xadc] sm:$0xf]
      %v1026 = vld [vmem:[%s325 + $0xae0] sm:$0xf]
      %v1027 = vld [vmem:[%s325 + $0xae4] sm:$0xf]
      %v1028 = vld [vmem:[%s325 + $0xae8] sm:$0xf]
      %v1029 = vld [vmem:[%s325 + $0xaec] sm:$0xf]
      %v1030 = vld [vmem:[%s325 + $0xaf0] sm:$0xf]
      %v1031 = vld [vmem:[%s325 + $0xaf4] sm:$0xf]
      %v1032 = vld [vmem:[%s325 + $0xaf8] sm:$0xf]
      %v1033 = vld [vmem:[%s325 + $0xafc] sm:$0xf]
      %v1034 = vld [vmem:[%s325 + $0xb00] sm:$0xf]
      %v1035 = vld [vmem:[%s325 + $0xb04] sm:$0xf]
      %v1036 = vld [vmem:[%s325 + $0xb08] sm:$0xf]
      %v1037 = vld [vmem:[%s325 + $0xb0c] sm:$0xf]
      %v1038 = vld [vmem:[%s325 + $0xb10] sm:$0xf]
      %v1039 = vld [vmem:[%s325 + $0xb14] sm:$0xf]
      %v1040 = vld [vmem:[%s325 + $0xb18] sm:$0xf]
      %v1041 = vld [vmem:[%s325 + $0xb1c] sm:$0xf]
      %v1042 = vld [vmem:[%s325 + $0xb20] sm:$0xf]
      %v1043 = vld [vmem:[%s325 + $0xb24] sm:$0xf]
      %v1044 = vld [vmem:[%s325 + $0xb28] sm:$0xf]
      %v1045 = vld [vmem:[%s325 + $0xb2c] sm:$0xf]
      %v1046 = vld [vmem:[%s325 + $0xb30] sm:$0xf]
      %v1047 = vld [vmem:[%s325 + $0xb34] sm:$0xf]
      %v1048 = vld [vmem:[%s325 + $0xb38] sm:$0xf]
      %v1049 = vld [vmem:[%s325 + $0xb3c] sm:$0xf]
      %v1050 = vld [vmem:[%s325 + $0xb40] sm:$0xf]
      %v1051 = vld [vmem:[%s325 + $0xb44] sm:$0xf]
      %v1052 = vld [vmem:[%s325 + $0xb48] sm:$0xf]
      %v1053 = vld [vmem:[%s325 + $0xb4c] sm:$0xf]
      %v1054 = vld [vmem:[%s325 + $0xb50] sm:$0xf]
      %v1055 = vld [vmem:[%s325 + $0xb54] sm:$0xf]
      %v1056 = vld [vmem:[%s325 + $0xb58] sm:$0xf]
      %v1057 = vld [vmem:[%s325 + $0xb5c] sm:$0xf]
      %v1058 = vld [vmem:[%s325 + $0xb60] sm:$0xf]
      %v1059 = vld [vmem:[%s325 + $0xb64] sm:$0xf]
      %v1060 = vld [vmem:[%s325 + $0xb68] sm:$0xf]
      %v1061 = vld [vmem:[%s325 + $0xb6c] sm:$0xf]
      %v1062 = vld [vmem:[%s325 + $0xb70] sm:$0xf]
      %v1063 = vld [vmem:[%s325 + $0xb74] sm:$0xf]
      %v1064 = vld [vmem:[%s325 + $0xb78] sm:$0xf]
      %v1065 = vld [vmem:[%s325 + $0xb7c] sm:$0xf]
      %v1066 = vld [vmem:[%s325 + $0xb80] sm:$0xf]
      %v1067 = vld [vmem:[%s325 + $0xb84] sm:$0xf]
      %v1068 = vld [vmem:[%s325 + $0xb88] sm:$0xf]
      %v1069 = vld [vmem:[%s325 + $0xb8c] sm:$0xf]
      %v1070 = vld [vmem:[%s325 + $0xb90] sm:$0xf]
      %v1071 = vld [vmem:[%s325 + $0xb94] sm:$0xf]
      %v1072 = vld [vmem:[%s325 + $0xb98] sm:$0xf]
      %v1073 = vld [vmem:[%s325 + $0xb9c] sm:$0xf]
      %v1074 = vld [vmem:[%s325 + $0xba0] sm:$0xf]
      %v1075 = vld [vmem:[%s325 + $0xba4] sm:$0xf]
      %v1076 = vld [vmem:[%s325 + $0xba8] sm:$0xf]
      %v1077 = vld [vmem:[%s325 + $0xbac] sm:$0xf]
      %v1078 = vld [vmem:[%s325 + $0xbb0] sm:$0xf]
      %v1079 = vld [vmem:[%s325 + $0xbb4] sm:$0xf]
      %v1080 = vld [vmem:[%s325 + $0xbb8] sm:$0xf]
      %v1081 = vld [vmem:[%s325 + $0xbbc] sm:$0xf]
      %v1082 = vld [vmem:[%s325 + $0xbc0] sm:$0xf]
      %v1083 = vld [vmem:[%s325 + $0xbc4] sm:$0xf]
      %v1084 = vld [vmem:[%s325 + $0xbc8] sm:$0xf]
      %v1085 = vld [vmem:[%s325 + $0xbcc] sm:$0xf]
      %v1086 = vld [vmem:[%s325 + $0xbd0] sm:$0xf]
      %v1087 = vld [vmem:[%s325 + $0xbd4] sm:$0xf]
      %v1088 = vld [vmem:[%s325 + $0xbd8] sm:$0xf]
      %v1089 = vld [vmem:[%s325 + $0xbdc] sm:$0xf]
      %v1090 = vld [vmem:[%s325 + $0xbe0] sm:$0xf]
      %v1091 = vld [vmem:[%s325 + $0xbe4] sm:$0xf]
      %v1092 = vld [vmem:[%s325 + $0xbe8] sm:$0xf]
      %v1093 = vld [vmem:[%s325 + $0xbec] sm:$0xf]
      %v1094 = vld [vmem:[%s325 + $0xbf0] sm:$0xf]
      %v1095 = vld [vmem:[%s325 + $0xbf4] sm:$0xf]
      %v1096 = vld [vmem:[%s325 + $0xbf8] sm:$0xf]
      %v1097 = vld [vmem:[%s325 + $0xbfc] sm:$0xf]
      %v1098 = vld [vmem:[%s325 + $0xc00] sm:$0xf]
      %v1099 = vld [vmem:[%s325 + $0xc04] sm:$0xf]
      %v1100 = vld [vmem:[%s325 + $0xc08] sm:$0xf]
      %v1101 = vld [vmem:[%s325 + $0xc0c] sm:$0xf]
      %v1102 = vld [vmem:[%s325 + $0xc10] sm:$0xf]
      %v1103 = vld [vmem:[%s325 + $0xc14] sm:$0xf]
      %v1104 = vld [vmem:[%s325 + $0xc18] sm:$0xf]
      %v1105 = vld [vmem:[%s1] sm:$0xf]
      %v1106 = vld [vmem:[%s1 + $0x4] sm:$0xf]
      %v1107 = vld [vmem:[%s1 + $0x8] sm:$0xf]
      %v1108 = vld [vmem:[%s1 + $0xc] sm:$0xf]
      %v1884 = vunpack.c.l.b16 %v330
      %v1885 = vunpack.c.l.b16 %v331
      %v1886 = vunpack.c.l.b16 %v332
      %v1887 = vunpack.c.l.b16 %v333
      %v1888 = vunpack.c.l.b16 %v334
      %v1889 = vunpack.c.l.b16 %v335
      %v1890 = vunpack.c.l.b16 %v336
      %v1891 = vunpack.c.l.b16 %v337
      %v1892 = vunpack.c.l.b16 %v338
      %v1893 = vunpack.c.l.b16 %v339
      %v1894 = vunpack.c.l.b16 %v340
      %v1895 = vunpack.c.l.b16 %v341
      %v1896 = vunpack.c.l.b16 %v342
      %v1897 = vunpack.c.l.b16 %v343
      %v1898 = vunpack.c.l.b16 %v344
      %v1899 = vunpack.c.l.b16 %v345
      %v1900 = vunpack.c.l.b16 %v346
      %v1901 = vunpack.c.l.b16 %v347
      %v1902 = vunpack.c.l.b16 %v348
      %v1903 = vunpack.c.l.b16 %v349
      %v1904 = vunpack.c.l.b16 %v350
      %v1905 = vunpack.c.l.b16 %v351
      %v1906 = vunpack.c.l.b16 %v352
      %v1907 = vunpack.c.l.b16 %v353
      %v1908 = vunpack.c.l.b16 %v354
      %v1909 = vunpack.c.l.b16 %v355
      %v1910 = vunpack.c.l.b16 %v356
      %v1911 = vunpack.c.l.b16 %v357
      %v1912 = vunpack.c.l.b16 %v358
      %v1913 = vunpack.c.l.b16 %v359
      %v1914 = vunpack.c.l.b16 %v360
      %v1915 = vunpack.c.l.b16 %v361
      %v1916 = vunpack.c.l.b16 %v362
      %v1917 = vunpack.c.l.b16 %v363
      %v1918 = vunpack.c.l.b16 %v364
      %v1919 = vunpack.c.l.b16 %v365
      %v1920 = vunpack.c.l.b16 %v366
      %v1921 = vunpack.c.l.b16 %v367
      %v1922 = vunpack.c.l.b16 %v368
      %v1923 = vunpack.c.l.b16 %v369
      %v1924 = vunpack.c.l.b16 %v370
      %v1925 = vunpack.c.l.b16 %v371
      %v1926 = vunpack.c.l.b16 %v372
      %v1927 = vunpack.c.l.b16 %v373
      %v1928 = vunpack.c.l.b16 %v374
      %v1929 = vunpack.c.l.b16 %v375
      %v1930 = vunpack.c.l.b16 %v376
      %v1931 = vunpack.c.l.b16 %v377
      %v1932 = vunpack.c.l.b16 %v378
      %v1933 = vunpack.c.l.b16 %v379
      %v1934 = vunpack.c.l.b16 %v380
      %v1935 = vunpack.c.l.b16 %v381
      %v1936 = vunpack.c.l.b16 %v382
      %v1937 = vunpack.c.l.b16 %v383
      %v1938 = vunpack.c.l.b16 %v384
      %v1939 = vunpack.c.l.b16 %v385
      %v1940 = vunpack.c.l.b16 %v386
      %v1941 = vunpack.c.l.b16 %v387
      %v1942 = vunpack.c.l.b16 %v388
      %v1943 = vunpack.c.l.b16 %v389
      %v1944 = vunpack.c.l.b16 %v390
      %v1945 = vunpack.c.l.b16 %v391
      %v1946 = vunpack.c.l.b16 %v392
      %v1947 = vunpack.c.l.b16 %v393
      %v1948 = vunpack.c.l.b16 %v394
      %v1949 = vunpack.c.l.b16 %v395
      %v1950 = vunpack.c.l.b16 %v396
      %v1951 = vunpack.c.l.b16 %v397
      %v1952 = vunpack.c.l.b16 %v398
      %v1953 = vunpack.c.l.b16 %v399
      %v1954 = vunpack.c.l.b16 %v400
      %v1955 = vunpack.c.l.b16 %v401
      %v1956 = vunpack.c.l.b16 %v402
      %v1957 = vunpack.c.l.b16 %v403
      %v1958 = vunpack.c.l.b16 %v404
      %v1959 = vunpack.c.l.b16 %v405
      %v1960 = vunpack.c.l.b16 %v406
      %v1961 = vunpack.c.l.b16 %v407
      %v1962 = vunpack.c.l.b16 %v408
      %v1963 = vunpack.c.l.b16 %v409
      %v1964 = vunpack.c.l.b16 %v410
      %v1965 = vunpack.c.l.b16 %v411
      %v1966 = vunpack.c.l.b16 %v412
      %v1967 = vunpack.c.l.b16 %v413
      %v1968 = vunpack.c.l.b16 %v414
      %v1969 = vunpack.c.l.b16 %v415
      %v1970 = vunpack.c.l.b16 %v416
      %v1971 = vunpack.c.l.b16 %v417
      %v1972 = vunpack.c.l.b16 %v418
      %v1973 = vunpack.c.l.b16 %v419
      %v1974 = vunpack.c.l.b16 %v420
      %v1975 = vunpack.c.l.b16 %v421
      %v1976 = vunpack.c.l.b16 %v422
      %v1977 = vunpack.c.l.b16 %v423
      %v1978 = vunpack.c.l.b16 %v424
      %v1979 = vunpack.c.l.b16 %v425
      %v1980 = vunpack.c.l.b16 %v426
      %v1981 = vunpack.c.l.b16 %v427
      %v1982 = vunpack.c.l.b16 %v428
      %v1983 = vunpack.c.l.b16 %v429
      %v1984 = vunpack.c.l.b16 %v430
      %v1985 = vunpack.c.l.b16 %v431
      %v1986 = vunpack.c.l.b16 %v432
      %v1987 = vunpack.c.l.b16 %v433
      %v1988 = vunpack.c.l.b16 %v434
      %v1989 = vunpack.c.l.b16 %v435
      %v1990 = vunpack.c.l.b16 %v436
      %v1991 = vunpack.c.l.b16 %v437
      %v1992 = vunpack.c.l.b16 %v438
      %v1993 = vunpack.c.l.b16 %v439
      %v1994 = vunpack.c.l.b16 %v440
      %v1995 = vunpack.c.l.b16 %v441
      %v1996 = vunpack.c.l.b16 %v442
      %v1997 = vunpack.c.l.b16 %v443
      %v1998 = vunpack.c.l.b16 %v444
      %v1999 = vunpack.c.l.b16 %v445
      %v2000 = vunpack.c.l.b16 %v446
      %v2001 = vunpack.c.l.b16 %v447
      %v2002 = vunpack.c.l.b16 %v448
      %v2003 = vunpack.c.l.b16 %v449
      %v2004 = vunpack.c.l.b16 %v450
      %v2005 = vunpack.c.l.b16 %v451
      %v2006 = vunpack.c.l.b16 %v452
      %v2007 = vunpack.c.l.b16 %v453
      %v2008 = vunpack.c.l.b16 %v454
      %v2009 = vunpack.c.l.b16 %v455
      %v2010 = vunpack.c.l.b16 %v456
      %v2011 = vunpack.c.l.b16 %v457
      %v2012 = vunpack.c.l.b16 %v458
      %v2013 = vunpack.c.l.b16 %v459
      %v2014 = vunpack.c.l.b16 %v460
      %v2015 = vunpack.c.l.b16 %v461
      %v2016 = vunpack.c.l.b16 %v462
      %v2017 = vunpack.c.l.b16 %v463
      %v2018 = vunpack.c.l.b16 %v464
      %v2019 = vunpack.c.l.b16 %v465
      %v2020 = vunpack.c.l.b16 %v466
      %v2021 = vunpack.c.l.b16 %v467
      %v2022 = vunpack.c.l.b16 %v468
      %v2023 = vunpack.c.l.b16 %v469
      %v2024 = vunpack.c.l.b16 %v470
      %v2025 = vunpack.c.l.b16 %v471
      %v2026 = vunpack.c.l.b16 %v472
      %v2027 = vunpack.c.l.b16 %v473
      %v2028 = vunpack.c.l.b16 %v474
      %v2029 = vunpack.c.l.b16 %v475
      %v2030 = vunpack.c.l.b16 %v476
      %v2031 = vunpack.c.l.b16 %v477
      %v2032 = vunpack.c.l.b16 %v478
      %v2033 = vunpack.c.l.b16 %v479
      %v2034 = vunpack.c.l.b16 %v480
      %v2035 = vunpack.c.l.b16 %v481
      %v2036 = vunpack.c.l.b16 %v482
      %v2037 = vunpack.c.l.b16 %v483
      %v2038 = vunpack.c.l.b16 %v484
      %v2039 = vunpack.c.l.b16 %v485
      %v2040 = vunpack.c.l.b16 %v486
      %v2041 = vunpack.c.l.b16 %v487
      %v2042 = vunpack.c.l.b16 %v488
      %v2043 = vunpack.c.l.b16 %v489
      %v2044 = vunpack.c.l.b16 %v490
      %v2045 = vunpack.c.l.b16 %v491
      %v2046 = vunpack.c.l.b16 %v492
      %v2047 = vunpack.c.l.b16 %v493
      %v2048 = vunpack.c.l.b16 %v494
      %v2049 = vunpack.c.l.b16 %v495
      %v2050 = vunpack.c.l.b16 %v496
      %v2051 = vunpack.c.l.b16 %v497
      %v2052 = vunpack.c.l.b16 %v498
      %v2053 = vunpack.c.l.b16 %v499
      %v2054 = vunpack.c.l.b16 %v500
      %v2055 = vunpack.c.l.b16 %v501
      %v2056 = vunpack.c.l.b16 %v502
      %v2057 = vunpack.c.l.b16 %v503
      %v2058 = vunpack.c.l.b16 %v504
      %v2059 = vunpack.c.l.b16 %v505
      %v2060 = vunpack.c.l.b16 %v506
      %v2061 = vunpack.c.l.b16 %v507
      %v2062 = vunpack.c.l.b16 %v508
      %v2063 = vunpack.c.l.b16 %v509
      %v2064 = vunpack.c.l.b16 %v510
      %v2065 = vunpack.c.l.b16 %v511
      %v2066 = vunpack.c.l.b16 %v512
      %v2067 = vunpack.c.l.b16 %v513
      %v2068 = vunpack.c.l.b16 %v514
      %v2069 = vunpack.c.l.b16 %v515
      %v2070 = vunpack.c.l.b16 %v516
      %v2071 = vunpack.c.l.b16 %v517
      %v2072 = vunpack.c.l.b16 %v518
      %v2073 = vunpack.c.l.b16 %v519
      %v2074 = vunpack.c.l.b16 %v520
      %v2075 = vunpack.c.l.b16 %v521
      %v2076 = vunpack.c.l.b16 %v522
      %v2077 = vunpack.c.l.b16 %v523
      %v2078 = vunpack.c.l.b16 %v524
      %v2079 = vunpack.c.l.b16 %v525
      %v2080 = vunpack.c.l.b16 %v526
      %v2081 = vunpack.c.l.b16 %v527
      %v2082 = vunpack.c.l.b16 %v528
      %v2083 = vunpack.c.l.b16 %v529
      %v2084 = vunpack.c.l.b16 %v530
      %v2085 = vunpack.c.l.b16 %v531
      %v2086 = vunpack.c.l.b16 %v532
      %v2087 = vunpack.c.l.b16 %v533
      %v2088 = vunpack.c.l.b16 %v534
      %v2089 = vunpack.c.l.b16 %v535
      %v2090 = vunpack.c.l.b16 %v536
      %v2091 = vunpack.c.l.b16 %v537
      %v2092 = vunpack.c.l.b16 %v538
      %v2093 = vunpack.c.l.b16 %v539
      %v2094 = vunpack.c.l.b16 %v540
      %v2095 = vunpack.c.l.b16 %v541
      %v2096 = vunpack.c.l.b16 %v542
      %v2097 = vunpack.c.l.b16 %v543
      %v2098 = vunpack.c.l.b16 %v544
      %v2099 = vunpack.c.l.b16 %v545
      %v2100 = vunpack.c.l.b16 %v546
      %v2101 = vunpack.c.l.b16 %v547
      %v2102 = vunpack.c.l.b16 %v548
      %v2103 = vunpack.c.l.b16 %v549
      %v2104 = vunpack.c.l.b16 %v550
      %v2105 = vunpack.c.l.b16 %v551
      %v2106 = vunpack.c.l.b16 %v552
      %v2107 = vunpack.c.l.b16 %v553
      %v2108 = vunpack.c.l.b16 %v554
      %v2109 = vunpack.c.l.b16 %v555
      %v2110 = vunpack.c.l.b16 %v556
      %v2111 = vunpack.c.l.b16 %v557
      %v2112 = vunpack.c.l.b16 %v558
      %v2113 = vunpack.c.l.b16 %v559
      %v2114 = vunpack.c.l.b16 %v560
      %v2115 = vunpack.c.l.b16 %v561
      %v2116 = vunpack.c.l.b16 %v562
      %v2117 = vunpack.c.l.b16 %v563
      %v2118 = vunpack.c.l.b16 %v564
      %v2119 = vunpack.c.l.b16 %v565
      %v2120 = vunpack.c.l.b16 %v566
      %v2121 = vunpack.c.l.b16 %v567
      %v2122 = vunpack.c.l.b16 %v568
      %v2123 = vunpack.c.l.b16 %v569
      %v2124 = vunpack.c.l.b16 %v570
      %v2125 = vunpack.c.l.b16 %v571
      %v2126 = vunpack.c.l.b16 %v572
      %v2127 = vunpack.c.l.b16 %v573
      %v2128 = vunpack.c.l.b16 %v574
      %v2129 = vunpack.c.l.b16 %v575
      %v2130 = vunpack.c.l.b16 %v576
      %v2131 = vunpack.c.l.b16 %v577
      %v2132 = vunpack.c.l.b16 %v578
      %v2133 = vunpack.c.l.b16 %v579
      %v2134 = vunpack.c.l.b16 %v580
      %v2135 = vunpack.c.l.b16 %v581
      %v2136 = vunpack.c.l.b16 %v582
      %v2137 = vunpack.c.l.b16 %v583
      %v2138 = vunpack.c.l.b16 %v584
      %v2139 = vunpack.c.l.b16 %v585
      %v2140 = vunpack.c.l.b16 %v586
      %v2141 = vunpack.c.l.b16 %v587
      %v2142 = vunpack.c.l.b16 %v588
      %v2143 = vunpack.c.l.b16 %v589
      %v2144 = vunpack.c.l.b16 %v590
      %v2145 = vunpack.c.l.b16 %v591
      %v2146 = vunpack.c.l.b16 %v592
      %v2147 = vunpack.c.l.b16 %v593
      %v2148 = vunpack.c.l.b16 %v594
      %v2149 = vunpack.c.l.b16 %v595
      %v2150 = vunpack.c.l.b16 %v596
      %v2151 = vunpack.c.l.b16 %v597
      %v2152 = vunpack.c.l.b16 %v598
      %v2153 = vunpack.c.l.b16 %v599
      %v2154 = vunpack.c.l.b16 %v600
      %v2155 = vunpack.c.l.b16 %v601
      %v2156 = vunpack.c.l.b16 %v602
      %v2157 = vunpack.c.l.b16 %v603
      %v2158 = vunpack.c.l.b16 %v604
      %v2159 = vunpack.c.l.b16 %v605
      %v2160 = vunpack.c.l.b16 %v606
      %v2161 = vunpack.c.l.b16 %v607
      %v2162 = vunpack.c.l.b16 %v608
      %v2163 = vunpack.c.l.b16 %v609
      %v2164 = vunpack.c.l.b16 %v610
      %v2165 = vunpack.c.l.b16 %v611
      %v2166 = vunpack.c.l.b16 %v612
      %v2167 = vunpack.c.l.b16 %v613
      %v2168 = vunpack.c.l.b16 %v614
      %v2169 = vunpack.c.l.b16 %v615
      %v2170 = vunpack.c.l.b16 %v616
      %v2171 = vunpack.c.l.b16 %v617
      %v2172 = vunpack.c.l.b16 %v618
      %v2173 = vunpack.c.l.b16 %v619
      %v2174 = vunpack.c.l.b16 %v620
      %v2175 = vunpack.c.l.b16 %v621
      %v2176 = vunpack.c.l.b16 %v622
      %v2177 = vunpack.c.l.b16 %v623
      %v2178 = vunpack.c.l.b16 %v624
      %v2179 = vunpack.c.l.b16 %v625
      %v2180 = vunpack.c.l.b16 %v626
      %v2181 = vunpack.c.l.b16 %v627
      %v2182 = vunpack.c.l.b16 %v628
      %v2183 = vunpack.c.l.b16 %v629
      %v2184 = vunpack.c.l.b16 %v630
      %v2185 = vunpack.c.l.b16 %v631
      %v2186 = vunpack.c.l.b16 %v632
      %v2187 = vunpack.c.l.b16 %v633
      %v2188 = vunpack.c.l.b16 %v634
      %v2189 = vunpack.c.l.b16 %v635
      %v2190 = vunpack.c.l.b16 %v636
      %v2191 = vunpack.c.l.b16 %v637
      %v2192 = vunpack.c.l.b16 %v638
      %v2193 = vunpack.c.l.b16 %v639
      %v2194 = vunpack.c.l.b16 %v640
      %v2195 = vunpack.c.l.b16 %v641
      %v2196 = vunpack.c.l.b16 %v642
      %v2197 = vunpack.c.l.b16 %v643
      %v2198 = vunpack.c.l.b16 %v644
      %v2199 = vunpack.c.l.b16 %v645
      %v2200 = vunpack.c.l.b16 %v646
      %v2201 = vunpack.c.l.b16 %v647
      %v2202 = vunpack.c.l.b16 %v648
      %v2203 = vunpack.c.l.b16 %v649
      %v2204 = vunpack.c.l.b16 %v650
      %v2205 = vunpack.c.l.b16 %v651
      %v2206 = vunpack.c.l.b16 %v652
      %v2207 = vunpack.c.l.b16 %v653
      %v2208 = vunpack.c.l.b16 %v654
      %v2209 = vunpack.c.l.b16 %v655
      %v2210 = vunpack.c.l.b16 %v656
      %v2211 = vunpack.c.l.b16 %v657
      %v2212 = vunpack.c.l.b16 %v658
      %v2213 = vunpack.c.l.b16 %v659
      %v2214 = vunpack.c.l.b16 %v660
      %v2215 = vunpack.c.l.b16 %v661
      %v2216 = vunpack.c.l.b16 %v662
      %v2217 = vunpack.c.l.b16 %v663
      %v2218 = vunpack.c.l.b16 %v664
      %v2219 = vunpack.c.l.b16 %v665
      %v2220 = vunpack.c.l.b16 %v666
      %v2221 = vunpack.c.l.b16 %v667
      %v2222 = vunpack.c.l.b16 %v668
      %v2223 = vunpack.c.l.b16 %v669
      %v2224 = vunpack.c.l.b16 %v670
      %v2225 = vunpack.c.l.b16 %v671
      %v2226 = vunpack.c.l.b16 %v672
      %v2227 = vunpack.c.l.b16 %v673
      %v2228 = vunpack.c.l.b16 %v674
      %v2229 = vunpack.c.l.b16 %v675
      %v2230 = vunpack.c.l.b16 %v676
      %v2231 = vunpack.c.l.b16 %v677
      %v2232 = vunpack.c.l.b16 %v678
      %v2233 = vunpack.c.l.b16 %v679
      %v2234 = vunpack.c.l.b16 %v680
      %v2235 = vunpack.c.l.b16 %v681
      %v2236 = vunpack.c.l.b16 %v682
      %v2237 = vunpack.c.l.b16 %v683
      %v2238 = vunpack.c.l.b16 %v684
      %v2239 = vunpack.c.l.b16 %v685
      %v2240 = vunpack.c.l.b16 %v686
      %v2241 = vunpack.c.l.b16 %v687
      %v2242 = vunpack.c.l.b16 %v688
      %v2243 = vunpack.c.l.b16 %v689
      %v2244 = vunpack.c.l.b16 %v690
      %v2245 = vunpack.c.l.b16 %v691
      %v2246 = vunpack.c.l.b16 %v692
      %v2247 = vunpack.c.l.b16 %v693
      %v2248 = vunpack.c.l.b16 %v694
      %v2249 = vunpack.c.l.b16 %v695
      %v2250 = vunpack.c.l.b16 %v696
      %v2251 = vunpack.c.l.b16 %v697
      %v2252 = vunpack.c.l.b16 %v698
      %v2253 = vunpack.c.l.b16 %v699
      %v2254 = vunpack.c.l.b16 %v700
      %v2255 = vunpack.c.l.b16 %v701
      %v2256 = vunpack.c.l.b16 %v702
      %v2257 = vunpack.c.l.b16 %v703
      %v2258 = vunpack.c.l.b16 %v704
      %v2259 = vunpack.c.l.b16 %v705
      %v2260 = vunpack.c.l.b16 %v706
      %v2261 = vunpack.c.l.b16 %v707
      %v2262 = vunpack.c.l.b16 %v708
      %v2263 = vunpack.c.l.b16 %v709
      %v2264 = vunpack.c.l.b16 %v710
      %v2265 = vunpack.c.l.b16 %v711
      %v2266 = vunpack.c.l.b16 %v712
      %v2267 = vunpack.c.l.b16 %v713
      %v2268 = vunpack.c.l.b16 %v714
      %v2269 = vunpack.c.l.b16 %v715
      %v2270 = vunpack.c.l.b16 %v716
      %v2271 = vunpack.c.l.b16 %v717
      %v2272 = vunpack.c.l.b16 %v718
      %v2273 = vunpack.c.l.b16 %v719
      %v2274 = vunpack.c.l.b16 %v720
      %v2275 = vunpack.c.l.b16 %v721
      %v2276 = vunpack.c.l.b16 %v722
      %v2277 = vunpack.c.l.b16 %v723
      %v2278 = vunpack.c.l.b16 %v724
      %v2279 = vunpack.c.l.b16 %v725
      %v2280 = vunpack.c.l.b16 %v726
      %v2281 = vunpack.c.l.b16 %v727
      %v2282 = vunpack.c.l.b16 %v728
      %v2283 = vunpack.c.l.b16 %v729
      %v2284 = vunpack.c.l.b16 %v730
      %v2285 = vunpack.c.l.b16 %v731
      %v2286 = vunpack.c.l.b16 %v732
      %v2287 = vunpack.c.l.b16 %v733
      %v2288 = vunpack.c.l.b16 %v734
      %v2289 = vunpack.c.l.b16 %v735
      %v2290 = vunpack.c.l.b16 %v736
      %v2291 = vunpack.c.l.b16 %v737
      %v2292 = vunpack.c.l.b16 %v738
      %v2293 = vunpack.c.l.b16 %v739
      %v2294 = vunpack.c.l.b16 %v740
      %v2295 = vunpack.c.l.b16 %v741
      %v2296 = vunpack.c.l.b16 %v742
      %v2297 = vunpack.c.l.b16 %v743
      %v2298 = vunpack.c.l.b16 %v744
      %v2299 = vunpack.c.l.b16 %v745
      %v2300 = vunpack.c.l.b16 %v746
      %v2301 = vunpack.c.l.b16 %v747
      %v2302 = vunpack.c.l.b16 %v748
      %v2303 = vunpack.c.l.b16 %v749
      %v2304 = vunpack.c.l.b16 %v750
      %v2305 = vunpack.c.l.b16 %v751
      %v2306 = vunpack.c.l.b16 %v752
      %v2307 = vunpack.c.l.b16 %v753
      %v2308 = vunpack.c.l.b16 %v754
      %v2309 = vunpack.c.l.b16 %v755
      %v2310 = vunpack.c.l.b16 %v756
      %v2311 = vunpack.c.l.b16 %v757
      %v2312 = vunpack.c.l.b16 %v758
      %v2313 = vunpack.c.l.b16 %v759
      %v2314 = vunpack.c.l.b16 %v760
      %v2315 = vunpack.c.l.b16 %v761
      %v2316 = vunpack.c.l.b16 %v762
      %v2317 = vunpack.c.l.b16 %v763
      %v2318 = vunpack.c.l.b16 %v764
      %v2319 = vunpack.c.l.b16 %v765
      %v2320 = vunpack.c.l.b16 %v766
      %v2321 = vunpack.c.l.b16 %v767
      %v2322 = vunpack.c.l.b16 %v768
      %v2323 = vunpack.c.l.b16 %v769
      %v2324 = vunpack.c.l.b16 %v770
      %v2325 = vunpack.c.l.b16 %v771
      %v2326 = vunpack.c.l.b16 %v772
      %v2327 = vunpack.c.l.b16 %v773
      %v2328 = vunpack.c.l.b16 %v774
      %v2329 = vunpack.c.l.b16 %v775
      %v2330 = vunpack.c.l.b16 %v776
      %v2331 = vunpack.c.l.b16 %v777
      %v2332 = vunpack.c.l.b16 %v778
      %v2333 = vunpack.c.l.b16 %v779
      %v2334 = vunpack.c.l.b16 %v780
      %v2335 = vunpack.c.l.b16 %v781
      %v2336 = vunpack.c.l.b16 %v782
      %v2337 = vunpack.c.l.b16 %v783
      %v2338 = vunpack.c.l.b16 %v784
      %v2339 = vunpack.c.l.b16 %v785
      %v2340 = vunpack.c.l.b16 %v786
      %v2341 = vunpack.c.l.b16 %v787
      %v2342 = vunpack.c.l.b16 %v788
      %v2343 = vunpack.c.l.b16 %v789
      %v2344 = vunpack.c.l.b16 %v790
      %v2345 = vunpack.c.l.b16 %v791
      %v2346 = vunpack.c.l.b16 %v792
      %v2347 = vunpack.c.l.b16 %v793
      %v2348 = vunpack.c.l.b16 %v794
      %v2349 = vunpack.c.l.b16 %v795
      %v2350 = vunpack.c.l.b16 %v796
      %v2351 = vunpack.c.l.b16 %v797
      %v2352 = vunpack.c.l.b16 %v798
      %v2353 = vunpack.c.l.b16 %v799
      %v2354 = vunpack.c.l.b16 %v800
      %v2355 = vunpack.c.l.b16 %v801
      %v2356 = vunpack.c.l.b16 %v802
      %v2357 = vunpack.c.l.b16 %v803
      %v2358 = vunpack.c.l.b16 %v804
      %v2359 = vunpack.c.l.b16 %v805
      %v2360 = vunpack.c.l.b16 %v806
      %v2361 = vunpack.c.l.b16 %v807
      %v2362 = vunpack.c.l.b16 %v808
      %v2363 = vunpack.c.l.b16 %v809
      %v2364 = vunpack.c.l.b16 %v810
      %v2365 = vunpack.c.l.b16 %v811
      %v2366 = vunpack.c.l.b16 %v812
      %v2367 = vunpack.c.l.b16 %v813
      %v2368 = vunpack.c.l.b16 %v814
      %v2369 = vunpack.c.l.b16 %v815
      %v2370 = vunpack.c.l.b16 %v816
      %v2371 = vunpack.c.l.b16 %v817
      %v2372 = vunpack.c.l.b16 %v818
      %v2373 = vunpack.c.l.b16 %v819
      %v2374 = vunpack.c.l.b16 %v820
      %v2375 = vunpack.c.l.b16 %v821
      %v2376 = vunpack.c.l.b16 %v822
      %v2377 = vunpack.c.l.b16 %v823
      %v2378 = vunpack.c.l.b16 %v824
      %v2379 = vunpack.c.l.b16 %v825
      %v2380 = vunpack.c.l.b16 %v826
      %v2381 = vunpack.c.l.b16 %v827
      %v2382 = vunpack.c.l.b16 %v828
      %v2383 = vunpack.c.l.b16 %v829
      %v2384 = vunpack.c.l.b16 %v830
      %v2385 = vunpack.c.l.b16 %v831
      %v2386 = vunpack.c.l.b16 %v832
      %v2387 = vunpack.c.l.b16 %v833
      %v2388 = vunpack.c.l.b16 %v834
      %v2389 = vunpack.c.l.b16 %v835
      %v2390 = vunpack.c.l.b16 %v836
      %v2391 = vunpack.c.l.b16 %v837
      %v2392 = vunpack.c.l.b16 %v838
      %v2393 = vunpack.c.l.b16 %v839
      %v2394 = vunpack.c.l.b16 %v840
      %v2395 = vunpack.c.l.b16 %v841
      %v2396 = vunpack.c.l.b16 %v842
      %v2397 = vunpack.c.l.b16 %v843
      %v2398 = vunpack.c.l.b16 %v844
      %v2399 = vunpack.c.l.b16 %v845
      %v2400 = vunpack.c.l.b16 %v846
      %v2401 = vunpack.c.l.b16 %v847
      %v2402 = vunpack.c.l.b16 %v848
      %v2403 = vunpack.c.l.b16 %v849
      %v2404 = vunpack.c.l.b16 %v850
      %v2405 = vunpack.c.l.b16 %v851
      %v2406 = vunpack.c.l.b16 %v852
      %v2407 = vunpack.c.l.b16 %v853
      %v2408 = vunpack.c.l.b16 %v854
      %v2409 = vunpack.c.l.b16 %v855
      %v2410 = vunpack.c.l.b16 %v856
      %v2411 = vunpack.c.l.b16 %v857
      %v2412 = vunpack.c.l.b16 %v858
      %v2413 = vunpack.c.l.b16 %v859
      %v2414 = vunpack.c.l.b16 %v860
      %v2415 = vunpack.c.l.b16 %v861
      %v2416 = vunpack.c.l.b16 %v862
      %v2417 = vunpack.c.l.b16 %v863
      %v2418 = vunpack.c.l.b16 %v864
      %v2419 = vunpack.c.l.b16 %v865
      %v2420 = vunpack.c.l.b16 %v866
      %v2421 = vunpack.c.l.b16 %v867
      %v2422 = vunpack.c.l.b16 %v868
      %v2423 = vunpack.c.l.b16 %v869
      %v2424 = vunpack.c.l.b16 %v870
      %v2425 = vunpack.c.l.b16 %v871
      %v2426 = vunpack.c.l.b16 %v872
      %v2427 = vunpack.c.l.b16 %v873
      %v2428 = vunpack.c.l.b16 %v874
      %v2429 = vunpack.c.l.b16 %v875
      %v2430 = vunpack.c.l.b16 %v876
      %v2431 = vunpack.c.l.b16 %v877
      %v2432 = vunpack.c.l.b16 %v878
      %v2433 = vunpack.c.l.b16 %v879
      %v2434 = vunpack.c.l.b16 %v880
      %v2435 = vunpack.c.l.b16 %v881
      %v2436 = vunpack.c.l.b16 %v882
      %v2437 = vunpack.c.l.b16 %v883
      %v2438 = vunpack.c.l.b16 %v884
      %v2439 = vunpack.c.l.b16 %v885
      %v2440 = vunpack.c.l.b16 %v886
      %v2441 = vunpack.c.l.b16 %v887
      %v2442 = vunpack.c.l.b16 %v888
      %v2443 = vunpack.c.l.b16 %v889
      %v2444 = vunpack.c.l.b16 %v890
      %v2445 = vunpack.c.l.b16 %v891
      %v2446 = vunpack.c.l.b16 %v892
      %v2447 = vunpack.c.l.b16 %v893
      %v2448 = vunpack.c.l.b16 %v894
      %v2449 = vunpack.c.l.b16 %v895
      %v2450 = vunpack.c.l.b16 %v896
      %v2451 = vunpack.c.l.b16 %v897
      %v2452 = vunpack.c.l.b16 %v898
      %v2453 = vunpack.c.l.b16 %v899
      %v2454 = vunpack.c.l.b16 %v900
      %v2455 = vunpack.c.l.b16 %v901
      %v2456 = vunpack.c.l.b16 %v902
      %v2457 = vunpack.c.l.b16 %v903
      %v2458 = vunpack.c.l.b16 %v904
      %v2459 = vunpack.c.l.b16 %v905
      %v2460 = vunpack.c.l.b16 %v906
      %v2461 = vunpack.c.l.b16 %v907
      %v2462 = vunpack.c.l.b16 %v908
      %v2463 = vunpack.c.l.b16 %v909
      %v2464 = vunpack.c.l.b16 %v910
      %v2465 = vunpack.c.l.b16 %v911
      %v2466 = vunpack.c.l.b16 %v912
      %v2467 = vunpack.c.l.b16 %v913
      %v2468 = vunpack.c.l.b16 %v914
      %v2469 = vunpack.c.l.b16 %v915
      %v2470 = vunpack.c.l.b16 %v916
      %v2471 = vunpack.c.l.b16 %v917
      %v2472 = vunpack.c.l.b16 %v918
      %v2473 = vunpack.c.l.b16 %v919
      %v2474 = vunpack.c.l.b16 %v920
      %v2475 = vunpack.c.l.b16 %v921
      %v2476 = vunpack.c.l.b16 %v922
      %v2477 = vunpack.c.l.b16 %v923
      %v2478 = vunpack.c.l.b16 %v924
      %v2479 = vunpack.c.l.b16 %v925
      %v2480 = vunpack.c.l.b16 %v926
      %v2481 = vunpack.c.l.b16 %v927
      %v2482 = vunpack.c.l.b16 %v928
      %v2483 = vunpack.c.l.b16 %v929
      %v2484 = vunpack.c.l.b16 %v930
      %v2485 = vunpack.c.l.b16 %v931
      %v2486 = vunpack.c.l.b16 %v932
      %v2487 = vunpack.c.l.b16 %v933
      %v2488 = vunpack.c.l.b16 %v934
      %v2489 = vunpack.c.l.b16 %v935
      %v2490 = vunpack.c.l.b16 %v936
      %v2491 = vunpack.c.l.b16 %v937
      %v2492 = vunpack.c.l.b16 %v938
      %v2493 = vunpack.c.l.b16 %v939
      %v2494 = vunpack.c.l.b16 %v940
      %v2495 = vunpack.c.l.b16 %v941
      %v2496 = vunpack.c.l.b16 %v942
      %v2497 = vunpack.c.l.b16 %v943
      %v2498 = vunpack.c.l.b16 %v944
      %v2499 = vunpack.c.l.b16 %v945
      %v2500 = vunpack.c.l.b16 %v946
      %v2501 = vunpack.c.l.b16 %v947
      %v2502 = vunpack.c.l.b16 %v948
      %v2503 = vunpack.c.l.b16 %v949
      %v2504 = vunpack.c.l.b16 %v950
      %v2505 = vunpack.c.l.b16 %v951
      %v2506 = vunpack.c.l.b16 %v952
      %v2507 = vunpack.c.l.b16 %v953
      %v2508 = vunpack.c.l.b16 %v954
      %v2509 = vunpack.c.l.b16 %v955
      %v2510 = vunpack.c.l.b16 %v956
      %v2511 = vunpack.c.l.b16 %v957
      %v2512 = vunpack.c.l.b16 %v958
      %v2513 = vunpack.c.l.b16 %v959
      %v2514 = vunpack.c.l.b16 %v960
      %v2515 = vunpack.c.l.b16 %v961
      %v2516 = vunpack.c.l.b16 %v962
      %v2517 = vunpack.c.l.b16 %v963
      %v2518 = vunpack.c.l.b16 %v964
      %v2519 = vunpack.c.l.b16 %v965
      %v2520 = vunpack.c.l.b16 %v966
      %v2521 = vunpack.c.l.b16 %v967
      %v2522 = vunpack.c.l.b16 %v968
      %v2523 = vunpack.c.l.b16 %v969
      %v2524 = vunpack.c.l.b16 %v970
      %v2525 = vunpack.c.l.b16 %v971
      %v2526 = vunpack.c.l.b16 %v972
      %v2527 = vunpack.c.l.b16 %v973
      %v2528 = vunpack.c.l.b16 %v974
      %v2529 = vunpack.c.l.b16 %v975
      %v2530 = vunpack.c.l.b16 %v976
      %v2531 = vunpack.c.l.b16 %v977
      %v2532 = vunpack.c.l.b16 %v978
      %v2533 = vunpack.c.l.b16 %v979
      %v2534 = vunpack.c.l.b16 %v980
      %v2535 = vunpack.c.l.b16 %v981
      %v2536 = vunpack.c.l.b16 %v982
      %v2537 = vunpack.c.l.b16 %v983
      %v2538 = vunpack.c.l.b16 %v984
      %v2539 = vunpack.c.l.b16 %v985
      %v2540 = vunpack.c.l.b16 %v986
      %v2541 = vunpack.c.l.b16 %v987
      %v2542 = vunpack.c.l.b16 %v988
      %v2543 = vunpack.c.l.b16 %v989
      %v2544 = vunpack.c.l.b16 %v990
      %v2545 = vunpack.c.l.b16 %v991
      %v2546 = vunpack.c.l.b16 %v992
      %v2547 = vunpack.c.l.b16 %v993
      %v2548 = vunpack.c.l.b16 %v994
      %v2549 = vunpack.c.l.b16 %v995
      %v2550 = vunpack.c.l.b16 %v996
      %v2551 = vunpack.c.l.b16 %v997
      %v2552 = vunpack.c.l.b16 %v998
      %v2553 = vunpack.c.l.b16 %v999
      %v2554 = vunpack.c.l.b16 %v1000
      %v2555 = vunpack.c.l.b16 %v1001
      %v2556 = vunpack.c.l.b16 %v1002
      %v2557 = vunpack.c.l.b16 %v1003
      %v2558 = vunpack.c.l.b16 %v1004
      %v2559 = vunpack.c.l.b16 %v1005
      %v2560 = vunpack.c.l.b16 %v1006
      %v2561 = vunpack.c.l.b16 %v1007
      %v2562 = vunpack.c.l.b16 %v1008
      %v2563 = vunpack.c.l.b16 %v1009
      %v2564 = vunpack.c.l.b16 %v1010
      %v2565 = vunpack.c.l.b16 %v1011
      %v2566 = vunpack.c.l.b16 %v1012
      %v2567 = vunpack.c.l.b16 %v1013
      %v2568 = vunpack.c.l.b16 %v1014
      %v2569 = vunpack.c.l.b16 %v1015
      %v2570 = vunpack.c.l.b16 %v1016
      %v2571 = vunpack.c.l.b16 %v1017
      %v2572 = vunpack.c.l.b16 %v1018
      %v2573 = vunpack.c.l.b16 %v1019
      %v2574 = vunpack.c.l.b16 %v1020
      %v2575 = vunpack.c.l.b16 %v1021
      %v2576 = vunpack.c.l.b16 %v1022
      %v2577 = vunpack.c.l.b16 %v1023
      %v2578 = vunpack.c.l.b16 %v1024
      %v2579 = vunpack.c.l.b16 %v1025
      %v2580 = vunpack.c.l.b16 %v1026
      %v2581 = vunpack.c.l.b16 %v1027
      %v2582 = vunpack.c.l.b16 %v1028
      %v2583 = vunpack.c.l.b16 %v1029
      %v2584 = vunpack.c.l.b16 %v1030
      %v2585 = vunpack.c.l.b16 %v1031
      %v2586 = vunpack.c.l.b16 %v1032
      %v2587 = vunpack.c.l.b16 %v1033
      %v2588 = vunpack.c.l.b16 %v1034
      %v2589 = vunpack.c.l.b16 %v1035
      %v2590 = vunpack.c.l.b16 %v1036
      %v2591 = vunpack.c.l.b16 %v1037
      %v2592 = vunpack.c.l.b16 %v1038
      %v2593 = vunpack.c.l.b16 %v1039
      %v2594 = vunpack.c.l.b16 %v1040
      %v2595 = vunpack.c.l.b16 %v1041
      %v2596 = vunpack.c.l.b16 %v1042
      %v2597 = vunpack.c.l.b16 %v1043
      %v2598 = vunpack.c.l.b16 %v1044
      %v2599 = vunpack.c.l.b16 %v1045
      %v2600 = vunpack.c.l.b16 %v1046
      %v2601 = vunpack.c.l.b16 %v1047
      %v2602 = vunpack.c.l.b16 %v1048
      %v2603 = vunpack.c.l.b16 %v1049
      %v2604 = vunpack.c.l.b16 %v1050
      %v2605 = vunpack.c.l.b16 %v1051
      %v2606 = vunpack.c.l.b16 %v1052
      %v2607 = vunpack.c.l.b16 %v1053
      %v2608 = vunpack.c.l.b16 %v1054
      %v2609 = vunpack.c.l.b16 %v1055
      %v2610 = vunpack.c.l.b16 %v1056
      %v2611 = vunpack.c.l.b16 %v1057
      %v2612 = vunpack.c.l.b16 %v1058
      %v2613 = vunpack.c.l.b16 %v1059
      %v2614 = vunpack.c.l.b16 %v1060
      %v2615 = vunpack.c.l.b16 %v1061
      %v2616 = vunpack.c.l.b16 %v1062
      %v2617 = vunpack.c.l.b16 %v1063
      %v2618 = vunpack.c.l.b16 %v1064
      %v2619 = vunpack.c.l.b16 %v1065
      %v2620 = vunpack.c.l.b16 %v1066
      %v2621 = vunpack.c.l.b16 %v1067
      %v2622 = vunpack.c.l.b16 %v1068
      %v2623 = vunpack.c.l.b16 %v1069
      %v2624 = vunpack.c.l.b16 %v1070
      %v2625 = vunpack.c.l.b16 %v1071
      %v2626 = vunpack.c.l.b16 %v1072
      %v2627 = vunpack.c.l.b16 %v1073
      %v2628 = vunpack.c.l.b16 %v1074
      %v2629 = vunpack.c.l.b16 %v1075
      %v2630 = vunpack.c.l.b16 %v1076
      %v2631 = vunpack.c.l.b16 %v1077
      %v2632 = vunpack.c.l.b16 %v1078
      %v2633 = vunpack.c.l.b16 %v1079
      %v2634 = vunpack.c.l.b16 %v1080
      %v2635 = vunpack.c.l.b16 %v1081
      %v2636 = vunpack.c.l.b16 %v1082
      %v2637 = vunpack.c.l.b16 %v1083
      %v2638 = vunpack.c.l.b16 %v1084
      %v2639 = vunpack.c.l.b16 %v1085
      %v2640 = vunpack.c.l.b16 %v1086
      %v2641 = vunpack.c.l.b16 %v1087
      %v2642 = vunpack.c.l.b16 %v1088
      %v2643 = vunpack.c.l.b16 %v1089
      %v2644 = vunpack.c.l.b16 %v1090
      %v2645 = vunpack.c.l.b16 %v1091
      %v2646 = vunpack.c.l.b16 %v1092
      %v2647 = vunpack.c.l.b16 %v1093
      %v2648 = vunpack.c.l.b16 %v1094
      %v2649 = vunpack.c.l.b16 %v1095
      %v2650 = vunpack.c.l.b16 %v1096
      %v2651 = vunpack.c.l.b16 %v1097
      %v2652 = vunpack.c.l.b16 %v1098
      %v2653 = vunpack.c.l.b16 %v1099
      %v2654 = vunpack.c.l.b16 %v1100
      %v2655 = vunpack.c.l.b16 %v1101
      %v2656 = vunpack.c.l.b16 %v1102
      %v2657 = vunpack.c.l.b16 %v1103
      %v2658 = vunpack.c.l.b16 %v1104
      %v2659 = vpack.c.b16 %v1885, %v1884
      %v2660 = vpack.c.b16 %v1887, %v1886
      %v2661 = vpack.c.b16 %v1889, %v1888
      %v2662 = vpack.c.b16 %v1891, %v1890
      %v2663 = vpack.c.b16 %v1893, %v1892
      %v2664 = vpack.c.b16 %v1895, %v1894
      %v2665 = vpack.c.b16 %v1897, %v1896
      %v2666 = vpack.c.b16 %v1899, %v1898
      %v2667 = vpack.c.b16 %v1901, %v1900
      %v2668 = vpack.c.b16 %v1903, %v1902
      %v2669 = vpack.c.b16 %v1905, %v1904
      %v2670 = vpack.c.b16 %v1907, %v1906
      %v2671 = vpack.c.b16 %v1909, %v1908
      %v2672 = vpack.c.b16 %v1911, %v1910
      %v2673 = vpack.c.b16 %v1913, %v1912
      %v2674 = vpack.c.b16 %v1915, %v1914
      %v2675 = vpack.c.b16 %v1917, %v1916
      %v2676 = vpack.c.b16 %v1919, %v1918
      %v2677 = vpack.c.b16 %v1921, %v1920
      %v2678 = vpack.c.b16 %v1923, %v1922
      %v2679 = vpack.c.b16 %v1925, %v1924
      %v2680 = vpack.c.b16 %v1927, %v1926
      %v2681 = vpack.c.b16 %v1929, %v1928
      %v2682 = vpack.c.b16 %v1931, %v1930
      %v2683 = vpack.c.b16 %v1933, %v1932
      %v2684 = vpack.c.b16 %v1935, %v1934
      %v2685 = vpack.c.b16 %v1937, %v1936
      %v2686 = vpack.c.b16 %v1939, %v1938
      %v2687 = vpack.c.b16 %v1941, %v1940
      %v2688 = vpack.c.b16 %v1943, %v1942
      %v2689 = vpack.c.b16 %v1945, %v1944
      %v2690 = vpack.c.b16 %v1947, %v1946
      %v2691 = vpack.c.b16 %v1949, %v1948
      %v2692 = vpack.c.b16 %v1951, %v1950
      %v2693 = vpack.c.b16 %v1953, %v1952
      %v2694 = vpack.c.b16 %v1955, %v1954
      %v2695 = vpack.c.b16 %v1957, %v1956
      %v2696 = vpack.c.b16 %v1959, %v1958
      %v2697 = vpack.c.b16 %v1961, %v1960
      %v2698 = vpack.c.b16 %v1963, %v1962
      %v2699 = vpack.c.b16 %v1965, %v1964
      %v2700 = vpack.c.b16 %v1967, %v1966
      %v2701 = vpack.c.b16 %v1969, %v1968
      %v2702 = vpack.c.b16 %v1971, %v1970
      %v2703 = vpack.c.b16 %v1973, %v1972
      %v2704 = vpack.c.b16 %v1975, %v1974
      %v2705 = vpack.c.b16 %v1977, %v1976
      %v2706 = vpack.c.b16 %v1979, %v1978
      %v2707 = vpack.c.b16 %v1981, %v1980
      %v2708 = vpack.c.b16 %v1983, %v1982
      %v2709 = vpack.c.b16 %v1985, %v1984
      %v2710 = vpack.c.b16 %v1987, %v1986
      %v2711 = vpack.c.b16 %v1989, %v1988
      %v2712 = vpack.c.b16 %v1991, %v1990
      %v2713 = vpack.c.b16 %v1993, %v1992
      %v2714 = vpack.c.b16 %v1995, %v1994
      %v2715 = vpack.c.b16 %v1997, %v1996
      %v2716 = vpack.c.b16 %v1999, %v1998
      %v2717 = vpack.c.b16 %v2001, %v2000
      %v2718 = vpack.c.b16 %v2003, %v2002
      %v2719 = vpack.c.b16 %v2005, %v2004
      %v2720 = vpack.c.b16 %v2007, %v2006
      %v2721 = vpack.c.b16 %v2009, %v2008
      %v2722 = vpack.c.b16 %v2011, %v2010
      %v2723 = vpack.c.b16 %v2013, %v2012
      %v2724 = vpack.c.b16 %v2015, %v2014
      %v2725 = vpack.c.b16 %v2017, %v2016
      %v2726 = vpack.c.b16 %v2019, %v2018
      %v2727 = vpack.c.b16 %v2021, %v2020
      %v2728 = vpack.c.b16 %v2023, %v2022
      %v2729 = vpack.c.b16 %v2025, %v2024
      %v2730 = vpack.c.b16 %v2027, %v2026
      %v2731 = vpack.c.b16 %v2029, %v2028
      %v2732 = vpack.c.b16 %v2031, %v2030
      %v2733 = vpack.c.b16 %v2033, %v2032
      %v2734 = vpack.c.b16 %v2035, %v2034
      %v2735 = vpack.c.b16 %v2037, %v2036
      %v2736 = vpack.c.b16 %v2039, %v2038
      %v2737 = vpack.c.b16 %v2041, %v2040
      %v2738 = vpack.c.b16 %v2043, %v2042
      %v2739 = vpack.c.b16 %v2045, %v2044
      %v2740 = vpack.c.b16 %v2047, %v2046
      %v2741 = vpack.c.b16 %v2049, %v2048
      %v2742 = vpack.c.b16 %v2051, %v2050
      %v2743 = vpack.c.b16 %v2053, %v2052
      %v2744 = vpack.c.b16 %v2055, %v2054
      %v2745 = vpack.c.b16 %v2057, %v2056
      %v2746 = vpack.c.b16 %v2059, %v2058
      %v2747 = vpack.c.b16 %v2061, %v2060
      %v2748 = vpack.c.b16 %v2063, %v2062
      %v2749 = vpack.c.b16 %v2065, %v2064
      %v2750 = vpack.c.b16 %v2067, %v2066
      %v2751 = vpack.c.b16 %v2069, %v2068
      %v2752 = vpack.c.b16 %v2071, %v2070
      %v2753 = vpack.c.b16 %v2073, %v2072
      %v2754 = vpack.c.b16 %v2075, %v2074
      %v2755 = vpack.c.b16 %v2077, %v2076
      %v2756 = vpack.c.b16 %v2079, %v2078
      %v2757 = vpack.c.b16 %v2081, %v2080
      %v2758 = vpack.c.b16 %v2083, %v2082
      %v2759 = vpack.c.b16 %v2085, %v2084
      %v2760 = vpack.c.b16 %v2087, %v2086
      %v2761 = vpack.c.b16 %v2089, %v2088
      %v2762 = vpack.c.b16 %v2091, %v2090
      %v2763 = vpack.c.b16 %v2093, %v2092
      %v2764 = vpack.c.b16 %v2095, %v2094
      %v2765 = vpack.c.b16 %v2097, %v2096
      %v2766 = vpack.c.b16 %v2099, %v2098
      %v2767 = vpack.c.b16 %v2101, %v2100
      %v2768 = vpack.c.b16 %v2103, %v2102
      %v2769 = vpack.c.b16 %v2105, %v2104
      %v2770 = vpack.c.b16 %v2107, %v2106
      %v2771 = vpack.c.b16 %v2109, %v2108
      %v2772 = vpack.c.b16 %v2111, %v2110
      %v2773 = vpack.c.b16 %v2113, %v2112
      %v2774 = vpack.c.b16 %v2115, %v2114
      %v2775 = vpack.c.b16 %v2117, %v2116
      %v2776 = vpack.c.b16 %v2119, %v2118
      %v2777 = vpack.c.b16 %v2121, %v2120
      %v2778 = vpack.c.b16 %v2123, %v2122
      %v2779 = vpack.c.b16 %v2125, %v2124
      %v2780 = vpack.c.b16 %v2127, %v2126
      %v2781 = vpack.c.b16 %v2129, %v2128
      %v2782 = vpack.c.b16 %v2131, %v2130
      %v2783 = vpack.c.b16 %v2133, %v2132
      %v2784 = vpack.c.b16 %v2135, %v2134
      %v2785 = vpack.c.b16 %v2137, %v2136
      %v2786 = vpack.c.b16 %v2139, %v2138
      %v2787 = vpack.c.b16 %v2141, %v2140
      %v2788 = vpack.c.b16 %v2143, %v2142
      %v2789 = vpack.c.b16 %v2145, %v2144
      %v2790 = vpack.c.b16 %v2147, %v2146
      %v2791 = vpack.c.b16 %v2149, %v2148
      %v2792 = vpack.c.b16 %v2151, %v2150
      %v2793 = vpack.c.b16 %v2153, %v2152
      %v2794 = vpack.c.b16 %v2155, %v2154
      %v2795 = vpack.c.b16 %v2157, %v2156
      %v2796 = vpack.c.b16 %v2159, %v2158
      %v2797 = vpack.c.b16 %v2161, %v2160
      %v2798 = vpack.c.b16 %v2163, %v2162
      %v2799 = vpack.c.b16 %v2165, %v2164
      %v2800 = vpack.c.b16 %v2167, %v2166
      %v2801 = vpack.c.b16 %v2169, %v2168
      %v2802 = vpack.c.b16 %v2171, %v2170
      %v2803 = vpack.c.b16 %v2173, %v2172
      %v2804 = vpack.c.b16 %v2175, %v2174
      %v2805 = vpack.c.b16 %v2177, %v2176
      %v2806 = vpack.c.b16 %v2179, %v2178
      %v2807 = vpack.c.b16 %v2181, %v2180
      %v2808 = vpack.c.b16 %v2183, %v2182
      %v2809 = vpack.c.b16 %v2185, %v2184
      %v2810 = vpack.c.b16 %v2187, %v2186
      %v2811 = vpack.c.b16 %v2189, %v2188
      %v2812 = vpack.c.b16 %v2191, %v2190
      %v2813 = vpack.c.b16 %v2193, %v2192
      %v2814 = vpack.c.b16 %v2195, %v2194
      %v2815 = vpack.c.b16 %v2197, %v2196
      %v2816 = vpack.c.b16 %v2199, %v2198
      %v2817 = vpack.c.b16 %v2201, %v2200
      %v2818 = vpack.c.b16 %v2203, %v2202
      %v2819 = vpack.c.b16 %v2205, %v2204
      %v2820 = vpack.c.b16 %v2207, %v2206
      %v2821 = vpack.c.b16 %v2209, %v2208
      %v2822 = vpack.c.b16 %v2211, %v2210
      %v2823 = vpack.c.b16 %v2213, %v2212
      %v2824 = vpack.c.b16 %v2215, %v2214
      %v2825 = vpack.c.b16 %v2217, %v2216
      %v2826 = vpack.c.b16 %v2219, %v2218
      %v2827 = vpack.c.b16 %v2221, %v2220
      %v2828 = vpack.c.b16 %v2223, %v2222
      %v2829 = vpack.c.b16 %v2225, %v2224
      %v2830 = vpack.c.b16 %v2227, %v2226
      %v2831 = vpack.c.b16 %v2229, %v2228
      %v2832 = vpack.c.b16 %v2231, %v2230
      %v2833 = vpack.c.b16 %v2233, %v2232
      %v2834 = vpack.c.b16 %v2235, %v2234
      %v2835 = vpack.c.b16 %v2237, %v2236
      %v2836 = vpack.c.b16 %v2239, %v2238
      %v2837 = vpack.c.b16 %v2241, %v2240
      %v2838 = vpack.c.b16 %v2243, %v2242
      %v2839 = vpack.c.b16 %v2245, %v2244
      %v2840 = vpack.c.b16 %v2247, %v2246
      %v2841 = vpack.c.b16 %v2249, %v2248
      %v2842 = vpack.c.b16 %v2251, %v2250
      %v2843 = vpack.c.b16 %v2253, %v2252
      %v2844 = vpack.c.b16 %v2255, %v2254
      %v2845 = vpack.c.b16 %v2257, %v2256
      %v2846 = vpack.c.b16 %v2259, %v2258
      %v2847 = vpack.c.b16 %v2261, %v2260
      %v2848 = vpack.c.b16 %v2263, %v2262
      %v2849 = vpack.c.b16 %v2265, %v2264
      %v2850 = vpack.c.b16 %v2267, %v2266
      %v2851 = vpack.c.b16 %v2269, %v2268
      %v2852 = vpack.c.b16 %v2271, %v2270
      %v2853 = vpack.c.b16 %v2273, %v2272
      %v2854 = vpack.c.b16 %v2275, %v2274
      %v2855 = vpack.c.b16 %v2277, %v2276
      %v2856 = vpack.c.b16 %v2279, %v2278
      %v2857 = vpack.c.b16 %v2281, %v2280
      %v2858 = vpack.c.b16 %v2283, %v2282
      %v2859 = vpack.c.b16 %v2285, %v2284
      %v2860 = vpack.c.b16 %v2287, %v2286
      %v2861 = vpack.c.b16 %v2289, %v2288
      %v2862 = vpack.c.b16 %v2291, %v2290
      %v2863 = vpack.c.b16 %v2293, %v2292
      %v2864 = vpack.c.b16 %v2295, %v2294
      %v2865 = vpack.c.b16 %v2297, %v2296
      %v2866 = vpack.c.b16 %v2299, %v2298
      %v2867 = vpack.c.b16 %v2301, %v2300
      %v2868 = vpack.c.b16 %v2303, %v2302
      %v2869 = vpack.c.b16 %v2305, %v2304
      %v2870 = vpack.c.b16 %v2307, %v2306
      %v2871 = vpack.c.b16 %v2309, %v2308
      %v2872 = vpack.c.b16 %v2311, %v2310
      %v2873 = vpack.c.b16 %v2313, %v2312
      %v2874 = vpack.c.b16 %v2315, %v2314
      %v2875 = vpack.c.b16 %v2317, %v2316
      %v2876 = vpack.c.b16 %v2319, %v2318
      %v2877 = vpack.c.b16 %v2321, %v2320
      %v2878 = vpack.c.b16 %v2323, %v2322
      %v2879 = vpack.c.b16 %v2325, %v2324
      %v2880 = vpack.c.b16 %v2327, %v2326
      %v2881 = vpack.c.b16 %v2329, %v2328
      %v2882 = vpack.c.b16 %v2331, %v2330
      %v2883 = vpack.c.b16 %v2333, %v2332
      %v2884 = vpack.c.b16 %v2335, %v2334
      %v2885 = vpack.c.b16 %v2337, %v2336
      %v2886 = vpack.c.b16 %v2339, %v2338
      %v2887 = vpack.c.b16 %v2341, %v2340
      %v2888 = vpack.c.b16 %v2343, %v2342
      %v2889 = vpack.c.b16 %v2345, %v2344
      %v2890 = vpack.c.b16 %v2347, %v2346
      %v2891 = vpack.c.b16 %v2349, %v2348
      %v2892 = vpack.c.b16 %v2351, %v2350
      %v2893 = vpack.c.b16 %v2353, %v2352
      %v2894 = vpack.c.b16 %v2355, %v2354
      %v2895 = vpack.c.b16 %v2357, %v2356
      %v2896 = vpack.c.b16 %v2359, %v2358
      %v2897 = vpack.c.b16 %v2361, %v2360
      %v2898 = vpack.c.b16 %v2363, %v2362
      %v2899 = vpack.c.b16 %v2365, %v2364
      %v2900 = vpack.c.b16 %v2367, %v2366
      %v2901 = vpack.c.b16 %v2369, %v2368
      %v2902 = vpack.c.b16 %v2371, %v2370
      %v2903 = vpack.c.b16 %v2373, %v2372
      %v2904 = vpack.c.b16 %v2375, %v2374
      %v2905 = vpack.c.b16 %v2377, %v2376
      %v2906 = vpack.c.b16 %v2379, %v2378
      %v2907 = vpack.c.b16 %v2381, %v2380
      %v2908 = vpack.c.b16 %v2383, %v2382
      %v2909 = vpack.c.b16 %v2385, %v2384
      %v2910 = vpack.c.b16 %v2387, %v2386
      %v2911 = vpack.c.b16 %v2389, %v2388
      %v2912 = vpack.c.b16 %v2391, %v2390
      %v2913 = vpack.c.b16 %v2393, %v2392
      %v2914 = vpack.c.b16 %v2395, %v2394
      %v2915 = vpack.c.b16 %v2397, %v2396
      %v2916 = vpack.c.b16 %v2399, %v2398
      %v2917 = vpack.c.b16 %v2401, %v2400
      %v2918 = vpack.c.b16 %v2403, %v2402
      %v2919 = vpack.c.b16 %v2405, %v2404
      %v2920 = vpack.c.b16 %v2407, %v2406
      %v2921 = vpack.c.b16 %v2409, %v2408
      %v2922 = vpack.c.b16 %v2411, %v2410
      %v2923 = vpack.c.b16 %v2413, %v2412
      %v2924 = vpack.c.b16 %v2415, %v2414
      %v2925 = vpack.c.b16 %v2417, %v2416
      %v2926 = vpack.c.b16 %v2419, %v2418
      %v2927 = vpack.c.b16 %v2421, %v2420
      %v2928 = vpack.c.b16 %v2423, %v2422
      %v2929 = vpack.c.b16 %v2425, %v2424
      %v2930 = vpack.c.b16 %v2427, %v2426
      %v2931 = vpack.c.b16 %v2429, %v2428
      %v2932 = vpack.c.b16 %v2431, %v2430
      %v2933 = vpack.c.b16 %v2433, %v2432
      %v2934 = vpack.c.b16 %v2435, %v2434
      %v2935 = vpack.c.b16 %v2437, %v2436
      %v2936 = vpack.c.b16 %v2439, %v2438
      %v2937 = vpack.c.b16 %v2441, %v2440
      %v2938 = vpack.c.b16 %v2443, %v2442
      %v2939 = vpack.c.b16 %v2445, %v2444
      %v2940 = vpack.c.b16 %v2447, %v2446
      %v2941 = vpack.c.b16 %v2449, %v2448
      %v2942 = vpack.c.b16 %v2451, %v2450
      %v2943 = vpack.c.b16 %v2453, %v2452
      %v2944 = vpack.c.b16 %v2455, %v2454
      %v2945 = vpack.c.b16 %v2457, %v2456
      %v2946 = vpack.c.b16 %v2459, %v2458
      %v2947 = vpack.c.b16 %v2461, %v2460
      %v2948 = vpack.c.b16 %v2463, %v2462
      %v2949 = vpack.c.b16 %v2465, %v2464
      %v2950 = vpack.c.b16 %v2467, %v2466
      %v2951 = vpack.c.b16 %v2469, %v2468
      %v2952 = vpack.c.b16 %v2471, %v2470
      %v2953 = vpack.c.b16 %v2473, %v2472
      %v2954 = vpack.c.b16 %v2475, %v2474
      %v2955 = vpack.c.b16 %v2477, %v2476
      %v2956 = vpack.c.b16 %v2479, %v2478
      %v2957 = vpack.c.b16 %v2481, %v2480
      %v2958 = vpack.c.b16 %v2483, %v2482
      %v2959 = vpack.c.b16 %v2485, %v2484
      %v2960 = vpack.c.b16 %v2487, %v2486
      %v2961 = vpack.c.b16 %v2489, %v2488
      %v2962 = vpack.c.b16 %v2491, %v2490
      %v2963 = vpack.c.b16 %v2493, %v2492
      %v2964 = vpack.c.b16 %v2495, %v2494
      %v2965 = vpack.c.b16 %v2497, %v2496
      %v2966 = vpack.c.b16 %v2499, %v2498
      %v2967 = vpack.c.b16 %v2501, %v2500
      %v2968 = vpack.c.b16 %v2503, %v2502
      %v2969 = vpack.c.b16 %v2505, %v2504
      %v2970 = vpack.c.b16 %v2507, %v2506
      %v2971 = vpack.c.b16 %v2509, %v2508
      %v2972 = vpack.c.b16 %v2511, %v2510
      %v2973 = vpack.c.b16 %v2513, %v2512
      %v2974 = vpack.c.b16 %v2515, %v2514
      %v2975 = vpack.c.b16 %v2517, %v2516
      %v2976 = vpack.c.b16 %v2519, %v2518
      %v2977 = vpack.c.b16 %v2521, %v2520
      %v2978 = vpack.c.b16 %v2523, %v2522
      %v2979 = vpack.c.b16 %v2525, %v2524
      %v2980 = vpack.c.b16 %v2527, %v2526
      %v2981 = vpack.c.b16 %v2529, %v2528
      %v2982 = vpack.c.b16 %v2531, %v2530
      %v2983 = vpack.c.b16 %v2533, %v2532
      %v2984 = vpack.c.b16 %v2535, %v2534
      %v2985 = vpack.c.b16 %v2537, %v2536
      %v2986 = vpack.c.b16 %v2539, %v2538
      %v2987 = vpack.c.b16 %v2541, %v2540
      %v2988 = vpack.c.b16 %v2543, %v2542
      %v2989 = vpack.c.b16 %v2545, %v2544
      %v2990 = vpack.c.b16 %v2547, %v2546
      %v2991 = vpack.c.b16 %v2549, %v2548
      %v2992 = vpack.c.b16 %v2551, %v2550
      %v2993 = vpack.c.b16 %v2553, %v2552
      %v2994 = vpack.c.b16 %v2555, %v2554
      %v2995 = vpack.c.b16 %v2557, %v2556
      %v2996 = vpack.c.b16 %v2559, %v2558
      %v2997 = vpack.c.b16 %v2561, %v2560
      %v2998 = vpack.c.b16 %v2563, %v2562
      %v2999 = vpack.c.b16 %v2565, %v2564
      %v3000 = vpack.c.b16 %v2567, %v2566
      %v3001 = vpack.c.b16 %v2569, %v2568
      %v3002 = vpack.c.b16 %v2571, %v2570
      %v3003 = vpack.c.b16 %v2573, %v2572
      %v3004 = vpack.c.b16 %v2575, %v2574
      %v3005 = vpack.c.b16 %v2577, %v2576
      %v3006 = vpack.c.b16 %v2579, %v2578
      %v3007 = vpack.c.b16 %v2581, %v2580
      %v3008 = vpack.c.b16 %v2583, %v2582
      %v3009 = vpack.c.b16 %v2585, %v2584
      %v3010 = vpack.c.b16 %v2587, %v2586
      %v3011 = vpack.c.b16 %v2589, %v2588
      %v3012 = vpack.c.b16 %v2591, %v2590
      %v3013 = vpack.c.b16 %v2593, %v2592
      %v3014 = vpack.c.b16 %v2595, %v2594
      %v3015 = vpack.c.b16 %v2597, %v2596
      %v3016 = vpack.c.b16 %v2599, %v2598
      %v3017 = vpack.c.b16 %v2601, %v2600
      %v3018 = vpack.c.b16 %v2603, %v2602
      %v3019 = vpack.c.b16 %v2605, %v2604
      %v3020 = vpack.c.b16 %v2607, %v2606
      %v3021 = vpack.c.b16 %v2609, %v2608
      %v3022 = vpack.c.b16 %v2611, %v2610
      %v3023 = vpack.c.b16 %v2613, %v2612
      %v3024 = vpack.c.b16 %v2615, %v2614
      %v3025 = vpack.c.b16 %v2617, %v2616
      %v3026 = vpack.c.b16 %v2619, %v2618
      %v3027 = vpack.c.b16 %v2621, %v2620
      %v3028 = vpack.c.b16 %v2623, %v2622
      %v3029 = vpack.c.b16 %v2625, %v2624
      %v3030 = vpack.c.b16 %v2627, %v2626
      %v3031 = vpack.c.b16 %v2629, %v2628
      %v3032 = vpack.c.b16 %v2631, %v2630
      %v3033 = vpack.c.b16 %v2633, %v2632
      %v3034 = vpack.c.b16 %v2635, %v2634
      %v3035 = vpack.c.b16 %v2637, %v2636
      %v3036 = vpack.c.b16 %v2639, %v2638
      %v3037 = vpack.c.b16 %v2641, %v2640
      %v3038 = vpack.c.b16 %v2643, %v2642
      %v3039 = vpack.c.b16 %v2645, %v2644
      %v3040 = vpack.c.b16 %v2647, %v2646
      %v3041 = vpack.c.b16 %v2649, %v2648
      %v3042 = vpack.c.b16 %v2651, %v2650
      %v3043 = vpack.c.b16 %v2653, %v2652
      %v3044 = vpack.c.b16 %v2655, %v2654
      %v3045 = vpack.c.b16 %v2657, %v2656
      %v3046 = vpack.c.b16 %v2658, %v2658
      %v3051 = vunpack.c.l.b16 %v1105
      %v3052 = vunpack.c.l.b16 %v1106
      %v3053 = vunpack.c.l.b16 %v1107
      %v3054 = vunpack.c.l.b16 %v1108
      %v3055 = vpack.c.b16 %v3052, %v3051
      %v3056 = vpack.c.b16 %v3054, %v3053
      %vm3059 = vcmask 261120
      %v3061 = vsel %vm3059, %v2659, 0
      %v3064 = vsel %vm3059, %v2660, 0
      %v3067 = vsel %vm3059, %v2661, 0
      %v3070 = vsel %vm3059, %v2662, 0
      %v3073 = vsel %vm3059, %v2663, 0
      %v3076 = vsel %vm3059, %v2664, 0
      %v3079 = vsel %vm3059, %v2665, 0
      %v3082 = vsel %vm3059, %v2666, 0
      %v3085 = vsel %vm3059, %v2667, 0
      %v3088 = vsel %vm3059, %v2668, 0
      %v3091 = vsel %vm3059, %v2669, 0
      %v3094 = vsel %vm3059, %v2670, 0
      %v3097 = vsel %vm3059, %v2671, 0
      %v3100 = vsel %vm3059, %v2672, 0
      %v3103 = vsel %vm3059, %v2673, 0
      %v3106 = vsel %vm3059, %v2674, 0
      %v3109 = vsel %vm3059, %v2675, 0
      %v3112 = vsel %vm3059, %v2676, 0
      %v3115 = vsel %vm3059, %v2677, 0
      %v3118 = vsel %vm3059, %v2678, 0
      %v3121 = vsel %vm3059, %v2679, 0
      %v3124 = vsel %vm3059, %v2680, 0
      %v3127 = vsel %vm3059, %v2681, 0
      %v3130 = vsel %vm3059, %v2682, 0
      %v3133 = vsel %vm3059, %v2683, 0
      %v3136 = vsel %vm3059, %v2684, 0
      %v3139 = vsel %vm3059, %v2685, 0
      %v3142 = vsel %vm3059, %v2686, 0
      %v3145 = vsel %vm3059, %v2687, 0
      %v3148 = vsel %vm3059, %v2688, 0
      %v3151 = vsel %vm3059, %v2689, 0
      %v3154 = vsel %vm3059, %v2690, 0
      %v3157 = vsel %vm3059, %v2691, 0
      %v3160 = vsel %vm3059, %v2692, 0
      %v3163 = vsel %vm3059, %v2693, 0
      %v3166 = vsel %vm3059, %v2694, 0
      %v3169 = vsel %vm3059, %v2695, 0
      %v3172 = vsel %vm3059, %v2696, 0
      %v3175 = vsel %vm3059, %v2697, 0
      %v3178 = vsel %vm3059, %v2698, 0
      %v3181 = vsel %vm3059, %v2699, 0
      %v3184 = vsel %vm3059, %v2700, 0
      %v3187 = vsel %vm3059, %v2701, 0
      %v3190 = vsel %vm3059, %v2702, 0
      %v3193 = vsel %vm3059, %v2703, 0
      %v3196 = vsel %vm3059, %v2704, 0
      %v3199 = vsel %vm3059, %v2705, 0
      %v3202 = vsel %vm3059, %v2706, 0
      %v3205 = vsel %vm3059, %v2707, 0
      %v3208 = vsel %vm3059, %v2708, 0
      %v3211 = vsel %vm3059, %v2709, 0
      %v3214 = vsel %vm3059, %v2710, 0
      %v3217 = vsel %vm3059, %v2711, 0
      %v3220 = vsel %vm3059, %v2712, 0
      %v3223 = vsel %vm3059, %v2713, 0
      %v3226 = vsel %vm3059, %v2714, 0
      %v3229 = vsel %vm3059, %v2715, 0
      %v3232 = vsel %vm3059, %v2716, 0
      %v3235 = vsel %vm3059, %v2717, 0
      %v3238 = vsel %vm3059, %v2718, 0
      %v3241 = vsel %vm3059, %v2719, 0
      %v3244 = vsel %vm3059, %v2720, 0
      %v3247 = vsel %vm3059, %v2721, 0
      %v3250 = vsel %vm3059, %v2722, 0
      %v3253 = vsel %vm3059, %v2723, 0
      %v3256 = vsel %vm3059, %v2724, 0
      %v3259 = vsel %vm3059, %v2725, 0
      %v3262 = vsel %vm3059, %v2726, 0
      %v3265 = vsel %vm3059, %v2727, 0
      %v3268 = vsel %vm3059, %v2728, 0
      %v3271 = vsel %vm3059, %v2729, 0
      %v3274 = vsel %vm3059, %v2730, 0
      %v3277 = vsel %vm3059, %v2731, 0
      %v3280 = vsel %vm3059, %v2732, 0
      %v3283 = vsel %vm3059, %v2733, 0
      %v3286 = vsel %vm3059, %v2734, 0
      %v3289 = vsel %vm3059, %v2735, 0
      %v3292 = vsel %vm3059, %v2736, 0
      %v3295 = vsel %vm3059, %v2737, 0
      %v3298 = vsel %vm3059, %v2738, 0
      %v3301 = vsel %vm3059, %v2739, 0
      %v3304 = vsel %vm3059, %v2740, 0
      %v3307 = vsel %vm3059, %v2741, 0
      %v3310 = vsel %vm3059, %v2742, 0
      %v3313 = vsel %vm3059, %v2743, 0
      %v3316 = vsel %vm3059, %v2744, 0
      %v3319 = vsel %vm3059, %v2745, 0
      %v3322 = vsel %vm3059, %v2746, 0
      %v3325 = vsel %vm3059, %v2747, 0
      %v3328 = vsel %vm3059, %v2748, 0
      %v3331 = vsel %vm3059, %v2749, 0
      %v3334 = vsel %vm3059, %v2750, 0
      %v3337 = vsel %vm3059, %v2751, 0
      %v3340 = vsel %vm3059, %v2752, 0
      %v3343 = vsel %vm3059, %v2753, 0
      %v3346 = vsel %vm3059, %v2754, 0
      %v3349 = vsel %vm3059, %v2755, 0
      %v3352 = vsel %vm3059, %v2756, 0
      %v3355 = vsel %vm3059, %v2757, 0
      %v3358 = vsel %vm3059, %v2758, 0
      %v3361 = vsel %vm3059, %v2759, 0
      %v3364 = vsel %vm3059, %v2760, 0
      %v3367 = vsel %vm3059, %v2761, 0
      %v3370 = vsel %vm3059, %v2762, 0
      %v3373 = vsel %vm3059, %v2763, 0
      %v3376 = vsel %vm3059, %v2764, 0
      %v3379 = vsel %vm3059, %v2765, 0
      %v3382 = vsel %vm3059, %v2766, 0
      %v3385 = vsel %vm3059, %v2767, 0
      %v3388 = vsel %vm3059, %v2768, 0
      %v3391 = vsel %vm3059, %v2769, 0
      %v3394 = vsel %vm3059, %v2770, 0
      %v3397 = vsel %vm3059, %v2771, 0
      %v3400 = vsel %vm3059, %v2772, 0
      %v3403 = vsel %vm3059, %v2773, 0
      %v3406 = vsel %vm3059, %v2774, 0
      %v3409 = vsel %vm3059, %v2775, 0
      %v3412 = vsel %vm3059, %v2776, 0
      %v3415 = vsel %vm3059, %v2777, 0
      %v3418 = vsel %vm3059, %v2778, 0
      %v3421 = vsel %vm3059, %v2779, 0
      %v3424 = vsel %vm3059, %v2780, 0
      %v3427 = vsel %vm3059, %v2781, 0
      %v3430 = vsel %vm3059, %v2782, 0
      %v3433 = vsel %vm3059, %v2783, 0
      %v3436 = vsel %vm3059, %v2784, 0
      %v3439 = vsel %vm3059, %v2785, 0
      %v3442 = vsel %vm3059, %v2786, 0
      %v3445 = vsel %vm3059, %v2787, 0
      %v3448 = vsel %vm3059, %v2788, 0
      %v3451 = vsel %vm3059, %v2789, 0
      %v3454 = vsel %vm3059, %v2790, 0
      %v3457 = vsel %vm3059, %v2791, 0
      %v3460 = vsel %vm3059, %v2792, 0
      %v3463 = vsel %vm3059, %v2793, 0
      %v3466 = vsel %vm3059, %v2794, 0
      %v3469 = vsel %vm3059, %v2795, 0
      %v3472 = vsel %vm3059, %v2796, 0
      %v3475 = vsel %vm3059, %v2797, 0
      %v3478 = vsel %vm3059, %v2798, 0
      %v3481 = vsel %vm3059, %v2799, 0
      %v3484 = vsel %vm3059, %v2800, 0
      %v3487 = vsel %vm3059, %v2801, 0
      %v3490 = vsel %vm3059, %v2802, 0
      %v3493 = vsel %vm3059, %v2803, 0
      %v3496 = vsel %vm3059, %v2804, 0
      %v3499 = vsel %vm3059, %v2805, 0
      %v3502 = vsel %vm3059, %v2806, 0
      %v3505 = vsel %vm3059, %v2807, 0
      %v3508 = vsel %vm3059, %v2808, 0
      %v3511 = vsel %vm3059, %v2809, 0
      %v3514 = vsel %vm3059, %v2810, 0
      %v3517 = vsel %vm3059, %v2811, 0
      %v3520 = vsel %vm3059, %v2812, 0
      %v3523 = vsel %vm3059, %v2813, 0
      %v3526 = vsel %vm3059, %v2814, 0
      %v3529 = vsel %vm3059, %v2815, 0
      %v3532 = vsel %vm3059, %v2816, 0
      %v3535 = vsel %vm3059, %v2817, 0
      %v3538 = vsel %vm3059, %v2818, 0
      %v3541 = vsel %vm3059, %v2819, 0
      %v3544 = vsel %vm3059, %v2820, 0
      %v3547 = vsel %vm3059, %v2821, 0
      %v3550 = vsel %vm3059, %v2822, 0
      %v3553 = vsel %vm3059, %v2823, 0
      %v3556 = vsel %vm3059, %v2824, 0
      %v3559 = vsel %vm3059, %v2825, 0
      %v3562 = vsel %vm3059, %v2826, 0
      %v3565 = vsel %vm3059, %v2827, 0
      %v3568 = vsel %vm3059, %v2828, 0
      %v3571 = vsel %vm3059, %v2829, 0
      %v3574 = vsel %vm3059, %v2830, 0
      %v3577 = vsel %vm3059, %v2831, 0
      %v3580 = vsel %vm3059, %v2832, 0
      %v3583 = vsel %vm3059, %v2833, 0
      %v3586 = vsel %vm3059, %v2834, 0
      %v3589 = vsel %vm3059, %v2835, 0
      %v3592 = vsel %vm3059, %v2836, 0
      %v3595 = vsel %vm3059, %v2837, 0
      %v3598 = vsel %vm3059, %v2838, 0
      %v3601 = vsel %vm3059, %v2839, 0
      %v3604 = vsel %vm3059, %v2840, 0
      %v3607 = vsel %vm3059, %v2841, 0
      %v3610 = vsel %vm3059, %v2842, 0
      %v3613 = vsel %vm3059, %v2843, 0
      %v3616 = vsel %vm3059, %v2844, 0
      %v3619 = vsel %vm3059, %v2845, 0
      %v3622 = vsel %vm3059, %v2846, 0
      %v3625 = vsel %vm3059, %v2847, 0
      %v3628 = vsel %vm3059, %v2848, 0
      %v3631 = vsel %vm3059, %v2849, 0
      %v3634 = vsel %vm3059, %v2850, 0
      %v3637 = vsel %vm3059, %v2851, 0
      %v3640 = vsel %vm3059, %v2852, 0
      %v3643 = vsel %vm3059, %v2853, 0
      %v3646 = vsel %vm3059, %v2854, 0
      %v3649 = vsel %vm3059, %v2855, 0
      %v3652 = vsel %vm3059, %v2856, 0
      %v3655 = vsel %vm3059, %v2857, 0
      %v3658 = vsel %vm3059, %v2858, 0
      %v3661 = vsel %vm3059, %v2859, 0
      %v3664 = vsel %vm3059, %v2860, 0
      %v3667 = vsel %vm3059, %v2861, 0
      %v3670 = vsel %vm3059, %v2862, 0
      %v3673 = vsel %vm3059, %v2863, 0
      %v3676 = vsel %vm3059, %v2864, 0
      %v3679 = vsel %vm3059, %v2865, 0
      %v3682 = vsel %vm3059, %v2866, 0
      %v3685 = vsel %vm3059, %v2867, 0
      %v3688 = vsel %vm3059, %v2868, 0
      %v3691 = vsel %vm3059, %v2869, 0
      %v3694 = vsel %vm3059, %v2870, 0
      %v3697 = vsel %vm3059, %v2871, 0
      %v3700 = vsel %vm3059, %v2872, 0
      %v3703 = vsel %vm3059, %v2873, 0
      %v3706 = vsel %vm3059, %v2874, 0
      %v3709 = vsel %vm3059, %v2875, 0
      %v3712 = vsel %vm3059, %v2876, 0
      %v3715 = vsel %vm3059, %v2877, 0
      %v3718 = vsel %vm3059, %v2878, 0
      %v3721 = vsel %vm3059, %v2879, 0
      %v3724 = vsel %vm3059, %v2880, 0
      %v3727 = vsel %vm3059, %v2881, 0
      %v3730 = vsel %vm3059, %v2882, 0
      %v3733 = vsel %vm3059, %v2883, 0
      %v3736 = vsel %vm3059, %v2884, 0
      %v3739 = vsel %vm3059, %v2885, 0
      %v3742 = vsel %vm3059, %v2886, 0
      %v3745 = vsel %vm3059, %v2887, 0
      %v3748 = vsel %vm3059, %v2888, 0
      %v3751 = vsel %vm3059, %v2889, 0
      %v3754 = vsel %vm3059, %v2890, 0
      %v3757 = vsel %vm3059, %v2891, 0
      %v3760 = vsel %vm3059, %v2892, 0
      %v3763 = vsel %vm3059, %v2893, 0
      %v3766 = vsel %vm3059, %v2894, 0
      %v3769 = vsel %vm3059, %v2895, 0
      %v3772 = vsel %vm3059, %v2896, 0
      %v3775 = vsel %vm3059, %v2897, 0
      %v3778 = vsel %vm3059, %v2898, 0
      %v3781 = vsel %vm3059, %v2899, 0
      %v3784 = vsel %vm3059, %v2900, 0
      %v3787 = vsel %vm3059, %v2901, 0
      %v3790 = vsel %vm3059, %v2902, 0
      %v3793 = vsel %vm3059, %v2903, 0
      %v3796 = vsel %vm3059, %v2904, 0
      %v3799 = vsel %vm3059, %v2905, 0
      %v3802 = vsel %vm3059, %v2906, 0
      %v3805 = vsel %vm3059, %v2907, 0
      %v3808 = vsel %vm3059, %v2908, 0
      %v3811 = vsel %vm3059, %v2909, 0
      %v3814 = vsel %vm3059, %v2910, 0
      %v3817 = vsel %vm3059, %v2911, 0
      %v3820 = vsel %vm3059, %v2912, 0
      %v3823 = vsel %vm3059, %v2913, 0
      %v3826 = vsel %vm3059, %v2914, 0
      %v3829 = vsel %vm3059, %v2915, 0
      %v3832 = vsel %vm3059, %v2916, 0
      %v3835 = vsel %vm3059, %v2917, 0
      %v3838 = vsel %vm3059, %v2918, 0
      %v3841 = vsel %vm3059, %v2919, 0
      %v3844 = vsel %vm3059, %v2920, 0
      %v3847 = vsel %vm3059, %v2921, 0
      %v3850 = vsel %vm3059, %v2922, 0
      %v3853 = vsel %vm3059, %v2923, 0
      %v3856 = vsel %vm3059, %v2924, 0
      %v3859 = vsel %vm3059, %v2925, 0
      %v3862 = vsel %vm3059, %v2926, 0
      %v3865 = vsel %vm3059, %v2927, 0
      %v3868 = vsel %vm3059, %v2928, 0
      %v3871 = vsel %vm3059, %v2929, 0
      %v3874 = vsel %vm3059, %v2930, 0
      %v3877 = vsel %vm3059, %v2931, 0
      %v3880 = vsel %vm3059, %v2932, 0
      %v3883 = vsel %vm3059, %v2933, 0
      %v3886 = vsel %vm3059, %v2934, 0
      %v3889 = vsel %vm3059, %v2935, 0
      %v3892 = vsel %vm3059, %v2936, 0
      %v3895 = vsel %vm3059, %v2937, 0
      %v3898 = vsel %vm3059, %v2938, 0
      %v3901 = vsel %vm3059, %v2939, 0
      %v3904 = vsel %vm3059, %v2940, 0
      %v3907 = vsel %vm3059, %v2941, 0
      %v3910 = vsel %vm3059, %v2942, 0
      %v3913 = vsel %vm3059, %v2943, 0
      %v3916 = vsel %vm3059, %v2944, 0
      %v3919 = vsel %vm3059, %v2945, 0
      %v3922 = vsel %vm3059, %v2946, 0
      %v3925 = vsel %vm3059, %v2947, 0
      %v3928 = vsel %vm3059, %v2948, 0
      %v3931 = vsel %vm3059, %v2949, 0
      %v3934 = vsel %vm3059, %v2950, 0
      %v3937 = vsel %vm3059, %v2951, 0
      %v3940 = vsel %vm3059, %v2952, 0
      %v3943 = vsel %vm3059, %v2953, 0
      %v3946 = vsel %vm3059, %v2954, 0
      %v3949 = vsel %vm3059, %v2955, 0
      %v3952 = vsel %vm3059, %v2956, 0
      %v3955 = vsel %vm3059, %v2957, 0
      %v3958 = vsel %vm3059, %v2958, 0
      %v3961 = vsel %vm3059, %v2959, 0
      %v3964 = vsel %vm3059, %v2960, 0
      %v3967 = vsel %vm3059, %v2961, 0
      %v3970 = vsel %vm3059, %v2962, 0
      %v3973 = vsel %vm3059, %v2963, 0
      %v3976 = vsel %vm3059, %v2964, 0
      %v3979 = vsel %vm3059, %v2965, 0
      %v3982 = vsel %vm3059, %v2966, 0
      %v3985 = vsel %vm3059, %v2967, 0
      %v3988 = vsel %vm3059, %v2968, 0
      %v3991 = vsel %vm3059, %v2969, 0
      %v3994 = vsel %vm3059, %v2970, 0
      %v3997 = vsel %vm3059, %v2971, 0
      %v4000 = vsel %vm3059, %v2972, 0
      %v4003 = vsel %vm3059, %v2973, 0
      %v4006 = vsel %vm3059, %v2974, 0
      %v4009 = vsel %vm3059, %v2975, 0
      %v4012 = vsel %vm3059, %v2976, 0
      %v4015 = vsel %vm3059, %v2977, 0
      %v4018 = vsel %vm3059, %v2978, 0
      %v4021 = vsel %vm3059, %v2979, 0
      %v4024 = vsel %vm3059, %v2980, 0
      %v4027 = vsel %vm3059, %v2981, 0
      %v4030 = vsel %vm3059, %v2982, 0
      %v4033 = vsel %vm3059, %v2983, 0
      %v4036 = vsel %vm3059, %v2984, 0
      %v4039 = vsel %vm3059, %v2985, 0
      %v4042 = vsel %vm3059, %v2986, 0
      %v4045 = vsel %vm3059, %v2987, 0
      %v4048 = vsel %vm3059, %v2988, 0
      %v4051 = vsel %vm3059, %v2989, 0
      %v4054 = vsel %vm3059, %v2990, 0
      %v4057 = vsel %vm3059, %v2991, 0
      %v4060 = vsel %vm3059, %v2992, 0
      %v4063 = vsel %vm3059, %v2993, 0
      %v4066 = vsel %vm3059, %v2994, 0
      %v4069 = vsel %vm3059, %v2995, 0
      %v4072 = vsel %vm3059, %v2996, 0
      %v4075 = vsel %vm3059, %v2997, 0
      %v4078 = vsel %vm3059, %v2998, 0
      %v4081 = vsel %vm3059, %v2999, 0
      %v4084 = vsel %vm3059, %v3000, 0
      %v4087 = vsel %vm3059, %v3001, 0
      %v4090 = vsel %vm3059, %v3002, 0
      %v4093 = vsel %vm3059, %v3003, 0
      %v4096 = vsel %vm3059, %v3004, 0
      %v4099 = vsel %vm3059, %v3005, 0
      %v4102 = vsel %vm3059, %v3006, 0
      %v4105 = vsel %vm3059, %v3007, 0
      %v4108 = vsel %vm3059, %v3008, 0
      %v4111 = vsel %vm3059, %v3009, 0
      %v4114 = vsel %vm3059, %v3010, 0
      %v4117 = vsel %vm3059, %v3011, 0
      %v4120 = vsel %vm3059, %v3012, 0
      %v4123 = vsel %vm3059, %v3013, 0
      %v4126 = vsel %vm3059, %v3014, 0
      %v4129 = vsel %vm3059, %v3015, 0
      %v4132 = vsel %vm3059, %v3016, 0
      %v4135 = vsel %vm3059, %v3017, 0
      %v4138 = vsel %vm3059, %v3018, 0
      %v4141 = vsel %vm3059, %v3019, 0
      %v4144 = vsel %vm3059, %v3020, 0
      %v4147 = vsel %vm3059, %v3021, 0
      %v4150 = vsel %vm3059, %v3022, 0
      %v4153 = vsel %vm3059, %v3023, 0
      %v4156 = vsel %vm3059, %v3024, 0
      %v4159 = vsel %vm3059, %v3025, 0
      %v4162 = vsel %vm3059, %v3026, 0
      %v4165 = vsel %vm3059, %v3027, 0
      %v4168 = vsel %vm3059, %v3028, 0
      %v4171 = vsel %vm3059, %v3029, 0
      %v4174 = vsel %vm3059, %v3030, 0
      %v4177 = vsel %vm3059, %v3031, 0
      %v4180 = vsel %vm3059, %v3032, 0
      %v4183 = vsel %vm3059, %v3033, 0
      %v4186 = vsel %vm3059, %v3034, 0
      %v4189 = vsel %vm3059, %v3035, 0
      %v4192 = vsel %vm3059, %v3036, 0
      %v4195 = vsel %vm3059, %v3037, 0
      %v4198 = vsel %vm3059, %v3038, 0
      %v4201 = vsel %vm3059, %v3039, 0
      %v4204 = vsel %vm3059, %v3040, 0
      %v4207 = vsel %vm3059, %v3041, 0
      %v4210 = vsel %vm3059, %v3042, 0
      %v4213 = vsel %vm3059, %v3043, 0
      %v4216 = vsel %vm3059, %v3044, 0
      %v4219 = vsel %vm3059, %v3045, 0
      %v4222 = vsel %vm3059, %v3046, 0
      %4224 = vmatprep.subr.bf16.mxu0 0
      %4225 = vmatpush1.bf16.msra.mxu0 %v3055
      %4226 = vmatprep.subr.bf16.mxu0 0
      %4227 = vmatpush1.bf16.msra.mxu0 %v3056
      %4228 = vmatprep.subr.bf16.mxu0 0
      %4229 = vmatpush1.bf16.msra.mxu0 0
      %4230 = vmatprep.subr.bf16.mxu0 0
      %4231 = vmatpush1.bf16.msra.mxu0 0
      %4232 = vmatprep.subr.bf16.mxu0 0
      %4233 = vmatpush1.bf16.msra.mxu0 0
      %4234 = vmatprep.subr.bf16.mxu0 0
      %4235 = vmatpush1.bf16.msra.mxu0 0
      %4236 = vmatprep.subr.bf16.mxu0 0
      %4237 = vmatpush1.bf16.msra.mxu0 0
      %4238 = vmatprep.subr.bf16.mxu0 0
      %4239 = vmatpush1.bf16.msra.mxu0 0
      %4240 = vmatprep.subr.bf16.mxu0 0
      %4241 = vmatpush1.bf16.msra.mxu0 0
      %4242 = vmatprep.subr.bf16.mxu0 0
      %4243 = vmatpush1.bf16.msra.mxu0 0
      %4244 = vmatprep.subr.bf16.mxu0 0
      %4245 = vmatpush1.bf16.msra.mxu0 0
      %4246 = vmatprep.subr.bf16.mxu0 0
      %4247 = vmatpush1.bf16.msra.mxu0 0
      %4248 = vmatprep.subr.bf16.mxu0 0
      %4249 = vmatpush1.bf16.msra.mxu0 0
      %4250 = vmatprep.subr.bf16.mxu0 0
      %4251 = vmatpush1.bf16.msra.mxu0 0
      %4252 = vmatprep.subr.bf16.mxu0 0
      %4253 = vmatpush1.bf16.msra.mxu0 0
      %4254 = vmatprep.subr.bf16.mxu0 0
      %4255 = vmatpush1.bf16.msra.mxu0 0
      %4256 = vmatprep.mubr.bf16.mxu0 0
      %4257 = vmatmul.mubr.bf16.gmra.mrb[0].mxu0 %v3061
      %v4258 = vpop.f32.mrb[0].mxu0
      %v4259 = vadd.f32 0.0, %v4258
      %v4260 = vpop.f32.mrb[0].mxu0
      %v4261 = vpop.f32.mrb[0].mxu0
      %v4262 = vadd.f32 0.0, %v4261
      %v4263 = vpop.f32.mrb[0].mxu0
      %4264 = vmatprep.mubr.bf16.mxu0 0
      %4265 = vmatmul.mubr.bf16.gmra.mrb[0].mxu0 %v3064
      %v4266 = vpop.f32.mrb[0].mxu0
      %v4267 = vadd.f32 0.0, %v4266
      %v4268 = vpop.f32.mrb[0].mxu0
      %v4269 = vpop.f32.mrb[0].mxu0
      %v4270 = vadd.f32 0.0, %v4269
      %v4271 = vpop.f32.mrb[0].mxu0
      %4272 = vmatprep.mubr.bf16.mxu0 0
      %4273 = vmatmul.mubr.bf16.gmra.mrb[0].mxu0 %v3067
      %v4274 = vpop.f32.mrb[0].mxu0
      %v4275 = vadd.f32 0.0, %v4274
      %v4276 = vpop.f32.mrb[0].mxu0
      %v4277 = vpop.f32.mrb[0].mxu0
      %v4278 = vadd.f32 0.0, %v4277
      %v4279 = vpop.f32.mrb[0].mxu0
      %4280 = vmatprep.mubr.bf16.mxu0 0
      %4281 = vmatmul.mubr.bf16.gmra.mrb[0].mxu0 %v3070
      %v4282 = vpop.f32.mrb[0].mxu0
      %v4283 = vadd.f32 0.0, %v4282
      %v4284 = vpop.f32.mrb[0].mxu0
      %v4285 = vpop.f32.mrb[0].mxu0
      %v4286 = vadd.f32 0.0, %v4285
      %v4287 = vpop.f32.mrb[0].mxu0
      %4288 = vmatprep.mubr.bf16.mxu0 0
      %4289 = vmatmul.mubr.bf16.gmra.mrb[0].mxu0 %v3073
      %v4290 = vpop.f32.mrb[0].mxu0
      %v4291 = vadd.f32 0.0, %v4290
      %v4292 = vpop.f32.mrb[0].mxu0
      %v4293 = vpop.f32.mrb[0].mxu0
      %v4294 = vadd.f32 0.0, %v4293
      %v4295 = vpop.f32.mrb[0].mxu0
      %4296 = vmatprep.mubr.bf16.mxu0 0
      %4297 = vmatmul.mubr.bf16.gmra.mrb[0].mxu0 %v3076
      %v4298 = vpop.f32.mrb[0].mxu0
      %v4299 = vadd.f32 0.0, %v4298
      %v4300 = vpop.f32.mrb[0].mxu0
      %v4301 = vpop.f32.mrb[0].mxu0
      %v4302 = vadd.f32 0.0, %v4301
      %v4303 = vpop.f32.mrb[0].mxu0
      %4304 = vmatprep.mubr.bf16.mxu0 0
      %4305 = vmatmul.mubr.bf16.gmra.mrb[0].mxu0 %v3079
      %v4306 = vpop.f32.mrb[0].mxu0
      %v4307 = vadd.f32 0.0, %v4306
      %v4308 = vpop.f32.mrb[0].mxu0
      %v4309 = vpop.f32.mrb[0].mxu0
      %v4310 = vadd.f32 0.0, %v4309
      %v4311 = vpop.f32.mrb[0].mxu0
      %4312 = vmatprep.mubr.bf16.mxu0 0
      %4313 = vmatmul.mubr.bf16.gmra.mrb[0].mxu0 %v3082
      %v4314 = vpop.f32.mrb[0].mxu0
      %v4315 = vadd.f32 0.0, %v4314
      %v4316 = vpop.f32.mrb[0].mxu0
      %v4317 = vpop.f32.mrb[0].mxu0
      %v4318 = vadd.f32 0.0, %v4317
      %v4319 = vpop.f32.mrb[0].mxu0
      %4320 = vmatprep.mubr.bf16.mxu0 0
      %4321 = vmatmul.mubr.bf16.gmra.mrb[0].mxu0 %v3085
      %v4322 = vpop.f32.mrb[0].mxu0
      %v4323 = vadd.f32 0.0, %v4322
      %v4324 = vpop.f32.mrb[0].mxu0
      %v4325 = vpop.f32.mrb[0].mxu0
      %v4326 = vadd.f32 0.0, %v4325
      %v4327 = vpop.f32.mrb[0].mxu0
      %4328 = vmatprep.mubr.bf16.mxu0 0
      %4329 = vmatmul.mubr.bf16.gmra.mrb[0].mxu0 %v3088
      %v4330 = vpop.f32.mrb[0].mxu0
      %v4331 = vadd.f32 0.0, %v4330
      %v4332 = vpop.f32.mrb[0].mxu0
      %v4333 = vpop.f32.mrb[0].mxu0
      %v4334 = vadd.f32 0.0, %v4333
      %v4335 = vpop.f32.mrb[0].mxu0
      %4336 = vmatprep.mubr.bf16.mxu0 0
      %4337 = vmatmul.mubr.bf16.gmra.mrb[0].mxu0 %v3091
      %v4338 = vpop.f32.mrb[0].mxu0
      %v4339 = vadd.f32 0.0, %v4338
      %v4340 = vpop.f32.mrb[0].mxu0
      %v4341 = vpop.f32.mrb[0].mxu0
      %v4342 = vadd.f32 0.0, %v4341
      %v4343 = vpop.f32.mrb[0].mxu0
      %4344 = vmatprep.mubr.bf16.mxu0 0
      %4345 = vmatmul.mubr.bf16.gmra.mrb[0].mxu0 %v3094
      %v4346 = vpop.f32.mrb[0].mxu0
      %v4347 = vadd.f32 0.0, %v4346
      %v4348 = vpop.f32.mrb[0].mxu0
      %v4349 = vpop.f32.mrb[0].mxu0
      %v4350 = vadd.f32 0.0, %v4349
      %v4351 = vpop.f32.mrb[0].mxu0
      %4352 = vmatprep.mubr.bf16.mxu0 0
      %4353 = vmatmul.mubr.bf16.gmra.mrb[0].mxu0 %v3097
      %v4354 = vpop.f32.mrb[0].mxu0
      %v4355 = vadd.f32 0.0, %v4354
      %v4356 = vpop.f32.mrb[0].mxu0
      %v4357 = vpop.f32.mrb[0].mxu0
      %v4358 = vadd.f32 0.0, %v4357
      %v4359 = vpop.f32.mrb[0].mxu0
      %4360 = vmatprep.mubr.bf16.mxu0 0
      %4361 = vmatmul.mubr.bf16.gmra.mrb[0].mxu0 %v3100
      %v4362 = vpop.f32.mrb[0].mxu0
      %v4363 = vadd.f32 0.0, %v4362
      %v4364 = vpop.f32.mrb[0].mxu0
      %v4365 = vpop.f32.mrb[0].mxu0
      %v4366 = vadd.f32 0.0, %v4365
      %v4367 = vpop.f32.mrb[0].mxu0
      %4368 = vmatprep.mubr.bf16.mxu0 0
      %4369 = vmatmul.mubr.bf16.gmra.mrb[0].mxu0 %v3103
      %v4370 = vpop.f32.mrb[0].mxu0
      %v4371 = vadd.f32 0.0, %v4370
      %v4372 = vpop.f32.mrb[0].mxu0
      %v4373 = vpop.f32.mrb[0].mxu0
      %v4374 = vadd.f32 0.0, %v4373
      %v4375 = vpop.f32.mrb[0].mxu0
      %4376 = vmatprep.mubr.bf16.mxu0 0
      %4377 = vmatmul.mubr.bf16.gmra.mrb[0].mxu0 %v3106
      %v4378 = vpop.f32.mrb[0].mxu0
      %v4379 = vadd.f32 0.0, %v4378
      %v4380 = vpop.f32.mrb[0].mxu0
      %v4381 = vpop.f32.mrb[0].mxu0
      %v4382 = vadd.f32 0.0, %v4381
      %v4383 = vpop.f32.mrb[0].mxu0
      %4384 = vmatprep.mubr.bf16.mxu0 0
      %4385 = vmatmul.mubr.bf16.gmra.mrb[0].mxu0 %v3109
      %v4386 = vpop.f32.mrb[0].mxu0
      %v4387 = vadd.f32 0.0, %v4386
      %v4388 = vpop.f32.mrb[0].mxu0
      %v4389 = vpop.f32.mrb[0].mxu0
      %v4390 = vadd.f32 0.0, %v4389
      %v4391 = vpop.f32.mrb[0].mxu0
      %4392 = vmatprep.mubr.bf16.mxu0 0
      %4393 = vmatmul.mubr.bf16.gmra.mrb[0].mxu0 %v3112
      %v4394 = vpop.f32.mrb[0].mxu0
      %v4395 = vadd.f32 0.0, %v4394
      %v4396 = vpop.f32.mrb[0].mxu0
      %v4397 = vpop.f32.mrb[0].mxu0
      %v4398 = vadd.f32 0.0, %v4397
      %v4399 = vpop.f32.mrb[0].mxu0
      %4400 = vmatprep.mubr.bf16.mxu0 0
      %4401 = vmatmul.mubr.bf16.gmra.mrb[0].mxu0 %v3115
      %v4402 = vpop.f32.mrb[0].mxu0
      %v4403 = vadd.f32 0.0, %v4402
      %v4404 = vpop.f32.mrb[0].mxu0
      %v4405 = vpop.f32.mrb[0].mxu0
      %v4406 = vadd.f32 0.0, %v4405
      %v4407 = vpop.f32.mrb[0].mxu0
      %4408 = vmatprep.mubr.bf16.mxu0 0
      %4409 = vmatmul.mubr.bf16.gmra.mrb[0].mxu0 %v3118
      %v4410 = vpop.f32.mrb[0].mxu0
      %v4411 = vadd.f32 0.0, %v4410
      %v4412 = vpop.f32.mrb[0].mxu0
      %v4413 = vpop.f32.mrb[0].mxu0
      %v4414 = vadd.f32 0.0, %v4413
      %v4415 = vpop.f32.mrb[0].mxu0
      %4416 = vmatprep.mubr.bf16.mxu0 0
      %4417 = vmatmul.mubr.bf16.gmra.mrb[0].mxu0 %v3121
      %v4418 = vpop.f32.mrb[0].mxu0
      %v4419 = vadd.f32 0.0, %v4418
      %v4420 = vpop.f32.mrb[0].mxu0
      %v4421 = vpop.f32.mrb[0].mxu0
      %v4422 = vadd.f32 0.0, %v4421
      %v4423 = vpop.f32.mrb[0].mxu0
      %4424 = vmatprep.mubr.bf16.mxu0 0
      %4425 = vmatmul.mubr.bf16.gmra.mrb[0].mxu0 %v3124
      %v4426 = vpop.f32.mrb[0].mxu0
      %v4427 = vadd.f32 0.0, %v4426
      %v4428 = vpop.f32.mrb[0].mxu0
      %v4429 = vpop.f32.mrb[0].mxu0
      %v4430 = vadd.f32 0.0, %v4429
      %v4431 = vpop.f32.mrb[0].mxu0
      %4432 = vmatprep.mubr.bf16.mxu0 0
      %4433 = vmatmul.mubr.bf16.gmra.mrb[0].mxu0 %v3127
      %v4434 = vpop.f32.mrb[0].mxu0
      %v4435 = vadd.f32 0.0, %v4434
      %v4436 = vpop.f32.mrb[0].mxu0
      %v4437 = vpop.f32.mrb[0].mxu0
      %v4438 = vadd.f32 0.0, %v4437
      %v4439 = vpop.f32.mrb[0].mxu0
      %4440 = vmatprep.mubr.bf16.mxu0 0
      %4441 = vmatmul.mubr.bf16.gmra.mrb[0].mxu0 %v3130
      %v4442 = vpop.f32.mrb[0].mxu0
      %v4443 = vadd.f32 0.0, %v4442
      %v4444 = vpop.f32.mrb[0].mxu0
      %v4445 = vpop.f32.mrb[0].mxu0
      %v4446 = vadd.f32 0.0, %v4445
      %v4447 = vpop.f32.mrb[0].mxu0
      %4448 = vmatprep.mubr.bf16.mxu0 0
      %4449 = vmatmul.mubr.bf16.gmra.mrb[0].mxu0 %v3133
      %v4450 = vpop.f32.mrb[0].mxu0
      %v4451 = vadd.f32 0.0, %v4450
      %v4452 = vpop.f32.mrb[0].mxu0
      %v4453 = vpop.f32.mrb[0].mxu0
      %v4454 = vadd.f32 0.0, %v4453
      %v4455 = vpop.f32.mrb[0].mxu0
      %4456 = vmatprep.mubr.bf16.mxu0 0
      %4457 = vmatmul.mubr.bf16.gmra.mrb[0].mxu0 %v3136
      %v4458 = vpop.f32.mrb[0].mxu0
      %v4459 = vadd.f32 0.0, %v4458
      %v4460 = vpop.f32.mrb[0].mxu0
      %v4461 = vpop.f32.mrb[0].mxu0
      %v4462 = vadd.f32 0.0, %v4461
      %v4463 = vpop.f32.mrb[0].mxu0
      %4464 = vmatprep.mubr.bf16.mxu0 0
      %4465 = vmatmul.mubr.bf16.gmra.mrb[0].mxu0 %v3139
      %v4466 = vpop.f32.mrb[0].mxu0
      %v4467 = vadd.f32 0.0, %v4466
      %v4468 = vpop.f32.mrb[0].mxu0
      %v4469 = vpop.f32.mrb[0].mxu0
      %v4470 = vadd.f32 0.0, %v4469
      %v4471 = vpop.f32.mrb[0].mxu0
      %4472 = vmatprep.mubr.bf16.mxu0 0
      %4473 = vmatmul.mubr.bf16.gmra.mrb[0].mxu0 %v3142
      %v4474 = vpop.f32.mrb[0].mxu0
      %v4475 = vadd.f32 0.0, %v4474
      %v4476 = vpop.f32.mrb[0].mxu0
      %v4477 = vpop.f32.mrb[0].mxu0
      %v4478 = vadd.f32 0.0, %v4477
      %v4479 = vpop.f32.mrb[0].mxu0
      %4480 = vmatprep.mubr.bf16.mxu0 0
      %4481 = vmatmul.mubr.bf16.gmra.mrb[0].mxu0 %v3145
      %v4482 = vpop.f32.mrb[0].mxu0
      %v4483 = vadd.f32 0.0, %v4482
      %v4484 = vpop.f32.mrb[0].mxu0
      %v4485 = vpop.f32.mrb[0].mxu0
      %v4486 = vadd.f32 0.0, %v4485
      %v4487 = vpop.f32.mrb[0].mxu0
      %4488 = vmatprep.mubr.bf16.mxu0 0
      %4489 = vmatmul.mubr.bf16.gmra.mrb[0].mxu0 %v3148
      %v4490 = vpop.f32.mrb[0].mxu0
      %v4491 = vadd.f32 0.0, %v4490
      %v4492 = vpop.f32.mrb[0].mxu0
      %v4493 = vpop.f32.mrb[0].mxu0
      %v4494 = vadd.f32 0.0, %v4493
      %v4495 = vpop.f32.mrb[0].mxu0
      %4496 = vmatprep.mubr.bf16.mxu0 0
      %4497 = vmatmul.mubr.bf16.gmra.mrb[0].mxu0 %v3151
      %v4498 = vpop.f32.mrb[0].mxu0
      %v4499 = vadd.f32 0.0, %v4498
      %v4500 = vpop.f32.mrb[0].mxu0
      %v4501 = vpop.f32.mrb[0].mxu0
      %v4502 = vadd.f32 0.0, %v4501
      %v4503 = vpop.f32.mrb[0].mxu0
      %4504 = vmatprep.mubr.bf16.mxu0 0
      %4505 = vmatmul.mubr.bf16.gmra.mrb[0].mxu0 %v3154
      %v4506 = vpop.f32.mrb[0].mxu0
      %v4507 = vadd.f32 0.0, %v4506
      %v4508 = vpop.f32.mrb[0].mxu0
      %v4509 = vpop.f32.mrb[0].mxu0
      %v4510 = vadd.f32 0.0, %v4509
      %v4511 = vpop.f32.mrb[0].mxu0
      %4512 = vmatprep.mubr.bf16.mxu0 0
      %4513 = vmatmul.mubr.bf16.gmra.mrb[0].mxu0 %v3157
      %v4514 = vpop.f32.mrb[0].mxu0
      %v4515 = vadd.f32 0.0, %v4514
      %v4516 = vpop.f32.mrb[0].mxu0
      %v4517 = vpop.f32.mrb[0].mxu0
      %v4518 = vadd.f32 0.0, %v4517
      %v4519 = vpop.f32.mrb[0].mxu0
      %4520 = vmatprep.mubr.bf16.mxu0 0
      %4521 = vmatmul.mubr.bf16.gmra.mrb[0].mxu0 %v3160
      %v4522 = vpop.f32.mrb[0].mxu0
      %v4523 = vadd.f32 0.0, %v4522
      %v4524 = vpop.f32.mrb[0].mxu0
      %v4525 = vpop.f32.mrb[0].mxu0
      %v4526 = vadd.f32 0.0, %v4525
      %v4527 = vpop.f32.mrb[0].mxu0
      %4528 = vmatprep.mubr.bf16.mxu0 0
      %4529 = vmatmul.mubr.bf16.gmra.mrb[0].mxu0 %v3163
      %v4530 = vpop.f32.mrb[0].mxu0
      %v4531 = vadd.f32 0.0, %v4530
      %v4532 = vpop.f32.mrb[0].mxu0
      %v4533 = vpop.f32.mrb[0].mxu0
      %v4534 = vadd.f32 0.0, %v4533
      %v4535 = vpop.f32.mrb[0].mxu0
      %4536 = vmatprep.mubr.bf16.mxu0 0
      %4537 = vmatmul.mubr.bf16.gmra.mrb[0].mxu0 %v3166
      %v4538 = vpop.f32.mrb[0].mxu0
      %v4539 = vadd.f32 0.0, %v4538
      %v4540 = vpop.f32.mrb[0].mxu0
      %v4541 = vpop.f32.mrb[0].mxu0
      %v4542 = vadd.f32 0.0, %v4541
      %v4543 = vpop.f32.mrb[0].mxu0
      %4544 = vmatprep.mubr.bf16.mxu0 0
      %4545 = vmatmul.mubr.bf16.gmra.mrb[0].mxu0 %v3169
      %v4546 = vpop.f32.mrb[0].mxu0
      %v4547 = vadd.f32 0.0, %v4546
      %v4548 = vpop.f32.mrb[0].mxu0
      %v4549 = vpop.f32.mrb[0].mxu0
      %v4550 = vadd.f32 0.0, %v4549
      %v4551 = vpop.f32.mrb[0].mxu0
      %4552 = vmatprep.mubr.bf16.mxu0 0
      %4553 = vmatmul.mubr.bf16.gmra.mrb[0].mxu0 %v3172
      %v4554 = vpop.f32.mrb[0].mxu0
      %v4555 = vadd.f32 0.0, %v4554
      %v4556 = vpop.f32.mrb[0].mxu0
      %v4557 = vpop.f32.mrb[0].mxu0
      %v4558 = vadd.f32 0.0, %v4557
      %v4559 = vpop.f32.mrb[0].mxu0
      %4560 = vmatprep.mubr.bf16.mxu0 0
      %4561 = vmatmul.mubr.bf16.gmra.mrb[0].mxu0 %v3175
      %v4562 = vpop.f32.mrb[0].mxu0
      %v4563 = vadd.f32 0.0, %v4562
      %v4564 = vpop.f32.mrb[0].mxu0
      %v4565 = vpop.f32.mrb[0].mxu0
      %v4566 = vadd.f32 0.0, %v4565
      %v4567 = vpop.f32.mrb[0].mxu0
      %4568 = vmatprep.mubr.bf16.mxu0 0
      %4569 = vmatmul.mubr.bf16.gmra.mrb[0].mxu0 %v3178
      %v4570 = vpop.f32.mrb[0].mxu0
      %v4571 = vadd.f32 0.0, %v4570
      %v4572 = vpop.f32.mrb[0].mxu0
      %v4573 = vpop.f32.mrb[0].mxu0
      %v4574 = vadd.f32 0.0, %v4573
      %v4575 = vpop.f32.mrb[0].mxu0
      %4576 = vmatprep.mubr.bf16.mxu0 0
      %4577 = vmatmul.mubr.bf16.gmra.mrb[0].mxu0 %v3181
      %v4578 = vpop.f32.mrb[0].mxu0
      %v4579 = vadd.f32 0.0, %v4578
      %v4580 = vpop.f32.mrb[0].mxu0
      %v4581 = vpop.f32.mrb[0].mxu0
      %v4582 = vadd.f32 0.0, %v4581
      %v4583 = vpop.f32.mrb[0].mxu0
      %4584 = vmatprep.mubr.bf16.mxu0 0
      %4585 = vmatmul.mubr.bf16.gmra.mrb[0].mxu0 %v3184
      %v4586 = vpop.f32.mrb[0].mxu0
      %v4587 = vadd.f32 0.0, %v4586
      %v4588 = vpop.f32.mrb[0].mxu0
      %v4589 = vpop.f32.mrb[0].mxu0
      %v4590 = vadd.f32 0.0, %v4589
      %v4591 = vpop.f32.mrb[0].mxu0
      %4592 = vmatprep.mubr.bf16.mxu0 0
      %4593 = vmatmul.mubr.bf16.gmra.mrb[0].mxu0 %v3187
      %v4594 = vpop.f32.mrb[0].mxu0
      %v4595 = vadd.f32 0.0, %v4594
      %v4596 = vpop.f32.mrb[0].mxu0
      %v4597 = vpop.f32.mrb[0].mxu0
      %v4598 = vadd.f32 0.0, %v4597
      %v4599 = vpop.f32.mrb[0].mxu0
      %4600 = vmatprep.mubr.bf16.mxu0 0
      %4601 = vmatmul.mubr.bf16.gmra.mrb[0].mxu0 %v3190
      %v4602 = vpop.f32.mrb[0].mxu0
      %v4603 = vadd.f32 0.0, %v4602
      %v4604 = vpop.f32.mrb[0].mxu0
      %v4605 = vpop.f32.mrb[0].mxu0
      %v4606 = vadd.f32 0.0, %v4605
      %v4607 = vpop.f32.mrb[0].mxu0
      %4608 = vmatprep.mubr.bf16.mxu0 0
      %4609 = vmatmul.mubr.bf16.gmra.mrb[0].mxu0 %v3193
      %v4610 = vpop.f32.mrb[0].mxu0
      %v4611 = vadd.f32 0.0, %v4610
      %v4612 = vpop.f32.mrb[0].mxu0
      %v4613 = vpop.f32.mrb[0].mxu0
      %v4614 = vadd.f32 0.0, %v4613
      %v4615 = vpop.f32.mrb[0].mxu0
      %4616 = vmatprep.mubr.bf16.mxu0 0
      %4617 = vmatmul.mubr.bf16.gmra.mrb[0].mxu0 %v3196
      %v4618 = vpop.f32.mrb[0].mxu0
      %v4619 = vadd.f32 0.0, %v4618
      %v4620 = vpop.f32.mrb[0].mxu0
      %v4621 = vpop.f32.mrb[0].mxu0
      %v4622 = vadd.f32 0.0, %v4621
      %v4623 = vpop.f32.mrb[0].mxu0
      %4624 = vmatprep.mubr.bf16.mxu0 0
      %4625 = vmatmul.mubr.bf16.gmra.mrb[0].mxu0 %v3199
      %v4626 = vpop.f32.mrb[0].mxu0
      %v4627 = vadd.f32 0.0, %v4626
      %v4628 = vpop.f32.mrb[0].mxu0
      %v4629 = vpop.f32.mrb[0].mxu0
      %v4630 = vadd.f32 0.0, %v4629
      %v4631 = vpop.f32.mrb[0].mxu0
      %4632 = vmatprep.mubr.bf16.mxu0 0
      %4633 = vmatmul.mubr.bf16.gmra.mrb[0].mxu0 %v3202
      %v4634 = vpop.f32.mrb[0].mxu0
      %v4635 = vadd.f32 0.0, %v4634
      %v4636 = vpop.f32.mrb[0].mxu0
      %v4637 = vpop.f32.mrb[0].mxu0
      %v4638 = vadd.f32 0.0, %v4637
      %v4639 = vpop.f32.mrb[0].mxu0
      %4640 = vmatprep.mubr.bf16.mxu0 0
      %4641 = vmatmul.mubr.bf16.gmra.mrb[0].mxu0 %v3205
      %v4642 = vpop.f32.mrb[0].mxu0
      %v4643 = vadd.f32 0.0, %v4642
      %v4644 = vpop.f32.mrb[0].mxu0
      %v4645 = vpop.f32.mrb[0].mxu0
      %v4646 = vadd.f32 0.0, %v4645
      %v4647 = vpop.f32.mrb[0].mxu0
      %4648 = vmatprep.mubr.bf16.mxu0 0
      %4649 = vmatmul.mubr.bf16.gmra.mrb[0].mxu0 %v3208
      %v4650 = vpop.f32.mrb[0].mxu0
      %v4651 = vadd.f32 0.0, %v4650
      %v4652 = vpop.f32.mrb[0].mxu0
      %v4653 = vpop.f32.mrb[0].mxu0
      %v4654 = vadd.f32 0.0, %v4653
      %v4655 = vpop.f32.mrb[0].mxu0
      %4656 = vmatprep.mubr.bf16.mxu0 0
      %4657 = vmatmul.mubr.bf16.gmra.mrb[0].mxu0 %v3211
      %v4658 = vpop.f32.mrb[0].mxu0
      %v4659 = vadd.f32 0.0, %v4658
      %v4660 = vpop.f32.mrb[0].mxu0
      %v4661 = vpop.f32.mrb[0].mxu0
      %v4662 = vadd.f32 0.0, %v4661
      %v4663 = vpop.f32.mrb[0].mxu0
      %4664 = vmatprep.mubr.bf16.mxu0 0
      %4665 = vmatmul.mubr.bf16.gmra.mrb[0].mxu0 %v3214
      %v4666 = vpop.f32.mrb[0].mxu0
      %v4667 = vadd.f32 0.0, %v4666
      %v4668 = vpop.f32.mrb[0].mxu0
      %v4669 = vpop.f32.mrb[0].mxu0
      %v4670 = vadd.f32 0.0, %v4669
      %v4671 = vpop.f32.mrb[0].mxu0
      %4672 = vmatprep.mubr.bf16.mxu0 0
      %4673 = vmatmul.mubr.bf16.gmra.mrb[0].mxu0 %v3217
      %v4674 = vpop.f32.mrb[0].mxu0
      %v4675 = vadd.f32 0.0, %v4674
      %v4676 = vpop.f32.mrb[0].mxu0
      %v4677 = vpop.f32.mrb[0].mxu0
      %v4678 = vadd.f32 0.0, %v4677
      %v4679 = vpop.f32.mrb[0].mxu0
      %4680 = vmatprep.mubr.bf16.mxu0 0
      %4681 = vmatmul.mubr.bf16.gmra.mrb[0].mxu0 %v3220
      %v4682 = vpop.f32.mrb[0].mxu0
      %v4683 = vadd.f32 0.0, %v4682
      %v4684 = vpop.f32.mrb[0].mxu0
      %v4685 = vpop.f32.mrb[0].mxu0
      %v4686 = vadd.f32 0.0, %v4685
      %v4687 = vpop.f32.mrb[0].mxu0
      %4688 = vmatprep.mubr.bf16.mxu0 0
      %4689 = vmatmul.mubr.bf16.gmra.mrb[0].mxu0 %v3223
      %v4690 = vpop.f32.mrb[0].mxu0
      %v4691 = vadd.f32 0.0, %v4690
      %v4692 = vpop.f32.mrb[0].mxu0
      %v4693 = vpop.f32.mrb[0].mxu0
      %v4694 = vadd.f32 0.0, %v4693
      %v4695 = vpop.f32.mrb[0].mxu0
      %4696 = vmatprep.mubr.bf16.mxu0 0
      %4697 = vmatmul.mubr.bf16.gmra.mrb[0].mxu0 %v3226
      %v4698 = vpop.f32.mrb[0].mxu0
      %v4699 = vadd.f32 0.0, %v4698
      %v4700 = vpop.f32.mrb[0].mxu0
      %v4701 = vpop.f32.mrb[0].mxu0
      %v4702 = vadd.f32 0.0, %v4701
      %v4703 = vpop.f32.mrb[0].mxu0
      %4704 = vmatprep.mubr.bf16.mxu0 0
      %4705 = vmatmul.mubr.bf16.gmra.mrb[0].mxu0 %v3229
      %v4706 = vpop.f32.mrb[0].mxu0
      %v4707 = vadd.f32 0.0, %v4706
      %v4708 = vpop.f32.mrb[0].mxu0
      %v4709 = vpop.f32.mrb[0].mxu0
      %v4710 = vadd.f32 0.0, %v4709
      %v4711 = vpop.f32.mrb[0].mxu0
      %4712 = vmatprep.mubr.bf16.mxu0 0
      %4713 = vmatmul.mubr.bf16.gmra.mrb[0].mxu0 %v3232
      %v4714 = vpop.f32.mrb[0].mxu0
      %v4715 = vadd.f32 0.0, %v4714
      %v4716 = vpop.f32.mrb[0].mxu0
      %v4717 = vpop.f32.mrb[0].mxu0
      %v4718 = vadd.f32 0.0, %v4717
      %v4719 = vpop.f32.mrb[0].mxu0
      %4720 = vmatprep.mubr.bf16.mxu0 0
      %4721 = vmatmul.mubr.bf16.gmra.mrb[0].mxu0 %v3235
      %v4722 = vpop.f32.mrb[0].mxu0
      %v4723 = vadd.f32 0.0, %v4722
      %v4724 = vpop.f32.mrb[0].mxu0
      %v4725 = vpop.f32.mrb[0].mxu0
      %v4726 = vadd.f32 0.0, %v4725
      %v4727 = vpop.f32.mrb[0].mxu0
      %4728 = vmatprep.mubr.bf16.mxu0 0
      %4729 = vmatmul.mubr.bf16.gmra.mrb[0].mxu0 %v3238
      %v4730 = vpop.f32.mrb[0].mxu0
      %v4731 = vadd.f32 0.0, %v4730
      %v4732 = vpop.f32.mrb[0].mxu0
      %v4733 = vpop.f32.mrb[0].mxu0
      %v4734 = vadd.f32 0.0, %v4733
      %v4735 = vpop.f32.mrb[0].mxu0
      %4736 = vmatprep.mubr.bf16.mxu0 0
      %4737 = vmatmul.mubr.bf16.gmra.mrb[0].mxu0 %v3241
      %v4738 = vpop.f32.mrb[0].mxu0
      %v4739 = vadd.f32 0.0, %v4738
      %v4740 = vpop.f32.mrb[0].mxu0
      %v4741 = vpop.f32.mrb[0].mxu0
      %v4742 = vadd.f32 0.0, %v4741
      %v4743 = vpop.f32.mrb[0].mxu0
      %4744 = vmatprep.mubr.bf16.mxu0 0
      %4745 = vmatmul.mubr.bf16.gmra.mrb[0].mxu0 %v3244
      %v4746 = vpop.f32.mrb[0].mxu0
      %v4747 = vadd.f32 0.0, %v4746
      %v4748 = vpop.f32.mrb[0].mxu0
      %v4749 = vpop.f32.mrb[0].mxu0
      %v4750 = vadd.f32 0.0, %v4749
      %v4751 = vpop.f32.mrb[0].mxu0
      %4752 = vmatprep.mubr.bf16.mxu0 0
      %4753 = vmatmul.mubr.bf16.gmra.mrb[0].mxu0 %v3247
      %v4754 = vpop.f32.mrb[0].mxu0
      %v4755 = vadd.f32 0.0, %v4754
      %v4756 = vpop.f32.mrb[0].mxu0
      %v4757 = vpop.f32.mrb[0].mxu0
      %v4758 = vadd.f32 0.0, %v4757
      %v4759 = vpop.f32.mrb[0].mxu0
      %4760 = vmatprep.mubr.bf16.mxu0 0
      %4761 = vmatmul.mubr.bf16.gmra.mrb[0].mxu0 %v3250
      %v4762 = vpop.f32.mrb[0].mxu0
      %v4763 = vadd.f32 0.0, %v4762
      %v4764 = vpop.f32.mrb[0].mxu0
      %v4765 = vpop.f32.mrb[0].mxu0
      %v4766 = vadd.f32 0.0, %v4765
      %v4767 = vpop.f32.mrb[0].mxu0
      %4768 = vmatprep.mubr.bf16.mxu0 0
      %4769 = vmatmul.mubr.bf16.gmra.mrb[0].mxu0 %v3253
      %v4770 = vpop.f32.mrb[0].mxu0
      %v4771 = vadd.f32 0.0, %v4770
      %v4772 = vpop.f32.mrb[0].mxu0
      %v4773 = vpop.f32.mrb[0].mxu0
      %v4774 = vadd.f32 0.0, %v4773
      %v4775 = vpop.f32.mrb[0].mxu0
      %4776 = vmatprep.mubr.bf16.mxu0 0
      %4777 = vmatmul.mubr.bf16.gmra.mrb[0].mxu0 %v3256
      %v4778 = vpop.f32.mrb[0].mxu0
      %v4779 = vadd.f32 0.0, %v4778
      %v4780 = vpop.f32.mrb[0].mxu0
      %v4781 = vpop.f32.mrb[0].mxu0
      %v4782 = vadd.f32 0.0, %v4781
      %v4783 = vpop.f32.mrb[0].mxu0
      %4784 = vmatprep.mubr.bf16.mxu0 0
      %4785 = vmatmul.mubr.bf16.gmra.mrb[0].mxu0 %v3259
      %v4786 = vpop.f32.mrb[0].mxu0
      %v4787 = vadd.f32 0.0, %v4786
      %v4788 = vpop.f32.mrb[0].mxu0
      %v4789 = vpop.f32.mrb[0].mxu0
      %v4790 = vadd.f32 0.0, %v4789
      %v4791 = vpop.f32.mrb[0].mxu0
      %4792 = vmatprep.mubr.bf16.mxu0 0
      %4793 = vmatmul.mubr.bf16.gmra.mrb[0].mxu0 %v3262
      %v4794 = vpop.f32.mrb[0].mxu0
      %v4795 = vadd.f32 0.0, %v4794
      %v4796 = vpop.f32.mrb[0].mxu0
      %v4797 = vpop.f32.mrb[0].mxu0
      %v4798 = vadd.f32 0.0, %v4797
      %v4799 = vpop.f32.mrb[0].mxu0
      %4800 = vmatprep.mubr.bf16.mxu0 0
      %4801 = vmatmul.mubr.bf16.gmra.mrb[0].mxu0 %v3265
      %v4802 = vpop.f32.mrb[0].mxu0
      %v4803 = vadd.f32 0.0, %v4802
      %v4804 = vpop.f32.mrb[0].mxu0
      %v4805 = vpop.f32.mrb[0].mxu0
      %v4806 = vadd.f32 0.0, %v4805
      %v4807 = vpop.f32.mrb[0].mxu0
      %4808 = vmatprep.mubr.bf16.mxu0 0
      %4809 = vmatmul.mubr.bf16.gmra.mrb[0].mxu0 %v3268
      %v4810 = vpop.f32.mrb[0].mxu0
      %v4811 = vadd.f32 0.0, %v4810
      %v4812 = vpop.f32.mrb[0].mxu0
      %v4813 = vpop.f32.mrb[0].mxu0
      %v4814 = vadd.f32 0.0, %v4813
      %v4815 = vpop.f32.mrb[0].mxu0
      %4816 = vmatprep.mubr.bf16.mxu0 0
      %4817 = vmatmul.mubr.bf16.gmra.mrb[0].mxu0 %v3271
      %v4818 = vpop.f32.mrb[0].mxu0
      %v4819 = vadd.f32 0.0, %v4818
      %v4820 = vpop.f32.mrb[0].mxu0
      %v4821 = vpop.f32.mrb[0].mxu0
      %v4822 = vadd.f32 0.0, %v4821
      %v4823 = vpop.f32.mrb[0].mxu0
      %4824 = vmatprep.mubr.bf16.mxu0 0
      %4825 = vmatmul.mubr.bf16.gmra.mrb[0].mxu0 %v3274
      %v4826 = vpop.f32.mrb[0].mxu0
      %v4827 = vadd.f32 0.0, %v4826
      %v4828 = vpop.f32.mrb[0].mxu0
      %v4829 = vpop.f32.mrb[0].mxu0
      %v4830 = vadd.f32 0.0, %v4829
      %v4831 = vpop.f32.mrb[0].mxu0
      %4832 = vmatprep.mubr.bf16.mxu0 0
      %4833 = vmatmul.mubr.bf16.gmra.mrb[0].mxu0 %v3277
      %v4834 = vpop.f32.mrb[0].mxu0
      %v4835 = vadd.f32 0.0, %v4834
      %v4836 = vpop.f32.mrb[0].mxu0
      %v4837 = vpop.f32.mrb[0].mxu0
      %v4838 = vadd.f32 0.0, %v4837
      %v4839 = vpop.f32.mrb[0].mxu0
      %4840 = vmatprep.mubr.bf16.mxu0 0
      %4841 = vmatmul.mubr.bf16.gmra.mrb[0].mxu0 %v3280
      %v4842 = vpop.f32.mrb[0].mxu0
      %v4843 = vadd.f32 0.0, %v4842
      %v4844 = vpop.f32.mrb[0].mxu0
      %v4845 = vpop.f32.mrb[0].mxu0
      %v4846 = vadd.f32 0.0, %v4845
      %v4847 = vpop.f32.mrb[0].mxu0
      %4848 = vmatprep.mubr.bf16.mxu0 0
      %4849 = vmatmul.mubr.bf16.gmra.mrb[0].mxu0 %v3283
      %v4850 = vpop.f32.mrb[0].mxu0
      %v4851 = vadd.f32 0.0, %v4850
      %v4852 = vpop.f32.mrb[0].mxu0
      %v4853 = vpop.f32.mrb[0].mxu0
      %v4854 = vadd.f32 0.0, %v4853
      %v4855 = vpop.f32.mrb[0].mxu0
      %4856 = vmatprep.mubr.bf16.mxu0 0
      %4857 = vmatmul.mubr.bf16.gmra.mrb[0].mxu0 %v3286
      %v4858 = vpop.f32.mrb[0].mxu0
      %v4859 = vadd.f32 0.0, %v4858
      %v4860 = vpop.f32.mrb[0].mxu0
      %v4861 = vpop.f32.mrb[0].mxu0
      %v4862 = vadd.f32 0.0, %v4861
      %v4863 = vpop.f32.mrb[0].mxu0
      %4864 = vmatprep.mubr.bf16.mxu0 0
      %4865 = vmatmul.mubr.bf16.gmra.mrb[0].mxu0 %v3289
      %v4866 = vpop.f32.mrb[0].mxu0
      %v4867 = vadd.f32 0.0, %v4866
      %v4868 = vpop.f32.mrb[0].mxu0
      %v4869 = vpop.f32.mrb[0].mxu0
      %v4870 = vadd.f32 0.0, %v4869
      %v4871 = vpop.f32.mrb[0].mxu0
      %4872 = vmatprep.mubr.bf16.mxu0 0
      %4873 = vmatmul.mubr.bf16.gmra.mrb[0].mxu0 %v3292
      %v4874 = vpop.f32.mrb[0].mxu0
      %v4875 = vadd.f32 0.0, %v4874
      %v4876 = vpop.f32.mrb[0].mxu0
      %v4877 = vpop.f32.mrb[0].mxu0
      %v4878 = vadd.f32 0.0, %v4877
      %v4879 = vpop.f32.mrb[0].mxu0
      %4880 = vmatprep.mubr.bf16.mxu0 0
      %4881 = vmatmul.mubr.bf16.gmra.mrb[0].mxu0 %v3295
      %v4882 = vpop.f32.mrb[0].mxu0
      %v4883 = vadd.f32 0.0, %v4882
      %v4884 = vpop.f32.mrb[0].mxu0
      %v4885 = vpop.f32.mrb[0].mxu0
      %v4886 = vadd.f32 0.0, %v4885
      %v4887 = vpop.f32.mrb[0].mxu0
      %4888 = vmatprep.mubr.bf16.mxu0 0
      %4889 = vmatmul.mubr.bf16.gmra.mrb[0].mxu0 %v3298
      %v4890 = vpop.f32.mrb[0].mxu0
      %v4891 = vadd.f32 0.0, %v4890
      %v4892 = vpop.f32.mrb[0].mxu0
      %v4893 = vpop.f32.mrb[0].mxu0
      %v4894 = vadd.f32 0.0, %v4893
      %v4895 = vpop.f32.mrb[0].mxu0
      %4896 = vmatprep.mubr.bf16.mxu0 0
      %4897 = vmatmul.mubr.bf16.gmra.mrb[0].mxu0 %v3301
      %v4898 = vpop.f32.mrb[0].mxu0
      %v4899 = vadd.f32 0.0, %v4898
      %v4900 = vpop.f32.mrb[0].mxu0
      %v4901 = vpop.f32.mrb[0].mxu0
      %v4902 = vadd.f32 0.0, %v4901
      %v4903 = vpop.f32.mrb[0].mxu0
      %4904 = vmatprep.mubr.bf16.mxu0 0
      %4905 = vmatmul.mubr.bf16.gmra.mrb[0].mxu0 %v3304
      %v4906 = vpop.f32.mrb[0].mxu0
      %v4907 = vadd.f32 0.0, %v4906
      %v4908 = vpop.f32.mrb[0].mxu0
      %v4909 = vpop.f32.mrb[0].mxu0
      %v4910 = vadd.f32 0.0, %v4909
      %v4911 = vpop.f32.mrb[0].mxu0
      %4912 = vmatprep.mubr.bf16.mxu0 0
      %4913 = vmatmul.mubr.bf16.gmra.mrb[0].mxu0 %v3307
      %v4914 = vpop.f32.mrb[0].mxu0
      %v4915 = vadd.f32 0.0, %v4914
      %v4916 = vpop.f32.mrb[0].mxu0
      %v4917 = vpop.f32.mrb[0].mxu0
      %v4918 = vadd.f32 0.0, %v4917
      %v4919 = vpop.f32.mrb[0].mxu0
      %4920 = vmatprep.mubr.bf16.mxu0 0
      %4921 = vmatmul.mubr.bf16.gmra.mrb[0].mxu0 %v3310
      %v4922 = vpop.f32.mrb[0].mxu0
      %v4923 = vadd.f32 0.0, %v4922
      %v4924 = vpop.f32.mrb[0].mxu0
      %v4925 = vpop.f32.mrb[0].mxu0
      %v4926 = vadd.f32 0.0, %v4925
      %v4927 = vpop.f32.mrb[0].mxu0
      %4928 = vmatprep.mubr.bf16.mxu0 0
      %4929 = vmatmul.mubr.bf16.gmra.mrb[0].mxu0 %v3313
      %v4930 = vpop.f32.mrb[0].mxu0
      %v4931 = vadd.f32 0.0, %v4930
      %v4932 = vpop.f32.mrb[0].mxu0
      %v4933 = vpop.f32.mrb[0].mxu0
      %v4934 = vadd.f32 0.0, %v4933
      %v4935 = vpop.f32.mrb[0].mxu0
      %4936 = vmatprep.mubr.bf16.mxu0 0
      %4937 = vmatmul.mubr.bf16.gmra.mrb[0].mxu0 %v3316
      %v4938 = vpop.f32.mrb[0].mxu0
      %v4939 = vadd.f32 0.0, %v4938
      %v4940 = vpop.f32.mrb[0].mxu0
      %v4941 = vpop.f32.mrb[0].mxu0
      %v4942 = vadd.f32 0.0, %v4941
      %v4943 = vpop.f32.mrb[0].mxu0
      %4944 = vmatprep.mubr.bf16.mxu0 0
      %4945 = vmatmul.mubr.bf16.gmra.mrb[0].mxu0 %v3319
      %v4946 = vpop.f32.mrb[0].mxu0
      %v4947 = vadd.f32 0.0, %v4946
      %v4948 = vpop.f32.mrb[0].mxu0
      %v4949 = vpop.f32.mrb[0].mxu0
      %v4950 = vadd.f32 0.0, %v4949
      %v4951 = vpop.f32.mrb[0].mxu0
      %4952 = vmatprep.mubr.bf16.mxu0 0
      %4953 = vmatmul.mubr.bf16.gmra.mrb[0].mxu0 %v3322
      %v4954 = vpop.f32.mrb[0].mxu0
      %v4955 = vadd.f32 0.0, %v4954
      %v4956 = vpop.f32.mrb[0].mxu0
      %v4957 = vpop.f32.mrb[0].mxu0
      %v4958 = vadd.f32 0.0, %v4957
      %v4959 = vpop.f32.mrb[0].mxu0
      %4960 = vmatprep.mubr.bf16.mxu0 0
      %4961 = vmatmul.mubr.bf16.gmra.mrb[0].mxu0 %v3325
      %v4962 = vpop.f32.mrb[0].mxu0
      %v4963 = vadd.f32 0.0, %v4962
      %v4964 = vpop.f32.mrb[0].mxu0
      %v4965 = vpop.f32.mrb[0].mxu0
      %v4966 = vadd.f32 0.0, %v4965
      %v4967 = vpop.f32.mrb[0].mxu0
      %4968 = vmatprep.mubr.bf16.mxu0 0
      %4969 = vmatmul.mubr.bf16.gmra.mrb[0].mxu0 %v3328
      %v4970 = vpop.f32.mrb[0].mxu0
      %v4971 = vadd.f32 0.0, %v4970
      %v4972 = vpop.f32.mrb[0].mxu0
      %v4973 = vpop.f32.mrb[0].mxu0
      %v4974 = vadd.f32 0.0, %v4973
      %v4975 = vpop.f32.mrb[0].mxu0
      %4976 = vmatprep.mubr.bf16.mxu0 0
      %4977 = vmatmul.mubr.bf16.gmra.mrb[0].mxu0 %v3331
      %v4978 = vpop.f32.mrb[0].mxu0
      %v4979 = vadd.f32 0.0, %v4978
      %v4980 = vpop.f32.mrb[0].mxu0
      %v4981 = vpop.f32.mrb[0].mxu0
      %v4982 = vadd.f32 0.0, %v4981
      %v4983 = vpop.f32.mrb[0].mxu0
      %4984 = vmatprep.mubr.bf16.mxu0 0
      %4985 = vmatmul.mubr.bf16.gmra.mrb[0].mxu0 %v3334
      %v4986 = vpop.f32.mrb[0].mxu0
      %v4987 = vadd.f32 0.0, %v4986
      %v4988 = vpop.f32.mrb[0].mxu0
      %v4989 = vpop.f32.mrb[0].mxu0
      %v4990 = vadd.f32 0.0, %v4989
      %v4991 = vpop.f32.mrb[0].mxu0
      %4992 = vmatprep.mubr.bf16.mxu0 0
      %4993 = vmatmul.mubr.bf16.gmra.mrb[0].mxu0 %v3337
      %v4994 = vpop.f32.mrb[0].mxu0
      %v4995 = vadd.f32 0.0, %v4994
      %v4996 = vpop.f32.mrb[0].mxu0
      %v4997 = vpop.f32.mrb[0].mxu0
      %v4998 = vadd.f32 0.0, %v4997
      %v4999 = vpop.f32.mrb[0].mxu0
      %5000 = vmatprep.mubr.bf16.mxu0 0
      %5001 = vmatmul.mubr.bf16.gmra.mrb[0].mxu0 %v3340
      %v5002 = vpop.f32.mrb[0].mxu0
      %v5003 = vadd.f32 0.0, %v5002
      %v5004 = vpop.f32.mrb[0].mxu0
      %v5005 = vpop.f32.mrb[0].mxu0
      %v5006 = vadd.f32 0.0, %v5005
      %v5007 = vpop.f32.mrb[0].mxu0
      %5008 = vmatprep.mubr.bf16.mxu0 0
      %5009 = vmatmul.mubr.bf16.gmra.mrb[0].mxu0 %v3343
      %v5010 = vpop.f32.mrb[0].mxu0
      %v5011 = vadd.f32 0.0, %v5010
      %v5012 = vpop.f32.mrb[0].mxu0
      %v5013 = vpop.f32.mrb[0].mxu0
      %v5014 = vadd.f32 0.0, %v5013
      %v5015 = vpop.f32.mrb[0].mxu0
      %5016 = vmatprep.mubr.bf16.mxu0 0
      %5017 = vmatmul.mubr.bf16.gmra.mrb[0].mxu0 %v3346
      %v5018 = vpop.f32.mrb[0].mxu0
      %v5019 = vadd.f32 0.0, %v5018
      %v5020 = vpop.f32.mrb[0].mxu0
      %v5021 = vpop.f32.mrb[0].mxu0
      %v5022 = vadd.f32 0.0, %v5021
      %v5023 = vpop.f32.mrb[0].mxu0
      %5024 = vmatprep.mubr.bf16.mxu0 0
      %5025 = vmatmul.mubr.bf16.gmra.mrb[0].mxu0 %v3349
      %v5026 = vpop.f32.mrb[0].mxu0
      %v5027 = vadd.f32 0.0, %v5026
      %v5028 = vpop.f32.mrb[0].mxu0
      %v5029 = vpop.f32.mrb[0].mxu0
      %v5030 = vadd.f32 0.0, %v5029
      %v5031 = vpop.f32.mrb[0].mxu0
      %5032 = vmatprep.mubr.bf16.mxu0 0
      %5033 = vmatmul.mubr.bf16.gmra.mrb[0].mxu0 %v3352
      %v5034 = vpop.f32.mrb[0].mxu0
      %v5035 = vadd.f32 0.0, %v5034
      %v5036 = vpop.f32.mrb[0].mxu0
      %v5037 = vpop.f32.mrb[0].mxu0
      %v5038 = vadd.f32 0.0, %v5037
      %v5039 = vpop.f32.mrb[0].mxu0
      %5040 = vmatprep.mubr.bf16.mxu0 0
      %5041 = vmatmul.mubr.bf16.gmra.mrb[0].mxu0 %v3355
      %v5042 = vpop.f32.mrb[0].mxu0
      %v5043 = vadd.f32 0.0, %v5042
      %v5044 = vpop.f32.mrb[0].mxu0
      %v5045 = vpop.f32.mrb[0].mxu0
      %v5046 = vadd.f32 0.0, %v5045
      %v5047 = vpop.f32.mrb[0].mxu0
      %5048 = vmatprep.mubr.bf16.mxu0 0
      %5049 = vmatmul.mubr.bf16.gmra.mrb[0].mxu0 %v3358
      %v5050 = vpop.f32.mrb[0].mxu0
      %v5051 = vadd.f32 0.0, %v5050
      %v5052 = vpop.f32.mrb[0].mxu0
      %v5053 = vpop.f32.mrb[0].mxu0
      %v5054 = vadd.f32 0.0, %v5053
      %v5055 = vpop.f32.mrb[0].mxu0
      %5056 = vmatprep.mubr.bf16.mxu0 0
      %5057 = vmatmul.mubr.bf16.gmra.mrb[0].mxu0 %v3361
      %v5058 = vpop.f32.mrb[0].mxu0
      %v5059 = vadd.f32 0.0, %v5058
      %v5060 = vpop.f32.mrb[0].mxu0
      %v5061 = vpop.f32.mrb[0].mxu0
      %v5062 = vadd.f32 0.0, %v5061
      %v5063 = vpop.f32.mrb[0].mxu0
      %5064 = vmatprep.mubr.bf16.mxu0 0
      %5065 = vmatmul.mubr.bf16.gmra.mrb[0].mxu0 %v3364
      %v5066 = vpop.f32.mrb[0].mxu0
      %v5067 = vadd.f32 0.0, %v5066
      %v5068 = vpop.f32.mrb[0].mxu0
      %v5069 = vpop.f32.mrb[0].mxu0
      %v5070 = vadd.f32 0.0, %v5069
      %v5071 = vpop.f32.mrb[0].mxu0
      %5072 = vmatprep.mubr.bf16.mxu0 0
      %5073 = vmatmul.mubr.bf16.gmra.mrb[0].mxu0 %v3367
      %v5074 = vpop.f32.mrb[0].mxu0
      %v5075 = vadd.f32 0.0, %v5074
      %v5076 = vpop.f32.mrb[0].mxu0
      %v5077 = vpop.f32.mrb[0].mxu0
      %v5078 = vadd.f32 0.0, %v5077
      %v5079 = vpop.f32.mrb[0].mxu0
      %5080 = vmatprep.mubr.bf16.mxu0 0
      %5081 = vmatmul.mubr.bf16.gmra.mrb[0].mxu0 %v3370
      %v5082 = vpop.f32.mrb[0].mxu0
      %v5083 = vadd.f32 0.0, %v5082
      %v5084 = vpop.f32.mrb[0].mxu0
      %v5085 = vpop.f32.mrb[0].mxu0
      %v5086 = vadd.f32 0.0, %v5085
      %v5087 = vpop.f32.mrb[0].mxu0
      %5088 = vmatprep.mubr.bf16.mxu0 0
      %5089 = vmatmul.mubr.bf16.gmra.mrb[0].mxu0 %v3373
      %v5090 = vpop.f32.mrb[0].mxu0
      %v5091 = vadd.f32 0.0, %v5090
      %v5092 = vpop.f32.mrb[0].mxu0
      %v5093 = vpop.f32.mrb[0].mxu0
      %v5094 = vadd.f32 0.0, %v5093
      %v5095 = vpop.f32.mrb[0].mxu0
      %5096 = vmatprep.mubr.bf16.mxu0 0
      %5097 = vmatmul.mubr.bf16.gmra.mrb[0].mxu0 %v3376
      %v5098 = vpop.f32.mrb[0].mxu0
      %v5099 = vadd.f32 0.0, %v5098
      %v5100 = vpop.f32.mrb[0].mxu0
      %v5101 = vpop.f32.mrb[0].mxu0
      %v5102 = vadd.f32 0.0, %v5101
      %v5103 = vpop.f32.mrb[0].mxu0
      %5104 = vmatprep.mubr.bf16.mxu0 0
      %5105 = vmatmul.mubr.bf16.gmra.mrb[0].mxu0 %v3379
      %v5106 = vpop.f32.mrb[0].mxu0
      %v5107 = vadd.f32 0.0, %v5106
      %v5108 = vpop.f32.mrb[0].mxu0
      %v5109 = vpop.f32.mrb[0].mxu0
      %v5110 = vadd.f32 0.0, %v5109
      %v5111 = vpop.f32.mrb[0].mxu0
      %5112 = vmatprep.mubr.bf16.mxu0 0
      %5113 = vmatmul.mubr.bf16.gmra.mrb[0].mxu0 %v3382
      %v5114 = vpop.f32.mrb[0].mxu0
      %v5115 = vadd.f32 0.0, %v5114
      %v5116 = vpop.f32.mrb[0].mxu0
      %v5117 = vpop.f32.mrb[0].mxu0
      %v5118 = vadd.f32 0.0, %v5117
      %v5119 = vpop.f32.mrb[0].mxu0
      %5120 = vmatprep.mubr.bf16.mxu0 0
      %5121 = vmatmul.mubr.bf16.gmra.mrb[0].mxu0 %v3385
      %v5122 = vpop.f32.mrb[0].mxu0
      %v5123 = vadd.f32 0.0, %v5122
      %v5124 = vpop.f32.mrb[0].mxu0
      %v5125 = vpop.f32.mrb[0].mxu0
      %v5126 = vadd.f32 0.0, %v5125
      %v5127 = vpop.f32.mrb[0].mxu0
      %5128 = vmatprep.mubr.bf16.mxu0 0
      %5129 = vmatmul.mubr.bf16.gmra.mrb[0].mxu0 %v3388
      %v5130 = vpop.f32.mrb[0].mxu0
      %v5131 = vadd.f32 0.0, %v5130
      %v5132 = vpop.f32.mrb[0].mxu0
      %v5133 = vpop.f32.mrb[0].mxu0
      %v5134 = vadd.f32 0.0, %v5133
      %v5135 = vpop.f32.mrb[0].mxu0
      %5136 = vmatprep.mubr.bf16.mxu0 0
      %5137 = vmatmul.mubr.bf16.gmra.mrb[0].mxu0 %v3391
      %v5138 = vpop.f32.mrb[0].mxu0
      %v5139 = vadd.f32 0.0, %v5138
      %v5140 = vpop.f32.mrb[0].mxu0
      %v5141 = vpop.f32.mrb[0].mxu0
      %v5142 = vadd.f32 0.0, %v5141
      %v5143 = vpop.f32.mrb[0].mxu0
      %5144 = vmatprep.mubr.bf16.mxu0 0
      %5145 = vmatmul.mubr.bf16.gmra.mrb[0].mxu0 %v3394
      %v5146 = vpop.f32.mrb[0].mxu0
      %v5147 = vadd.f32 0.0, %v5146
      %v5148 = vpop.f32.mrb[0].mxu0
      %v5149 = vpop.f32.mrb[0].mxu0
      %v5150 = vadd.f32 0.0, %v5149
      %v5151 = vpop.f32.mrb[0].mxu0
      %5152 = vmatprep.mubr.bf16.mxu0 0
      %5153 = vmatmul.mubr.bf16.gmra.mrb[0].mxu0 %v3397
      %v5154 = vpop.f32.mrb[0].mxu0
      %v5155 = vadd.f32 0.0, %v5154
      %v5156 = vpop.f32.mrb[0].mxu0
      %v5157 = vpop.f32.mrb[0].mxu0
      %v5158 = vadd.f32 0.0, %v5157
      %v5159 = vpop.f32.mrb[0].mxu0
      %5160 = vmatprep.mubr.bf16.mxu0 0
      %5161 = vmatmul.mubr.bf16.gmra.mrb[0].mxu0 %v3400
      %v5162 = vpop.f32.mrb[0].mxu0
      %v5163 = vadd.f32 0.0, %v5162
      %v5164 = vpop.f32.mrb[0].mxu0
      %v5165 = vpop.f32.mrb[0].mxu0
      %v5166 = vadd.f32 0.0, %v5165
      %v5167 = vpop.f32.mrb[0].mxu0
      %5168 = vmatprep.mubr.bf16.mxu0 0
      %5169 = vmatmul.mubr.bf16.gmra.mrb[0].mxu0 %v3403
      %v5170 = vpop.f32.mrb[0].mxu0
      %v5171 = vadd.f32 0.0, %v5170
      %v5172 = vpop.f32.mrb[0].mxu0
      %v5173 = vpop.f32.mrb[0].mxu0
      %v5174 = vadd.f32 0.0, %v5173
      %v5175 = vpop.f32.mrb[0].mxu0
      %5176 = vmatprep.mubr.bf16.mxu0 0
      %5177 = vmatmul.mubr.bf16.gmra.mrb[0].mxu0 %v3406
      %v5178 = vpop.f32.mrb[0].mxu0
      %v5179 = vadd.f32 0.0, %v5178
      %v5180 = vpop.f32.mrb[0].mxu0
      %v5181 = vpop.f32.mrb[0].mxu0
      %v5182 = vadd.f32 0.0, %v5181
      %v5183 = vpop.f32.mrb[0].mxu0
      %5184 = vmatprep.mubr.bf16.mxu0 0
      %5185 = vmatmul.mubr.bf16.gmra.mrb[0].mxu0 %v3409
      %v5186 = vpop.f32.mrb[0].mxu0
      %v5187 = vadd.f32 0.0, %v5186
      %v5188 = vpop.f32.mrb[0].mxu0
      %v5189 = vpop.f32.mrb[0].mxu0
      %v5190 = vadd.f32 0.0, %v5189
      %v5191 = vpop.f32.mrb[0].mxu0
      %5192 = vmatprep.mubr.bf16.mxu0 0
      %5193 = vmatmul.mubr.bf16.gmra.mrb[0].mxu0 %v3412
      %v5194 = vpop.f32.mrb[0].mxu0
      %v5195 = vadd.f32 0.0, %v5194
      %v5196 = vpop.f32.mrb[0].mxu0
      %v5197 = vpop.f32.mrb[0].mxu0
      %v5198 = vadd.f32 0.0, %v5197
      %v5199 = vpop.f32.mrb[0].mxu0
      %5200 = vmatprep.mubr.bf16.mxu0 0
      %5201 = vmatmul.mubr.bf16.gmra.mrb[0].mxu0 %v3415
      %v5202 = vpop.f32.mrb[0].mxu0
      %v5203 = vadd.f32 0.0, %v5202
      %v5204 = vpop.f32.mrb[0].mxu0
      %v5205 = vpop.f32.mrb[0].mxu0
      %v5206 = vadd.f32 0.0, %v5205
      %v5207 = vpop.f32.mrb[0].mxu0
      %5208 = vmatprep.mubr.bf16.mxu0 0
      %5209 = vmatmul.mubr.bf16.gmra.mrb[0].mxu0 %v3418
      %v5210 = vpop.f32.mrb[0].mxu0
      %v5211 = vadd.f32 0.0, %v5210
      %v5212 = vpop.f32.mrb[0].mxu0
      %v5213 = vpop.f32.mrb[0].mxu0
      %v5214 = vadd.f32 0.0, %v5213
      %v5215 = vpop.f32.mrb[0].mxu0
      %5216 = vmatprep.mubr.bf16.mxu0 0
      %5217 = vmatmul.mubr.bf16.gmra.mrb[0].mxu0 %v3421
      %v5218 = vpop.f32.mrb[0].mxu0
      %v5219 = vadd.f32 0.0, %v5218
      %v5220 = vpop.f32.mrb[0].mxu0
      %v5221 = vpop.f32.mrb[0].mxu0
      %v5222 = vadd.f32 0.0, %v5221
      %v5223 = vpop.f32.mrb[0].mxu0
      %5224 = vmatprep.mubr.bf16.mxu0 0
      %5225 = vmatmul.mubr.bf16.gmra.mrb[0].mxu0 %v3424
      %v5226 = vpop.f32.mrb[0].mxu0
      %v5227 = vadd.f32 0.0, %v5226
      %v5228 = vpop.f32.mrb[0].mxu0
      %v5229 = vpop.f32.mrb[0].mxu0
      %v5230 = vadd.f32 0.0, %v5229
      %v5231 = vpop.f32.mrb[0].mxu0
      %5232 = vmatprep.mubr.bf16.mxu0 0
      %5233 = vmatmul.mubr.bf16.gmra.mrb[0].mxu0 %v3427
      %v5234 = vpop.f32.mrb[0].mxu0
      %v5235 = vadd.f32 0.0, %v5234
      %v5236 = vpop.f32.mrb[0].mxu0
      %v5237 = vpop.f32.mrb[0].mxu0
      %v5238 = vadd.f32 0.0, %v5237
      %v5239 = vpop.f32.mrb[0].mxu0
      %5240 = vmatprep.mubr.bf16.mxu0 0
      %5241 = vmatmul.mubr.bf16.gmra.mrb[0].mxu0 %v3430
      %v5242 = vpop.f32.mrb[0].mxu0
      %v5243 = vadd.f32 0.0, %v5242
      %v5244 = vpop.f32.mrb[0].mxu0
      %v5245 = vpop.f32.mrb[0].mxu0
      %v5246 = vadd.f32 0.0, %v5245
      %v5247 = vpop.f32.mrb[0].mxu0
      %5248 = vmatprep.mubr.bf16.mxu0 0
      %5249 = vmatmul.mubr.bf16.gmra.mrb[0].mxu0 %v3433
      %v5250 = vpop.f32.mrb[0].mxu0
      %v5251 = vadd.f32 0.0, %v5250
      %v5252 = vpop.f32.mrb[0].mxu0
      %v5253 = vpop.f32.mrb[0].mxu0
      %v5254 = vadd.f32 0.0, %v5253
      %v5255 = vpop.f32.mrb[0].mxu0
      %5256 = vmatprep.mubr.bf16.mxu0 0
      %5257 = vmatmul.mubr.bf16.gmra.mrb[0].mxu0 %v3436
      %v5258 = vpop.f32.mrb[0].mxu0
      %v5259 = vadd.f32 0.0, %v5258
      %v5260 = vpop.f32.mrb[0].mxu0
      %v5261 = vpop.f32.mrb[0].mxu0
      %v5262 = vadd.f32 0.0, %v5261
      %v5263 = vpop.f32.mrb[0].mxu0
      %5264 = vmatprep.mubr.bf16.mxu0 0
      %5265 = vmatmul.mubr.bf16.gmra.mrb[0].mxu0 %v3439
      %v5266 = vpop.f32.mrb[0].mxu0
      %v5267 = vadd.f32 0.0, %v5266
      %v5268 = vpop.f32.mrb[0].mxu0
      %v5269 = vpop.f32.mrb[0].mxu0
      %v5270 = vadd.f32 0.0, %v5269
      %v5271 = vpop.f32.mrb[0].mxu0
      %5272 = vmatprep.mubr.bf16.mxu0 0
      %5273 = vmatmul.mubr.bf16.gmra.mrb[0].mxu0 %v3442
      %v5274 = vpop.f32.mrb[0].mxu0
      %v5275 = vadd.f32 0.0, %v5274
      %v5276 = vpop.f32.mrb[0].mxu0
      %v5277 = vpop.f32.mrb[0].mxu0
      %v5278 = vadd.f32 0.0, %v5277
      %v5279 = vpop.f32.mrb[0].mxu0
      %5280 = vmatprep.mubr.bf16.mxu0 0
      %5281 = vmatmul.mubr.bf16.gmra.mrb[0].mxu0 %v3445
      %v5282 = vpop.f32.mrb[0].mxu0
      %v5283 = vadd.f32 0.0, %v5282
      %v5284 = vpop.f32.mrb[0].mxu0
      %v5285 = vpop.f32.mrb[0].mxu0
      %v5286 = vadd.f32 0.0, %v5285
      %v5287 = vpop.f32.mrb[0].mxu0
      %5288 = vmatprep.mubr.bf16.mxu0 0
      %5289 = vmatmul.mubr.bf16.gmra.mrb[0].mxu0 %v3448
      %v5290 = vpop.f32.mrb[0].mxu0
      %v5291 = vadd.f32 0.0, %v5290
      %v5292 = vpop.f32.mrb[0].mxu0
      %v5293 = vpop.f32.mrb[0].mxu0
      %v5294 = vadd.f32 0.0, %v5293
      %v5295 = vpop.f32.mrb[0].mxu0
      %5296 = vmatprep.mubr.bf16.mxu0 0
      %5297 = vmatmul.mubr.bf16.gmra.mrb[0].mxu0 %v3451
      %v5298 = vpop.f32.mrb[0].mxu0
      %v5299 = vadd.f32 0.0, %v5298
      %v5300 = vpop.f32.mrb[0].mxu0
      %v5301 = vpop.f32.mrb[0].mxu0
      %v5302 = vadd.f32 0.0, %v5301
      %v5303 = vpop.f32.mrb[0].mxu0
      %5304 = vmatprep.mubr.bf16.mxu0 0
      %5305 = vmatmul.mubr.bf16.gmra.mrb[0].mxu0 %v3454
      %v5306 = vpop.f32.mrb[0].mxu0
      %v5307 = vadd.f32 0.0, %v5306
      %v5308 = vpop.f32.mrb[0].mxu0
      %v5309 = vpop.f32.mrb[0].mxu0
      %v5310 = vadd.f32 0.0, %v5309
      %v5311 = vpop.f32.mrb[0].mxu0
      %5312 = vmatprep.mubr.bf16.mxu0 0
      %5313 = vmatmul.mubr.bf16.gmra.mrb[0].mxu0 %v3457
      %v5314 = vpop.f32.mrb[0].mxu0
      %v5315 = vadd.f32 0.0, %v5314
      %v5316 = vpop.f32.mrb[0].mxu0
      %v5317 = vpop.f32.mrb[0].mxu0
      %v5318 = vadd.f32 0.0, %v5317
      %v5319 = vpop.f32.mrb[0].mxu0
      %5320 = vmatprep.mubr.bf16.mxu0 0
      %5321 = vmatmul.mubr.bf16.gmra.mrb[0].mxu0 %v3460
      %v5322 = vpop.f32.mrb[0].mxu0
      %v5323 = vadd.f32 0.0, %v5322
      %v5324 = vpop.f32.mrb[0].mxu0
      %v5325 = vpop.f32.mrb[0].mxu0
      %v5326 = vadd.f32 0.0, %v5325
      %v5327 = vpop.f32.mrb[0].mxu0
      %5328 = vmatprep.mubr.bf16.mxu0 0
      %5329 = vmatmul.mubr.bf16.gmra.mrb[0].mxu0 %v3463
      %v5330 = vpop.f32.mrb[0].mxu0
      %v5331 = vadd.f32 0.0, %v5330
      %v5332 = vpop.f32.mrb[0].mxu0
      %v5333 = vpop.f32.mrb[0].mxu0
      %v5334 = vadd.f32 0.0, %v5333
      %v5335 = vpop.f32.mrb[0].mxu0
      %5336 = vmatprep.mubr.bf16.mxu0 0
      %5337 = vmatmul.mubr.bf16.gmra.mrb[0].mxu0 %v3466
      %v5338 = vpop.f32.mrb[0].mxu0
      %v5339 = vadd.f32 0.0, %v5338
      %v5340 = vpop.f32.mrb[0].mxu0
      %v5341 = vpop.f32.mrb[0].mxu0
      %v5342 = vadd.f32 0.0, %v5341
      %v5343 = vpop.f32.mrb[0].mxu0
      %5344 = vmatprep.mubr.bf16.mxu0 0
      %5345 = vmatmul.mubr.bf16.gmra.mrb[0].mxu0 %v3469
      %v5346 = vpop.f32.mrb[0].mxu0
      %v5347 = vadd.f32 0.0, %v5346
      %v5348 = vpop.f32.mrb[0].mxu0
      %v5349 = vpop.f32.mrb[0].mxu0
      %v5350 = vadd.f32 0.0, %v5349
      %v5351 = vpop.f32.mrb[0].mxu0
      %5352 = vmatprep.mubr.bf16.mxu0 0
      %5353 = vmatmul.mubr.bf16.gmra.mrb[0].mxu0 %v3472
      %v5354 = vpop.f32.mrb[0].mxu0
      %v5355 = vadd.f32 0.0, %v5354
      %v5356 = vpop.f32.mrb[0].mxu0
      %v5357 = vpop.f32.mrb[0].mxu0
      %v5358 = vadd.f32 0.0, %v5357
      %v5359 = vpop.f32.mrb[0].mxu0
      %5360 = vmatprep.mubr.bf16.mxu0 0
      %5361 = vmatmul.mubr.bf16.gmra.mrb[0].mxu0 %v3475
      %v5362 = vpop.f32.mrb[0].mxu0
      %v5363 = vadd.f32 0.0, %v5362
      %v5364 = vpop.f32.mrb[0].mxu0
      %v5365 = vpop.f32.mrb[0].mxu0
      %v5366 = vadd.f32 0.0, %v5365
      %v5367 = vpop.f32.mrb[0].mxu0
      %5368 = vmatprep.mubr.bf16.mxu0 0
      %5369 = vmatmul.mubr.bf16.gmra.mrb[0].mxu0 %v3478
      %v5370 = vpop.f32.mrb[0].mxu0
      %v5371 = vadd.f32 0.0, %v5370
      %v5372 = vpop.f32.mrb[0].mxu0
      %v5373 = vpop.f32.mrb[0].mxu0
      %v5374 = vadd.f32 0.0, %v5373
      %v5375 = vpop.f32.mrb[0].mxu0
      %5376 = vmatprep.mubr.bf16.mxu0 0
      %5377 = vmatmul.mubr.bf16.gmra.mrb[0].mxu0 %v3481
      %v5378 = vpop.f32.mrb[0].mxu0
      %v5379 = vadd.f32 0.0, %v5378
      %v5380 = vpop.f32.mrb[0].mxu0
      %v5381 = vpop.f32.mrb[0].mxu0
      %v5382 = vadd.f32 0.0, %v5381
      %v5383 = vpop.f32.mrb[0].mxu0
      %5384 = vmatprep.mubr.bf16.mxu0 0
      %5385 = vmatmul.mubr.bf16.gmra.mrb[0].mxu0 %v3484
      %v5386 = vpop.f32.mrb[0].mxu0
      %v5387 = vadd.f32 0.0, %v5386
      %v5388 = vpop.f32.mrb[0].mxu0
      %v5389 = vpop.f32.mrb[0].mxu0
      %v5390 = vadd.f32 0.0, %v5389
      %v5391 = vpop.f32.mrb[0].mxu0
      %5392 = vmatprep.mubr.bf16.mxu0 0
      %5393 = vmatmul.mubr.bf16.gmra.mrb[0].mxu0 %v3487
      %v5394 = vpop.f32.mrb[0].mxu0
      %v5395 = vadd.f32 0.0, %v5394
      %v5396 = vpop.f32.mrb[0].mxu0
      %v5397 = vpop.f32.mrb[0].mxu0
      %v5398 = vadd.f32 0.0, %v5397
      %v5399 = vpop.f32.mrb[0].mxu0
      %5400 = vmatprep.mubr.bf16.mxu0 0
      %5401 = vmatmul.mubr.bf16.gmra.mrb[0].mxu0 %v3490
      %v5402 = vpop.f32.mrb[0].mxu0
      %v5403 = vadd.f32 0.0, %v5402
      %v5404 = vpop.f32.mrb[0].mxu0
      %v5405 = vpop.f32.mrb[0].mxu0
      %v5406 = vadd.f32 0.0, %v5405
      %v5407 = vpop.f32.mrb[0].mxu0
      %5408 = vmatprep.mubr.bf16.mxu0 0
      %5409 = vmatmul.mubr.bf16.gmra.mrb[0].mxu0 %v3493
      %v5410 = vpop.f32.mrb[0].mxu0
      %v5411 = vadd.f32 0.0, %v5410
      %v5412 = vpop.f32.mrb[0].mxu0
      %v5413 = vpop.f32.mrb[0].mxu0
      %v5414 = vadd.f32 0.0, %v5413
      %v5415 = vpop.f32.mrb[0].mxu0
      %5416 = vmatprep.mubr.bf16.mxu0 0
      %5417 = vmatmul.mubr.bf16.gmra.mrb[0].mxu0 %v3496
      %v5418 = vpop.f32.mrb[0].mxu0
      %v5419 = vadd.f32 0.0, %v5418
      %v5420 = vpop.f32.mrb[0].mxu0
      %v5421 = vpop.f32.mrb[0].mxu0
      %v5422 = vadd.f32 0.0, %v5421
      %v5423 = vpop.f32.mrb[0].mxu0
      %5424 = vmatprep.mubr.bf16.mxu0 0
      %5425 = vmatmul.mubr.bf16.gmra.mrb[0].mxu0 %v3499
      %v5426 = vpop.f32.mrb[0].mxu0
      %v5427 = vadd.f32 0.0, %v5426
      %v5428 = vpop.f32.mrb[0].mxu0
      %v5429 = vpop.f32.mrb[0].mxu0
      %v5430 = vadd.f32 0.0, %v5429
      %v5431 = vpop.f32.mrb[0].mxu0
      %5432 = vmatprep.mubr.bf16.mxu0 0
      %5433 = vmatmul.mubr.bf16.gmra.mrb[0].mxu0 %v3502
      %v5434 = vpop.f32.mrb[0].mxu0
      %v5435 = vadd.f32 0.0, %v5434
      %v5436 = vpop.f32.mrb[0].mxu0
      %v5437 = vpop.f32.mrb[0].mxu0
      %v5438 = vadd.f32 0.0, %v5437
      %v5439 = vpop.f32.mrb[0].mxu0
      %5440 = vmatprep.mubr.bf16.mxu0 0
      %5441 = vmatmul.mubr.bf16.gmra.mrb[0].mxu0 %v3505
      %v5442 = vpop.f32.mrb[0].mxu0
      %v5443 = vadd.f32 0.0, %v5442
      %v5444 = vpop.f32.mrb[0].mxu0
      %v5445 = vpop.f32.mrb[0].mxu0
      %v5446 = vadd.f32 0.0, %v5445
      %v5447 = vpop.f32.mrb[0].mxu0
      %5448 = vmatprep.mubr.bf16.mxu0 0
      %5449 = vmatmul.mubr.bf16.gmra.mrb[0].mxu0 %v3508
      %v5450 = vpop.f32.mrb[0].mxu0
      %v5451 = vadd.f32 0.0, %v5450
      %v5452 = vpop.f32.mrb[0].mxu0
      %v5453 = vpop.f32.mrb[0].mxu0
      %v5454 = vadd.f32 0.0, %v5453
      %v5455 = vpop.f32.mrb[0].mxu0
      %5456 = vmatprep.mubr.bf16.mxu0 0
      %5457 = vmatmul.mubr.bf16.gmra.mrb[0].mxu0 %v3511
      %v5458 = vpop.f32.mrb[0].mxu0
      %v5459 = vadd.f32 0.0, %v5458
      %v5460 = vpop.f32.mrb[0].mxu0
      %v5461 = vpop.f32.mrb[0].mxu0
      %v5462 = vadd.f32 0.0, %v5461
      %v5463 = vpop.f32.mrb[0].mxu0
      %5464 = vmatprep.mubr.bf16.mxu0 0
      %5465 = vmatmul.mubr.bf16.gmra.mrb[0].mxu0 %v3514
      %v5466 = vpop.f32.mrb[0].mxu0
      %v5467 = vadd.f32 0.0, %v5466
      %v5468 = vpop.f32.mrb[0].mxu0
      %v5469 = vpop.f32.mrb[0].mxu0
      %v5470 = vadd.f32 0.0, %v5469
      %v5471 = vpop.f32.mrb[0].mxu0
      %5472 = vmatprep.mubr.bf16.mxu0 0
      %5473 = vmatmul.mubr.bf16.gmra.mrb[0].mxu0 %v3517
      %v5474 = vpop.f32.mrb[0].mxu0
      %v5475 = vadd.f32 0.0, %v5474
      %v5476 = vpop.f32.mrb[0].mxu0
      %v5477 = vpop.f32.mrb[0].mxu0
      %v5478 = vadd.f32 0.0, %v5477
      %v5479 = vpop.f32.mrb[0].mxu0
      %5480 = vmatprep.mubr.bf16.mxu0 0
      %5481 = vmatmul.mubr.bf16.gmra.mrb[0].mxu0 %v3520
      %v5482 = vpop.f32.mrb[0].mxu0
      %v5483 = vadd.f32 0.0, %v5482
      %v5484 = vpop.f32.mrb[0].mxu0
      %v5485 = vpop.f32.mrb[0].mxu0
      %v5486 = vadd.f32 0.0, %v5485
      %v5487 = vpop.f32.mrb[0].mxu0
      %5488 = vmatprep.mubr.bf16.mxu0 0
      %5489 = vmatmul.mubr.bf16.gmra.mrb[0].mxu0 %v3523
      %v5490 = vpop.f32.mrb[0].mxu0
      %v5491 = vadd.f32 0.0, %v5490
      %v5492 = vpop.f32.mrb[0].mxu0
      %v5493 = vpop.f32.mrb[0].mxu0
      %v5494 = vadd.f32 0.0, %v5493
      %v5495 = vpop.f32.mrb[0].mxu0
      %5496 = vmatprep.mubr.bf16.mxu0 0
      %5497 = vmatmul.mubr.bf16.gmra.mrb[0].mxu0 %v3526
      %v5498 = vpop.f32.mrb[0].mxu0
      %v5499 = vadd.f32 0.0, %v5498
      %v5500 = vpop.f32.mrb[0].mxu0
      %v5501 = vpop.f32.mrb[0].mxu0
      %v5502 = vadd.f32 0.0, %v5501
      %v5503 = vpop.f32.mrb[0].mxu0
      %5504 = vmatprep.mubr.bf16.mxu0 0
      %5505 = vmatmul.mubr.bf16.gmra.mrb[0].mxu0 %v3529
      %v5506 = vpop.f32.mrb[0].mxu0
      %v5507 = vadd.f32 0.0, %v5506
      %v5508 = vpop.f32.mrb[0].mxu0
      %v5509 = vpop.f32.mrb[0].mxu0
      %v5510 = vadd.f32 0.0, %v5509
      %v5511 = vpop.f32.mrb[0].mxu0
      %5512 = vmatprep.mubr.bf16.mxu0 0
      %5513 = vmatmul.mubr.bf16.gmra.mrb[0].mxu0 %v3532
      %v5514 = vpop.f32.mrb[0].mxu0
      %v5515 = vadd.f32 0.0, %v5514
      %v5516 = vpop.f32.mrb[0].mxu0
      %v5517 = vpop.f32.mrb[0].mxu0
      %v5518 = vadd.f32 0.0, %v5517
      %v5519 = vpop.f32.mrb[0].mxu0
      %5520 = vmatprep.mubr.bf16.mxu0 0
      %5521 = vmatmul.mubr.bf16.gmra.mrb[0].mxu0 %v3535
      %v5522 = vpop.f32.mrb[0].mxu0
      %v5523 = vadd.f32 0.0, %v5522
      %v5524 = vpop.f32.mrb[0].mxu0
      %v5525 = vpop.f32.mrb[0].mxu0
      %v5526 = vadd.f32 0.0, %v5525
      %v5527 = vpop.f32.mrb[0].mxu0
      %5528 = vmatprep.mubr.bf16.mxu0 0
      %5529 = vmatmul.mubr.bf16.gmra.mrb[0].mxu0 %v3538
      %v5530 = vpop.f32.mrb[0].mxu0
      %v5531 = vadd.f32 0.0, %v5530
      %v5532 = vpop.f32.mrb[0].mxu0
      %v5533 = vpop.f32.mrb[0].mxu0
      %v5534 = vadd.f32 0.0, %v5533
      %v5535 = vpop.f32.mrb[0].mxu0
      %5536 = vmatprep.mubr.bf16.mxu0 0
      %5537 = vmatmul.mubr.bf16.gmra.mrb[0].mxu0 %v3541
      %v5538 = vpop.f32.mrb[0].mxu0
      %v5539 = vadd.f32 0.0, %v5538
      %v5540 = vpop.f32.mrb[0].mxu0
      %v5541 = vpop.f32.mrb[0].mxu0
      %v5542 = vadd.f32 0.0, %v5541
      %v5543 = vpop.f32.mrb[0].mxu0
      %5544 = vmatprep.mubr.bf16.mxu0 0
      %5545 = vmatmul.mubr.bf16.gmra.mrb[0].mxu0 %v3544
      %v5546 = vpop.f32.mrb[0].mxu0
      %v5547 = vadd.f32 0.0, %v5546
      %v5548 = vpop.f32.mrb[0].mxu0
      %v5549 = vpop.f32.mrb[0].mxu0
      %v5550 = vadd.f32 0.0, %v5549
      %v5551 = vpop.f32.mrb[0].mxu0
      %5552 = vmatprep.mubr.bf16.mxu0 0
      %5553 = vmatmul.mubr.bf16.gmra.mrb[0].mxu0 %v3547
      %v5554 = vpop.f32.mrb[0].mxu0
      %v5555 = vadd.f32 0.0, %v5554
      %v5556 = vpop.f32.mrb[0].mxu0
      %v5557 = vpop.f32.mrb[0].mxu0
      %v5558 = vadd.f32 0.0, %v5557
      %v5559 = vpop.f32.mrb[0].mxu0
      %5560 = vmatprep.mubr.bf16.mxu0 0
      %5561 = vmatmul.mubr.bf16.gmra.mrb[0].mxu0 %v3550
      %v5562 = vpop.f32.mrb[0].mxu0
      %v5563 = vadd.f32 0.0, %v5562
      %v5564 = vpop.f32.mrb[0].mxu0
      %v5565 = vpop.f32.mrb[0].mxu0
      %v5566 = vadd.f32 0.0, %v5565
      %v5567 = vpop.f32.mrb[0].mxu0
      %5568 = vmatprep.mubr.bf16.mxu0 0
      %5569 = vmatmul.mubr.bf16.gmra.mrb[0].mxu0 %v3553
      %v5570 = vpop.f32.mrb[0].mxu0
      %v5571 = vadd.f32 0.0, %v5570
      %v5572 = vpop.f32.mrb[0].mxu0
      %v5573 = vpop.f32.mrb[0].mxu0
      %v5574 = vadd.f32 0.0, %v5573
      %v5575 = vpop.f32.mrb[0].mxu0
      %5576 = vmatprep.mubr.bf16.mxu0 0
      %5577 = vmatmul.mubr.bf16.gmra.mrb[0].mxu0 %v3556
      %v5578 = vpop.f32.mrb[0].mxu0
      %v5579 = vadd.f32 0.0, %v5578
      %v5580 = vpop.f32.mrb[0].mxu0
      %v5581 = vpop.f32.mrb[0].mxu0
      %v5582 = vadd.f32 0.0, %v5581
      %v5583 = vpop.f32.mrb[0].mxu0
      %5584 = vmatprep.mubr.bf16.mxu0 0
      %5585 = vmatmul.mubr.bf16.gmra.mrb[0].mxu0 %v3559
      %v5586 = vpop.f32.mrb[0].mxu0
      %v5587 = vadd.f32 0.0, %v5586
      %v5588 = vpop.f32.mrb[0].mxu0
      %v5589 = vpop.f32.mrb[0].mxu0
      %v5590 = vadd.f32 0.0, %v5589
      %v5591 = vpop.f32.mrb[0].mxu0
      %5592 = vmatprep.mubr.bf16.mxu0 0
      %5593 = vmatmul.mubr.bf16.gmra.mrb[0].mxu0 %v3562
      %v5594 = vpop.f32.mrb[0].mxu0
      %v5595 = vadd.f32 0.0, %v5594
      %v5596 = vpop.f32.mrb[0].mxu0
      %v5597 = vpop.f32.mrb[0].mxu0
      %v5598 = vadd.f32 0.0, %v5597
      %v5599 = vpop.f32.mrb[0].mxu0
      %5600 = vmatprep.mubr.bf16.mxu0 0
      %5601 = vmatmul.mubr.bf16.gmra.mrb[0].mxu0 %v3565
      %v5602 = vpop.f32.mrb[0].mxu0
      %v5603 = vadd.f32 0.0, %v5602
      %v5604 = vpop.f32.mrb[0].mxu0
      %v5605 = vpop.f32.mrb[0].mxu0
      %v5606 = vadd.f32 0.0, %v5605
      %v5607 = vpop.f32.mrb[0].mxu0
      %5608 = vmatprep.mubr.bf16.mxu0 0
      %5609 = vmatmul.mubr.bf16.gmra.mrb[0].mxu0 %v3568
      %v5610 = vpop.f32.mrb[0].mxu0
      %v5611 = vadd.f32 0.0, %v5610
      %v5612 = vpop.f32.mrb[0].mxu0
      %v5613 = vpop.f32.mrb[0].mxu0
      %v5614 = vadd.f32 0.0, %v5613
      %v5615 = vpop.f32.mrb[0].mxu0
      %5616 = vmatprep.mubr.bf16.mxu0 0
      %5617 = vmatmul.mubr.bf16.gmra.mrb[0].mxu0 %v3571
      %v5618 = vpop.f32.mrb[0].mxu0
      %v5619 = vadd.f32 0.0, %v5618
      %v5620 = vpop.f32.mrb[0].mxu0
      %v5621 = vpop.f32.mrb[0].mxu0
      %v5622 = vadd.f32 0.0, %v5621
      %v5623 = vpop.f32.mrb[0].mxu0
      %5624 = vmatprep.mubr.bf16.mxu0 0
      %5625 = vmatmul.mubr.bf16.gmra.mrb[0].mxu0 %v3574
      %v5626 = vpop.f32.mrb[0].mxu0
      %v5627 = vadd.f32 0.0, %v5626
      %v5628 = vpop.f32.mrb[0].mxu0
      %v5629 = vpop.f32.mrb[0].mxu0
      %v5630 = vadd.f32 0.0, %v5629
      %v5631 = vpop.f32.mrb[0].mxu0
      %5632 = vmatprep.mubr.bf16.mxu0 0
      %5633 = vmatmul.mubr.bf16.gmra.mrb[0].mxu0 %v3577
      %v5634 = vpop.f32.mrb[0].mxu0
      %v5635 = vadd.f32 0.0, %v5634
      %v5636 = vpop.f32.mrb[0].mxu0
      %v5637 = vpop.f32.mrb[0].mxu0
      %v5638 = vadd.f32 0.0, %v5637
      %v5639 = vpop.f32.mrb[0].mxu0
      %5640 = vmatprep.mubr.bf16.mxu0 0
      %5641 = vmatmul.mubr.bf16.gmra.mrb[0].mxu0 %v3580
      %v5642 = vpop.f32.mrb[0].mxu0
      %v5643 = vadd.f32 0.0, %v5642
      %v5644 = vpop.f32.mrb[0].mxu0
      %v5645 = vpop.f32.mrb[0].mxu0
      %v5646 = vadd.f32 0.0, %v5645
      %v5647 = vpop.f32.mrb[0].mxu0
      %5648 = vmatprep.mubr.bf16.mxu0 0
      %5649 = vmatmul.mubr.bf16.gmra.mrb[0].mxu0 %v3583
      %v5650 = vpop.f32.mrb[0].mxu0
      %v5651 = vadd.f32 0.0, %v5650
      %v5652 = vpop.f32.mrb[0].mxu0
      %v5653 = vpop.f32.mrb[0].mxu0
      %v5654 = vadd.f32 0.0, %v5653
      %v5655 = vpop.f32.mrb[0].mxu0
      %5656 = vmatprep.mubr.bf16.mxu0 0
      %5657 = vmatmul.mubr.bf16.gmra.mrb[0].mxu0 %v3586
      %v5658 = vpop.f32.mrb[0].mxu0
      %v5659 = vadd.f32 0.0, %v5658
      %v5660 = vpop.f32.mrb[0].mxu0
      %v5661 = vpop.f32.mrb[0].mxu0
      %v5662 = vadd.f32 0.0, %v5661
      %v5663 = vpop.f32.mrb[0].mxu0
      %5664 = vmatprep.mubr.bf16.mxu0 0
      %5665 = vmatmul.mubr.bf16.gmra.mrb[0].mxu0 %v3589
      %v5666 = vpop.f32.mrb[0].mxu0
      %v5667 = vadd.f32 0.0, %v5666
      %v5668 = vpop.f32.mrb[0].mxu0
      %v5669 = vpop.f32.mrb[0].mxu0
      %v5670 = vadd.f32 0.0, %v5669
      %v5671 = vpop.f32.mrb[0].mxu0
      %5672 = vmatprep.mubr.bf16.mxu0 0
      %5673 = vmatmul.mubr.bf16.gmra.mrb[0].mxu0 %v3592
      %v5674 = vpop.f32.mrb[0].mxu0
      %v5675 = vadd.f32 0.0, %v5674
      %v5676 = vpop.f32.mrb[0].mxu0
      %v5677 = vpop.f32.mrb[0].mxu0
      %v5678 = vadd.f32 0.0, %v5677
      %v5679 = vpop.f32.mrb[0].mxu0
      %5680 = vmatprep.mubr.bf16.mxu0 0
      %5681 = vmatmul.mubr.bf16.gmra.mrb[0].mxu0 %v3595
      %v5682 = vpop.f32.mrb[0].mxu0
      %v5683 = vadd.f32 0.0, %v5682
      %v5684 = vpop.f32.mrb[0].mxu0
      %v5685 = vpop.f32.mrb[0].mxu0
      %v5686 = vadd.f32 0.0, %v5685
      %v5687 = vpop.f32.mrb[0].mxu0
      %5688 = vmatprep.mubr.bf16.mxu0 0
      %5689 = vmatmul.mubr.bf16.gmra.mrb[0].mxu0 %v3598
      %v5690 = vpop.f32.mrb[0].mxu0
      %v5691 = vadd.f32 0.0, %v5690
      %v5692 = vpop.f32.mrb[0].mxu0
      %v5693 = vpop.f32.mrb[0].mxu0
      %v5694 = vadd.f32 0.0, %v5693
      %v5695 = vpop.f32.mrb[0].mxu0
      %5696 = vmatprep.mubr.bf16.mxu0 0
      %5697 = vmatmul.mubr.bf16.gmra.mrb[0].mxu0 %v3601
      %v5698 = vpop.f32.mrb[0].mxu0
      %v5699 = vadd.f32 0.0, %v5698
      %v5700 = vpop.f32.mrb[0].mxu0
      %v5701 = vpop.f32.mrb[0].mxu0
      %v5702 = vadd.f32 0.0, %v5701
      %v5703 = vpop.f32.mrb[0].mxu0
      %5704 = vmatprep.mubr.bf16.mxu0 0
      %5705 = vmatmul.mubr.bf16.gmra.mrb[0].mxu0 %v3604
      %v5706 = vpop.f32.mrb[0].mxu0
      %v5707 = vadd.f32 0.0, %v5706
      %v5708 = vpop.f32.mrb[0].mxu0
      %v5709 = vpop.f32.mrb[0].mxu0
      %v5710 = vadd.f32 0.0, %v5709
      %v5711 = vpop.f32.mrb[0].mxu0
      %5712 = vmatprep.mubr.bf16.mxu0 0
      %5713 = vmatmul.mubr.bf16.gmra.mrb[0].mxu0 %v3607
      %v5714 = vpop.f32.mrb[0].mxu0
      %v5715 = vadd.f32 0.0, %v5714
      %v5716 = vpop.f32.mrb[0].mxu0
      %v5717 = vpop.f32.mrb[0].mxu0
      %v5718 = vadd.f32 0.0, %v5717
      %v5719 = vpop.f32.mrb[0].mxu0
      %5720 = vmatprep.mubr.bf16.mxu0 0
      %5721 = vmatmul.mubr.bf16.gmra.mrb[0].mxu0 %v3610
      %v5722 = vpop.f32.mrb[0].mxu0
      %v5723 = vadd.f32 0.0, %v5722
      %v5724 = vpop.f32.mrb[0].mxu0
      %v5725 = vpop.f32.mrb[0].mxu0
      %v5726 = vadd.f32 0.0, %v5725
      %v5727 = vpop.f32.mrb[0].mxu0
      %5728 = vmatprep.mubr.bf16.mxu0 0
      %5729 = vmatmul.mubr.bf16.gmra.mrb[0].mxu0 %v3613
      %v5730 = vpop.f32.mrb[0].mxu0
      %v5731 = vadd.f32 0.0, %v5730
      %v5732 = vpop.f32.mrb[0].mxu0
      %v5733 = vpop.f32.mrb[0].mxu0
      %v5734 = vadd.f32 0.0, %v5733
      %v5735 = vpop.f32.mrb[0].mxu0
      %5736 = vmatprep.mubr.bf16.mxu0 0
      %5737 = vmatmul.mubr.bf16.gmra.mrb[0].mxu0 %v3616
      %v5738 = vpop.f32.mrb[0].mxu0
      %v5739 = vadd.f32 0.0, %v5738
      %v5740 = vpop.f32.mrb[0].mxu0
      %v5741 = vpop.f32.mrb[0].mxu0
      %v5742 = vadd.f32 0.0, %v5741
      %v5743 = vpop.f32.mrb[0].mxu0
      %5744 = vmatprep.mubr.bf16.mxu0 0
      %5745 = vmatmul.mubr.bf16.gmra.mrb[0].mxu0 %v3619
      %v5746 = vpop.f32.mrb[0].mxu0
      %v5747 = vadd.f32 0.0, %v5746
      %v5748 = vpop.f32.mrb[0].mxu0
      %v5749 = vpop.f32.mrb[0].mxu0
      %v5750 = vadd.f32 0.0, %v5749
      %v5751 = vpop.f32.mrb[0].mxu0
      %5752 = vmatprep.mubr.bf16.mxu0 0
      %5753 = vmatmul.mubr.bf16.gmra.mrb[0].mxu0 %v3622
      %v5754 = vpop.f32.mrb[0].mxu0
      %v5755 = vadd.f32 0.0, %v5754
      %v5756 = vpop.f32.mrb[0].mxu0
      %v5757 = vpop.f32.mrb[0].mxu0
      %v5758 = vadd.f32 0.0, %v5757
      %v5759 = vpop.f32.mrb[0].mxu0
      %5760 = vmatprep.mubr.bf16.mxu0 0
      %5761 = vmatmul.mubr.bf16.gmra.mrb[0].mxu0 %v3625
      %v5762 = vpop.f32.mrb[0].mxu0
      %v5763 = vadd.f32 0.0, %v5762
      %v5764 = vpop.f32.mrb[0].mxu0
      %v5765 = vpop.f32.mrb[0].mxu0
      %v5766 = vadd.f32 0.0, %v5765
      %v5767 = vpop.f32.mrb[0].mxu0
      %5768 = vmatprep.mubr.bf16.mxu0 0
      %5769 = vmatmul.mubr.bf16.gmra.mrb[0].mxu0 %v3628
      %v5770 = vpop.f32.mrb[0].mxu0
      %v5771 = vadd.f32 0.0, %v5770
      %v5772 = vpop.f32.mrb[0].mxu0
      %v5773 = vpop.f32.mrb[0].mxu0
      %v5774 = vadd.f32 0.0, %v5773
      %v5775 = vpop.f32.mrb[0].mxu0
      %5776 = vmatprep.mubr.bf16.mxu0 0
      %5777 = vmatmul.mubr.bf16.gmra.mrb[0].mxu0 %v3631
      %v5778 = vpop.f32.mrb[0].mxu0
      %v5779 = vadd.f32 0.0, %v5778
      %v5780 = vpop.f32.mrb[0].mxu0
      %v5781 = vpop.f32.mrb[0].mxu0
      %v5782 = vadd.f32 0.0, %v5781
      %v5783 = vpop.f32.mrb[0].mxu0
      %5784 = vmatprep.mubr.bf16.mxu0 0
      %5785 = vmatmul.mubr.bf16.gmra.mrb[0].mxu0 %v3634
      %v5786 = vpop.f32.mrb[0].mxu0
      %v5787 = vadd.f32 0.0, %v5786
      %v5788 = vpop.f32.mrb[0].mxu0
      %v5789 = vpop.f32.mrb[0].mxu0
      %v5790 = vadd.f32 0.0, %v5789
      %v5791 = vpop.f32.mrb[0].mxu0
      %5792 = vmatprep.mubr.bf16.mxu0 0
      %5793 = vmatmul.mubr.bf16.gmra.mrb[0].mxu0 %v3637
      %v5794 = vpop.f32.mrb[0].mxu0
      %v5795 = vadd.f32 0.0, %v5794
      %v5796 = vpop.f32.mrb[0].mxu0
      %v5797 = vpop.f32.mrb[0].mxu0
      %v5798 = vadd.f32 0.0, %v5797
      %v5799 = vpop.f32.mrb[0].mxu0
      %5800 = vmatprep.mubr.bf16.mxu0 0
      %5801 = vmatmul.mubr.bf16.gmra.mrb[0].mxu0 %v3640
      %v5802 = vpop.f32.mrb[0].mxu0
      %v5803 = vadd.f32 0.0, %v5802
      %v5804 = vpop.f32.mrb[0].mxu0
      %v5805 = vpop.f32.mrb[0].mxu0
      %v5806 = vadd.f32 0.0, %v5805
      %v5807 = vpop.f32.mrb[0].mxu0
      %5808 = vmatprep.mubr.bf16.mxu0 0
      %5809 = vmatmul.mubr.bf16.gmra.mrb[0].mxu0 %v3643
      %v5810 = vpop.f32.mrb[0].mxu0
      %v5811 = vadd.f32 0.0, %v5810
      %v5812 = vpop.f32.mrb[0].mxu0
      %v5813 = vpop.f32.mrb[0].mxu0
      %v5814 = vadd.f32 0.0, %v5813
      %v5815 = vpop.f32.mrb[0].mxu0
      %5816 = vmatprep.mubr.bf16.mxu0 0
      %5817 = vmatmul.mubr.bf16.gmra.mrb[0].mxu0 %v3646
      %v5818 = vpop.f32.mrb[0].mxu0
      %v5819 = vadd.f32 0.0, %v5818
      %v5820 = vpop.f32.mrb[0].mxu0
      %v5821 = vpop.f32.mrb[0].mxu0
      %v5822 = vadd.f32 0.0, %v5821
      %v5823 = vpop.f32.mrb[0].mxu0
      %5824 = vmatprep.mubr.bf16.mxu0 0
      %5825 = vmatmul.mubr.bf16.gmra.mrb[0].mxu0 %v3649
      %v5826 = vpop.f32.mrb[0].mxu0
      %v5827 = vadd.f32 0.0, %v5826
      %v5828 = vpop.f32.mrb[0].mxu0
      %v5829 = vpop.f32.mrb[0].mxu0
      %v5830 = vadd.f32 0.0, %v5829
      %v5831 = vpop.f32.mrb[0].mxu0
      %5832 = vmatprep.mubr.bf16.mxu0 0
      %5833 = vmatmul.mubr.bf16.gmra.mrb[0].mxu0 %v3652
      %v5834 = vpop.f32.mrb[0].mxu0
      %v5835 = vadd.f32 0.0, %v5834
      %v5836 = vpop.f32.mrb[0].mxu0
      %v5837 = vpop.f32.mrb[0].mxu0
      %v5838 = vadd.f32 0.0, %v5837
      %v5839 = vpop.f32.mrb[0].mxu0
      %5840 = vmatprep.mubr.bf16.mxu0 0
      %5841 = vmatmul.mubr.bf16.gmra.mrb[0].mxu0 %v3655
      %v5842 = vpop.f32.mrb[0].mxu0
      %v5843 = vadd.f32 0.0, %v5842
      %v5844 = vpop.f32.mrb[0].mxu0
      %v5845 = vpop.f32.mrb[0].mxu0
      %v5846 = vadd.f32 0.0, %v5845
      %v5847 = vpop.f32.mrb[0].mxu0
      %5848 = vmatprep.mubr.bf16.mxu0 0
      %5849 = vmatmul.mubr.bf16.gmra.mrb[0].mxu0 %v3658
      %v5850 = vpop.f32.mrb[0].mxu0
      %v5851 = vadd.f32 0.0, %v5850
      %v5852 = vpop.f32.mrb[0].mxu0
      %v5853 = vpop.f32.mrb[0].mxu0
      %v5854 = vadd.f32 0.0, %v5853
      %v5855 = vpop.f32.mrb[0].mxu0
      %5856 = vmatprep.mubr.bf16.mxu0 0
      %5857 = vmatmul.mubr.bf16.gmra.mrb[0].mxu0 %v3661
      %v5858 = vpop.f32.mrb[0].mxu0
      %v5859 = vadd.f32 0.0, %v5858
      %v5860 = vpop.f32.mrb[0].mxu0
      %v5861 = vpop.f32.mrb[0].mxu0
      %v5862 = vadd.f32 0.0, %v5861
      %v5863 = vpop.f32.mrb[0].mxu0
      %5864 = vmatprep.mubr.bf16.mxu0 0
      %5865 = vmatmul.mubr.bf16.gmra.mrb[0].mxu0 %v3664
      %v5866 = vpop.f32.mrb[0].mxu0
      %v5867 = vadd.f32 0.0, %v5866
      %v5868 = vpop.f32.mrb[0].mxu0
      %v5869 = vpop.f32.mrb[0].mxu0
      %v5870 = vadd.f32 0.0, %v5869
      %v5871 = vpop.f32.mrb[0].mxu0
      %5872 = vmatprep.mubr.bf16.mxu0 0
      %5873 = vmatmul.mubr.bf16.gmra.mrb[0].mxu0 %v3667
      %v5874 = vpop.f32.mrb[0].mxu0
      %v5875 = vadd.f32 0.0, %v5874
      %v5876 = vpop.f32.mrb[0].mxu0
      %v5877 = vpop.f32.mrb[0].mxu0
      %v5878 = vadd.f32 0.0, %v5877
      %v5879 = vpop.f32.mrb[0].mxu0
      %5880 = vmatprep.mubr.bf16.mxu0 0
      %5881 = vmatmul.mubr.bf16.gmra.mrb[0].mxu0 %v3670
      %v5882 = vpop.f32.mrb[0].mxu0
      %v5883 = vadd.f32 0.0, %v5882
      %v5884 = vpop.f32.mrb[0].mxu0
      %v5885 = vpop.f32.mrb[0].mxu0
      %v5886 = vadd.f32 0.0, %v5885
      %v5887 = vpop.f32.mrb[0].mxu0
      %5888 = vmatprep.mubr.bf16.mxu0 0
      %5889 = vmatmul.mubr.bf16.gmra.mrb[0].mxu0 %v3673
      %v5890 = vpop.f32.mrb[0].mxu0
      %v5891 = vadd.f32 0.0, %v5890
      %v5892 = vpop.f32.mrb[0].mxu0
      %v5893 = vpop.f32.mrb[0].mxu0
      %v5894 = vadd.f32 0.0, %v5893
      %v5895 = vpop.f32.mrb[0].mxu0
      %5896 = vmatprep.mubr.bf16.mxu0 0
      %5897 = vmatmul.mubr.bf16.gmra.mrb[0].mxu0 %v3676
      %v5898 = vpop.f32.mrb[0].mxu0
      %v5899 = vadd.f32 0.0, %v5898
      %v5900 = vpop.f32.mrb[0].mxu0
      %v5901 = vpop.f32.mrb[0].mxu0
      %v5902 = vadd.f32 0.0, %v5901
      %v5903 = vpop.f32.mrb[0].mxu0
      %5904 = vmatprep.mubr.bf16.mxu0 0
      %5905 = vmatmul.mubr.bf16.gmra.mrb[0].mxu0 %v3679
      %v5906 = vpop.f32.mrb[0].mxu0
      %v5907 = vadd.f32 0.0, %v5906
      %v5908 = vpop.f32.mrb[0].mxu0
      %v5909 = vpop.f32.mrb[0].mxu0
      %v5910 = vadd.f32 0.0, %v5909
      %v5911 = vpop.f32.mrb[0].mxu0
      %5912 = vmatprep.mubr.bf16.mxu0 0
      %5913 = vmatmul.mubr.bf16.gmra.mrb[0].mxu0 %v3682
      %v5914 = vpop.f32.mrb[0].mxu0
      %v5915 = vadd.f32 0.0, %v5914
      %v5916 = vpop.f32.mrb[0].mxu0
      %v5917 = vpop.f32.mrb[0].mxu0
      %v5918 = vadd.f32 0.0, %v5917
      %v5919 = vpop.f32.mrb[0].mxu0
      %5920 = vmatprep.mubr.bf16.mxu0 0
      %5921 = vmatmul.mubr.bf16.gmra.mrb[0].mxu0 %v3685
      %v5922 = vpop.f32.mrb[0].mxu0
      %v5923 = vadd.f32 0.0, %v5922
      %v5924 = vpop.f32.mrb[0].mxu0
      %v5925 = vpop.f32.mrb[0].mxu0
      %v5926 = vadd.f32 0.0, %v5925
      %v5927 = vpop.f32.mrb[0].mxu0
      %5928 = vmatprep.mubr.bf16.mxu0 0
      %5929 = vmatmul.mubr.bf16.gmra.mrb[0].mxu0 %v3688
      %v5930 = vpop.f32.mrb[0].mxu0
      %v5931 = vadd.f32 0.0, %v5930
      %v5932 = vpop.f32.mrb[0].mxu0
      %v5933 = vpop.f32.mrb[0].mxu0
      %v5934 = vadd.f32 0.0, %v5933
      %v5935 = vpop.f32.mrb[0].mxu0
      %5936 = vmatprep.mubr.bf16.mxu0 0
      %5937 = vmatmul.mubr.bf16.gmra.mrb[0].mxu0 %v3691
      %v5938 = vpop.f32.mrb[0].mxu0
      %v5939 = vadd.f32 0.0, %v5938
      %v5940 = vpop.f32.mrb[0].mxu0
      %v5941 = vpop.f32.mrb[0].mxu0
      %v5942 = vadd.f32 0.0, %v5941
      %v5943 = vpop.f32.mrb[0].mxu0
      %5944 = vmatprep.mubr.bf16.mxu0 0
      %5945 = vmatmul.mubr.bf16.gmra.mrb[0].mxu0 %v3694
      %v5946 = vpop.f32.mrb[0].mxu0
      %v5947 = vadd.f32 0.0, %v5946
      %v5948 = vpop.f32.mrb[0].mxu0
      %v5949 = vpop.f32.mrb[0].mxu0
      %v5950 = vadd.f32 0.0, %v5949
      %v5951 = vpop.f32.mrb[0].mxu0
      %5952 = vmatprep.mubr.bf16.mxu0 0
      %5953 = vmatmul.mubr.bf16.gmra.mrb[0].mxu0 %v3697
      %v5954 = vpop.f32.mrb[0].mxu0
      %v5955 = vadd.f32 0.0, %v5954
      %v5956 = vpop.f32.mrb[0].mxu0
      %v5957 = vpop.f32.mrb[0].mxu0
      %v5958 = vadd.f32 0.0, %v5957
      %v5959 = vpop.f32.mrb[0].mxu0
      %5960 = vmatprep.mubr.bf16.mxu0 0
      %5961 = vmatmul.mubr.bf16.gmra.mrb[0].mxu0 %v3700
      %v5962 = vpop.f32.mrb[0].mxu0
      %v5963 = vadd.f32 0.0, %v5962
      %v5964 = vpop.f32.mrb[0].mxu0
      %v5965 = vpop.f32.mrb[0].mxu0
      %v5966 = vadd.f32 0.0, %v5965
      %v5967 = vpop.f32.mrb[0].mxu0
      %5968 = vmatprep.mubr.bf16.mxu0 0
      %5969 = vmatmul.mubr.bf16.gmra.mrb[0].mxu0 %v3703
      %v5970 = vpop.f32.mrb[0].mxu0
      %v5971 = vadd.f32 0.0, %v5970
      %v5972 = vpop.f32.mrb[0].mxu0
      %v5973 = vpop.f32.mrb[0].mxu0
      %v5974 = vadd.f32 0.0, %v5973
      %v5975 = vpop.f32.mrb[0].mxu0
      %5976 = vmatprep.mubr.bf16.mxu0 0
      %5977 = vmatmul.mubr.bf16.gmra.mrb[0].mxu0 %v3706
      %v5978 = vpop.f32.mrb[0].mxu0
      %v5979 = vadd.f32 0.0, %v5978
      %v5980 = vpop.f32.mrb[0].mxu0
      %v5981 = vpop.f32.mrb[0].mxu0
      %v5982 = vadd.f32 0.0, %v5981
      %v5983 = vpop.f32.mrb[0].mxu0
      %5984 = vmatprep.mubr.bf16.mxu0 0
      %5985 = vmatmul.mubr.bf16.gmra.mrb[0].mxu0 %v3709
      %v5986 = vpop.f32.mrb[0].mxu0
      %v5987 = vadd.f32 0.0, %v5986
      %v5988 = vpop.f32.mrb[0].mxu0
      %v5989 = vpop.f32.mrb[0].mxu0
      %v5990 = vadd.f32 0.0, %v5989
      %v5991 = vpop.f32.mrb[0].mxu0
      %5992 = vmatprep.mubr.bf16.mxu0 0
      %5993 = vmatmul.mubr.bf16.gmra.mrb[0].mxu0 %v3712
      %v5994 = vpop.f32.mrb[0].mxu0
      %v5995 = vadd.f32 0.0, %v5994
      %v5996 = vpop.f32.mrb[0].mxu0
      %v5997 = vpop.f32.mrb[0].mxu0
      %v5998 = vadd.f32 0.0, %v5997
      %v5999 = vpop.f32.mrb[0].mxu0
      %6000 = vmatprep.mubr.bf16.mxu0 0
      %6001 = vmatmul.mubr.bf16.gmra.mrb[0].mxu0 %v3715
      %v6002 = vpop.f32.mrb[0].mxu0
      %v6003 = vadd.f32 0.0, %v6002
      %v6004 = vpop.f32.mrb[0].mxu0
      %v6005 = vpop.f32.mrb[0].mxu0
      %v6006 = vadd.f32 0.0, %v6005
      %v6007 = vpop.f32.mrb[0].mxu0
      %6008 = vmatprep.mubr.bf16.mxu0 0
      %6009 = vmatmul.mubr.bf16.gmra.mrb[0].mxu0 %v3718
      %v6010 = vpop.f32.mrb[0].mxu0
      %v6011 = vadd.f32 0.0, %v6010
      %v6012 = vpop.f32.mrb[0].mxu0
      %v6013 = vpop.f32.mrb[0].mxu0
      %v6014 = vadd.f32 0.0, %v6013
      %v6015 = vpop.f32.mrb[0].mxu0
      %6016 = vmatprep.mubr.bf16.mxu0 0
      %6017 = vmatmul.mubr.bf16.gmra.mrb[0].mxu0 %v3721
      %v6018 = vpop.f32.mrb[0].mxu0
      %v6019 = vadd.f32 0.0, %v6018
      %v6020 = vpop.f32.mrb[0].mxu0
      %v6021 = vpop.f32.mrb[0].mxu0
      %v6022 = vadd.f32 0.0, %v6021
      %v6023 = vpop.f32.mrb[0].mxu0
      %6024 = vmatprep.mubr.bf16.mxu0 0
      %6025 = vmatmul.mubr.bf16.gmra.mrb[0].mxu0 %v3724
      %v6026 = vpop.f32.mrb[0].mxu0
      %v6027 = vadd.f32 0.0, %v6026
      %v6028 = vpop.f32.mrb[0].mxu0
      %v6029 = vpop.f32.mrb[0].mxu0
      %v6030 = vadd.f32 0.0, %v6029
      %v6031 = vpop.f32.mrb[0].mxu0
      %6032 = vmatprep.mubr.bf16.mxu0 0
      %6033 = vmatmul.mubr.bf16.gmra.mrb[0].mxu0 %v3727
      %v6034 = vpop.f32.mrb[0].mxu0
      %v6035 = vadd.f32 0.0, %v6034
      %v6036 = vpop.f32.mrb[0].mxu0
      %v6037 = vpop.f32.mrb[0].mxu0
      %v6038 = vadd.f32 0.0, %v6037
      %v6039 = vpop.f32.mrb[0].mxu0
      %6040 = vmatprep.mubr.bf16.mxu0 0
      %6041 = vmatmul.mubr.bf16.gmra.mrb[0].mxu0 %v3730
      %v6042 = vpop.f32.mrb[0].mxu0
      %v6043 = vadd.f32 0.0, %v6042
      %v6044 = vpop.f32.mrb[0].mxu0
      %v6045 = vpop.f32.mrb[0].mxu0
      %v6046 = vadd.f32 0.0, %v6045
      %v6047 = vpop.f32.mrb[0].mxu0
      %6048 = vmatprep.mubr.bf16.mxu0 0
      %6049 = vmatmul.mubr.bf16.gmra.mrb[0].mxu0 %v3733
      %v6050 = vpop.f32.mrb[0].mxu0
      %v6051 = vadd.f32 0.0, %v6050
      %v6052 = vpop.f32.mrb[0].mxu0
      %v6053 = vpop.f32.mrb[0].mxu0
      %v6054 = vadd.f32 0.0, %v6053
      %v6055 = vpop.f32.mrb[0].mxu0
      %6056 = vmatprep.mubr.bf16.mxu0 0
      %6057 = vmatmul.mubr.bf16.gmra.mrb[0].mxu0 %v3736
      %v6058 = vpop.f32.mrb[0].mxu0
      %v6059 = vadd.f32 0.0, %v6058
      %v6060 = vpop.f32.mrb[0].mxu0
      %v6061 = vpop.f32.mrb[0].mxu0
      %v6062 = vadd.f32 0.0, %v6061
      %v6063 = vpop.f32.mrb[0].mxu0
      %6064 = vmatprep.mubr.bf16.mxu0 0
      %6065 = vmatmul.mubr.bf16.gmra.mrb[0].mxu0 %v3739
      %v6066 = vpop.f32.mrb[0].mxu0
      %v6067 = vadd.f32 0.0, %v6066
      %v6068 = vpop.f32.mrb[0].mxu0
      %v6069 = vpop.f32.mrb[0].mxu0
      %v6070 = vadd.f32 0.0, %v6069
      %v6071 = vpop.f32.mrb[0].mxu0
      %6072 = vmatprep.mubr.bf16.mxu0 0
      %6073 = vmatmul.mubr.bf16.gmra.mrb[0].mxu0 %v3742
      %v6074 = vpop.f32.mrb[0].mxu0
      %v6075 = vadd.f32 0.0, %v6074
      %v6076 = vpop.f32.mrb[0].mxu0
      %v6077 = vpop.f32.mrb[0].mxu0
      %v6078 = vadd.f32 0.0, %v6077
      %v6079 = vpop.f32.mrb[0].mxu0
      %6080 = vmatprep.mubr.bf16.mxu0 0
      %6081 = vmatmul.mubr.bf16.gmra.mrb[0].mxu0 %v3745
      %v6082 = vpop.f32.mrb[0].mxu0
      %v6083 = vadd.f32 0.0, %v6082
      %v6084 = vpop.f32.mrb[0].mxu0
      %v6085 = vpop.f32.mrb[0].mxu0
      %v6086 = vadd.f32 0.0, %v6085
      %v6087 = vpop.f32.mrb[0].mxu0
      %6088 = vmatprep.mubr.bf16.mxu0 0
      %6089 = vmatmul.mubr.bf16.gmra.mrb[0].mxu0 %v3748
      %v6090 = vpop.f32.mrb[0].mxu0
      %v6091 = vadd.f32 0.0, %v6090
      %v6092 = vpop.f32.mrb[0].mxu0
      %v6093 = vpop.f32.mrb[0].mxu0
      %v6094 = vadd.f32 0.0, %v6093
      %v6095 = vpop.f32.mrb[0].mxu0
      %6096 = vmatprep.mubr.bf16.mxu0 0
      %6097 = vmatmul.mubr.bf16.gmra.mrb[0].mxu0 %v3751
      %v6098 = vpop.f32.mrb[0].mxu0
      %v6099 = vadd.f32 0.0, %v6098
      %v6100 = vpop.f32.mrb[0].mxu0
      %v6101 = vpop.f32.mrb[0].mxu0
      %v6102 = vadd.f32 0.0, %v6101
      %v6103 = vpop.f32.mrb[0].mxu0
      %6104 = vmatprep.mubr.bf16.mxu0 0
      %6105 = vmatmul.mubr.bf16.gmra.mrb[0].mxu0 %v3754
      %v6106 = vpop.f32.mrb[0].mxu0
      %v6107 = vadd.f32 0.0, %v6106
      %v6108 = vpop.f32.mrb[0].mxu0
      %v6109 = vpop.f32.mrb[0].mxu0
      %v6110 = vadd.f32 0.0, %v6109
      %v6111 = vpop.f32.mrb[0].mxu0
      %6112 = vmatprep.mubr.bf16.mxu0 0
      %6113 = vmatmul.mubr.bf16.gmra.mrb[0].mxu0 %v3757
      %v6114 = vpop.f32.mrb[0].mxu0
      %v6115 = vadd.f32 0.0, %v6114
      %v6116 = vpop.f32.mrb[0].mxu0
      %v6117 = vpop.f32.mrb[0].mxu0
      %v6118 = vadd.f32 0.0, %v6117
      %v6119 = vpop.f32.mrb[0].mxu0
      %6120 = vmatprep.mubr.bf16.mxu0 0
      %6121 = vmatmul.mubr.bf16.gmra.mrb[0].mxu0 %v3760
      %v6122 = vpop.f32.mrb[0].mxu0
      %v6123 = vadd.f32 0.0, %v6122
      %v6124 = vpop.f32.mrb[0].mxu0
      %v6125 = vpop.f32.mrb[0].mxu0
      %v6126 = vadd.f32 0.0, %v6125
      %v6127 = vpop.f32.mrb[0].mxu0
      %6128 = vmatprep.mubr.bf16.mxu0 0
      %6129 = vmatmul.mubr.bf16.gmra.mrb[0].mxu0 %v3763
      %v6130 = vpop.f32.mrb[0].mxu0
      %v6131 = vadd.f32 0.0, %v6130
      %v6132 = vpop.f32.mrb[0].mxu0
      %v6133 = vpop.f32.mrb[0].mxu0
      %v6134 = vadd.f32 0.0, %v6133
      %v6135 = vpop.f32.mrb[0].mxu0
      %6136 = vmatprep.mubr.bf16.mxu0 0
      %6137 = vmatmul.mubr.bf16.gmra.mrb[0].mxu0 %v3766
      %v6138 = vpop.f32.mrb[0].mxu0
      %v6139 = vadd.f32 0.0, %v6138
      %v6140 = vpop.f32.mrb[0].mxu0
      %v6141 = vpop.f32.mrb[0].mxu0
      %v6142 = vadd.f32 0.0, %v6141
      %v6143 = vpop.f32.mrb[0].mxu0
      %6144 = vmatprep.mubr.bf16.mxu0 0
      %6145 = vmatmul.mubr.bf16.gmra.mrb[0].mxu0 %v3769
      %v6146 = vpop.f32.mrb[0].mxu0
      %v6147 = vadd.f32 0.0, %v6146
      %v6148 = vpop.f32.mrb[0].mxu0
      %v6149 = vpop.f32.mrb[0].mxu0
      %v6150 = vadd.f32 0.0, %v6149
      %v6151 = vpop.f32.mrb[0].mxu0
      %6152 = vmatprep.mubr.bf16.mxu0 0
      %6153 = vmatmul.mubr.bf16.gmra.mrb[0].mxu0 %v3772
      %v6154 = vpop.f32.mrb[0].mxu0
      %v6155 = vadd.f32 0.0, %v6154
      %v6156 = vpop.f32.mrb[0].mxu0
      %v6157 = vpop.f32.mrb[0].mxu0
      %v6158 = vadd.f32 0.0, %v6157
      %v6159 = vpop.f32.mrb[0].mxu0
      %6160 = vmatprep.mubr.bf16.mxu0 0
      %6161 = vmatmul.mubr.bf16.gmra.mrb[0].mxu0 %v3775
      %v6162 = vpop.f32.mrb[0].mxu0
      %v6163 = vadd.f32 0.0, %v6162
      %v6164 = vpop.f32.mrb[0].mxu0
      %v6165 = vpop.f32.mrb[0].mxu0
      %v6166 = vadd.f32 0.0, %v6165
      %v6167 = vpop.f32.mrb[0].mxu0
      %6168 = vmatprep.mubr.bf16.mxu0 0
      %6169 = vmatmul.mubr.bf16.gmra.mrb[0].mxu0 %v3778
      %v6170 = vpop.f32.mrb[0].mxu0
      %v6171 = vadd.f32 0.0, %v6170
      %v6172 = vpop.f32.mrb[0].mxu0
      %v6173 = vpop.f32.mrb[0].mxu0
      %v6174 = vadd.f32 0.0, %v6173
      %v6175 = vpop.f32.mrb[0].mxu0
      %6176 = vmatprep.mubr.bf16.mxu0 0
      %6177 = vmatmul.mubr.bf16.gmra.mrb[0].mxu0 %v3781
      %v6178 = vpop.f32.mrb[0].mxu0
      %v6179 = vadd.f32 0.0, %v6178
      %v6180 = vpop.f32.mrb[0].mxu0
      %v6181 = vpop.f32.mrb[0].mxu0
      %v6182 = vadd.f32 0.0, %v6181
      %v6183 = vpop.f32.mrb[0].mxu0
      %6184 = vmatprep.mubr.bf16.mxu0 0
      %6185 = vmatmul.mubr.bf16.gmra.mrb[0].mxu0 %v3784
      %v6186 = vpop.f32.mrb[0].mxu0
      %v6187 = vadd.f32 0.0, %v6186
      %v6188 = vpop.f32.mrb[0].mxu0
      %v6189 = vpop.f32.mrb[0].mxu0
      %v6190 = vadd.f32 0.0, %v6189
      %v6191 = vpop.f32.mrb[0].mxu0
      %6192 = vmatprep.mubr.bf16.mxu0 0
      %6193 = vmatmul.mubr.bf16.gmra.mrb[0].mxu0 %v3787
      %v6194 = vpop.f32.mrb[0].mxu0
      %v6195 = vadd.f32 0.0, %v6194
      %v6196 = vpop.f32.mrb[0].mxu0
      %v6197 = vpop.f32.mrb[0].mxu0
      %v6198 = vadd.f32 0.0, %v6197
      %v6199 = vpop.f32.mrb[0].mxu0
      %6200 = vmatprep.mubr.bf16.mxu0 0
      %6201 = vmatmul.mubr.bf16.gmra.mrb[0].mxu0 %v3790
      %v6202 = vpop.f32.mrb[0].mxu0
      %v6203 = vadd.f32 0.0, %v6202
      %v6204 = vpop.f32.mrb[0].mxu0
      %v6205 = vpop.f32.mrb[0].mxu0
      %v6206 = vadd.f32 0.0, %v6205
      %v6207 = vpop.f32.mrb[0].mxu0
      %6208 = vmatprep.mubr.bf16.mxu0 0
      %6209 = vmatmul.mubr.bf16.gmra.mrb[0].mxu0 %v3793
      %v6210 = vpop.f32.mrb[0].mxu0
      %v6211 = vadd.f32 0.0, %v6210
      %v6212 = vpop.f32.mrb[0].mxu0
      %v6213 = vpop.f32.mrb[0].mxu0
      %v6214 = vadd.f32 0.0, %v6213
      %v6215 = vpop.f32.mrb[0].mxu0
      %6216 = vmatprep.mubr.bf16.mxu0 0
      %6217 = vmatmul.mubr.bf16.gmra.mrb[0].mxu0 %v3796
      %v6218 = vpop.f32.mrb[0].mxu0
      %v6219 = vadd.f32 0.0, %v6218
      %v6220 = vpop.f32.mrb[0].mxu0
      %v6221 = vpop.f32.mrb[0].mxu0
      %v6222 = vadd.f32 0.0, %v6221
      %v6223 = vpop.f32.mrb[0].mxu0
      %6224 = vmatprep.mubr.bf16.mxu0 0
      %6225 = vmatmul.mubr.bf16.gmra.mrb[0].mxu0 %v3799
      %v6226 = vpop.f32.mrb[0].mxu0
      %v6227 = vadd.f32 0.0, %v6226
      %v6228 = vpop.f32.mrb[0].mxu0
      %v6229 = vpop.f32.mrb[0].mxu0
      %v6230 = vadd.f32 0.0, %v6229
      %v6231 = vpop.f32.mrb[0].mxu0
      %6232 = vmatprep.mubr.bf16.mxu0 0
      %6233 = vmatmul.mubr.bf16.gmra.mrb[0].mxu0 %v3802
      %v6234 = vpop.f32.mrb[0].mxu0
      %v6235 = vadd.f32 0.0, %v6234
      %v6236 = vpop.f32.mrb[0].mxu0
      %v6237 = vpop.f32.mrb[0].mxu0
      %v6238 = vadd.f32 0.0, %v6237
      %v6239 = vpop.f32.mrb[0].mxu0
      %6240 = vmatprep.mubr.bf16.mxu0 0
      %6241 = vmatmul.mubr.bf16.gmra.mrb[0].mxu0 %v3805
      %v6242 = vpop.f32.mrb[0].mxu0
      %v6243 = vadd.f32 0.0, %v6242
      %v6244 = vpop.f32.mrb[0].mxu0
      %v6245 = vpop.f32.mrb[0].mxu0
      %v6246 = vadd.f32 0.0, %v6245
      %v6247 = vpop.f32.mrb[0].mxu0
      %6248 = vmatprep.mubr.bf16.mxu0 0
      %6249 = vmatmul.mubr.bf16.gmra.mrb[0].mxu0 %v3808
      %v6250 = vpop.f32.mrb[0].mxu0
      %v6251 = vadd.f32 0.0, %v6250
      %v6252 = vpop.f32.mrb[0].mxu0
      %v6253 = vpop.f32.mrb[0].mxu0
      %v6254 = vadd.f32 0.0, %v6253
      %v6255 = vpop.f32.mrb[0].mxu0
      %6256 = vmatprep.mubr.bf16.mxu0 0
      %6257 = vmatmul.mubr.bf16.gmra.mrb[0].mxu0 %v3811
      %v6258 = vpop.f32.mrb[0].mxu0
      %v6259 = vadd.f32 0.0, %v6258
      %v6260 = vpop.f32.mrb[0].mxu0
      %v6261 = vpop.f32.mrb[0].mxu0
      %v6262 = vadd.f32 0.0, %v6261
      %v6263 = vpop.f32.mrb[0].mxu0
      %6264 = vmatprep.mubr.bf16.mxu0 0
      %6265 = vmatmul.mubr.bf16.gmra.mrb[0].mxu0 %v3814
      %v6266 = vpop.f32.mrb[0].mxu0
      %v6267 = vadd.f32 0.0, %v6266
      %v6268 = vpop.f32.mrb[0].mxu0
      %v6269 = vpop.f32.mrb[0].mxu0
      %v6270 = vadd.f32 0.0, %v6269
      %v6271 = vpop.f32.mrb[0].mxu0
      %6272 = vmatprep.mubr.bf16.mxu0 0
      %6273 = vmatmul.mubr.bf16.gmra.mrb[0].mxu0 %v3817
      %v6274 = vpop.f32.mrb[0].mxu0
      %v6275 = vadd.f32 0.0, %v6274
      %v6276 = vpop.f32.mrb[0].mxu0
      %v6277 = vpop.f32.mrb[0].mxu0
      %v6278 = vadd.f32 0.0, %v6277
      %v6279 = vpop.f32.mrb[0].mxu0
      %6280 = vmatprep.mubr.bf16.mxu0 0
      %6281 = vmatmul.mubr.bf16.gmra.mrb[0].mxu0 %v3820
      %v6282 = vpop.f32.mrb[0].mxu0
      %v6283 = vadd.f32 0.0, %v6282
      %v6284 = vpop.f32.mrb[0].mxu0
      %v6285 = vpop.f32.mrb[0].mxu0
      %v6286 = vadd.f32 0.0, %v6285
      %v6287 = vpop.f32.mrb[0].mxu0
      %6288 = vmatprep.mubr.bf16.mxu0 0
      %6289 = vmatmul.mubr.bf16.gmra.mrb[0].mxu0 %v3823
      %v6290 = vpop.f32.mrb[0].mxu0
      %v6291 = vadd.f32 0.0, %v6290
      %v6292 = vpop.f32.mrb[0].mxu0
      %v6293 = vpop.f32.mrb[0].mxu0
      %v6294 = vadd.f32 0.0, %v6293
      %v6295 = vpop.f32.mrb[0].mxu0
      %6296 = vmatprep.mubr.bf16.mxu0 0
      %6297 = vmatmul.mubr.bf16.gmra.mrb[0].mxu0 %v3826
      %v6298 = vpop.f32.mrb[0].mxu0
      %v6299 = vadd.f32 0.0, %v6298
      %v6300 = vpop.f32.mrb[0].mxu0
      %v6301 = vpop.f32.mrb[0].mxu0
      %v6302 = vadd.f32 0.0, %v6301
      %v6303 = vpop.f32.mrb[0].mxu0
      %6304 = vmatprep.mubr.bf16.mxu0 0
      %6305 = vmatmul.mubr.bf16.gmra.mrb[0].mxu0 %v3829
      %v6306 = vpop.f32.mrb[0].mxu0
      %v6307 = vadd.f32 0.0, %v6306
      %v6308 = vpop.f32.mrb[0].mxu0
      %v6309 = vpop.f32.mrb[0].mxu0
      %v6310 = vadd.f32 0.0, %v6309
      %v6311 = vpop.f32.mrb[0].mxu0
      %6312 = vmatprep.mubr.bf16.mxu0 0
      %6313 = vmatmul.mubr.bf16.gmra.mrb[0].mxu0 %v3832
      %v6314 = vpop.f32.mrb[0].mxu0
      %v6315 = vadd.f32 0.0, %v6314
      %v6316 = vpop.f32.mrb[0].mxu0
      %v6317 = vpop.f32.mrb[0].mxu0
      %v6318 = vadd.f32 0.0, %v6317
      %v6319 = vpop.f32.mrb[0].mxu0
      %6320 = vmatprep.mubr.bf16.mxu0 0
      %6321 = vmatmul.mubr.bf16.gmra.mrb[0].mxu0 %v3835
      %v6322 = vpop.f32.mrb[0].mxu0
      %v6323 = vadd.f32 0.0, %v6322
      %v6324 = vpop.f32.mrb[0].mxu0
      %v6325 = vpop.f32.mrb[0].mxu0
      %v6326 = vadd.f32 0.0, %v6325
      %v6327 = vpop.f32.mrb[0].mxu0
      %6328 = vmatprep.mubr.bf16.mxu0 0
      %6329 = vmatmul.mubr.bf16.gmra.mrb[0].mxu0 %v3838
      %v6330 = vpop.f32.mrb[0].mxu0
      %v6331 = vadd.f32 0.0, %v6330
      %v6332 = vpop.f32.mrb[0].mxu0
      %v6333 = vpop.f32.mrb[0].mxu0
      %v6334 = vadd.f32 0.0, %v6333
      %v6335 = vpop.f32.mrb[0].mxu0
      %6336 = vmatprep.mubr.bf16.mxu0 0
      %6337 = vmatmul.mubr.bf16.gmra.mrb[0].mxu0 %v3841
      %v6338 = vpop.f32.mrb[0].mxu0
      %v6339 = vadd.f32 0.0, %v6338
      %v6340 = vpop.f32.mrb[0].mxu0
      %v6341 = vpop.f32.mrb[0].mxu0
      %v6342 = vadd.f32 0.0, %v6341
      %v6343 = vpop.f32.mrb[0].mxu0
      %6344 = vmatprep.mubr.bf16.mxu0 0
      %6345 = vmatmul.mubr.bf16.gmra.mrb[0].mxu0 %v3844
      %v6346 = vpop.f32.mrb[0].mxu0
      %v6347 = vadd.f32 0.0, %v6346
      %v6348 = vpop.f32.mrb[0].mxu0
      %v6349 = vpop.f32.mrb[0].mxu0
      %v6350 = vadd.f32 0.0, %v6349
      %v6351 = vpop.f32.mrb[0].mxu0
      %6352 = vmatprep.mubr.bf16.mxu0 0
      %6353 = vmatmul.mubr.bf16.gmra.mrb[0].mxu0 %v3847
      %v6354 = vpop.f32.mrb[0].mxu0
      %v6355 = vadd.f32 0.0, %v6354
      %v6356 = vpop.f32.mrb[0].mxu0
      %v6357 = vpop.f32.mrb[0].mxu0
      %v6358 = vadd.f32 0.0, %v6357
      %v6359 = vpop.f32.mrb[0].mxu0
      %6360 = vmatprep.mubr.bf16.mxu0 0
      %6361 = vmatmul.mubr.bf16.gmra.mrb[0].mxu0 %v3850
      %v6362 = vpop.f32.mrb[0].mxu0
      %v6363 = vadd.f32 0.0, %v6362
      %v6364 = vpop.f32.mrb[0].mxu0
      %v6365 = vpop.f32.mrb[0].mxu0
      %v6366 = vadd.f32 0.0, %v6365
      %v6367 = vpop.f32.mrb[0].mxu0
      %6368 = vmatprep.mubr.bf16.mxu0 0
      %6369 = vmatmul.mubr.bf16.gmra.mrb[0].mxu0 %v3853
      %v6370 = vpop.f32.mrb[0].mxu0
      %v6371 = vadd.f32 0.0, %v6370
      %v6372 = vpop.f32.mrb[0].mxu0
      %v6373 = vpop.f32.mrb[0].mxu0
      %v6374 = vadd.f32 0.0, %v6373
      %v6375 = vpop.f32.mrb[0].mxu0
      %6376 = vmatprep.mubr.bf16.mxu0 0
      %6377 = vmatmul.mubr.bf16.gmra.mrb[0].mxu0 %v3856
      %v6378 = vpop.f32.mrb[0].mxu0
      %v6379 = vadd.f32 0.0, %v6378
      %v6380 = vpop.f32.mrb[0].mxu0
      %v6381 = vpop.f32.mrb[0].mxu0
      %v6382 = vadd.f32 0.0, %v6381
      %v6383 = vpop.f32.mrb[0].mxu0
      %6384 = vmatprep.mubr.bf16.mxu0 0
      %6385 = vmatmul.mubr.bf16.gmra.mrb[0].mxu0 %v3859
      %v6386 = vpop.f32.mrb[0].mxu0
      %v6387 = vadd.f32 0.0, %v6386
      %v6388 = vpop.f32.mrb[0].mxu0
      %v6389 = vpop.f32.mrb[0].mxu0
      %v6390 = vadd.f32 0.0, %v6389
      %v6391 = vpop.f32.mrb[0].mxu0
      %6392 = vmatprep.mubr.bf16.mxu0 0
      %6393 = vmatmul.mubr.bf16.gmra.mrb[0].mxu0 %v3862
      %v6394 = vpop.f32.mrb[0].mxu0
      %v6395 = vadd.f32 0.0, %v6394
      %v6396 = vpop.f32.mrb[0].mxu0
      %v6397 = vpop.f32.mrb[0].mxu0
      %v6398 = vadd.f32 0.0, %v6397
      %v6399 = vpop.f32.mrb[0].mxu0
      %6400 = vmatprep.mubr.bf16.mxu0 0
      %6401 = vmatmul.mubr.bf16.gmra.mrb[0].mxu0 %v3865
      %v6402 = vpop.f32.mrb[0].mxu0
      %v6403 = vadd.f32 0.0, %v6402
      %v6404 = vpop.f32.mrb[0].mxu0
      %v6405 = vpop.f32.mrb[0].mxu0
      %v6406 = vadd.f32 0.0, %v6405
      %v6407 = vpop.f32.mrb[0].mxu0
      %6408 = vmatprep.mubr.bf16.mxu0 0
      %6409 = vmatmul.mubr.bf16.gmra.mrb[0].mxu0 %v3868
      %v6410 = vpop.f32.mrb[0].mxu0
      %v6411 = vadd.f32 0.0, %v6410
      %v6412 = vpop.f32.mrb[0].mxu0
      %v6413 = vpop.f32.mrb[0].mxu0
      %v6414 = vadd.f32 0.0, %v6413
      %v6415 = vpop.f32.mrb[0].mxu0
      %6416 = vmatprep.mubr.bf16.mxu0 0
      %6417 = vmatmul.mubr.bf16.gmra.mrb[0].mxu0 %v3871
      %v6418 = vpop.f32.mrb[0].mxu0
      %v6419 = vadd.f32 0.0, %v6418
      %v6420 = vpop.f32.mrb[0].mxu0
      %v6421 = vpop.f32.mrb[0].mxu0
      %v6422 = vadd.f32 0.0, %v6421
      %v6423 = vpop.f32.mrb[0].mxu0
      %6424 = vmatprep.mubr.bf16.mxu0 0
      %6425 = vmatmul.mubr.bf16.gmra.mrb[0].mxu0 %v3874
      %v6426 = vpop.f32.mrb[0].mxu0
      %v6427 = vadd.f32 0.0, %v6426
      %v6428 = vpop.f32.mrb[0].mxu0
      %v6429 = vpop.f32.mrb[0].mxu0
      %v6430 = vadd.f32 0.0, %v6429
      %v6431 = vpop.f32.mrb[0].mxu0
      %6432 = vmatprep.mubr.bf16.mxu0 0
      %6433 = vmatmul.mubr.bf16.gmra.mrb[0].mxu0 %v3877
      %v6434 = vpop.f32.mrb[0].mxu0
      %v6435 = vadd.f32 0.0, %v6434
      %v6436 = vpop.f32.mrb[0].mxu0
      %v6437 = vpop.f32.mrb[0].mxu0
      %v6438 = vadd.f32 0.0, %v6437
      %v6439 = vpop.f32.mrb[0].mxu0
      %6440 = vmatprep.mubr.bf16.mxu0 0
      %6441 = vmatmul.mubr.bf16.gmra.mrb[0].mxu0 %v3880
      %v6442 = vpop.f32.mrb[0].mxu0
      %v6443 = vadd.f32 0.0, %v6442
      %v6444 = vpop.f32.mrb[0].mxu0
      %v6445 = vpop.f32.mrb[0].mxu0
      %v6446 = vadd.f32 0.0, %v6445
      %v6447 = vpop.f32.mrb[0].mxu0
      %6448 = vmatprep.mubr.bf16.mxu0 0
      %6449 = vmatmul.mubr.bf16.gmra.mrb[0].mxu0 %v3883
      %v6450 = vpop.f32.mrb[0].mxu0
      %v6451 = vadd.f32 0.0, %v6450
      %v6452 = vpop.f32.mrb[0].mxu0
      %v6453 = vpop.f32.mrb[0].mxu0
      %v6454 = vadd.f32 0.0, %v6453
      %v6455 = vpop.f32.mrb[0].mxu0
      %6456 = vmatprep.mubr.bf16.mxu0 0
      %6457 = vmatmul.mubr.bf16.gmra.mrb[0].mxu0 %v3886
      %v6458 = vpop.f32.mrb[0].mxu0
      %v6459 = vadd.f32 0.0, %v6458
      %v6460 = vpop.f32.mrb[0].mxu0
      %v6461 = vpop.f32.mrb[0].mxu0
      %v6462 = vadd.f32 0.0, %v6461
      %v6463 = vpop.f32.mrb[0].mxu0
      %6464 = vmatprep.mubr.bf16.mxu0 0
      %6465 = vmatmul.mubr.bf16.gmra.mrb[0].mxu0 %v3889
      %v6466 = vpop.f32.mrb[0].mxu0
      %v6467 = vadd.f32 0.0, %v6466
      %v6468 = vpop.f32.mrb[0].mxu0
      %v6469 = vpop.f32.mrb[0].mxu0
      %v6470 = vadd.f32 0.0, %v6469
      %v6471 = vpop.f32.mrb[0].mxu0
      %6472 = vmatprep.mubr.bf16.mxu0 0
      %6473 = vmatmul.mubr.bf16.gmra.mrb[0].mxu0 %v3892
      %v6474 = vpop.f32.mrb[0].mxu0
      %v6475 = vadd.f32 0.0, %v6474
      %v6476 = vpop.f32.mrb[0].mxu0
      %v6477 = vpop.f32.mrb[0].mxu0
      %v6478 = vadd.f32 0.0, %v6477
      %v6479 = vpop.f32.mrb[0].mxu0
      %6480 = vmatprep.mubr.bf16.mxu0 0
      %6481 = vmatmul.mubr.bf16.gmra.mrb[0].mxu0 %v3895
      %v6482 = vpop.f32.mrb[0].mxu0
      %v6483 = vadd.f32 0.0, %v6482
      %v6484 = vpop.f32.mrb[0].mxu0
      %v6485 = vpop.f32.mrb[0].mxu0
      %v6486 = vadd.f32 0.0, %v6485
      %v6487 = vpop.f32.mrb[0].mxu0
      %6488 = vmatprep.mubr.bf16.mxu0 0
      %6489 = vmatmul.mubr.bf16.gmra.mrb[0].mxu0 %v3898
      %v6490 = vpop.f32.mrb[0].mxu0
      %v6491 = vadd.f32 0.0, %v6490
      %v6492 = vpop.f32.mrb[0].mxu0
      %v6493 = vpop.f32.mrb[0].mxu0
      %v6494 = vadd.f32 0.0, %v6493
      %v6495 = vpop.f32.mrb[0].mxu0
      %6496 = vmatprep.mubr.bf16.mxu0 0
      %6497 = vmatmul.mubr.bf16.gmra.mrb[0].mxu0 %v3901
      %v6498 = vpop.f32.mrb[0].mxu0
      %v6499 = vadd.f32 0.0, %v6498
      %v6500 = vpop.f32.mrb[0].mxu0
      %v6501 = vpop.f32.mrb[0].mxu0
      %v6502 = vadd.f32 0.0, %v6501
      %v6503 = vpop.f32.mrb[0].mxu0
      %6504 = vmatprep.mubr.bf16.mxu0 0
      %6505 = vmatmul.mubr.bf16.gmra.mrb[0].mxu0 %v3904
      %v6506 = vpop.f32.mrb[0].mxu0
      %v6507 = vadd.f32 0.0, %v6506
      %v6508 = vpop.f32.mrb[0].mxu0
      %v6509 = vpop.f32.mrb[0].mxu0
      %v6510 = vadd.f32 0.0, %v6509
      %v6511 = vpop.f32.mrb[0].mxu0
      %6512 = vmatprep.mubr.bf16.mxu0 0
      %6513 = vmatmul.mubr.bf16.gmra.mrb[0].mxu0 %v3907
      %v6514 = vpop.f32.mrb[0].mxu0
      %v6515 = vadd.f32 0.0, %v6514
      %v6516 = vpop.f32.mrb[0].mxu0
      %v6517 = vpop.f32.mrb[0].mxu0
      %v6518 = vadd.f32 0.0, %v6517
      %v6519 = vpop.f32.mrb[0].mxu0
      %6520 = vmatprep.mubr.bf16.mxu0 0
      %6521 = vmatmul.mubr.bf16.gmra.mrb[0].mxu0 %v3910
      %v6522 = vpop.f32.mrb[0].mxu0
      %v6523 = vadd.f32 0.0, %v6522
      %v6524 = vpop.f32.mrb[0].mxu0
      %v6525 = vpop.f32.mrb[0].mxu0
      %v6526 = vadd.f32 0.0, %v6525
      %v6527 = vpop.f32.mrb[0].mxu0
      %6528 = vmatprep.mubr.bf16.mxu0 0
      %6529 = vmatmul.mubr.bf16.gmra.mrb[0].mxu0 %v3913
      %v6530 = vpop.f32.mrb[0].mxu0
      %v6531 = vadd.f32 0.0, %v6530
      %v6532 = vpop.f32.mrb[0].mxu0
      %v6533 = vpop.f32.mrb[0].mxu0
      %v6534 = vadd.f32 0.0, %v6533
      %v6535 = vpop.f32.mrb[0].mxu0
      %6536 = vmatprep.mubr.bf16.mxu0 0
      %6537 = vmatmul.mubr.bf16.gmra.mrb[0].mxu0 %v3916
      %v6538 = vpop.f32.mrb[0].mxu0
      %v6539 = vadd.f32 0.0, %v6538
      %v6540 = vpop.f32.mrb[0].mxu0
      %v6541 = vpop.f32.mrb[0].mxu0
      %v6542 = vadd.f32 0.0, %v6541
      %v6543 = vpop.f32.mrb[0].mxu0
      %6544 = vmatprep.mubr.bf16.mxu0 0
      %6545 = vmatmul.mubr.bf16.gmra.mrb[0].mxu0 %v3919
      %v6546 = vpop.f32.mrb[0].mxu0
      %v6547 = vadd.f32 0.0, %v6546
      %v6548 = vpop.f32.mrb[0].mxu0
      %v6549 = vpop.f32.mrb[0].mxu0
      %v6550 = vadd.f32 0.0, %v6549
      %v6551 = vpop.f32.mrb[0].mxu0
      %6552 = vmatprep.mubr.bf16.mxu0 0
      %6553 = vmatmul.mubr.bf16.gmra.mrb[0].mxu0 %v3922
      %v6554 = vpop.f32.mrb[0].mxu0
      %v6555 = vadd.f32 0.0, %v6554
      %v6556 = vpop.f32.mrb[0].mxu0
      %v6557 = vpop.f32.mrb[0].mxu0
      %v6558 = vadd.f32 0.0, %v6557
      %v6559 = vpop.f32.mrb[0].mxu0
      %6560 = vmatprep.mubr.bf16.mxu0 0
      %6561 = vmatmul.mubr.bf16.gmra.mrb[0].mxu0 %v3925
      %v6562 = vpop.f32.mrb[0].mxu0
      %v6563 = vadd.f32 0.0, %v6562
      %v6564 = vpop.f32.mrb[0].mxu0
      %v6565 = vpop.f32.mrb[0].mxu0
      %v6566 = vadd.f32 0.0, %v6565
      %v6567 = vpop.f32.mrb[0].mxu0
      %6568 = vmatprep.mubr.bf16.mxu0 0
      %6569 = vmatmul.mubr.bf16.gmra.mrb[0].mxu0 %v3928
      %v6570 = vpop.f32.mrb[0].mxu0
      %v6571 = vadd.f32 0.0, %v6570
      %v6572 = vpop.f32.mrb[0].mxu0
      %v6573 = vpop.f32.mrb[0].mxu0
      %v6574 = vadd.f32 0.0, %v6573
      %v6575 = vpop.f32.mrb[0].mxu0
      %6576 = vmatprep.mubr.bf16.mxu0 0
      %6577 = vmatmul.mubr.bf16.gmra.mrb[0].mxu0 %v3931
      %v6578 = vpop.f32.mrb[0].mxu0
      %v6579 = vadd.f32 0.0, %v6578
      %v6580 = vpop.f32.mrb[0].mxu0
      %v6581 = vpop.f32.mrb[0].mxu0
      %v6582 = vadd.f32 0.0, %v6581
      %v6583 = vpop.f32.mrb[0].mxu0
      %6584 = vmatprep.mubr.bf16.mxu0 0
      %6585 = vmatmul.mubr.bf16.gmra.mrb[0].mxu0 %v3934
      %v6586 = vpop.f32.mrb[0].mxu0
      %v6587 = vadd.f32 0.0, %v6586
      %v6588 = vpop.f32.mrb[0].mxu0
      %v6589 = vpop.f32.mrb[0].mxu0
      %v6590 = vadd.f32 0.0, %v6589
      %v6591 = vpop.f32.mrb[0].mxu0
      %6592 = vmatprep.mubr.bf16.mxu0 0
      %6593 = vmatmul.mubr.bf16.gmra.mrb[0].mxu0 %v3937
      %v6594 = vpop.f32.mrb[0].mxu0
      %v6595 = vadd.f32 0.0, %v6594
      %v6596 = vpop.f32.mrb[0].mxu0
      %v6597 = vpop.f32.mrb[0].mxu0
      %v6598 = vadd.f32 0.0, %v6597
      %v6599 = vpop.f32.mrb[0].mxu0
      %6600 = vmatprep.mubr.bf16.mxu0 0
      %6601 = vmatmul.mubr.bf16.gmra.mrb[0].mxu0 %v3940
      %v6602 = vpop.f32.mrb[0].mxu0
      %v6603 = vadd.f32 0.0, %v6602
      %v6604 = vpop.f32.mrb[0].mxu0
      %v6605 = vpop.f32.mrb[0].mxu0
      %v6606 = vadd.f32 0.0, %v6605
      %v6607 = vpop.f32.mrb[0].mxu0
      %6608 = vmatprep.mubr.bf16.mxu0 0
      %6609 = vmatmul.mubr.bf16.gmra.mrb[0].mxu0 %v3943
      %v6610 = vpop.f32.mrb[0].mxu0
      %v6611 = vadd.f32 0.0, %v6610
      %v6612 = vpop.f32.mrb[0].mxu0
      %v6613 = vpop.f32.mrb[0].mxu0
      %v6614 = vadd.f32 0.0, %v6613
      %v6615 = vpop.f32.mrb[0].mxu0
      %6616 = vmatprep.mubr.bf16.mxu0 0
      %6617 = vmatmul.mubr.bf16.gmra.mrb[0].mxu0 %v3946
      %v6618 = vpop.f32.mrb[0].mxu0
      %v6619 = vadd.f32 0.0, %v6618
      %v6620 = vpop.f32.mrb[0].mxu0
      %v6621 = vpop.f32.mrb[0].mxu0
      %v6622 = vadd.f32 0.0, %v6621
      %v6623 = vpop.f32.mrb[0].mxu0
      %6624 = vmatprep.mubr.bf16.mxu0 0
      %6625 = vmatmul.mubr.bf16.gmra.mrb[0].mxu0 %v3949
      %v6626 = vpop.f32.mrb[0].mxu0
      %v6627 = vadd.f32 0.0, %v6626
      %v6628 = vpop.f32.mrb[0].mxu0
      %v6629 = vpop.f32.mrb[0].mxu0
      %v6630 = vadd.f32 0.0, %v6629
      %v6631 = vpop.f32.mrb[0].mxu0
      %6632 = vmatprep.mubr.bf16.mxu0 0
      %6633 = vmatmul.mubr.bf16.gmra.mrb[0].mxu0 %v3952
      %v6634 = vpop.f32.mrb[0].mxu0
      %v6635 = vadd.f32 0.0, %v6634
      %v6636 = vpop.f32.mrb[0].mxu0
      %v6637 = vpop.f32.mrb[0].mxu0
      %v6638 = vadd.f32 0.0, %v6637
      %v6639 = vpop.f32.mrb[0].mxu0
      %6640 = vmatprep.mubr.bf16.mxu0 0
      %6641 = vmatmul.mubr.bf16.gmra.mrb[0].mxu0 %v3955
      %v6642 = vpop.f32.mrb[0].mxu0
      %v6643 = vadd.f32 0.0, %v6642
      %v6644 = vpop.f32.mrb[0].mxu0
      %v6645 = vpop.f32.mrb[0].mxu0
      %v6646 = vadd.f32 0.0, %v6645
      %v6647 = vpop.f32.mrb[0].mxu0
      %6648 = vmatprep.mubr.bf16.mxu0 0
      %6649 = vmatmul.mubr.bf16.gmra.mrb[0].mxu0 %v3958
      %v6650 = vpop.f32.mrb[0].mxu0
      %v6651 = vadd.f32 0.0, %v6650
      %v6652 = vpop.f32.mrb[0].mxu0
      %v6653 = vpop.f32.mrb[0].mxu0
      %v6654 = vadd.f32 0.0, %v6653
      %v6655 = vpop.f32.mrb[0].mxu0
      %6656 = vmatprep.mubr.bf16.mxu0 0
      %6657 = vmatmul.mubr.bf16.gmra.mrb[0].mxu0 %v3961
      %v6658 = vpop.f32.mrb[0].mxu0
      %v6659 = vadd.f32 0.0, %v6658
      %v6660 = vpop.f32.mrb[0].mxu0
      %v6661 = vpop.f32.mrb[0].mxu0
      %v6662 = vadd.f32 0.0, %v6661
      %v6663 = vpop.f32.mrb[0].mxu0
      %6664 = vmatprep.mubr.bf16.mxu0 0
      %6665 = vmatmul.mubr.bf16.gmra.mrb[0].mxu0 %v3964
      %v6666 = vpop.f32.mrb[0].mxu0
      %v6667 = vadd.f32 0.0, %v6666
      %v6668 = vpop.f32.mrb[0].mxu0
      %v6669 = vpop.f32.mrb[0].mxu0
      %v6670 = vadd.f32 0.0, %v6669
      %v6671 = vpop.f32.mrb[0].mxu0
      %6672 = vmatprep.mubr.bf16.mxu0 0
      %6673 = vmatmul.mubr.bf16.gmra.mrb[0].mxu0 %v3967
      %v6674 = vpop.f32.mrb[0].mxu0
      %v6675 = vadd.f32 0.0, %v6674
      %v6676 = vpop.f32.mrb[0].mxu0
      %v6677 = vpop.f32.mrb[0].mxu0
      %v6678 = vadd.f32 0.0, %v6677
      %v6679 = vpop.f32.mrb[0].mxu0
      %6680 = vmatprep.mubr.bf16.mxu0 0
      %6681 = vmatmul.mubr.bf16.gmra.mrb[0].mxu0 %v3970
      %v6682 = vpop.f32.mrb[0].mxu0
      %v6683 = vadd.f32 0.0, %v6682
      %v6684 = vpop.f32.mrb[0].mxu0
      %v6685 = vpop.f32.mrb[0].mxu0
      %v6686 = vadd.f32 0.0, %v6685
      %v6687 = vpop.f32.mrb[0].mxu0
      %6688 = vmatprep.mubr.bf16.mxu0 0
      %6689 = vmatmul.mubr.bf16.gmra.mrb[0].mxu0 %v3973
      %v6690 = vpop.f32.mrb[0].mxu0
      %v6691 = vadd.f32 0.0, %v6690
      %v6692 = vpop.f32.mrb[0].mxu0
      %v6693 = vpop.f32.mrb[0].mxu0
      %v6694 = vadd.f32 0.0, %v6693
      %v6695 = vpop.f32.mrb[0].mxu0
      %6696 = vmatprep.mubr.bf16.mxu0 0
      %6697 = vmatmul.mubr.bf16.gmra.mrb[0].mxu0 %v3976
      %v6698 = vpop.f32.mrb[0].mxu0
      %v6699 = vadd.f32 0.0, %v6698
      %v6700 = vpop.f32.mrb[0].mxu0
      %v6701 = vpop.f32.mrb[0].mxu0
      %v6702 = vadd.f32 0.0, %v6701
      %v6703 = vpop.f32.mrb[0].mxu0
      %6704 = vmatprep.mubr.bf16.mxu0 0
      %6705 = vmatmul.mubr.bf16.gmra.mrb[0].mxu0 %v3979
      %v6706 = vpop.f32.mrb[0].mxu0
      %v6707 = vadd.f32 0.0, %v6706
      %v6708 = vpop.f32.mrb[0].mxu0
      %v6709 = vpop.f32.mrb[0].mxu0
      %v6710 = vadd.f32 0.0, %v6709
      %v6711 = vpop.f32.mrb[0].mxu0
      %6712 = vmatprep.mubr.bf16.mxu0 0
      %6713 = vmatmul.mubr.bf16.gmra.mrb[0].mxu0 %v3982
      %v6714 = vpop.f32.mrb[0].mxu0
      %v6715 = vadd.f32 0.0, %v6714
      %v6716 = vpop.f32.mrb[0].mxu0
      %v6717 = vpop.f32.mrb[0].mxu0
      %v6718 = vadd.f32 0.0, %v6717
      %v6719 = vpop.f32.mrb[0].mxu0
      %6720 = vmatprep.mubr.bf16.mxu0 0
      %6721 = vmatmul.mubr.bf16.gmra.mrb[0].mxu0 %v3985
      %v6722 = vpop.f32.mrb[0].mxu0
      %v6723 = vadd.f32 0.0, %v6722
      %v6724 = vpop.f32.mrb[0].mxu0
      %v6725 = vpop.f32.mrb[0].mxu0
      %v6726 = vadd.f32 0.0, %v6725
      %v6727 = vpop.f32.mrb[0].mxu0
      %6728 = vmatprep.mubr.bf16.mxu0 0
      %6729 = vmatmul.mubr.bf16.gmra.mrb[0].mxu0 %v3988
      %v6730 = vpop.f32.mrb[0].mxu0
      %v6731 = vadd.f32 0.0, %v6730
      %v6732 = vpop.f32.mrb[0].mxu0
      %v6733 = vpop.f32.mrb[0].mxu0
      %v6734 = vadd.f32 0.0, %v6733
      %v6735 = vpop.f32.mrb[0].mxu0
      %6736 = vmatprep.mubr.bf16.mxu0 0
      %6737 = vmatmul.mubr.bf16.gmra.mrb[0].mxu0 %v3991
      %v6738 = vpop.f32.mrb[0].mxu0
      %v6739 = vadd.f32 0.0, %v6738
      %v6740 = vpop.f32.mrb[0].mxu0
      %v6741 = vpop.f32.mrb[0].mxu0
      %v6742 = vadd.f32 0.0, %v6741
      %v6743 = vpop.f32.mrb[0].mxu0
      %6744 = vmatprep.mubr.bf16.mxu0 0
      %6745 = vmatmul.mubr.bf16.gmra.mrb[0].mxu0 %v3994
      %v6746 = vpop.f32.mrb[0].mxu0
      %v6747 = vadd.f32 0.0, %v6746
      %v6748 = vpop.f32.mrb[0].mxu0
      %v6749 = vpop.f32.mrb[0].mxu0
      %v6750 = vadd.f32 0.0, %v6749
      %v6751 = vpop.f32.mrb[0].mxu0
      %6752 = vmatprep.mubr.bf16.mxu0 0
      %6753 = vmatmul.mubr.bf16.gmra.mrb[0].mxu0 %v3997
      %v6754 = vpop.f32.mrb[0].mxu0
      %v6755 = vadd.f32 0.0, %v6754
      %v6756 = vpop.f32.mrb[0].mxu0
      %v6757 = vpop.f32.mrb[0].mxu0
      %v6758 = vadd.f32 0.0, %v6757
      %v6759 = vpop.f32.mrb[0].mxu0
      %6760 = vmatprep.mubr.bf16.mxu0 0
      %6761 = vmatmul.mubr.bf16.gmra.mrb[0].mxu0 %v4000
      %v6762 = vpop.f32.mrb[0].mxu0
      %v6763 = vadd.f32 0.0, %v6762
      %v6764 = vpop.f32.mrb[0].mxu0
      %v6765 = vpop.f32.mrb[0].mxu0
      %v6766 = vadd.f32 0.0, %v6765
      %v6767 = vpop.f32.mrb[0].mxu0
      %6768 = vmatprep.mubr.bf16.mxu0 0
      %6769 = vmatmul.mubr.bf16.gmra.mrb[0].mxu0 %v4003
      %v6770 = vpop.f32.mrb[0].mxu0
      %v6771 = vadd.f32 0.0, %v6770
      %v6772 = vpop.f32.mrb[0].mxu0
      %v6773 = vpop.f32.mrb[0].mxu0
      %v6774 = vadd.f32 0.0, %v6773
      %v6775 = vpop.f32.mrb[0].mxu0
      %6776 = vmatprep.mubr.bf16.mxu0 0
      %6777 = vmatmul.mubr.bf16.gmra.mrb[0].mxu0 %v4006
      %v6778 = vpop.f32.mrb[0].mxu0
      %v6779 = vadd.f32 0.0, %v6778
      %v6780 = vpop.f32.mrb[0].mxu0
      %v6781 = vpop.f32.mrb[0].mxu0
      %v6782 = vadd.f32 0.0, %v6781
      %v6783 = vpop.f32.mrb[0].mxu0
      %6784 = vmatprep.mubr.bf16.mxu0 0
      %6785 = vmatmul.mubr.bf16.gmra.mrb[0].mxu0 %v4009
      %v6786 = vpop.f32.mrb[0].mxu0
      %v6787 = vadd.f32 0.0, %v6786
      %v6788 = vpop.f32.mrb[0].mxu0
      %v6789 = vpop.f32.mrb[0].mxu0
      %v6790 = vadd.f32 0.0, %v6789
      %v6791 = vpop.f32.mrb[0].mxu0
      %6792 = vmatprep.mubr.bf16.mxu0 0
      %6793 = vmatmul.mubr.bf16.gmra.mrb[0].mxu0 %v4012
      %v6794 = vpop.f32.mrb[0].mxu0
      %v6795 = vadd.f32 0.0, %v6794
      %v6796 = vpop.f32.mrb[0].mxu0
      %v6797 = vpop.f32.mrb[0].mxu0
      %v6798 = vadd.f32 0.0, %v6797
      %v6799 = vpop.f32.mrb[0].mxu0
      %6800 = vmatprep.mubr.bf16.mxu0 0
      %6801 = vmatmul.mubr.bf16.gmra.mrb[0].mxu0 %v4015
      %v6802 = vpop.f32.mrb[0].mxu0
      %v6803 = vadd.f32 0.0, %v6802
      %v6804 = vpop.f32.mrb[0].mxu0
      %v6805 = vpop.f32.mrb[0].mxu0
      %v6806 = vadd.f32 0.0, %v6805
      %v6807 = vpop.f32.mrb[0].mxu0
      %6808 = vmatprep.mubr.bf16.mxu0 0
      %6809 = vmatmul.mubr.bf16.gmra.mrb[0].mxu0 %v4018
      %v6810 = vpop.f32.mrb[0].mxu0
      %v6811 = vadd.f32 0.0, %v6810
      %v6812 = vpop.f32.mrb[0].mxu0
      %v6813 = vpop.f32.mrb[0].mxu0
      %v6814 = vadd.f32 0.0, %v6813
      %v6815 = vpop.f32.mrb[0].mxu0
      %6816 = vmatprep.mubr.bf16.mxu0 0
      %6817 = vmatmul.mubr.bf16.gmra.mrb[0].mxu0 %v4021
      %v6818 = vpop.f32.mrb[0].mxu0
      %v6819 = vadd.f32 0.0, %v6818
      %v6820 = vpop.f32.mrb[0].mxu0
      %v6821 = vpop.f32.mrb[0].mxu0
      %v6822 = vadd.f32 0.0, %v6821
      %v6823 = vpop.f32.mrb[0].mxu0
      %6824 = vmatprep.mubr.bf16.mxu0 0
      %6825 = vmatmul.mubr.bf16.gmra.mrb[0].mxu0 %v4024
      %v6826 = vpop.f32.mrb[0].mxu0
      %v6827 = vadd.f32 0.0, %v6826
      %v6828 = vpop.f32.mrb[0].mxu0
      %v6829 = vpop.f32.mrb[0].mxu0
      %v6830 = vadd.f32 0.0, %v6829
      %v6831 = vpop.f32.mrb[0].mxu0
      %6832 = vmatprep.mubr.bf16.mxu0 0
      %6833 = vmatmul.mubr.bf16.gmra.mrb[0].mxu0 %v4027
      %v6834 = vpop.f32.mrb[0].mxu0
      %v6835 = vadd.f32 0.0, %v6834
      %v6836 = vpop.f32.mrb[0].mxu0
      %v6837 = vpop.f32.mrb[0].mxu0
      %v6838 = vadd.f32 0.0, %v6837
      %v6839 = vpop.f32.mrb[0].mxu0
      %6840 = vmatprep.mubr.bf16.mxu0 0
      %6841 = vmatmul.mubr.bf16.gmra.mrb[0].mxu0 %v4030
      %v6842 = vpop.f32.mrb[0].mxu0
      %v6843 = vadd.f32 0.0, %v6842
      %v6844 = vpop.f32.mrb[0].mxu0
      %v6845 = vpop.f32.mrb[0].mxu0
      %v6846 = vadd.f32 0.0, %v6845
      %v6847 = vpop.f32.mrb[0].mxu0
      %6848 = vmatprep.mubr.bf16.mxu0 0
      %6849 = vmatmul.mubr.bf16.gmra.mrb[0].mxu0 %v4033
      %v6850 = vpop.f32.mrb[0].mxu0
      %v6851 = vadd.f32 0.0, %v6850
      %v6852 = vpop.f32.mrb[0].mxu0
      %v6853 = vpop.f32.mrb[0].mxu0
      %v6854 = vadd.f32 0.0, %v6853
      %v6855 = vpop.f32.mrb[0].mxu0
      %6856 = vmatprep.mubr.bf16.mxu0 0
      %6857 = vmatmul.mubr.bf16.gmra.mrb[0].mxu0 %v4036
      %v6858 = vpop.f32.mrb[0].mxu0
      %v6859 = vadd.f32 0.0, %v6858
      %v6860 = vpop.f32.mrb[0].mxu0
      %v6861 = vpop.f32.mrb[0].mxu0
      %v6862 = vadd.f32 0.0, %v6861
      %v6863 = vpop.f32.mrb[0].mxu0
      %6864 = vmatprep.mubr.bf16.mxu0 0
      %6865 = vmatmul.mubr.bf16.gmra.mrb[0].mxu0 %v4039
      %v6866 = vpop.f32.mrb[0].mxu0
      %v6867 = vadd.f32 0.0, %v6866
      %v6868 = vpop.f32.mrb[0].mxu0
      %v6869 = vpop.f32.mrb[0].mxu0
      %v6870 = vadd.f32 0.0, %v6869
      %v6871 = vpop.f32.mrb[0].mxu0
      %6872 = vmatprep.mubr.bf16.mxu0 0
      %6873 = vmatmul.mubr.bf16.gmra.mrb[0].mxu0 %v4042
      %v6874 = vpop.f32.mrb[0].mxu0
      %v6875 = vadd.f32 0.0, %v6874
      %v6876 = vpop.f32.mrb[0].mxu0
      %v6877 = vpop.f32.mrb[0].mxu0
      %v6878 = vadd.f32 0.0, %v6877
      %v6879 = vpop.f32.mrb[0].mxu0
      %6880 = vmatprep.mubr.bf16.mxu0 0
      %6881 = vmatmul.mubr.bf16.gmra.mrb[0].mxu0 %v4045
      %v6882 = vpop.f32.mrb[0].mxu0
      %v6883 = vadd.f32 0.0, %v6882
      %v6884 = vpop.f32.mrb[0].mxu0
      %v6885 = vpop.f32.mrb[0].mxu0
      %v6886 = vadd.f32 0.0, %v6885
      %v6887 = vpop.f32.mrb[0].mxu0
      %6888 = vmatprep.mubr.bf16.mxu0 0
      %6889 = vmatmul.mubr.bf16.gmra.mrb[0].mxu0 %v4048
      %v6890 = vpop.f32.mrb[0].mxu0
      %v6891 = vadd.f32 0.0, %v6890
      %v6892 = vpop.f32.mrb[0].mxu0
      %v6893 = vpop.f32.mrb[0].mxu0
      %v6894 = vadd.f32 0.0, %v6893
      %v6895 = vpop.f32.mrb[0].mxu0
      %6896 = vmatprep.mubr.bf16.mxu0 0
      %6897 = vmatmul.mubr.bf16.gmra.mrb[0].mxu0 %v4051
      %v6898 = vpop.f32.mrb[0].mxu0
      %v6899 = vadd.f32 0.0, %v6898
      %v6900 = vpop.f32.mrb[0].mxu0
      %v6901 = vpop.f32.mrb[0].mxu0
      %v6902 = vadd.f32 0.0, %v6901
      %v6903 = vpop.f32.mrb[0].mxu0
      %6904 = vmatprep.mubr.bf16.mxu0 0
      %6905 = vmatmul.mubr.bf16.gmra.mrb[0].mxu0 %v4054
      %v6906 = vpop.f32.mrb[0].mxu0
      %v6907 = vadd.f32 0.0, %v6906
      %v6908 = vpop.f32.mrb[0].mxu0
      %v6909 = vpop.f32.mrb[0].mxu0
      %v6910 = vadd.f32 0.0, %v6909
      %v6911 = vpop.f32.mrb[0].mxu0
      %6912 = vmatprep.mubr.bf16.mxu0 0
      %6913 = vmatmul.mubr.bf16.gmra.mrb[0].mxu0 %v4057
      %v6914 = vpop.f32.mrb[0].mxu0
      %v6915 = vadd.f32 0.0, %v6914
      %v6916 = vpop.f32.mrb[0].mxu0
      %v6917 = vpop.f32.mrb[0].mxu0
      %v6918 = vadd.f32 0.0, %v6917
      %v6919 = vpop.f32.mrb[0].mxu0
      %6920 = vmatprep.mubr.bf16.mxu0 0
      %6921 = vmatmul.mubr.bf16.gmra.mrb[0].mxu0 %v4060
      %v6922 = vpop.f32.mrb[0].mxu0
      %v6923 = vadd.f32 0.0, %v6922
      %v6924 = vpop.f32.mrb[0].mxu0
      %v6925 = vpop.f32.mrb[0].mxu0
      %v6926 = vadd.f32 0.0, %v6925
      %v6927 = vpop.f32.mrb[0].mxu0
      %6928 = vmatprep.mubr.bf16.mxu0 0
      %6929 = vmatmul.mubr.bf16.gmra.mrb[0].mxu0 %v4063
      %v6930 = vpop.f32.mrb[0].mxu0
      %v6931 = vadd.f32 0.0, %v6930
      %v6932 = vpop.f32.mrb[0].mxu0
      %v6933 = vpop.f32.mrb[0].mxu0
      %v6934 = vadd.f32 0.0, %v6933
      %v6935 = vpop.f32.mrb[0].mxu0
      %6936 = vmatprep.mubr.bf16.mxu0 0
      %6937 = vmatmul.mubr.bf16.gmra.mrb[0].mxu0 %v4066
      %v6938 = vpop.f32.mrb[0].mxu0
      %v6939 = vadd.f32 0.0, %v6938
      %v6940 = vpop.f32.mrb[0].mxu0
      %v6941 = vpop.f32.mrb[0].mxu0
      %v6942 = vadd.f32 0.0, %v6941
      %v6943 = vpop.f32.mrb[0].mxu0
      %6944 = vmatprep.mubr.bf16.mxu0 0
      %6945 = vmatmul.mubr.bf16.gmra.mrb[0].mxu0 %v4069
      %v6946 = vpop.f32.mrb[0].mxu0
      %v6947 = vadd.f32 0.0, %v6946
      %v6948 = vpop.f32.mrb[0].mxu0
      %v6949 = vpop.f32.mrb[0].mxu0
      %v6950 = vadd.f32 0.0, %v6949
      %v6951 = vpop.f32.mrb[0].mxu0
      %6952 = vmatprep.mubr.bf16.mxu0 0
      %6953 = vmatmul.mubr.bf16.gmra.mrb[0].mxu0 %v4072
      %v6954 = vpop.f32.mrb[0].mxu0
      %v6955 = vadd.f32 0.0, %v6954
      %v6956 = vpop.f32.mrb[0].mxu0
      %v6957 = vpop.f32.mrb[0].mxu0
      %v6958 = vadd.f32 0.0, %v6957
      %v6959 = vpop.f32.mrb[0].mxu0
      %6960 = vmatprep.mubr.bf16.mxu0 0
      %6961 = vmatmul.mubr.bf16.gmra.mrb[0].mxu0 %v4075
      %v6962 = vpop.f32.mrb[0].mxu0
      %v6963 = vadd.f32 0.0, %v6962
      %v6964 = vpop.f32.mrb[0].mxu0
      %v6965 = vpop.f32.mrb[0].mxu0
      %v6966 = vadd.f32 0.0, %v6965
      %v6967 = vpop.f32.mrb[0].mxu0
      %6968 = vmatprep.mubr.bf16.mxu0 0
      %6969 = vmatmul.mubr.bf16.gmra.mrb[0].mxu0 %v4078
      %v6970 = vpop.f32.mrb[0].mxu0
      %v6971 = vadd.f32 0.0, %v6970
      %v6972 = vpop.f32.mrb[0].mxu0
      %v6973 = vpop.f32.mrb[0].mxu0
      %v6974 = vadd.f32 0.0, %v6973
      %v6975 = vpop.f32.mrb[0].mxu0
      %6976 = vmatprep.mubr.bf16.mxu0 0
      %6977 = vmatmul.mubr.bf16.gmra.mrb[0].mxu0 %v4081
      %v6978 = vpop.f32.mrb[0].mxu0
      %v6979 = vadd.f32 0.0, %v6978
      %v6980 = vpop.f32.mrb[0].mxu0
      %v6981 = vpop.f32.mrb[0].mxu0
      %v6982 = vadd.f32 0.0, %v6981
      %v6983 = vpop.f32.mrb[0].mxu0
      %6984 = vmatprep.mubr.bf16.mxu0 0
      %6985 = vmatmul.mubr.bf16.gmra.mrb[0].mxu0 %v4084
      %v6986 = vpop.f32.mrb[0].mxu0
      %v6987 = vadd.f32 0.0, %v6986
      %v6988 = vpop.f32.mrb[0].mxu0
      %v6989 = vpop.f32.mrb[0].mxu0
      %v6990 = vadd.f32 0.0, %v6989
      %v6991 = vpop.f32.mrb[0].mxu0
      %6992 = vmatprep.mubr.bf16.mxu0 0
      %6993 = vmatmul.mubr.bf16.gmra.mrb[0].mxu0 %v4087
      %v6994 = vpop.f32.mrb[0].mxu0
      %v6995 = vadd.f32 0.0, %v6994
      %v6996 = vpop.f32.mrb[0].mxu0
      %v6997 = vpop.f32.mrb[0].mxu0
      %v6998 = vadd.f32 0.0, %v6997
      %v6999 = vpop.f32.mrb[0].mxu0
      %7000 = vmatprep.mubr.bf16.mxu0 0
      %7001 = vmatmul.mubr.bf16.gmra.mrb[0].mxu0 %v4090
      %v7002 = vpop.f32.mrb[0].mxu0
      %v7003 = vadd.f32 0.0, %v7002
      %v7004 = vpop.f32.mrb[0].mxu0
      %v7005 = vpop.f32.mrb[0].mxu0
      %v7006 = vadd.f32 0.0, %v7005
      %v7007 = vpop.f32.mrb[0].mxu0
      %7008 = vmatprep.mubr.bf16.mxu0 0
      %7009 = vmatmul.mubr.bf16.gmra.mrb[0].mxu0 %v4093
      %v7010 = vpop.f32.mrb[0].mxu0
      %v7011 = vadd.f32 0.0, %v7010
      %v7012 = vpop.f32.mrb[0].mxu0
      %v7013 = vpop.f32.mrb[0].mxu0
      %v7014 = vadd.f32 0.0, %v7013
      %v7015 = vpop.f32.mrb[0].mxu0
      %7016 = vmatprep.mubr.bf16.mxu0 0
      %7017 = vmatmul.mubr.bf16.gmra.mrb[0].mxu0 %v4096
      %v7018 = vpop.f32.mrb[0].mxu0
      %v7019 = vadd.f32 0.0, %v7018
      %v7020 = vpop.f32.mrb[0].mxu0
      %v7021 = vpop.f32.mrb[0].mxu0
      %v7022 = vadd.f32 0.0, %v7021
      %v7023 = vpop.f32.mrb[0].mxu0
      %7024 = vmatprep.mubr.bf16.mxu0 0
      %7025 = vmatmul.mubr.bf16.gmra.mrb[0].mxu0 %v4099
      %v7026 = vpop.f32.mrb[0].mxu0
      %v7027 = vadd.f32 0.0, %v7026
      %v7028 = vpop.f32.mrb[0].mxu0
      %v7029 = vpop.f32.mrb[0].mxu0
      %v7030 = vadd.f32 0.0, %v7029
      %v7031 = vpop.f32.mrb[0].mxu0
      %7032 = vmatprep.mubr.bf16.mxu0 0
      %7033 = vmatmul.mubr.bf16.gmra.mrb[0].mxu0 %v4102
      %v7034 = vpop.f32.mrb[0].mxu0
      %v7035 = vadd.f32 0.0, %v7034
      %v7036 = vpop.f32.mrb[0].mxu0
      %v7037 = vpop.f32.mrb[0].mxu0
      %v7038 = vadd.f32 0.0, %v7037
      %v7039 = vpop.f32.mrb[0].mxu0
      %7040 = vmatprep.mubr.bf16.mxu0 0
      %7041 = vmatmul.mubr.bf16.gmra.mrb[0].mxu0 %v4105
      %v7042 = vpop.f32.mrb[0].mxu0
      %v7043 = vadd.f32 0.0, %v7042
      %v7044 = vpop.f32.mrb[0].mxu0
      %v7045 = vpop.f32.mrb[0].mxu0
      %v7046 = vadd.f32 0.0, %v7045
      %v7047 = vpop.f32.mrb[0].mxu0
      %7048 = vmatprep.mubr.bf16.mxu0 0
      %7049 = vmatmul.mubr.bf16.gmra.mrb[0].mxu0 %v4108
      %v7050 = vpop.f32.mrb[0].mxu0
      %v7051 = vadd.f32 0.0, %v7050
      %v7052 = vpop.f32.mrb[0].mxu0
      %v7053 = vpop.f32.mrb[0].mxu0
      %v7054 = vadd.f32 0.0, %v7053
      %v7055 = vpop.f32.mrb[0].mxu0
      %7056 = vmatprep.mubr.bf16.mxu0 0
      %7057 = vmatmul.mubr.bf16.gmra.mrb[0].mxu0 %v4111
      %v7058 = vpop.f32.mrb[0].mxu0
      %v7059 = vadd.f32 0.0, %v7058
      %v7060 = vpop.f32.mrb[0].mxu0
      %v7061 = vpop.f32.mrb[0].mxu0
      %v7062 = vadd.f32 0.0, %v7061
      %v7063 = vpop.f32.mrb[0].mxu0
      %7064 = vmatprep.mubr.bf16.mxu0 0
      %7065 = vmatmul.mubr.bf16.gmra.mrb[0].mxu0 %v4114
      %v7066 = vpop.f32.mrb[0].mxu0
      %v7067 = vadd.f32 0.0, %v7066
      %v7068 = vpop.f32.mrb[0].mxu0
      %v7069 = vpop.f32.mrb[0].mxu0
      %v7070 = vadd.f32 0.0, %v7069
      %v7071 = vpop.f32.mrb[0].mxu0
      %7072 = vmatprep.mubr.bf16.mxu0 0
      %7073 = vmatmul.mubr.bf16.gmra.mrb[0].mxu0 %v4117
      %v7074 = vpop.f32.mrb[0].mxu0
      %v7075 = vadd.f32 0.0, %v7074
      %v7076 = vpop.f32.mrb[0].mxu0
      %v7077 = vpop.f32.mrb[0].mxu0
      %v7078 = vadd.f32 0.0, %v7077
      %v7079 = vpop.f32.mrb[0].mxu0
      %7080 = vmatprep.mubr.bf16.mxu0 0
      %7081 = vmatmul.mubr.bf16.gmra.mrb[0].mxu0 %v4120
      %v7082 = vpop.f32.mrb[0].mxu0
      %v7083 = vadd.f32 0.0, %v7082
      %v7084 = vpop.f32.mrb[0].mxu0
      %v7085 = vpop.f32.mrb[0].mxu0
      %v7086 = vadd.f32 0.0, %v7085
      %v7087 = vpop.f32.mrb[0].mxu0
      %7088 = vmatprep.mubr.bf16.mxu0 0
      %7089 = vmatmul.mubr.bf16.gmra.mrb[0].mxu0 %v4123
      %v7090 = vpop.f32.mrb[0].mxu0
      %v7091 = vadd.f32 0.0, %v7090
      %v7092 = vpop.f32.mrb[0].mxu0
      %v7093 = vpop.f32.mrb[0].mxu0
      %v7094 = vadd.f32 0.0, %v7093
      %v7095 = vpop.f32.mrb[0].mxu0
      %7096 = vmatprep.mubr.bf16.mxu0 0
      %7097 = vmatmul.mubr.bf16.gmra.mrb[0].mxu0 %v4126
      %v7098 = vpop.f32.mrb[0].mxu0
      %v7099 = vadd.f32 0.0, %v7098
      %v7100 = vpop.f32.mrb[0].mxu0
      %v7101 = vpop.f32.mrb[0].mxu0
      %v7102 = vadd.f32 0.0, %v7101
      %v7103 = vpop.f32.mrb[0].mxu0
      %7104 = vmatprep.mubr.bf16.mxu0 0
      %7105 = vmatmul.mubr.bf16.gmra.mrb[0].mxu0 %v4129
      %v7106 = vpop.f32.mrb[0].mxu0
      %v7107 = vadd.f32 0.0, %v7106
      %v7108 = vpop.f32.mrb[0].mxu0
      %v7109 = vpop.f32.mrb[0].mxu0
      %v7110 = vadd.f32 0.0, %v7109
      %v7111 = vpop.f32.mrb[0].mxu0
      %7112 = vmatprep.mubr.bf16.mxu0 0
      %7113 = vmatmul.mubr.bf16.gmra.mrb[0].mxu0 %v4132
      %v7114 = vpop.f32.mrb[0].mxu0
      %v7115 = vadd.f32 0.0, %v7114
      %v7116 = vpop.f32.mrb[0].mxu0
      %v7117 = vpop.f32.mrb[0].mxu0
      %v7118 = vadd.f32 0.0, %v7117
      %v7119 = vpop.f32.mrb[0].mxu0
      %7120 = vmatprep.mubr.bf16.mxu0 0
      %7121 = vmatmul.mubr.bf16.gmra.mrb[0].mxu0 %v4135
      %v7122 = vpop.f32.mrb[0].mxu0
      %v7123 = vadd.f32 0.0, %v7122
      %v7124 = vpop.f32.mrb[0].mxu0
      %v7125 = vpop.f32.mrb[0].mxu0
      %v7126 = vadd.f32 0.0, %v7125
      %v7127 = vpop.f32.mrb[0].mxu0
      %7128 = vmatprep.mubr.bf16.mxu0 0
      %7129 = vmatmul.mubr.bf16.gmra.mrb[0].mxu0 %v4138
      %v7130 = vpop.f32.mrb[0].mxu0
      %v7131 = vadd.f32 0.0, %v7130
      %v7132 = vpop.f32.mrb[0].mxu0
      %v7133 = vpop.f32.mrb[0].mxu0
      %v7134 = vadd.f32 0.0, %v7133
      %v7135 = vpop.f32.mrb[0].mxu0
      %7136 = vmatprep.mubr.bf16.mxu0 0
      %7137 = vmatmul.mubr.bf16.gmra.mrb[0].mxu0 %v4141
      %v7138 = vpop.f32.mrb[0].mxu0
      %v7139 = vadd.f32 0.0, %v7138
      %v7140 = vpop.f32.mrb[0].mxu0
      %v7141 = vpop.f32.mrb[0].mxu0
      %v7142 = vadd.f32 0.0, %v7141
      %v7143 = vpop.f32.mrb[0].mxu0
      %7144 = vmatprep.mubr.bf16.mxu0 0
      %7145 = vmatmul.mubr.bf16.gmra.mrb[0].mxu0 %v4144
      %v7146 = vpop.f32.mrb[0].mxu0
      %v7147 = vadd.f32 0.0, %v7146
      %v7148 = vpop.f32.mrb[0].mxu0
      %v7149 = vpop.f32.mrb[0].mxu0
      %v7150 = vadd.f32 0.0, %v7149
      %v7151 = vpop.f32.mrb[0].mxu0
      %7152 = vmatprep.mubr.bf16.mxu0 0
      %7153 = vmatmul.mubr.bf16.gmra.mrb[0].mxu0 %v4147
      %v7154 = vpop.f32.mrb[0].mxu0
      %v7155 = vadd.f32 0.0, %v7154
      %v7156 = vpop.f32.mrb[0].mxu0
      %v7157 = vpop.f32.mrb[0].mxu0
      %v7158 = vadd.f32 0.0, %v7157
      %v7159 = vpop.f32.mrb[0].mxu0
      %7160 = vmatprep.mubr.bf16.mxu0 0
      %7161 = vmatmul.mubr.bf16.gmra.mrb[0].mxu0 %v4150
      %v7162 = vpop.f32.mrb[0].mxu0
      %v7163 = vadd.f32 0.0, %v7162
      %v7164 = vpop.f32.mrb[0].mxu0
      %v7165 = vpop.f32.mrb[0].mxu0
      %v7166 = vadd.f32 0.0, %v7165
      %v7167 = vpop.f32.mrb[0].mxu0
      %7168 = vmatprep.mubr.bf16.mxu0 0
      %7169 = vmatmul.mubr.bf16.gmra.mrb[0].mxu0 %v4153
      %v7170 = vpop.f32.mrb[0].mxu0
      %v7171 = vadd.f32 0.0, %v7170
      %v7172 = vpop.f32.mrb[0].mxu0
      %v7173 = vpop.f32.mrb[0].mxu0
      %v7174 = vadd.f32 0.0, %v7173
      %v7175 = vpop.f32.mrb[0].mxu0
      %7176 = vmatprep.mubr.bf16.mxu0 0
      %7177 = vmatmul.mubr.bf16.gmra.mrb[0].mxu0 %v4156
      %v7178 = vpop.f32.mrb[0].mxu0
      %v7179 = vadd.f32 0.0, %v7178
      %v7180 = vpop.f32.mrb[0].mxu0
      %v7181 = vpop.f32.mrb[0].mxu0
      %v7182 = vadd.f32 0.0, %v7181
      %v7183 = vpop.f32.mrb[0].mxu0
      %7184 = vmatprep.mubr.bf16.mxu0 0
      %7185 = vmatmul.mubr.bf16.gmra.mrb[0].mxu0 %v4159
      %v7186 = vpop.f32.mrb[0].mxu0
      %v7187 = vadd.f32 0.0, %v7186
      %v7188 = vpop.f32.mrb[0].mxu0
      %v7189 = vpop.f32.mrb[0].mxu0
      %v7190 = vadd.f32 0.0, %v7189
      %v7191 = vpop.f32.mrb[0].mxu0
      %7192 = vmatprep.mubr.bf16.mxu0 0
      %7193 = vmatmul.mubr.bf16.gmra.mrb[0].mxu0 %v4162
      %v7194 = vpop.f32.mrb[0].mxu0
      %v7195 = vadd.f32 0.0, %v7194
      %v7196 = vpop.f32.mrb[0].mxu0
      %v7197 = vpop.f32.mrb[0].mxu0
      %v7198 = vadd.f32 0.0, %v7197
      %v7199 = vpop.f32.mrb[0].mxu0
      %7200 = vmatprep.mubr.bf16.mxu0 0
      %7201 = vmatmul.mubr.bf16.gmra.mrb[0].mxu0 %v4165
      %v7202 = vpop.f32.mrb[0].mxu0
      %v7203 = vadd.f32 0.0, %v7202
      %v7204 = vpop.f32.mrb[0].mxu0
      %v7205 = vpop.f32.mrb[0].mxu0
      %v7206 = vadd.f32 0.0, %v7205
      %v7207 = vpop.f32.mrb[0].mxu0
      %7208 = vmatprep.mubr.bf16.mxu0 0
      %7209 = vmatmul.mubr.bf16.gmra.mrb[0].mxu0 %v4168
      %v7210 = vpop.f32.mrb[0].mxu0
      %v7211 = vadd.f32 0.0, %v7210
      %v7212 = vpop.f32.mrb[0].mxu0
      %v7213 = vpop.f32.mrb[0].mxu0
      %v7214 = vadd.f32 0.0, %v7213
      %v7215 = vpop.f32.mrb[0].mxu0
      %7216 = vmatprep.mubr.bf16.mxu0 0
      %7217 = vmatmul.mubr.bf16.gmra.mrb[0].mxu0 %v4171
      %v7218 = vpop.f32.mrb[0].mxu0
      %v7219 = vadd.f32 0.0, %v7218
      %v7220 = vpop.f32.mrb[0].mxu0
      %v7221 = vpop.f32.mrb[0].mxu0
      %v7222 = vadd.f32 0.0, %v7221
      %v7223 = vpop.f32.mrb[0].mxu0
      %7224 = vmatprep.mubr.bf16.mxu0 0
      %7225 = vmatmul.mubr.bf16.gmra.mrb[0].mxu0 %v4174
      %v7226 = vpop.f32.mrb[0].mxu0
      %v7227 = vadd.f32 0.0, %v7226
      %v7228 = vpop.f32.mrb[0].mxu0
      %v7229 = vpop.f32.mrb[0].mxu0
      %v7230 = vadd.f32 0.0, %v7229
      %v7231 = vpop.f32.mrb[0].mxu0
      %7232 = vmatprep.mubr.bf16.mxu0 0
      %7233 = vmatmul.mubr.bf16.gmra.mrb[0].mxu0 %v4177
      %v7234 = vpop.f32.mrb[0].mxu0
      %v7235 = vadd.f32 0.0, %v7234
      %v7236 = vpop.f32.mrb[0].mxu0
      %v7237 = vpop.f32.mrb[0].mxu0
      %v7238 = vadd.f32 0.0, %v7237
      %v7239 = vpop.f32.mrb[0].mxu0
      %7240 = vmatprep.mubr.bf16.mxu0 0
      %7241 = vmatmul.mubr.bf16.gmra.mrb[0].mxu0 %v4180
      %v7242 = vpop.f32.mrb[0].mxu0
      %v7243 = vadd.f32 0.0, %v7242
      %v7244 = vpop.f32.mrb[0].mxu0
      %v7245 = vpop.f32.mrb[0].mxu0
      %v7246 = vadd.f32 0.0, %v7245
      %v7247 = vpop.f32.mrb[0].mxu0
      %7248 = vmatprep.mubr.bf16.mxu0 0
      %7249 = vmatmul.mubr.bf16.gmra.mrb[0].mxu0 %v4183
      %v7250 = vpop.f32.mrb[0].mxu0
      %v7251 = vadd.f32 0.0, %v7250
      %v7252 = vpop.f32.mrb[0].mxu0
      %v7253 = vpop.f32.mrb[0].mxu0
      %v7254 = vadd.f32 0.0, %v7253
      %v7255 = vpop.f32.mrb[0].mxu0
      %7256 = vmatprep.mubr.bf16.mxu0 0
      %7257 = vmatmul.mubr.bf16.gmra.mrb[0].mxu0 %v4186
      %v7258 = vpop.f32.mrb[0].mxu0
      %v7259 = vadd.f32 0.0, %v7258
      %v7260 = vpop.f32.mrb[0].mxu0
      %v7261 = vpop.f32.mrb[0].mxu0
      %v7262 = vadd.f32 0.0, %v7261
      %v7263 = vpop.f32.mrb[0].mxu0
      %7264 = vmatprep.mubr.bf16.mxu0 0
      %7265 = vmatmul.mubr.bf16.gmra.mrb[0].mxu0 %v4189
      %v7266 = vpop.f32.mrb[0].mxu0
      %v7267 = vadd.f32 0.0, %v7266
      %v7268 = vpop.f32.mrb[0].mxu0
      %v7269 = vpop.f32.mrb[0].mxu0
      %v7270 = vadd.f32 0.0, %v7269
      %v7271 = vpop.f32.mrb[0].mxu0
      %7272 = vmatprep.mubr.bf16.mxu0 0
      %7273 = vmatmul.mubr.bf16.gmra.mrb[0].mxu0 %v4192
      %v7274 = vpop.f32.mrb[0].mxu0
      %v7275 = vadd.f32 0.0, %v7274
      %v7276 = vpop.f32.mrb[0].mxu0
      %v7277 = vpop.f32.mrb[0].mxu0
      %v7278 = vadd.f32 0.0, %v7277
      %v7279 = vpop.f32.mrb[0].mxu0
      %7280 = vmatprep.mubr.bf16.mxu0 0
      %7281 = vmatmul.mubr.bf16.gmra.mrb[0].mxu0 %v4195
      %v7282 = vpop.f32.mrb[0].mxu0
      %v7283 = vadd.f32 0.0, %v7282
      %v7284 = vpop.f32.mrb[0].mxu0
      %v7285 = vpop.f32.mrb[0].mxu0
      %v7286 = vadd.f32 0.0, %v7285
      %v7287 = vpop.f32.mrb[0].mxu0
      %7288 = vmatprep.mubr.bf16.mxu0 0
      %7289 = vmatmul.mubr.bf16.gmra.mrb[0].mxu0 %v4198
      %v7290 = vpop.f32.mrb[0].mxu0
      %v7291 = vadd.f32 0.0, %v7290
      %v7292 = vpop.f32.mrb[0].mxu0
      %v7293 = vpop.f32.mrb[0].mxu0
      %v7294 = vadd.f32 0.0, %v7293
      %v7295 = vpop.f32.mrb[0].mxu0
      %7296 = vmatprep.mubr.bf16.mxu0 0
      %7297 = vmatmul.mubr.bf16.gmra.mrb[0].mxu0 %v4201
      %v7298 = vpop.f32.mrb[0].mxu0
      %v7299 = vadd.f32 0.0, %v7298
      %v7300 = vpop.f32.mrb[0].mxu0
      %v7301 = vpop.f32.mrb[0].mxu0
      %v7302 = vadd.f32 0.0, %v7301
      %v7303 = vpop.f32.mrb[0].mxu0
      %7304 = vmatprep.mubr.bf16.mxu0 0
      %7305 = vmatmul.mubr.bf16.gmra.mrb[0].mxu0 %v4204
      %v7306 = vpop.f32.mrb[0].mxu0
      %v7307 = vadd.f32 0.0, %v7306
      %v7308 = vpop.f32.mrb[0].mxu0
      %v7309 = vpop.f32.mrb[0].mxu0
      %v7310 = vadd.f32 0.0, %v7309
      %v7311 = vpop.f32.mrb[0].mxu0
      %7312 = vmatprep.mubr.bf16.mxu0 0
      %7313 = vmatmul.mubr.bf16.gmra.mrb[0].mxu0 %v4207
      %v7314 = vpop.f32.mrb[0].mxu0
      %v7315 = vadd.f32 0.0, %v7314
      %v7316 = vpop.f32.mrb[0].mxu0
      %v7317 = vpop.f32.mrb[0].mxu0
      %v7318 = vadd.f32 0.0, %v7317
      %v7319 = vpop.f32.mrb[0].mxu0
      %7320 = vmatprep.mubr.bf16.mxu0 0
      %7321 = vmatmul.mubr.bf16.gmra.mrb[0].mxu0 %v4210
      %v7322 = vpop.f32.mrb[0].mxu0
      %v7323 = vadd.f32 0.0, %v7322
      %v7324 = vpop.f32.mrb[0].mxu0
      %v7325 = vpop.f32.mrb[0].mxu0
      %v7326 = vadd.f32 0.0, %v7325
      %v7327 = vpop.f32.mrb[0].mxu0
      %7328 = vmatprep.mubr.bf16.mxu0 0
      %7329 = vmatmul.mubr.bf16.gmra.mrb[0].mxu0 %v4213
      %v7330 = vpop.f32.mrb[0].mxu0
      %v7331 = vadd.f32 0.0, %v7330
      %v7332 = vpop.f32.mrb[0].mxu0
      %v7333 = vpop.f32.mrb[0].mxu0
      %v7334 = vadd.f32 0.0, %v7333
      %v7335 = vpop.f32.mrb[0].mxu0
      %7336 = vmatprep.mubr.bf16.mxu0 0
      %7337 = vmatmul.mubr.bf16.gmra.mrb[0].mxu0 %v4216
      %v7338 = vpop.f32.mrb[0].mxu0
      %v7339 = vadd.f32 0.0, %v7338
      %v7340 = vpop.f32.mrb[0].mxu0
      %v7341 = vpop.f32.mrb[0].mxu0
      %v7342 = vadd.f32 0.0, %v7341
      %v7343 = vpop.f32.mrb[0].mxu0
      %7344 = vmatprep.mubr.bf16.mxu0 0
      %7345 = vmatmul.mubr.bf16.gmra.mrb[0].mxu0 %v4219
      %v7346 = vpop.f32.mrb[0].mxu0
      %v7347 = vadd.f32 0.0, %v7346
      %v7348 = vpop.f32.mrb[0].mxu0
      %v7349 = vpop.f32.mrb[0].mxu0
      %v7350 = vadd.f32 0.0, %v7349
      %v7351 = vpop.f32.mrb[0].mxu0
      %7352 = vmatprep.mubr.bf16.mxu0 0
      %7353 = vmatmul.mubr.bf16.gmra.mrb[0].mxu0 %v4222
      %v7354 = vpop.f32.mrb[0].mxu0
      %v7355 = vadd.f32 0.0, %v7354
      %v7356 = vpop.f32.mrb[0].mxu0
      %v7357 = vpop.f32.mrb[0].mxu0
      %v7358 = vpop.f32.mrb[0].mxu0
      %7359 = vdwg.mxu0
      %v7360 = vmax.f32 %v4259, 0.0
      %v7361 = vmax.f32 %v4262, 0.0
      %v7362 = vmax.f32 %v4267, 0.0
      %v7363 = vmax.f32 %v4270, 0.0
      %v7364 = vmax.f32 %v4275, 0.0
      %v7365 = vmax.f32 %v4278, 0.0
      %v7366 = vmax.f32 %v4283, 0.0
      %v7367 = vmax.f32 %v4286, 0.0
      %v7368 = vmax.f32 %v4291, 0.0
      %v7369 = vmax.f32 %v4294, 0.0
      %v7370 = vmax.f32 %v4299, 0.0
      %v7371 = vmax.f32 %v4302, 0.0
      %v7372 = vmax.f32 %v4307, 0.0
      %v7373 = vmax.f32 %v4310, 0.0
      %v7374 = vmax.f32 %v4315, 0.0
      %v7375 = vmax.f32 %v4318, 0.0
      %v7376 = vmax.f32 %v4323, 0.0
      %v7377 = vmax.f32 %v4326, 0.0
      %v7378 = vmax.f32 %v4331, 0.0
      %v7379 = vmax.f32 %v4334, 0.0
      %v7380 = vmax.f32 %v4339, 0.0
      %v7381 = vmax.f32 %v4342, 0.0
      %v7382 = vmax.f32 %v4347, 0.0
      %v7383 = vmax.f32 %v4350, 0.0
      %v7384 = vmax.f32 %v4355, 0.0
      %v7385 = vmax.f32 %v4358, 0.0
      %v7386 = vmax.f32 %v4363, 0.0
      %v7387 = vmax.f32 %v4366, 0.0
      %v7388 = vmax.f32 %v4371, 0.0
      %v7389 = vmax.f32 %v4374, 0.0
      %v7390 = vmax.f32 %v4379, 0.0
      %v7391 = vmax.f32 %v4382, 0.0
      %v7392 = vmax.f32 %v4387, 0.0
      %v7393 = vmax.f32 %v4390, 0.0
      %v7394 = vmax.f32 %v4395, 0.0
      %v7395 = vmax.f32 %v4398, 0.0
      %v7396 = vmax.f32 %v4403, 0.0
      %v7397 = vmax.f32 %v4406, 0.0
      %v7398 = vmax.f32 %v4411, 0.0
      %v7399 = vmax.f32 %v4414, 0.0
      %v7400 = vmax.f32 %v4419, 0.0
      %v7401 = vmax.f32 %v4422, 0.0
      %v7402 = vmax.f32 %v4427, 0.0
      %v7403 = vmax.f32 %v4430, 0.0
      %v7404 = vmax.f32 %v4435, 0.0
      %v7405 = vmax.f32 %v4438, 0.0
      %v7406 = vmax.f32 %v4443, 0.0
      %v7407 = vmax.f32 %v4446, 0.0
      %v7408 = vmax.f32 %v4451, 0.0
      %v7409 = vmax.f32 %v4454, 0.0
      %v7410 = vmax.f32 %v4459, 0.0
      %v7411 = vmax.f32 %v4462, 0.0
      %v7412 = vmax.f32 %v4467, 0.0
      %v7413 = vmax.f32 %v4470, 0.0
      %v7414 = vmax.f32 %v4475, 0.0
      %v7415 = vmax.f32 %v4478, 0.0
      %v7416 = vmax.f32 %v4483, 0.0
      %v7417 = vmax.f32 %v4486, 0.0
      %v7418 = vmax.f32 %v4491, 0.0
      %v7419 = vmax.f32 %v4494, 0.0
      %v7420 = vmax.f32 %v4499, 0.0
      %v7421 = vmax.f32 %v4502, 0.0
      %v7422 = vmax.f32 %v4507, 0.0
      %v7423 = vmax.f32 %v4510, 0.0
      %v7424 = vmax.f32 %v4515, 0.0
      %v7425 = vmax.f32 %v4518, 0.0
      %v7426 = vmax.f32 %v4523, 0.0
      %v7427 = vmax.f32 %v4526, 0.0
      %v7428 = vmax.f32 %v4531, 0.0
      %v7429 = vmax.f32 %v4534, 0.0
      %v7430 = vmax.f32 %v4539, 0.0
      %v7431 = vmax.f32 %v4542, 0.0
      %v7432 = vmax.f32 %v4547, 0.0
      %v7433 = vmax.f32 %v4550, 0.0
      %v7434 = vmax.f32 %v4555, 0.0
      %v7435 = vmax.f32 %v4558, 0.0
      %v7436 = vmax.f32 %v4563, 0.0
      %v7437 = vmax.f32 %v4566, 0.0
      %v7438 = vmax.f32 %v4571, 0.0
      %v7439 = vmax.f32 %v4574, 0.0
      %v7440 = vmax.f32 %v4579, 0.0
      %v7441 = vmax.f32 %v4582, 0.0
      %v7442 = vmax.f32 %v4587, 0.0
      %v7443 = vmax.f32 %v4590, 0.0
      %v7444 = vmax.f32 %v4595, 0.0
      %v7445 = vmax.f32 %v4598, 0.0
      %v7446 = vmax.f32 %v4603, 0.0
      %v7447 = vmax.f32 %v4606, 0.0
      %v7448 = vmax.f32 %v4611, 0.0
      %v7449 = vmax.f32 %v4614, 0.0
      %v7450 = vmax.f32 %v4619, 0.0
      %v7451 = vmax.f32 %v4622, 0.0
      %v7452 = vmax.f32 %v4627, 0.0
      %v7453 = vmax.f32 %v4630, 0.0
      %v7454 = vmax.f32 %v4635, 0.0
      %v7455 = vmax.f32 %v4638, 0.0
      %v7456 = vmax.f32 %v4643, 0.0
      %v7457 = vmax.f32 %v4646, 0.0
      %v7458 = vmax.f32 %v4651, 0.0
      %v7459 = vmax.f32 %v4654, 0.0
      %v7460 = vmax.f32 %v4659, 0.0
      %v7461 = vmax.f32 %v4662, 0.0
      %v7462 = vmax.f32 %v4667, 0.0
      %v7463 = vmax.f32 %v4670, 0.0
      %v7464 = vmax.f32 %v4675, 0.0
      %v7465 = vmax.f32 %v4678, 0.0
      %v7466 = vmax.f32 %v4683, 0.0
      %v7467 = vmax.f32 %v4686, 0.0
      %v7468 = vmax.f32 %v4691, 0.0
      %v7469 = vmax.f32 %v4694, 0.0
      %v7470 = vmax.f32 %v4699, 0.0
      %v7471 = vmax.f32 %v4702, 0.0
      %v7472 = vmax.f32 %v4707, 0.0
      %v7473 = vmax.f32 %v4710, 0.0
      %v7474 = vmax.f32 %v4715, 0.0
      %v7475 = vmax.f32 %v4718, 0.0
      %v7476 = vmax.f32 %v4723, 0.0
      %v7477 = vmax.f32 %v4726, 0.0
      %v7478 = vmax.f32 %v4731, 0.0
      %v7479 = vmax.f32 %v4734, 0.0
      %v7480 = vmax.f32 %v4739, 0.0
      %v7481 = vmax.f32 %v4742, 0.0
      %v7482 = vmax.f32 %v4747, 0.0
      %v7483 = vmax.f32 %v4750, 0.0
      %v7484 = vmax.f32 %v4755, 0.0
      %v7485 = vmax.f32 %v4758, 0.0
      %v7486 = vmax.f32 %v4763, 0.0
      %v7487 = vmax.f32 %v4766, 0.0
      %v7488 = vmax.f32 %v4771, 0.0
      %v7489 = vmax.f32 %v4774, 0.0
      %v7490 = vmax.f32 %v4779, 0.0
      %v7491 = vmax.f32 %v4782, 0.0
      %v7492 = vmax.f32 %v4787, 0.0
      %v7493 = vmax.f32 %v4790, 0.0
      %v7494 = vmax.f32 %v4795, 0.0
      %v7495 = vmax.f32 %v4798, 0.0
      %v7496 = vmax.f32 %v4803, 0.0
      %v7497 = vmax.f32 %v4806, 0.0
      %v7498 = vmax.f32 %v4811, 0.0
      %v7499 = vmax.f32 %v4814, 0.0
      %v7500 = vmax.f32 %v4819, 0.0
      %v7501 = vmax.f32 %v4822, 0.0
      %v7502 = vmax.f32 %v4827, 0.0
      %v7503 = vmax.f32 %v4830, 0.0
      %v7504 = vmax.f32 %v4835, 0.0
      %v7505 = vmax.f32 %v4838, 0.0
      %v7506 = vmax.f32 %v4843, 0.0
      %v7507 = vmax.f32 %v4846, 0.0
      %v7508 = vmax.f32 %v4851, 0.0
      %v7509 = vmax.f32 %v4854, 0.0
      %v7510 = vmax.f32 %v4859, 0.0
      %v7511 = vmax.f32 %v4862, 0.0
      %v7512 = vmax.f32 %v4867, 0.0
      %v7513 = vmax.f32 %v4870, 0.0
      %v7514 = vmax.f32 %v4875, 0.0
      %v7515 = vmax.f32 %v4878, 0.0
      %v7516 = vmax.f32 %v4883, 0.0
      %v7517 = vmax.f32 %v4886, 0.0
      %v7518 = vmax.f32 %v4891, 0.0
      %v7519 = vmax.f32 %v4894, 0.0
      %v7520 = vmax.f32 %v4899, 0.0
      %v7521 = vmax.f32 %v4902, 0.0
      %v7522 = vmax.f32 %v4907, 0.0
      %v7523 = vmax.f32 %v4910, 0.0
      %v7524 = vmax.f32 %v4915, 0.0
      %v7525 = vmax.f32 %v4918, 0.0
      %v7526 = vmax.f32 %v4923, 0.0
      %v7527 = vmax.f32 %v4926, 0.0
      %v7528 = vmax.f32 %v4931, 0.0
      %v7529 = vmax.f32 %v4934, 0.0
      %v7530 = vmax.f32 %v4939, 0.0
      %v7531 = vmax.f32 %v4942, 0.0
      %v7532 = vmax.f32 %v4947, 0.0
      %v7533 = vmax.f32 %v4950, 0.0
      %v7534 = vmax.f32 %v4955, 0.0
      %v7535 = vmax.f32 %v4958, 0.0
      %v7536 = vmax.f32 %v4963, 0.0
      %v7537 = vmax.f32 %v4966, 0.0
      %v7538 = vmax.f32 %v4971, 0.0
      %v7539 = vmax.f32 %v4974, 0.0
      %v7540 = vmax.f32 %v4979, 0.0
      %v7541 = vmax.f32 %v4982, 0.0
      %v7542 = vmax.f32 %v4987, 0.0
      %v7543 = vmax.f32 %v4990, 0.0
      %v7544 = vmax.f32 %v4995, 0.0
      %v7545 = vmax.f32 %v4998, 0.0
      %v7546 = vmax.f32 %v5003, 0.0
      %v7547 = vmax.f32 %v5006, 0.0
      %v7548 = vmax.f32 %v5011, 0.0
      %v7549 = vmax.f32 %v5014, 0.0
      %v7550 = vmax.f32 %v5019, 0.0
      %v7551 = vmax.f32 %v5022, 0.0
      %v7552 = vmax.f32 %v5027, 0.0
      %v7553 = vmax.f32 %v5030, 0.0
      %v7554 = vmax.f32 %v5035, 0.0
      %v7555 = vmax.f32 %v5038, 0.0
      %v7556 = vmax.f32 %v5043, 0.0
      %v7557 = vmax.f32 %v5046, 0.0
      %v7558 = vmax.f32 %v5051, 0.0
      %v7559 = vmax.f32 %v5054, 0.0
      %v7560 = vmax.f32 %v5059, 0.0
      %v7561 = vmax.f32 %v5062, 0.0
      %v7562 = vmax.f32 %v5067, 0.0
      %v7563 = vmax.f32 %v5070, 0.0
      %v7564 = vmax.f32 %v5075, 0.0
      %v7565 = vmax.f32 %v5078, 0.0
      %v7566 = vmax.f32 %v5083, 0.0
      %v7567 = vmax.f32 %v5086, 0.0
      %v7568 = vmax.f32 %v5091, 0.0
      %v7569 = vmax.f32 %v5094, 0.0
      %v7570 = vmax.f32 %v5099, 0.0
      %v7571 = vmax.f32 %v5102, 0.0
      %v7572 = vmax.f32 %v5107, 0.0
      %v7573 = vmax.f32 %v5110, 0.0
      %v7574 = vmax.f32 %v5115, 0.0
      %v7575 = vmax.f32 %v5118, 0.0
      %v7576 = vmax.f32 %v5123, 0.0
      %v7577 = vmax.f32 %v5126, 0.0
      %v7578 = vmax.f32 %v5131, 0.0
      %v7579 = vmax.f32 %v5134, 0.0
      %v7580 = vmax.f32 %v5139, 0.0
      %v7581 = vmax.f32 %v5142, 0.0
      %v7582 = vmax.f32 %v5147, 0.0
      %v7583 = vmax.f32 %v5150, 0.0
      %v7584 = vmax.f32 %v5155, 0.0
      %v7585 = vmax.f32 %v5158, 0.0
      %v7586 = vmax.f32 %v5163, 0.0
      %v7587 = vmax.f32 %v5166, 0.0
      %v7588 = vmax.f32 %v5171, 0.0
      %v7589 = vmax.f32 %v5174, 0.0
      %v7590 = vmax.f32 %v5179, 0.0
      %v7591 = vmax.f32 %v5182, 0.0
      %v7592 = vmax.f32 %v5187, 0.0
      %v7593 = vmax.f32 %v5190, 0.0
      %v7594 = vmax.f32 %v5195, 0.0
      %v7595 = vmax.f32 %v5198, 0.0
      %v7596 = vmax.f32 %v5203, 0.0
      %v7597 = vmax.f32 %v5206, 0.0
      %v7598 = vmax.f32 %v5211, 0.0
      %v7599 = vmax.f32 %v5214, 0.0
      %v7600 = vmax.f32 %v5219, 0.0
      %v7601 = vmax.f32 %v5222, 0.0
      %v7602 = vmax.f32 %v5227, 0.0
      %v7603 = vmax.f32 %v5230, 0.0
      %v7604 = vmax.f32 %v5235, 0.0
      %v7605 = vmax.f32 %v5238, 0.0
      %v7606 = vmax.f32 %v5243, 0.0
      %v7607 = vmax.f32 %v5246, 0.0
      %v7608 = vmax.f32 %v5251, 0.0
      %v7609 = vmax.f32 %v5254, 0.0
      %v7610 = vmax.f32 %v5259, 0.0
      %v7611 = vmax.f32 %v5262, 0.0
      %v7612 = vmax.f32 %v5267, 0.0
      %v7613 = vmax.f32 %v5270, 0.0
      %v7614 = vmax.f32 %v5275, 0.0
      %v7615 = vmax.f32 %v5278, 0.0
      %v7616 = vmax.f32 %v5283, 0.0
      %v7617 = vmax.f32 %v5286, 0.0
      %v7618 = vmax.f32 %v5291, 0.0
      %v7619 = vmax.f32 %v5294, 0.0
      %v7620 = vmax.f32 %v5299, 0.0
      %v7621 = vmax.f32 %v5302, 0.0
      %v7622 = vmax.f32 %v5307, 0.0
      %v7623 = vmax.f32 %v5310, 0.0
      %v7624 = vmax.f32 %v5315, 0.0
      %v7625 = vmax.f32 %v5318, 0.0
      %v7626 = vmax.f32 %v5323, 0.0
      %v7627 = vmax.f32 %v5326, 0.0
      %v7628 = vmax.f32 %v5331, 0.0
      %v7629 = vmax.f32 %v5334, 0.0
      %v7630 = vmax.f32 %v5339, 0.0
      %v7631 = vmax.f32 %v5342, 0.0
      %v7632 = vmax.f32 %v5347, 0.0
      %v7633 = vmax.f32 %v5350, 0.0
      %v7634 = vmax.f32 %v5355, 0.0
      %v7635 = vmax.f32 %v5358, 0.0
      %v7636 = vmax.f32 %v5363, 0.0
      %v7637 = vmax.f32 %v5366, 0.0
      %v7638 = vmax.f32 %v5371, 0.0
      %v7639 = vmax.f32 %v5374, 0.0
      %v7640 = vmax.f32 %v5379, 0.0
      %v7641 = vmax.f32 %v5382, 0.0
      %v7642 = vmax.f32 %v5387, 0.0
      %v7643 = vmax.f32 %v5390, 0.0
      %v7644 = vmax.f32 %v5395, 0.0
      %v7645 = vmax.f32 %v5398, 0.0
      %v7646 = vmax.f32 %v5403, 0.0
      %v7647 = vmax.f32 %v5406, 0.0
      %v7648 = vmax.f32 %v5411, 0.0
      %v7649 = vmax.f32 %v5414, 0.0
      %v7650 = vmax.f32 %v5419, 0.0
      %v7651 = vmax.f32 %v5422, 0.0
      %v7652 = vmax.f32 %v5427, 0.0
      %v7653 = vmax.f32 %v5430, 0.0
      %v7654 = vmax.f32 %v5435, 0.0
      %v7655 = vmax.f32 %v5438, 0.0
      %v7656 = vmax.f32 %v5443, 0.0
      %v7657 = vmax.f32 %v5446, 0.0
      %v7658 = vmax.f32 %v5451, 0.0
      %v7659 = vmax.f32 %v5454, 0.0
      %v7660 = vmax.f32 %v5459, 0.0
      %v7661 = vmax.f32 %v5462, 0.0
      %v7662 = vmax.f32 %v5467, 0.0
      %v7663 = vmax.f32 %v5470, 0.0
      %v7664 = vmax.f32 %v5475, 0.0
      %v7665 = vmax.f32 %v5478, 0.0
      %v7666 = vmax.f32 %v5483, 0.0
      %v7667 = vmax.f32 %v5486, 0.0
      %v7668 = vmax.f32 %v5491, 0.0
      %v7669 = vmax.f32 %v5494, 0.0
      %v7670 = vmax.f32 %v5499, 0.0
      %v7671 = vmax.f32 %v5502, 0.0
      %v7672 = vmax.f32 %v5507, 0.0
      %v7673 = vmax.f32 %v5510, 0.0
      %v7674 = vmax.f32 %v5515, 0.0
      %v7675 = vmax.f32 %v5518, 0.0
      %v7676 = vmax.f32 %v5523, 0.0
      %v7677 = vmax.f32 %v5526, 0.0
      %v7678 = vmax.f32 %v5531, 0.0
      %v7679 = vmax.f32 %v5534, 0.0
      %v7680 = vmax.f32 %v5539, 0.0
      %v7681 = vmax.f32 %v5542, 0.0
      %v7682 = vmax.f32 %v5547, 0.0
      %v7683 = vmax.f32 %v5550, 0.0
      %v7684 = vmax.f32 %v5555, 0.0
      %v7685 = vmax.f32 %v5558, 0.0
      %v7686 = vmax.f32 %v5563, 0.0
      %v7687 = vmax.f32 %v5566, 0.0
      %v7688 = vmax.f32 %v5571, 0.0
      %v7689 = vmax.f32 %v5574, 0.0
      %v7690 = vmax.f32 %v5579, 0.0
      %v7691 = vmax.f32 %v5582, 0.0
      %v7692 = vmax.f32 %v5587, 0.0
      %v7693 = vmax.f32 %v5590, 0.0
      %v7694 = vmax.f32 %v5595, 0.0
      %v7695 = vmax.f32 %v5598, 0.0
      %v7696 = vmax.f32 %v5603, 0.0
      %v7697 = vmax.f32 %v5606, 0.0
      %v7698 = vmax.f32 %v5611, 0.0
      %v7699 = vmax.f32 %v5614, 0.0
      %v7700 = vmax.f32 %v5619, 0.0
      %v7701 = vmax.f32 %v5622, 0.0
      %v7702 = vmax.f32 %v5627, 0.0
      %v7703 = vmax.f32 %v5630, 0.0
      %v7704 = vmax.f32 %v5635, 0.0
      %v7705 = vmax.f32 %v5638, 0.0
      %v7706 = vmax.f32 %v5643, 0.0
      %v7707 = vmax.f32 %v5646, 0.0
      %v7708 = vmax.f32 %v5651, 0.0
      %v7709 = vmax.f32 %v5654, 0.0
      %v7710 = vmax.f32 %v5659, 0.0
      %v7711 = vmax.f32 %v5662, 0.0
      %v7712 = vmax.f32 %v5667, 0.0
      %v7713 = vmax.f32 %v5670, 0.0
      %v7714 = vmax.f32 %v5675, 0.0
      %v7715 = vmax.f32 %v5678, 0.0
      %v7716 = vmax.f32 %v5683, 0.0
      %v7717 = vmax.f32 %v5686, 0.0
      %v7718 = vmax.f32 %v5691, 0.0
      %v7719 = vmax.f32 %v5694, 0.0
      %v7720 = vmax.f32 %v5699, 0.0
      %v7721 = vmax.f32 %v5702, 0.0
      %v7722 = vmax.f32 %v5707, 0.0
      %v7723 = vmax.f32 %v5710, 0.0
      %v7724 = vmax.f32 %v5715, 0.0
      %v7725 = vmax.f32 %v5718, 0.0
      %v7726 = vmax.f32 %v5723, 0.0
      %v7727 = vmax.f32 %v5726, 0.0
      %v7728 = vmax.f32 %v5731, 0.0
      %v7729 = vmax.f32 %v5734, 0.0
      %v7730 = vmax.f32 %v5739, 0.0
      %v7731 = vmax.f32 %v5742, 0.0
      %v7732 = vmax.f32 %v5747, 0.0
      %v7733 = vmax.f32 %v5750, 0.0
      %v7734 = vmax.f32 %v5755, 0.0
      %v7735 = vmax.f32 %v5758, 0.0
      %v7736 = vmax.f32 %v5763, 0.0
      %v7737 = vmax.f32 %v5766, 0.0
      %v7738 = vmax.f32 %v5771, 0.0
      %v7739 = vmax.f32 %v5774, 0.0
      %v7740 = vmax.f32 %v5779, 0.0
      %v7741 = vmax.f32 %v5782, 0.0
      %v7742 = vmax.f32 %v5787, 0.0
      %v7743 = vmax.f32 %v5790, 0.0
      %v7744 = vmax.f32 %v5795, 0.0
      %v7745 = vmax.f32 %v5798, 0.0
      %v7746 = vmax.f32 %v5803, 0.0
      %v7747 = vmax.f32 %v5806, 0.0
      %v7748 = vmax.f32 %v5811, 0.0
      %v7749 = vmax.f32 %v5814, 0.0
      %v7750 = vmax.f32 %v5819, 0.0
      %v7751 = vmax.f32 %v5822, 0.0
      %v7752 = vmax.f32 %v5827, 0.0
      %v7753 = vmax.f32 %v5830, 0.0
      %v7754 = vmax.f32 %v5835, 0.0
      %v7755 = vmax.f32 %v5838, 0.0
      %v7756 = vmax.f32 %v5843, 0.0
      %v7757 = vmax.f32 %v5846, 0.0
      %v7758 = vmax.f32 %v5851, 0.0
      %v7759 = vmax.f32 %v5854, 0.0
      %v7760 = vmax.f32 %v5859, 0.0
      %v7761 = vmax.f32 %v5862, 0.0
      %v7762 = vmax.f32 %v5867, 0.0
      %v7763 = vmax.f32 %v5870, 0.0
      %v7764 = vmax.f32 %v5875, 0.0
      %v7765 = vmax.f32 %v5878, 0.0
      %v7766 = vmax.f32 %v5883, 0.0
      %v7767 = vmax.f32 %v5886, 0.0
      %v7768 = vmax.f32 %v5891, 0.0
      %v7769 = vmax.f32 %v5894, 0.0
      %v7770 = vmax.f32 %v5899, 0.0
      %v7771 = vmax.f32 %v5902, 0.0
      %v7772 = vmax.f32 %v5907, 0.0
      %v7773 = vmax.f32 %v5910, 0.0
      %v7774 = vmax.f32 %v5915, 0.0
      %v7775 = vmax.f32 %v5918, 0.0
      %v7776 = vmax.f32 %v5923, 0.0
      %v7777 = vmax.f32 %v5926, 0.0
      %v7778 = vmax.f32 %v5931, 0.0
      %v7779 = vmax.f32 %v5934, 0.0
      %v7780 = vmax.f32 %v5939, 0.0
      %v7781 = vmax.f32 %v5942, 0.0
      %v7782 = vmax.f32 %v5947, 0.0
      %v7783 = vmax.f32 %v5950, 0.0
      %v7784 = vmax.f32 %v5955, 0.0
      %v7785 = vmax.f32 %v5958, 0.0
      %v7786 = vmax.f32 %v5963, 0.0
      %v7787 = vmax.f32 %v5966, 0.0
      %v7788 = vmax.f32 %v5971, 0.0
      %v7789 = vmax.f32 %v5974, 0.0
      %v7790 = vmax.f32 %v5979, 0.0
      %v7791 = vmax.f32 %v5982, 0.0
      %v7792 = vmax.f32 %v5987, 0.0
      %v7793 = vmax.f32 %v5990, 0.0
      %v7794 = vmax.f32 %v5995, 0.0
      %v7795 = vmax.f32 %v5998, 0.0
      %v7796 = vmax.f32 %v6003, 0.0
      %v7797 = vmax.f32 %v6006, 0.0
      %v7798 = vmax.f32 %v6011, 0.0
      %v7799 = vmax.f32 %v6014, 0.0
      %v7800 = vmax.f32 %v6019, 0.0
      %v7801 = vmax.f32 %v6022, 0.0
      %v7802 = vmax.f32 %v6027, 0.0
      %v7803 = vmax.f32 %v6030, 0.0
      %v7804 = vmax.f32 %v6035, 0.0
      %v7805 = vmax.f32 %v6038, 0.0
      %v7806 = vmax.f32 %v6043, 0.0
      %v7807 = vmax.f32 %v6046, 0.0
      %v7808 = vmax.f32 %v6051, 0.0
      %v7809 = vmax.f32 %v6054, 0.0
      %v7810 = vmax.f32 %v6059, 0.0
      %v7811 = vmax.f32 %v6062, 0.0
      %v7812 = vmax.f32 %v6067, 0.0
      %v7813 = vmax.f32 %v6070, 0.0
      %v7814 = vmax.f32 %v6075, 0.0
      %v7815 = vmax.f32 %v6078, 0.0
      %v7816 = vmax.f32 %v6083, 0.0
      %v7817 = vmax.f32 %v6086, 0.0
      %v7818 = vmax.f32 %v6091, 0.0
      %v7819 = vmax.f32 %v6094, 0.0
      %v7820 = vmax.f32 %v6099, 0.0
      %v7821 = vmax.f32 %v6102, 0.0
      %v7822 = vmax.f32 %v6107, 0.0
      %v7823 = vmax.f32 %v6110, 0.0
      %v7824 = vmax.f32 %v6115, 0.0
      %v7825 = vmax.f32 %v6118, 0.0
      %v7826 = vmax.f32 %v6123, 0.0
      %v7827 = vmax.f32 %v6126, 0.0
      %v7828 = vmax.f32 %v6131, 0.0
      %v7829 = vmax.f32 %v6134, 0.0
      %v7830 = vmax.f32 %v6139, 0.0
      %v7831 = vmax.f32 %v6142, 0.0
      %v7832 = vmax.f32 %v6147, 0.0
      %v7833 = vmax.f32 %v6150, 0.0
      %v7834 = vmax.f32 %v6155, 0.0
      %v7835 = vmax.f32 %v6158, 0.0
      %v7836 = vmax.f32 %v6163, 0.0
      %v7837 = vmax.f32 %v6166, 0.0
      %v7838 = vmax.f32 %v6171, 0.0
      %v7839 = vmax.f32 %v6174, 0.0
      %v7840 = vmax.f32 %v6179, 0.0
      %v7841 = vmax.f32 %v6182, 0.0
      %v7842 = vmax.f32 %v6187, 0.0
      %v7843 = vmax.f32 %v6190, 0.0
      %v7844 = vmax.f32 %v6195, 0.0
      %v7845 = vmax.f32 %v6198, 0.0
      %v7846 = vmax.f32 %v6203, 0.0
      %v7847 = vmax.f32 %v6206, 0.0
      %v7848 = vmax.f32 %v6211, 0.0
      %v7849 = vmax.f32 %v6214, 0.0
      %v7850 = vmax.f32 %v6219, 0.0
      %v7851 = vmax.f32 %v6222, 0.0
      %v7852 = vmax.f32 %v6227, 0.0
      %v7853 = vmax.f32 %v6230, 0.0
      %v7854 = vmax.f32 %v6235, 0.0
      %v7855 = vmax.f32 %v6238, 0.0
      %v7856 = vmax.f32 %v6243, 0.0
      %v7857 = vmax.f32 %v6246, 0.0
      %v7858 = vmax.f32 %v6251, 0.0
      %v7859 = vmax.f32 %v6254, 0.0
      %v7860 = vmax.f32 %v6259, 0.0
      %v7861 = vmax.f32 %v6262, 0.0
      %v7862 = vmax.f32 %v6267, 0.0
      %v7863 = vmax.f32 %v6270, 0.0
      %v7864 = vmax.f32 %v6275, 0.0
      %v7865 = vmax.f32 %v6278, 0.0
      %v7866 = vmax.f32 %v6283, 0.0
      %v7867 = vmax.f32 %v6286, 0.0
      %v7868 = vmax.f32 %v6291, 0.0
      %v7869 = vmax.f32 %v6294, 0.0
      %v7870 = vmax.f32 %v6299, 0.0
      %v7871 = vmax.f32 %v6302, 0.0
      %v7872 = vmax.f32 %v6307, 0.0
      %v7873 = vmax.f32 %v6310, 0.0
      %v7874 = vmax.f32 %v6315, 0.0
      %v7875 = vmax.f32 %v6318, 0.0
      %v7876 = vmax.f32 %v6323, 0.0
      %v7877 = vmax.f32 %v6326, 0.0
      %v7878 = vmax.f32 %v6331, 0.0
      %v7879 = vmax.f32 %v6334, 0.0
      %v7880 = vmax.f32 %v6339, 0.0
      %v7881 = vmax.f32 %v6342, 0.0
      %v7882 = vmax.f32 %v6347, 0.0
      %v7883 = vmax.f32 %v6350, 0.0
      %v7884 = vmax.f32 %v6355, 0.0
      %v7885 = vmax.f32 %v6358, 0.0
      %v7886 = vmax.f32 %v6363, 0.0
      %v7887 = vmax.f32 %v6366, 0.0
      %v7888 = vmax.f32 %v6371, 0.0
      %v7889 = vmax.f32 %v6374, 0.0
      %v7890 = vmax.f32 %v6379, 0.0
      %v7891 = vmax.f32 %v6382, 0.0
      %v7892 = vmax.f32 %v6387, 0.0
      %v7893 = vmax.f32 %v6390, 0.0
      %v7894 = vmax.f32 %v6395, 0.0
      %v7895 = vmax.f32 %v6398, 0.0
      %v7896 = vmax.f32 %v6403, 0.0
      %v7897 = vmax.f32 %v6406, 0.0
      %v7898 = vmax.f32 %v6411, 0.0
      %v7899 = vmax.f32 %v6414, 0.0
      %v7900 = vmax.f32 %v6419, 0.0
      %v7901 = vmax.f32 %v6422, 0.0
      %v7902 = vmax.f32 %v6427, 0.0
      %v7903 = vmax.f32 %v6430, 0.0
      %v7904 = vmax.f32 %v6435, 0.0
      %v7905 = vmax.f32 %v6438, 0.0
      %v7906 = vmax.f32 %v6443, 0.0
      %v7907 = vmax.f32 %v6446, 0.0
      %v7908 = vmax.f32 %v6451, 0.0
      %v7909 = vmax.f32 %v6454, 0.0
      %v7910 = vmax.f32 %v6459, 0.0
      %v7911 = vmax.f32 %v6462, 0.0
      %v7912 = vmax.f32 %v6467, 0.0
      %v7913 = vmax.f32 %v6470, 0.0
      %v7914 = vmax.f32 %v6475, 0.0
      %v7915 = vmax.f32 %v6478, 0.0
      %v7916 = vmax.f32 %v6483, 0.0
      %v7917 = vmax.f32 %v6486, 0.0
      %v7918 = vmax.f32 %v6491, 0.0
      %v7919 = vmax.f32 %v6494, 0.0
      %v7920 = vmax.f32 %v6499, 0.0
      %v7921 = vmax.f32 %v6502, 0.0
      %v7922 = vmax.f32 %v6507, 0.0
      %v7923 = vmax.f32 %v6510, 0.0
      %v7924 = vmax.f32 %v6515, 0.0
      %v7925 = vmax.f32 %v6518, 0.0
      %v7926 = vmax.f32 %v6523, 0.0
      %v7927 = vmax.f32 %v6526, 0.0
      %v7928 = vmax.f32 %v6531, 0.0
      %v7929 = vmax.f32 %v6534, 0.0
      %v7930 = vmax.f32 %v6539, 0.0
      %v7931 = vmax.f32 %v6542, 0.0
      %v7932 = vmax.f32 %v6547, 0.0
      %v7933 = vmax.f32 %v6550, 0.0
      %v7934 = vmax.f32 %v6555, 0.0
      %v7935 = vmax.f32 %v6558, 0.0
      %v7936 = vmax.f32 %v6563, 0.0
      %v7937 = vmax.f32 %v6566, 0.0
      %v7938 = vmax.f32 %v6571, 0.0
      %v7939 = vmax.f32 %v6574, 0.0
      %v7940 = vmax.f32 %v6579, 0.0
      %v7941 = vmax.f32 %v6582, 0.0
      %v7942 = vmax.f32 %v6587, 0.0
      %v7943 = vmax.f32 %v6590, 0.0
      %v7944 = vmax.f32 %v6595, 0.0
      %v7945 = vmax.f32 %v6598, 0.0
      %v7946 = vmax.f32 %v6603, 0.0
      %v7947 = vmax.f32 %v6606, 0.0
      %v7948 = vmax.f32 %v6611, 0.0
      %v7949 = vmax.f32 %v6614, 0.0
      %v7950 = vmax.f32 %v6619, 0.0
      %v7951 = vmax.f32 %v6622, 0.0
      %v7952 = vmax.f32 %v6627, 0.0
      %v7953 = vmax.f32 %v6630, 0.0
      %v7954 = vmax.f32 %v6635, 0.0
      %v7955 = vmax.f32 %v6638, 0.0
      %v7956 = vmax.f32 %v6643, 0.0
      %v7957 = vmax.f32 %v6646, 0.0
      %v7958 = vmax.f32 %v6651, 0.0
      %v7959 = vmax.f32 %v6654, 0.0
      %v7960 = vmax.f32 %v6659, 0.0
      %v7961 = vmax.f32 %v6662, 0.0
      %v7962 = vmax.f32 %v6667, 0.0
      %v7963 = vmax.f32 %v6670, 0.0
      %v7964 = vmax.f32 %v6675, 0.0
      %v7965 = vmax.f32 %v6678, 0.0
      %v7966 = vmax.f32 %v6683, 0.0
      %v7967 = vmax.f32 %v6686, 0.0
      %v7968 = vmax.f32 %v6691, 0.0
      %v7969 = vmax.f32 %v6694, 0.0
      %v7970 = vmax.f32 %v6699, 0.0
      %v7971 = vmax.f32 %v6702, 0.0
      %v7972 = vmax.f32 %v6707, 0.0
      %v7973 = vmax.f32 %v6710, 0.0
      %v7974 = vmax.f32 %v6715, 0.0
      %v7975 = vmax.f32 %v6718, 0.0
      %v7976 = vmax.f32 %v6723, 0.0
      %v7977 = vmax.f32 %v6726, 0.0
      %v7978 = vmax.f32 %v6731, 0.0
      %v7979 = vmax.f32 %v6734, 0.0
      %v7980 = vmax.f32 %v6739, 0.0
      %v7981 = vmax.f32 %v6742, 0.0
      %v7982 = vmax.f32 %v6747, 0.0
      %v7983 = vmax.f32 %v6750, 0.0
      %v7984 = vmax.f32 %v6755, 0.0
      %v7985 = vmax.f32 %v6758, 0.0
      %v7986 = vmax.f32 %v6763, 0.0
      %v7987 = vmax.f32 %v6766, 0.0
      %v7988 = vmax.f32 %v6771, 0.0
      %v7989 = vmax.f32 %v6774, 0.0
      %v7990 = vmax.f32 %v6779, 0.0
      %v7991 = vmax.f32 %v6782, 0.0
      %v7992 = vmax.f32 %v6787, 0.0
      %v7993 = vmax.f32 %v6790, 0.0
      %v7994 = vmax.f32 %v6795, 0.0
      %v7995 = vmax.f32 %v6798, 0.0
      %v7996 = vmax.f32 %v6803, 0.0
      %v7997 = vmax.f32 %v6806, 0.0
      %v7998 = vmax.f32 %v6811, 0.0
      %v7999 = vmax.f32 %v6814, 0.0
      %v8000 = vmax.f32 %v6819, 0.0
      %v8001 = vmax.f32 %v6822, 0.0
      %v8002 = vmax.f32 %v6827, 0.0
      %v8003 = vmax.f32 %v6830, 0.0
      %v8004 = vmax.f32 %v6835, 0.0
      %v8005 = vmax.f32 %v6838, 0.0
      %v8006 = vmax.f32 %v6843, 0.0
      %v8007 = vmax.f32 %v6846, 0.0
      %v8008 = vmax.f32 %v6851, 0.0
      %v8009 = vmax.f32 %v6854, 0.0
      %v8010 = vmax.f32 %v6859, 0.0
      %v8011 = vmax.f32 %v6862, 0.0
      %v8012 = vmax.f32 %v6867, 0.0
      %v8013 = vmax.f32 %v6870, 0.0
      %v8014 = vmax.f32 %v6875, 0.0
      %v8015 = vmax.f32 %v6878, 0.0
      %v8016 = vmax.f32 %v6883, 0.0
      %v8017 = vmax.f32 %v6886, 0.0
      %v8018 = vmax.f32 %v6891, 0.0
      %v8019 = vmax.f32 %v6894, 0.0
      %v8020 = vmax.f32 %v6899, 0.0
      %v8021 = vmax.f32 %v6902, 0.0
      %v8022 = vmax.f32 %v6907, 0.0
      %v8023 = vmax.f32 %v6910, 0.0
      %v8024 = vmax.f32 %v6915, 0.0
      %v8025 = vmax.f32 %v6918, 0.0
      %v8026 = vmax.f32 %v6923, 0.0
      %v8027 = vmax.f32 %v6926, 0.0
      %v8028 = vmax.f32 %v6931, 0.0
      %v8029 = vmax.f32 %v6934, 0.0
      %v8030 = vmax.f32 %v6939, 0.0
      %v8031 = vmax.f32 %v6942, 0.0
      %v8032 = vmax.f32 %v6947, 0.0
      %v8033 = vmax.f32 %v6950, 0.0
      %v8034 = vmax.f32 %v6955, 0.0
      %v8035 = vmax.f32 %v6958, 0.0
      %v8036 = vmax.f32 %v6963, 0.0
      %v8037 = vmax.f32 %v6966, 0.0
      %v8038 = vmax.f32 %v6971, 0.0
      %v8039 = vmax.f32 %v6974, 0.0
      %v8040 = vmax.f32 %v6979, 0.0
      %v8041 = vmax.f32 %v6982, 0.0
      %v8042 = vmax.f32 %v6987, 0.0
      %v8043 = vmax.f32 %v6990, 0.0
      %v8044 = vmax.f32 %v6995, 0.0
      %v8045 = vmax.f32 %v6998, 0.0
      %v8046 = vmax.f32 %v7003, 0.0
      %v8047 = vmax.f32 %v7006, 0.0
      %v8048 = vmax.f32 %v7011, 0.0
      %v8049 = vmax.f32 %v7014, 0.0
      %v8050 = vmax.f32 %v7019, 0.0
      %v8051 = vmax.f32 %v7022, 0.0
      %v8052 = vmax.f32 %v7027, 0.0
      %v8053 = vmax.f32 %v7030, 0.0
      %v8054 = vmax.f32 %v7035, 0.0
      %v8055 = vmax.f32 %v7038, 0.0
      %v8056 = vmax.f32 %v7043, 0.0
      %v8057 = vmax.f32 %v7046, 0.0
      %v8058 = vmax.f32 %v7051, 0.0
      %v8059 = vmax.f32 %v7054, 0.0
      %v8060 = vmax.f32 %v7059, 0.0
      %v8061 = vmax.f32 %v7062, 0.0
      %v8062 = vmax.f32 %v7067, 0.0
      %v8063 = vmax.f32 %v7070, 0.0
      %v8064 = vmax.f32 %v7075, 0.0
      %v8065 = vmax.f32 %v7078, 0.0
      %v8066 = vmax.f32 %v7083, 0.0
      %v8067 = vmax.f32 %v7086, 0.0
      %v8068 = vmax.f32 %v7091, 0.0
      %v8069 = vmax.f32 %v7094, 0.0
      %v8070 = vmax.f32 %v7099, 0.0
      %v8071 = vmax.f32 %v7102, 0.0
      %v8072 = vmax.f32 %v7107, 0.0
      %v8073 = vmax.f32 %v7110, 0.0
      %v8074 = vmax.f32 %v7115, 0.0
      %v8075 = vmax.f32 %v7118, 0.0
      %v8076 = vmax.f32 %v7123, 0.0
      %v8077 = vmax.f32 %v7126, 0.0
      %v8078 = vmax.f32 %v7131, 0.0
      %v8079 = vmax.f32 %v7134, 0.0
      %v8080 = vmax.f32 %v7139, 0.0
      %v8081 = vmax.f32 %v7142, 0.0
      %v8082 = vmax.f32 %v7147, 0.0
      %v8083 = vmax.f32 %v7150, 0.0
      %v8084 = vmax.f32 %v7155, 0.0
      %v8085 = vmax.f32 %v7158, 0.0
      %v8086 = vmax.f32 %v7163, 0.0
      %v8087 = vmax.f32 %v7166, 0.0
      %v8088 = vmax.f32 %v7171, 0.0
      %v8089 = vmax.f32 %v7174, 0.0
      %v8090 = vmax.f32 %v7179, 0.0
      %v8091 = vmax.f32 %v7182, 0.0
      %v8092 = vmax.f32 %v7187, 0.0
      %v8093 = vmax.f32 %v7190, 0.0
      %v8094 = vmax.f32 %v7195, 0.0
      %v8095 = vmax.f32 %v7198, 0.0
      %v8096 = vmax.f32 %v7203, 0.0
      %v8097 = vmax.f32 %v7206, 0.0
      %v8098 = vmax.f32 %v7211, 0.0
      %v8099 = vmax.f32 %v7214, 0.0
      %v8100 = vmax.f32 %v7219, 0.0
      %v8101 = vmax.f32 %v7222, 0.0
      %v8102 = vmax.f32 %v7227, 0.0
      %v8103 = vmax.f32 %v7230, 0.0
      %v8104 = vmax.f32 %v7235, 0.0
      %v8105 = vmax.f32 %v7238, 0.0
      %v8106 = vmax.f32 %v7243, 0.0
      %v8107 = vmax.f32 %v7246, 0.0
      %v8108 = vmax.f32 %v7251, 0.0
      %v8109 = vmax.f32 %v7254, 0.0
      %v8110 = vmax.f32 %v7259, 0.0
      %v8111 = vmax.f32 %v7262, 0.0
      %v8112 = vmax.f32 %v7267, 0.0
      %v8113 = vmax.f32 %v7270, 0.0
      %v8114 = vmax.f32 %v7275, 0.0
      %v8115 = vmax.f32 %v7278, 0.0
      %v8116 = vmax.f32 %v7283, 0.0
      %v8117 = vmax.f32 %v7286, 0.0
      %v8118 = vmax.f32 %v7291, 0.0
      %v8119 = vmax.f32 %v7294, 0.0
      %v8120 = vmax.f32 %v7299, 0.0
      %v8121 = vmax.f32 %v7302, 0.0
      %v8122 = vmax.f32 %v7307, 0.0
      %v8123 = vmax.f32 %v7310, 0.0
      %v8124 = vmax.f32 %v7315, 0.0
      %v8125 = vmax.f32 %v7318, 0.0
      %v8126 = vmax.f32 %v7323, 0.0
      %v8127 = vmax.f32 %v7326, 0.0
      %v8128 = vmax.f32 %v7331, 0.0
      %v8129 = vmax.f32 %v7334, 0.0
      %v8130 = vmax.f32 %v7339, 0.0
      %v8131 = vmax.f32 %v7342, 0.0
      %v8132 = vmax.f32 %v7347, 0.0
      %v8133 = vmax.f32 %v7350, 0.0
      %v8134 = vmax.f32 %v7355, 0.0
      %v8135 = vadd.f32 %v7360, %v7361
      %v8136 = vadd.f32 %v8135, %v7362
      %v8137 = vadd.f32 %v8136, %v7363
      %v8138 = vadd.f32 %v8137, %v7364
      %v8139 = vadd.f32 %v8138, %v7365
      %v8140 = vadd.f32 %v8139, %v7366
      %v8141 = vadd.f32 %v8140, %v7367
      %v8142 = vadd.f32 %v8141, %v7368
      %v8143 = vadd.f32 %v8142, %v7369
      %v8144 = vadd.f32 %v8143, %v7370
      %v8145 = vadd.f32 %v8144, %v7371
      %v8146 = vadd.f32 %v8145, %v7372
      %v8147 = vadd.f32 %v8146, %v7373
      %v8148 = vadd.f32 %v8147, %v7374
      %v8149 = vadd.f32 %v8148, %v7375
      %v8150 = vadd.f32 %v8149, %v7376
      %v8151 = vadd.f32 %v8150, %v7377
      %v8152 = vadd.f32 %v8151, %v7378
      %v8153 = vadd.f32 %v8152, %v7379
      %v8154 = vadd.f32 %v8153, %v7380
      %v8155 = vadd.f32 %v8154, %v7381
      %v8156 = vadd.f32 %v8155, %v7382
      %v8157 = vadd.f32 %v8156, %v7383
      %v8158 = vadd.f32 %v8157, %v7384
      %v8159 = vrot.slane %v8158, 4
      %v8160 = vadd.f32 %v8158, %v8159
      %v8161 = vrot.slane %v8160, 2
      %v8162 = vadd.f32 %v8160, %v8161
      %v8163 = vrot.slane %v8162, 1
      %v8164 = vadd.f32 %v8162, %v8163
      %v8165 = vadd.f32 %v7385, %v7386
      %v8166 = vadd.f32 %v8165, %v7387
      %v8167 = vadd.f32 %v8166, %v7388
      %v8168 = vadd.f32 %v8167, %v7389
      %v8169 = vadd.f32 %v8168, %v7390
      %v8170 = vadd.f32 %v8169, %v7391
      %v8171 = vadd.f32 %v8170, %v7392
      %v8172 = vadd.f32 %v8171, %v7393
      %v8173 = vadd.f32 %v8172, %v7394
      %v8174 = vadd.f32 %v8173, %v7395
      %v8175 = vadd.f32 %v8174, %v7396
      %v8176 = vadd.f32 %v8175, %v7397
      %v8177 = vadd.f32 %v8176, %v7398
      %v8178 = vadd.f32 %v8177, %v7399
      %v8179 = vadd.f32 %v8178, %v7400
      %v8180 = vadd.f32 %v8179, %v7401
      %v8181 = vadd.f32 %v8180, %v7402
      %v8182 = vadd.f32 %v8181, %v7403
      %v8183 = vadd.f32 %v8182, %v7404
      %v8184 = vadd.f32 %v8183, %v7405
      %v8185 = vadd.f32 %v8184, %v7406
      %v8186 = vadd.f32 %v8185, %v7407
      %v8187 = vadd.f32 %v8186, %v7408
      %v8188 = vadd.f32 %v8187, %v7409
      %v8189 = vrot.slane %v8188, 4
      %v8190 = vadd.f32 %v8188, %v8189
      %v8191 = vrot.slane %v8190, 2
      %v8192 = vadd.f32 %v8190, %v8191
      %v8193 = vrot.slane %v8192, 1
      %v8194 = vadd.f32 %v8192, %v8193
      %v8195 = vadd.f32 %v7410, %v7411
      %v8196 = vadd.f32 %v8195, %v7412
      %v8197 = vadd.f32 %v8196, %v7413
      %v8198 = vadd.f32 %v8197, %v7414
      %v8199 = vadd.f32 %v8198, %v7415
      %v8200 = vadd.f32 %v8199, %v7416
      %v8201 = vadd.f32 %v8200, %v7417
      %v8202 = vadd.f32 %v8201, %v7418
      %v8203 = vadd.f32 %v8202, %v7419
      %v8204 = vadd.f32 %v8203, %v7420
      %v8205 = vadd.f32 %v8204, %v7421
      %v8206 = vadd.f32 %v8205, %v7422
      %v8207 = vadd.f32 %v8206, %v7423
      %v8208 = vadd.f32 %v8207, %v7424
      %v8209 = vadd.f32 %v8208, %v7425
      %v8210 = vadd.f32 %v8209, %v7426
      %v8211 = vadd.f32 %v8210, %v7427
      %v8212 = vadd.f32 %v8211, %v7428
      %v8213 = vadd.f32 %v8212, %v7429
      %v8214 = vadd.f32 %v8213, %v7430
      %v8215 = vadd.f32 %v8214, %v7431
      %v8216 = vadd.f32 %v8215, %v7432
      %v8217 = vadd.f32 %v8216, %v7433
      %v8218 = vadd.f32 %v8217, %v7434
      %v8219 = vrot.slane %v8218, 4
      %v8220 = vadd.f32 %v8218, %v8219
      %v8221 = vrot.slane %v8220, 2
      %v8222 = vadd.f32 %v8220, %v8221
      %v8223 = vrot.slane %v8222, 1
      %v8224 = vadd.f32 %v8222, %v8223
      %v8225 = vadd.f32 %v7435, %v7436
      %v8226 = vadd.f32 %v8225, %v7437
      %v8227 = vadd.f32 %v8226, %v7438
      %v8228 = vadd.f32 %v8227, %v7439
      %v8229 = vadd.f32 %v8228, %v7440
      %v8230 = vadd.f32 %v8229, %v7441
      %v8231 = vadd.f32 %v8230, %v7442
      %v8232 = vadd.f32 %v8231, %v7443
      %v8233 = vadd.f32 %v8232, %v7444
      %v8234 = vadd.f32 %v8233, %v7445
      %v8235 = vadd.f32 %v8234, %v7446
      %v8236 = vadd.f32 %v8235, %v7447
      %v8237 = vadd.f32 %v8236, %v7448
      %v8238 = vadd.f32 %v8237, %v7449
      %v8239 = vadd.f32 %v8238, %v7450
      %v8240 = vadd.f32 %v8239, %v7451
      %v8241 = vadd.f32 %v8240, %v7452
      %v8242 = vadd.f32 %v8241, %v7453
      %v8243 = vadd.f32 %v8242, %v7454
      %v8244 = vadd.f32 %v8243, %v7455
      %v8245 = vadd.f32 %v8244, %v7456
      %v8246 = vadd.f32 %v8245, %v7457
      %v8247 = vadd.f32 %v8246, %v7458
      %v8248 = vadd.f32 %v8247, %v7459
      %v8249 = vrot.slane %v8248, 4
      %v8250 = vadd.f32 %v8248, %v8249
      %v8251 = vrot.slane %v8250, 2
      %v8252 = vadd.f32 %v8250, %v8251
      %v8253 = vrot.slane %v8252, 1
      %v8254 = vadd.f32 %v8252, %v8253
      %v8255 = vadd.f32 %v7460, %v7461
      %v8256 = vadd.f32 %v8255, %v7462
      %v8257 = vadd.f32 %v8256, %v7463
      %v8258 = vadd.f32 %v8257, %v7464
      %v8259 = vadd.f32 %v8258, %v7465
      %v8260 = vadd.f32 %v8259, %v7466
      %v8261 = vadd.f32 %v8260, %v7467
      %v8262 = vadd.f32 %v8261, %v7468
      %v8263 = vadd.f32 %v8262, %v7469
      %v8264 = vadd.f32 %v8263, %v7470
      %v8265 = vadd.f32 %v8264, %v7471
      %v8266 = vadd.f32 %v8265, %v7472
      %v8267 = vadd.f32 %v8266, %v7473
      %v8268 = vadd.f32 %v8267, %v7474
      %v8269 = vadd.f32 %v8268, %v7475
      %v8270 = vadd.f32 %v8269, %v7476
      %v8271 = vadd.f32 %v8270, %v7477
      %v8272 = vadd.f32 %v8271, %v7478
      %v8273 = vadd.f32 %v8272, %v7479
      %v8274 = vadd.f32 %v8273, %v7480
      %v8275 = vadd.f32 %v8274, %v7481
      %v8276 = vadd.f32 %v8275, %v7482
      %v8277 = vadd.f32 %v8276, %v7483
      %v8278 = vadd.f32 %v8277, %v7484
      %v8279 = vrot.slane %v8278, 4
      %v8280 = vadd.f32 %v8278, %v8279
      %v8281 = vrot.slane %v8280, 2
      %v8282 = vadd.f32 %v8280, %v8281
      %v8283 = vrot.slane %v8282, 1
      %v8284 = vadd.f32 %v8282, %v8283
      %v8285 = vadd.f32 %v7485, %v7486
      %v8286 = vadd.f32 %v8285, %v7487
      %v8287 = vadd.f32 %v8286, %v7488
      %v8288 = vadd.f32 %v8287, %v7489
      %v8289 = vadd.f32 %v8288, %v7490
      %v8290 = vadd.f32 %v8289, %v7491
      %v8291 = vadd.f32 %v8290, %v7492
      %v8292 = vadd.f32 %v8291, %v7493
      %v8293 = vadd.f32 %v8292, %v7494
      %v8294 = vadd.f32 %v8293, %v7495
      %v8295 = vadd.f32 %v8294, %v7496
      %v8296 = vadd.f32 %v8295, %v7497
      %v8297 = vadd.f32 %v8296, %v7498
      %v8298 = vadd.f32 %v8297, %v7499
      %v8299 = vadd.f32 %v8298, %v7500
      %v8300 = vadd.f32 %v8299, %v7501
      %v8301 = vadd.f32 %v8300, %v7502
      %v8302 = vadd.f32 %v8301, %v7503
      %v8303 = vadd.f32 %v8302, %v7504
      %v8304 = vadd.f32 %v8303, %v7505
      %v8305 = vadd.f32 %v8304, %v7506
      %v8306 = vadd.f32 %v8305, %v7507
      %v8307 = vadd.f32 %v8306, %v7508
      %v8308 = vadd.f32 %v8307, %v7509
      %v8309 = vrot.slane %v8308, 4
      %v8310 = vadd.f32 %v8308, %v8309
      %v8311 = vrot.slane %v8310, 2
      %v8312 = vadd.f32 %v8310, %v8311
      %v8313 = vrot.slane %v8312, 1
      %v8314 = vadd.f32 %v8312, %v8313
      %v8315 = vadd.f32 %v7510, %v7511
      %v8316 = vadd.f32 %v8315, %v7512
      %v8317 = vadd.f32 %v8316, %v7513
      %v8318 = vadd.f32 %v8317, %v7514
      %v8319 = vadd.f32 %v8318, %v7515
      %v8320 = vadd.f32 %v8319, %v7516
      %v8321 = vadd.f32 %v8320, %v7517
      %v8322 = vadd.f32 %v8321, %v7518
      %v8323 = vadd.f32 %v8322, %v7519
      %v8324 = vadd.f32 %v8323, %v7520
      %v8325 = vadd.f32 %v8324, %v7521
      %v8326 = vadd.f32 %v8325, %v7522
      %v8327 = vadd.f32 %v8326, %v7523
      %v8328 = vadd.f32 %v8327, %v7524
      %v8329 = vadd.f32 %v8328, %v7525
      %v8330 = vadd.f32 %v8329, %v7526
      %v8331 = vadd.f32 %v8330, %v7527
      %v8332 = vadd.f32 %v8331, %v7528
      %v8333 = vadd.f32 %v8332, %v7529
      %v8334 = vadd.f32 %v8333, %v7530
      %v8335 = vadd.f32 %v8334, %v7531
      %v8336 = vadd.f32 %v8335, %v7532
      %v8337 = vadd.f32 %v8336, %v7533
      %v8338 = vadd.f32 %v8337, %v7534
      %v8339 = vrot.slane %v8338, 4
      %v8340 = vadd.f32 %v8338, %v8339
      %v8341 = vrot.slane %v8340, 2
      %v8342 = vadd.f32 %v8340, %v8341
      %v8343 = vrot.slane %v8342, 1
      %v8344 = vadd.f32 %v8342, %v8343
      %v8345 = vadd.f32 %v7535, %v7536
      %v8346 = vadd.f32 %v8345, %v7537
      %v8347 = vadd.f32 %v8346, %v7538
      %v8348 = vadd.f32 %v8347, %v7539
      %v8349 = vadd.f32 %v8348, %v7540
      %v8350 = vadd.f32 %v8349, %v7541
      %v8351 = vadd.f32 %v8350, %v7542
      %v8352 = vadd.f32 %v8351, %v7543
      %v8353 = vadd.f32 %v8352, %v7544
      %v8354 = vadd.f32 %v8353, %v7545
      %v8355 = vadd.f32 %v8354, %v7546
      %v8356 = vadd.f32 %v8355, %v7547
      %v8357 = vadd.f32 %v8356, %v7548
      %v8358 = vadd.f32 %v8357, %v7549
      %v8359 = vadd.f32 %v8358, %v7550
      %v8360 = vadd.f32 %v8359, %v7551
      %v8361 = vadd.f32 %v8360, %v7552
      %v8362 = vadd.f32 %v8361, %v7553
      %v8363 = vadd.f32 %v8362, %v7554
      %v8364 = vadd.f32 %v8363, %v7555
      %v8365 = vadd.f32 %v8364, %v7556
      %v8366 = vadd.f32 %v8365, %v7557
      %v8367 = vadd.f32 %v8366, %v7558
      %v8368 = vadd.f32 %v8367, %v7559
      %v8369 = vrot.slane %v8368, 4
      %v8370 = vadd.f32 %v8368, %v8369
      %v8371 = vrot.slane %v8370, 2
      %v8372 = vadd.f32 %v8370, %v8371
      %v8373 = vrot.slane %v8372, 1
      %v8374 = vadd.f32 %v8372, %v8373
      %v8375 = vadd.f32 %v7560, %v7561
      %v8376 = vadd.f32 %v8375, %v7562
      %v8377 = vadd.f32 %v8376, %v7563
      %v8378 = vadd.f32 %v8377, %v7564
      %v8379 = vadd.f32 %v8378, %v7565
      %v8380 = vadd.f32 %v8379, %v7566
      %v8381 = vadd.f32 %v8380, %v7567
      %v8382 = vadd.f32 %v8381, %v7568
      %v8383 = vadd.f32 %v8382, %v7569
      %v8384 = vadd.f32 %v8383, %v7570
      %v8385 = vadd.f32 %v8384, %v7571
      %v8386 = vadd.f32 %v8385, %v7572
      %v8387 = vadd.f32 %v8386, %v7573
      %v8388 = vadd.f32 %v8387, %v7574
      %v8389 = vadd.f32 %v8388, %v7575
      %v8390 = vadd.f32 %v8389, %v7576
      %v8391 = vadd.f32 %v8390, %v7577
      %v8392 = vadd.f32 %v8391, %v7578
      %v8393 = vadd.f32 %v8392, %v7579
      %v8394 = vadd.f32 %v8393, %v7580
      %v8395 = vadd.f32 %v8394, %v7581
      %v8396 = vadd.f32 %v8395, %v7582
      %v8397 = vadd.f32 %v8396, %v7583
      %v8398 = vadd.f32 %v8397, %v7584
      %v8399 = vrot.slane %v8398, 4
      %v8400 = vadd.f32 %v8398, %v8399
      %v8401 = vrot.slane %v8400, 2
      %v8402 = vadd.f32 %v8400, %v8401
      %v8403 = vrot.slane %v8402, 1
      %v8404 = vadd.f32 %v8402, %v8403
      %v8405 = vadd.f32 %v7585, %v7586
      %v8406 = vadd.f32 %v8405, %v7587
      %v8407 = vadd.f32 %v8406, %v7588
      %v8408 = vadd.f32 %v8407, %v7589
      %v8409 = vadd.f32 %v8408, %v7590
      %v8410 = vadd.f32 %v8409, %v7591
      %v8411 = vadd.f32 %v8410, %v7592
      %v8412 = vadd.f32 %v8411, %v7593
      %v8413 = vadd.f32 %v8412, %v7594
      %v8414 = vadd.f32 %v8413, %v7595
      %v8415 = vadd.f32 %v8414, %v7596
      %v8416 = vadd.f32 %v8415, %v7597
      %v8417 = vadd.f32 %v8416, %v7598
      %v8418 = vadd.f32 %v8417, %v7599
      %v8419 = vadd.f32 %v8418, %v7600
      %v8420 = vadd.f32 %v8419, %v7601
      %v8421 = vadd.f32 %v8420, %v7602
      %v8422 = vadd.f32 %v8421, %v7603
      %v8423 = vadd.f32 %v8422, %v7604
      %v8424 = vadd.f32 %v8423, %v7605
      %v8425 = vadd.f32 %v8424, %v7606
      %v8426 = vadd.f32 %v8425, %v7607
      %v8427 = vadd.f32 %v8426, %v7608
      %v8428 = vadd.f32 %v8427, %v7609
      %v8429 = vrot.slane %v8428, 4
      %v8430 = vadd.f32 %v8428, %v8429
      %v8431 = vrot.slane %v8430, 2
      %v8432 = vadd.f32 %v8430, %v8431
      %v8433 = vrot.slane %v8432, 1
      %v8434 = vadd.f32 %v8432, %v8433
      %v8435 = vadd.f32 %v7610, %v7611
      %v8436 = vadd.f32 %v8435, %v7612
      %v8437 = vadd.f32 %v8436, %v7613
      %v8438 = vadd.f32 %v8437, %v7614
      %v8439 = vadd.f32 %v8438, %v7615
      %v8440 = vadd.f32 %v8439, %v7616
      %v8441 = vadd.f32 %v8440, %v7617
      %v8442 = vadd.f32 %v8441, %v7618
      %v8443 = vadd.f32 %v8442, %v7619
      %v8444 = vadd.f32 %v8443, %v7620
      %v8445 = vadd.f32 %v8444, %v7621
      %v8446 = vadd.f32 %v8445, %v7622
      %v8447 = vadd.f32 %v8446, %v7623
      %v8448 = vadd.f32 %v8447, %v7624
      %v8449 = vadd.f32 %v8448, %v7625
      %v8450 = vadd.f32 %v8449, %v7626
      %v8451 = vadd.f32 %v8450, %v7627
      %v8452 = vadd.f32 %v8451, %v7628
      %v8453 = vadd.f32 %v8452, %v7629
      %v8454 = vadd.f32 %v8453, %v7630
      %v8455 = vadd.f32 %v8454, %v7631
      %v8456 = vadd.f32 %v8455, %v7632
      %v8457 = vadd.f32 %v8456, %v7633
      %v8458 = vadd.f32 %v8457, %v7634
      %v8459 = vrot.slane %v8458, 4
      %v8460 = vadd.f32 %v8458, %v8459
      %v8461 = vrot.slane %v8460, 2
      %v8462 = vadd.f32 %v8460, %v8461
      %v8463 = vrot.slane %v8462, 1
      %v8464 = vadd.f32 %v8462, %v8463
      %v8465 = vadd.f32 %v7635, %v7636
      %v8466 = vadd.f32 %v8465, %v7637
      %v8467 = vadd.f32 %v8466, %v7638
      %v8468 = vadd.f32 %v8467, %v7639
      %v8469 = vadd.f32 %v8468, %v7640
      %v8470 = vadd.f32 %v8469, %v7641
      %v8471 = vadd.f32 %v8470, %v7642
      %v8472 = vadd.f32 %v8471, %v7643
      %v8473 = vadd.f32 %v8472, %v7644
      %v8474 = vadd.f32 %v8473, %v7645
      %v8475 = vadd.f32 %v8474, %v7646
      %v8476 = vadd.f32 %v8475, %v7647
      %v8477 = vadd.f32 %v8476, %v7648
      %v8478 = vadd.f32 %v8477, %v7649
      %v8479 = vadd.f32 %v8478, %v7650
      %v8480 = vadd.f32 %v8479, %v7651
      %v8481 = vadd.f32 %v8480, %v7652
      %v8482 = vadd.f32 %v8481, %v7653
      %v8483 = vadd.f32 %v8482, %v7654
      %v8484 = vadd.f32 %v8483, %v7655
      %v8485 = vadd.f32 %v8484, %v7656
      %v8486 = vadd.f32 %v8485, %v7657
      %v8487 = vadd.f32 %v8486, %v7658
      %v8488 = vadd.f32 %v8487, %v7659
      %v8489 = vrot.slane %v8488, 4
      %v8490 = vadd.f32 %v8488, %v8489
      %v8491 = vrot.slane %v8490, 2
      %v8492 = vadd.f32 %v8490, %v8491
      %v8493 = vrot.slane %v8492, 1
      %v8494 = vadd.f32 %v8492, %v8493
      %v8495 = vadd.f32 %v7660, %v7661
      %v8496 = vadd.f32 %v8495, %v7662
      %v8497 = vadd.f32 %v8496, %v7663
      %v8498 = vadd.f32 %v8497, %v7664
      %v8499 = vadd.f32 %v8498, %v7665
      %v8500 = vadd.f32 %v8499, %v7666
      %v8501 = vadd.f32 %v8500, %v7667
      %v8502 = vadd.f32 %v8501, %v7668
      %v8503 = vadd.f32 %v8502, %v7669
      %v8504 = vadd.f32 %v8503, %v7670
      %v8505 = vadd.f32 %v8504, %v7671
      %v8506 = vadd.f32 %v8505, %v7672
      %v8507 = vadd.f32 %v8506, %v7673
      %v8508 = vadd.f32 %v8507, %v7674
      %v8509 = vadd.f32 %v8508, %v7675
      %v8510 = vadd.f32 %v8509, %v7676
      %v8511 = vadd.f32 %v8510, %v7677
      %v8512 = vadd.f32 %v8511, %v7678
      %v8513 = vadd.f32 %v8512, %v7679
      %v8514 = vadd.f32 %v8513, %v7680
      %v8515 = vadd.f32 %v8514, %v7681
      %v8516 = vadd.f32 %v8515, %v7682
      %v8517 = vadd.f32 %v8516, %v7683
      %v8518 = vadd.f32 %v8517, %v7684
      %v8519 = vrot.slane %v8518, 4
      %v8520 = vadd.f32 %v8518, %v8519
      %v8521 = vrot.slane %v8520, 2
      %v8522 = vadd.f32 %v8520, %v8521
      %v8523 = vrot.slane %v8522, 1
      %v8524 = vadd.f32 %v8522, %v8523
      %v8525 = vadd.f32 %v7685, %v7686
      %v8526 = vadd.f32 %v8525, %v7687
      %v8527 = vadd.f32 %v8526, %v7688
      %v8528 = vadd.f32 %v8527, %v7689
      %v8529 = vadd.f32 %v8528, %v7690
      %v8530 = vadd.f32 %v8529, %v7691
      %v8531 = vadd.f32 %v8530, %v7692
      %v8532 = vadd.f32 %v8531, %v7693
      %v8533 = vadd.f32 %v8532, %v7694
      %v8534 = vadd.f32 %v8533, %v7695
      %v8535 = vadd.f32 %v8534, %v7696
      %v8536 = vadd.f32 %v8535, %v7697
      %v8537 = vadd.f32 %v8536, %v7698
      %v8538 = vadd.f32 %v8537, %v7699
      %v8539 = vadd.f32 %v8538, %v7700
      %v8540 = vadd.f32 %v8539, %v7701
      %v8541 = vadd.f32 %v8540, %v7702
      %v8542 = vadd.f32 %v8541, %v7703
      %v8543 = vadd.f32 %v8542, %v7704
      %v8544 = vadd.f32 %v8543, %v7705
      %v8545 = vadd.f32 %v8544, %v7706
      %v8546 = vadd.f32 %v8545, %v7707
      %v8547 = vadd.f32 %v8546, %v7708
      %v8548 = vadd.f32 %v8547, %v7709
      %v8549 = vrot.slane %v8548, 4
      %v8550 = vadd.f32 %v8548, %v8549
      %v8551 = vrot.slane %v8550, 2
      %v8552 = vadd.f32 %v8550, %v8551
      %v8553 = vrot.slane %v8552, 1
      %v8554 = vadd.f32 %v8552, %v8553
      %v8555 = vadd.f32 %v7710, %v7711
      %v8556 = vadd.f32 %v8555, %v7712
      %v8557 = vadd.f32 %v8556, %v7713
      %v8558 = vadd.f32 %v8557, %v7714
      %v8559 = vadd.f32 %v8558, %v7715
      %v8560 = vadd.f32 %v8559, %v7716
      %v8561 = vadd.f32 %v8560, %v7717
      %v8562 = vadd.f32 %v8561, %v7718
      %v8563 = vadd.f32 %v8562, %v7719
      %v8564 = vadd.f32 %v8563, %v7720
      %v8565 = vadd.f32 %v8564, %v7721
      %v8566 = vadd.f32 %v8565, %v7722
      %v8567 = vadd.f32 %v8566, %v7723
      %v8568 = vadd.f32 %v8567, %v7724
      %v8569 = vadd.f32 %v8568, %v7725
      %v8570 = vadd.f32 %v8569, %v7726
      %v8571 = vadd.f32 %v8570, %v7727
      %v8572 = vadd.f32 %v8571, %v7728
      %v8573 = vadd.f32 %v8572, %v7729
      %v8574 = vadd.f32 %v8573, %v7730
      %v8575 = vadd.f32 %v8574, %v7731
      %v8576 = vadd.f32 %v8575, %v7732
      %v8577 = vadd.f32 %v8576, %v7733
      %v8578 = vadd.f32 %v8577, %v7734
      %v8579 = vrot.slane %v8578, 4
      %v8580 = vadd.f32 %v8578, %v8579
      %v8581 = vrot.slane %v8580, 2
      %v8582 = vadd.f32 %v8580, %v8581
      %v8583 = vrot.slane %v8582, 1
      %v8584 = vadd.f32 %v8582, %v8583
      %v8585 = vadd.f32 %v7735, %v7736
      %v8586 = vadd.f32 %v8585, %v7737
      %v8587 = vadd.f32 %v8586, %v7738
      %v8588 = vadd.f32 %v8587, %v7739
      %v8589 = vadd.f32 %v8588, %v7740
      %v8590 = vadd.f32 %v8589, %v7741
      %v8591 = vadd.f32 %v8590, %v7742
      %v8592 = vadd.f32 %v8591, %v7743
      %v8593 = vadd.f32 %v8592, %v7744
      %v8594 = vadd.f32 %v8593, %v7745
      %v8595 = vadd.f32 %v8594, %v7746
      %v8596 = vadd.f32 %v8595, %v7747
      %v8597 = vadd.f32 %v8596, %v7748
      %v8598 = vadd.f32 %v8597, %v7749
      %v8599 = vadd.f32 %v8598, %v7750
      %v8600 = vadd.f32 %v8599, %v7751
      %v8601 = vadd.f32 %v8600, %v7752
      %v8602 = vadd.f32 %v8601, %v7753
      %v8603 = vadd.f32 %v8602, %v7754
      %v8604 = vadd.f32 %v8603, %v7755
      %v8605 = vadd.f32 %v8604, %v7756
      %v8606 = vadd.f32 %v8605, %v7757
      %v8607 = vadd.f32 %v8606, %v7758
      %v8608 = vadd.f32 %v8607, %v7759
      %v8609 = vrot.slane %v8608, 4
      %v8610 = vadd.f32 %v8608, %v8609
      %v8611 = vrot.slane %v8610, 2
      %v8612 = vadd.f32 %v8610, %v8611
      %v8613 = vrot.slane %v8612, 1
      %v8614 = vadd.f32 %v8612, %v8613
      %v8615 = vadd.f32 %v7760, %v7761
      %v8616 = vadd.f32 %v8615, %v7762
      %v8617 = vadd.f32 %v8616, %v7763
      %v8618 = vadd.f32 %v8617, %v7764
      %v8619 = vadd.f32 %v8618, %v7765
      %v8620 = vadd.f32 %v8619, %v7766
      %v8621 = vadd.f32 %v8620, %v7767
      %v8622 = vadd.f32 %v8621, %v7768
      %v8623 = vadd.f32 %v8622, %v7769
      %v8624 = vadd.f32 %v8623, %v7770
      %v8625 = vadd.f32 %v8624, %v7771
      %v8626 = vadd.f32 %v8625, %v7772
      %v8627 = vadd.f32 %v8626, %v7773
      %v8628 = vadd.f32 %v8627, %v7774
      %v8629 = vadd.f32 %v8628, %v7775
      %v8630 = vadd.f32 %v8629, %v7776
      %v8631 = vadd.f32 %v8630, %v7777
      %v8632 = vadd.f32 %v8631, %v7778
      %v8633 = vadd.f32 %v8632, %v7779
      %v8634 = vadd.f32 %v8633, %v7780
      %v8635 = vadd.f32 %v8634, %v7781
      %v8636 = vadd.f32 %v8635, %v7782
      %v8637 = vadd.f32 %v8636, %v7783
      %v8638 = vadd.f32 %v8637, %v7784
      %v8639 = vrot.slane %v8638, 4
      %v8640 = vadd.f32 %v8638, %v8639
      %v8641 = vrot.slane %v8640, 2
      %v8642 = vadd.f32 %v8640, %v8641
      %v8643 = vrot.slane %v8642, 1
      %v8644 = vadd.f32 %v8642, %v8643
      %v8645 = vadd.f32 %v7785, %v7786
      %v8646 = vadd.f32 %v8645, %v7787
      %v8647 = vadd.f32 %v8646, %v7788
      %v8648 = vadd.f32 %v8647, %v7789
      %v8649 = vadd.f32 %v8648, %v7790
      %v8650 = vadd.f32 %v8649, %v7791
      %v8651 = vadd.f32 %v8650, %v7792
      %v8652 = vadd.f32 %v8651, %v7793
      %v8653 = vadd.f32 %v8652, %v7794
      %v8654 = vadd.f32 %v8653, %v7795
      %v8655 = vadd.f32 %v8654, %v7796
      %v8656 = vadd.f32 %v8655, %v7797
      %v8657 = vadd.f32 %v8656, %v7798
      %v8658 = vadd.f32 %v8657, %v7799
      %v8659 = vadd.f32 %v8658, %v7800
      %v8660 = vadd.f32 %v8659, %v7801
      %v8661 = vadd.f32 %v8660, %v7802
      %v8662 = vadd.f32 %v8661, %v7803
      %v8663 = vadd.f32 %v8662, %v7804
      %v8664 = vadd.f32 %v8663, %v7805
      %v8665 = vadd.f32 %v8664, %v7806
      %v8666 = vadd.f32 %v8665, %v7807
      %v8667 = vadd.f32 %v8666, %v7808
      %v8668 = vadd.f32 %v8667, %v7809
      %v8669 = vrot.slane %v8668, 4
      %v8670 = vadd.f32 %v8668, %v8669
      %v8671 = vrot.slane %v8670, 2
      %v8672 = vadd.f32 %v8670, %v8671
      %v8673 = vrot.slane %v8672, 1
      %v8674 = vadd.f32 %v8672, %v8673
      %v8675 = vadd.f32 %v7810, %v7811
      %v8676 = vadd.f32 %v8675, %v7812
      %v8677 = vadd.f32 %v8676, %v7813
      %v8678 = vadd.f32 %v8677, %v7814
      %v8679 = vadd.f32 %v8678, %v7815
      %v8680 = vadd.f32 %v8679, %v7816
      %v8681 = vadd.f32 %v8680, %v7817
      %v8682 = vadd.f32 %v8681, %v7818
      %v8683 = vadd.f32 %v8682, %v7819
      %v8684 = vadd.f32 %v8683, %v7820
      %v8685 = vadd.f32 %v8684, %v7821
      %v8686 = vadd.f32 %v8685, %v7822
      %v8687 = vadd.f32 %v8686, %v7823
      %v8688 = vadd.f32 %v8687, %v7824
      %v8689 = vadd.f32 %v8688, %v7825
      %v8690 = vadd.f32 %v8689, %v7826
      %v8691 = vadd.f32 %v8690, %v7827
      %v8692 = vadd.f32 %v8691, %v7828
      %v8693 = vadd.f32 %v8692, %v7829
      %v8694 = vadd.f32 %v8693, %v7830
      %v8695 = vadd.f32 %v8694, %v7831
      %v8696 = vadd.f32 %v8695, %v7832
      %v8697 = vadd.f32 %v8696, %v7833
      %v8698 = vadd.f32 %v8697, %v7834
      %v8699 = vrot.slane %v8698, 4
      %v8700 = vadd.f32 %v8698, %v8699
      %v8701 = vrot.slane %v8700, 2
      %v8702 = vadd.f32 %v8700, %v8701
      %v8703 = vrot.slane %v8702, 1
      %v8704 = vadd.f32 %v8702, %v8703
      %v8705 = vadd.f32 %v7835, %v7836
      %v8706 = vadd.f32 %v8705, %v7837
      %v8707 = vadd.f32 %v8706, %v7838
      %v8708 = vadd.f32 %v8707, %v7839
      %v8709 = vadd.f32 %v8708, %v7840
      %v8710 = vadd.f32 %v8709, %v7841
      %v8711 = vadd.f32 %v8710, %v7842
      %v8712 = vadd.f32 %v8711, %v7843
      %v8713 = vadd.f32 %v8712, %v7844
      %v8714 = vadd.f32 %v8713, %v7845
      %v8715 = vadd.f32 %v8714, %v7846
      %v8716 = vadd.f32 %v8715, %v7847
      %v8717 = vadd.f32 %v8716, %v7848
      %v8718 = vadd.f32 %v8717, %v7849
      %v8719 = vadd.f32 %v8718, %v7850
      %v8720 = vadd.f32 %v8719, %v7851
      %v8721 = vadd.f32 %v8720, %v7852
      %v8722 = vadd.f32 %v8721, %v7853
      %v8723 = vadd.f32 %v8722, %v7854
      %v8724 = vadd.f32 %v8723, %v7855
      %v8725 = vadd.f32 %v8724, %v7856
      %v8726 = vadd.f32 %v8725, %v7857
      %v8727 = vadd.f32 %v8726, %v7858
      %v8728 = vadd.f32 %v8727, %v7859
      %v8729 = vrot.slane %v8728, 4
      %v8730 = vadd.f32 %v8728, %v8729
      %v8731 = vrot.slane %v8730, 2
      %v8732 = vadd.f32 %v8730, %v8731
      %v8733 = vrot.slane %v8732, 1
      %v8734 = vadd.f32 %v8732, %v8733
      %v8735 = vadd.f32 %v7860, %v7861
      %v8736 = vadd.f32 %v8735, %v7862
      %v8737 = vadd.f32 %v8736, %v7863
      %v8738 = vadd.f32 %v8737, %v7864
      %v8739 = vadd.f32 %v8738, %v7865
      %v8740 = vadd.f32 %v8739, %v7866
      %v8741 = vadd.f32 %v8740, %v7867
      %v8742 = vadd.f32 %v8741, %v7868
      %v8743 = vadd.f32 %v8742, %v7869
      %v8744 = vadd.f32 %v8743, %v7870
      %v8745 = vadd.f32 %v8744, %v7871
      %v8746 = vadd.f32 %v8745, %v7872
      %v8747 = vadd.f32 %v8746, %v7873
      %v8748 = vadd.f32 %v8747, %v7874
      %v8749 = vadd.f32 %v8748, %v7875
      %v8750 = vadd.f32 %v8749, %v7876
      %v8751 = vadd.f32 %v8750, %v7877
      %v8752 = vadd.f32 %v8751, %v7878
      %v8753 = vadd.f32 %v8752, %v7879
      %v8754 = vadd.f32 %v8753, %v7880
      %v8755 = vadd.f32 %v8754, %v7881
      %v8756 = vadd.f32 %v8755, %v7882
      %v8757 = vadd.f32 %v8756, %v7883
      %v8758 = vadd.f32 %v8757, %v7884
      %v8759 = vrot.slane %v8758, 4
      %v8760 = vadd.f32 %v8758, %v8759
      %v8761 = vrot.slane %v8760, 2
      %v8762 = vadd.f32 %v8760, %v8761
      %v8763 = vrot.slane %v8762, 1
      %v8764 = vadd.f32 %v8762, %v8763
      %v8765 = vadd.f32 %v7885, %v7886
      %v8766 = vadd.f32 %v8765, %v7887
      %v8767 = vadd.f32 %v8766, %v7888
      %v8768 = vadd.f32 %v8767, %v7889
      %v8769 = vadd.f32 %v8768, %v7890
      %v8770 = vadd.f32 %v8769, %v7891
      %v8771 = vadd.f32 %v8770, %v7892
      %v8772 = vadd.f32 %v8771, %v7893
      %v8773 = vadd.f32 %v8772, %v7894
      %v8774 = vadd.f32 %v8773, %v7895
      %v8775 = vadd.f32 %v8774, %v7896
      %v8776 = vadd.f32 %v8775, %v7897
      %v8777 = vadd.f32 %v8776, %v7898
      %v8778 = vadd.f32 %v8777, %v7899
      %v8779 = vadd.f32 %v8778, %v7900
      %v8780 = vadd.f32 %v8779, %v7901
      %v8781 = vadd.f32 %v8780, %v7902
      %v8782 = vadd.f32 %v8781, %v7903
      %v8783 = vadd.f32 %v8782, %v7904
      %v8784 = vadd.f32 %v8783, %v7905
      %v8785 = vadd.f32 %v8784, %v7906
      %v8786 = vadd.f32 %v8785, %v7907
      %v8787 = vadd.f32 %v8786, %v7908
      %v8788 = vadd.f32 %v8787, %v7909
      %v8789 = vrot.slane %v8788, 4
      %v8790 = vadd.f32 %v8788, %v8789
      %v8791 = vrot.slane %v8790, 2
      %v8792 = vadd.f32 %v8790, %v8791
      %v8793 = vrot.slane %v8792, 1
      %v8794 = vadd.f32 %v8792, %v8793
      %v8795 = vadd.f32 %v7910, %v7911
      %v8796 = vadd.f32 %v8795, %v7912
      %v8797 = vadd.f32 %v8796, %v7913
      %v8798 = vadd.f32 %v8797, %v7914
      %v8799 = vadd.f32 %v8798, %v7915
      %v8800 = vadd.f32 %v8799, %v7916
      %v8801 = vadd.f32 %v8800, %v7917
      %v8802 = vadd.f32 %v8801, %v7918
      %v8803 = vadd.f32 %v8802, %v7919
      %v8804 = vadd.f32 %v8803, %v7920
      %v8805 = vadd.f32 %v8804, %v7921
      %v8806 = vadd.f32 %v8805, %v7922
      %v8807 = vadd.f32 %v8806, %v7923
      %v8808 = vadd.f32 %v8807, %v7924
      %v8809 = vadd.f32 %v8808, %v7925
      %v8810 = vadd.f32 %v8809, %v7926
      %v8811 = vadd.f32 %v8810, %v7927
      %v8812 = vadd.f32 %v8811, %v7928
      %v8813 = vadd.f32 %v8812, %v7929
      %v8814 = vadd.f32 %v8813, %v7930
      %v8815 = vadd.f32 %v8814, %v7931
      %v8816 = vadd.f32 %v8815, %v7932
      %v8817 = vadd.f32 %v8816, %v7933
      %v8818 = vadd.f32 %v8817, %v7934
      %v8819 = vrot.slane %v8818, 4
      %v8820 = vadd.f32 %v8818, %v8819
      %v8821 = vrot.slane %v8820, 2
      %v8822 = vadd.f32 %v8820, %v8821
      %v8823 = vrot.slane %v8822, 1
      %v8824 = vadd.f32 %v8822, %v8823
      %v8825 = vadd.f32 %v7935, %v7936
      %v8826 = vadd.f32 %v8825, %v7937
      %v8827 = vadd.f32 %v8826, %v7938
      %v8828 = vadd.f32 %v8827, %v7939
      %v8829 = vadd.f32 %v8828, %v7940
      %v8830 = vadd.f32 %v8829, %v7941
      %v8831 = vadd.f32 %v8830, %v7942
      %v8832 = vadd.f32 %v8831, %v7943
      %v8833 = vadd.f32 %v8832, %v7944
      %v8834 = vadd.f32 %v8833, %v7945
      %v8835 = vadd.f32 %v8834, %v7946
      %v8836 = vadd.f32 %v8835, %v7947
      %v8837 = vadd.f32 %v8836, %v7948
      %v8838 = vadd.f32 %v8837, %v7949
      %v8839 = vadd.f32 %v8838, %v7950
      %v8840 = vadd.f32 %v8839, %v7951
      %v8841 = vadd.f32 %v8840, %v7952
      %v8842 = vadd.f32 %v8841, %v7953
      %v8843 = vadd.f32 %v8842, %v7954
      %v8844 = vadd.f32 %v8843, %v7955
      %v8845 = vadd.f32 %v8844, %v7956
      %v8846 = vadd.f32 %v8845, %v7957
      %v8847 = vadd.f32 %v8846, %v7958
      %v8848 = vadd.f32 %v8847, %v7959
      %v8849 = vrot.slane %v8848, 4
      %v8850 = vadd.f32 %v8848, %v8849
      %v8851 = vrot.slane %v8850, 2
      %v8852 = vadd.f32 %v8850, %v8851
      %v8853 = vrot.slane %v8852, 1
      %v8854 = vadd.f32 %v8852, %v8853
      %v8855 = vadd.f32 %v7960, %v7961
      %v8856 = vadd.f32 %v8855, %v7962
      %v8857 = vadd.f32 %v8856, %v7963
      %v8858 = vadd.f32 %v8857, %v7964
      %v8859 = vadd.f32 %v8858, %v7965
      %v8860 = vadd.f32 %v8859, %v7966
      %v8861 = vadd.f32 %v8860, %v7967
      %v8862 = vadd.f32 %v8861, %v7968
      %v8863 = vadd.f32 %v8862, %v7969
      %v8864 = vadd.f32 %v8863, %v7970
      %v8865 = vadd.f32 %v8864, %v7971
      %v8866 = vadd.f32 %v8865, %v7972
      %v8867 = vadd.f32 %v8866, %v7973
      %v8868 = vadd.f32 %v8867, %v7974
      %v8869 = vadd.f32 %v8868, %v7975
      %v8870 = vadd.f32 %v8869, %v7976
      %v8871 = vadd.f32 %v8870, %v7977
      %v8872 = vadd.f32 %v8871, %v7978
      %v8873 = vadd.f32 %v8872, %v7979
      %v8874 = vadd.f32 %v8873, %v7980
      %v8875 = vadd.f32 %v8874, %v7981
      %v8876 = vadd.f32 %v8875, %v7982
      %v8877 = vadd.f32 %v8876, %v7983
      %v8878 = vadd.f32 %v8877, %v7984
      %v8879 = vrot.slane %v8878, 4
      %v8880 = vadd.f32 %v8878, %v8879
      %v8881 = vrot.slane %v8880, 2
      %v8882 = vadd.f32 %v8880, %v8881
      %v8883 = vrot.slane %v8882, 1
      %v8884 = vadd.f32 %v8882, %v8883
      %v8885 = vadd.f32 %v7985, %v7986
      %v8886 = vadd.f32 %v8885, %v7987
      %v8887 = vadd.f32 %v8886, %v7988
      %v8888 = vadd.f32 %v8887, %v7989
      %v8889 = vadd.f32 %v8888, %v7990
      %v8890 = vadd.f32 %v8889, %v7991
      %v8891 = vadd.f32 %v8890, %v7992
      %v8892 = vadd.f32 %v8891, %v7993
      %v8893 = vadd.f32 %v8892, %v7994
      %v8894 = vadd.f32 %v8893, %v7995
      %v8895 = vadd.f32 %v8894, %v7996
      %v8896 = vadd.f32 %v8895, %v7997
      %v8897 = vadd.f32 %v8896, %v7998
      %v8898 = vadd.f32 %v8897, %v7999
      %v8899 = vadd.f32 %v8898, %v8000
      %v8900 = vadd.f32 %v8899, %v8001
      %v8901 = vadd.f32 %v8900, %v8002
      %v8902 = vadd.f32 %v8901, %v8003
      %v8903 = vadd.f32 %v8902, %v8004
      %v8904 = vadd.f32 %v8903, %v8005
      %v8905 = vadd.f32 %v8904, %v8006
      %v8906 = vadd.f32 %v8905, %v8007
      %v8907 = vadd.f32 %v8906, %v8008
      %v8908 = vadd.f32 %v8907, %v8009
      %v8909 = vrot.slane %v8908, 4
      %v8910 = vadd.f32 %v8908, %v8909
      %v8911 = vrot.slane %v8910, 2
      %v8912 = vadd.f32 %v8910, %v8911
      %v8913 = vrot.slane %v8912, 1
      %v8914 = vadd.f32 %v8912, %v8913
      %v8915 = vadd.f32 %v8010, %v8011
      %v8916 = vadd.f32 %v8915, %v8012
      %v8917 = vadd.f32 %v8916, %v8013
      %v8918 = vadd.f32 %v8917, %v8014
      %v8919 = vadd.f32 %v8918, %v8015
      %v8920 = vadd.f32 %v8919, %v8016
      %v8921 = vadd.f32 %v8920, %v8017
      %v8922 = vadd.f32 %v8921, %v8018
      %v8923 = vadd.f32 %v8922, %v8019
      %v8924 = vadd.f32 %v8923, %v8020
      %v8925 = vadd.f32 %v8924, %v8021
      %v8926 = vadd.f32 %v8925, %v8022
      %v8927 = vadd.f32 %v8926, %v8023
      %v8928 = vadd.f32 %v8927, %v8024
      %v8929 = vadd.f32 %v8928, %v8025
      %v8930 = vadd.f32 %v8929, %v8026
      %v8931 = vadd.f32 %v8930, %v8027
      %v8932 = vadd.f32 %v8931, %v8028
      %v8933 = vadd.f32 %v8932, %v8029
      %v8934 = vadd.f32 %v8933, %v8030
      %v8935 = vadd.f32 %v8934, %v8031
      %v8936 = vadd.f32 %v8935, %v8032
      %v8937 = vadd.f32 %v8936, %v8033
      %v8938 = vadd.f32 %v8937, %v8034
      %v8939 = vrot.slane %v8938, 4
      %v8940 = vadd.f32 %v8938, %v8939
      %v8941 = vrot.slane %v8940, 2
      %v8942 = vadd.f32 %v8940, %v8941
      %v8943 = vrot.slane %v8942, 1
      %v8944 = vadd.f32 %v8942, %v8943
      %v8945 = vadd.f32 %v8035, %v8036
      %v8946 = vadd.f32 %v8945, %v8037
      %v8947 = vadd.f32 %v8946, %v8038
      %v8948 = vadd.f32 %v8947, %v8039
      %v8949 = vadd.f32 %v8948, %v8040
      %v8950 = vadd.f32 %v8949, %v8041
      %v8951 = vadd.f32 %v8950, %v8042
      %v8952 = vadd.f32 %v8951, %v8043
      %v8953 = vadd.f32 %v8952, %v8044
      %v8954 = vadd.f32 %v8953, %v8045
      %v8955 = vadd.f32 %v8954, %v8046
      %v8956 = vadd.f32 %v8955, %v8047
      %v8957 = vadd.f32 %v8956, %v8048
      %v8958 = vadd.f32 %v8957, %v8049
      %v8959 = vadd.f32 %v8958, %v8050
      %v8960 = vadd.f32 %v8959, %v8051
      %v8961 = vadd.f32 %v8960, %v8052
      %v8962 = vadd.f32 %v8961, %v8053
      %v8963 = vadd.f32 %v8962, %v8054
      %v8964 = vadd.f32 %v8963, %v8055
      %v8965 = vadd.f32 %v8964, %v8056
      %v8966 = vadd.f32 %v8965, %v8057
      %v8967 = vadd.f32 %v8966, %v8058
      %v8968 = vadd.f32 %v8967, %v8059
      %v8969 = vrot.slane %v8968, 4
      %v8970 = vadd.f32 %v8968, %v8969
      %v8971 = vrot.slane %v8970, 2
      %v8972 = vadd.f32 %v8970, %v8971
      %v8973 = vrot.slane %v8972, 1
      %v8974 = vadd.f32 %v8972, %v8973
      %v8975 = vadd.f32 %v8060, %v8061
      %v8976 = vadd.f32 %v8975, %v8062
      %v8977 = vadd.f32 %v8976, %v8063
      %v8978 = vadd.f32 %v8977, %v8064
      %v8979 = vadd.f32 %v8978, %v8065
      %v8980 = vadd.f32 %v8979, %v8066
      %v8981 = vadd.f32 %v8980, %v8067
      %v8982 = vadd.f32 %v8981, %v8068
      %v8983 = vadd.f32 %v8982, %v8069
      %v8984 = vadd.f32 %v8983, %v8070
      %v8985 = vadd.f32 %v8984, %v8071
      %v8986 = vadd.f32 %v8985, %v8072
      %v8987 = vadd.f32 %v8986, %v8073
      %v8988 = vadd.f32 %v8987, %v8074
      %v8989 = vadd.f32 %v8988, %v8075
      %v8990 = vadd.f32 %v8989, %v8076
      %v8991 = vadd.f32 %v8990, %v8077
      %v8992 = vadd.f32 %v8991, %v8078
      %v8993 = vadd.f32 %v8992, %v8079
      %v8994 = vadd.f32 %v8993, %v8080
      %v8995 = vadd.f32 %v8994, %v8081
      %v8996 = vadd.f32 %v8995, %v8082
      %v8997 = vadd.f32 %v8996, %v8083
      %v8998 = vadd.f32 %v8997, %v8084
      %v8999 = vrot.slane %v8998, 4
      %v9000 = vadd.f32 %v8998, %v8999
      %v9001 = vrot.slane %v9000, 2
      %v9002 = vadd.f32 %v9000, %v9001
      %v9003 = vrot.slane %v9002, 1
      %v9004 = vadd.f32 %v9002, %v9003
      %v9005 = vadd.f32 %v8085, %v8086
      %v9006 = vadd.f32 %v9005, %v8087
      %v9007 = vadd.f32 %v9006, %v8088
      %v9008 = vadd.f32 %v9007, %v8089
      %v9009 = vadd.f32 %v9008, %v8090
      %v9010 = vadd.f32 %v9009, %v8091
      %v9011 = vadd.f32 %v9010, %v8092
      %v9012 = vadd.f32 %v9011, %v8093
      %v9013 = vadd.f32 %v9012, %v8094
      %v9014 = vadd.f32 %v9013, %v8095
      %v9015 = vadd.f32 %v9014, %v8096
      %v9016 = vadd.f32 %v9015, %v8097
      %v9017 = vadd.f32 %v9016, %v8098
      %v9018 = vadd.f32 %v9017, %v8099
      %v9019 = vadd.f32 %v9018, %v8100
      %v9020 = vadd.f32 %v9019, %v8101
      %v9021 = vadd.f32 %v9020, %v8102
      %v9022 = vadd.f32 %v9021, %v8103
      %v9023 = vadd.f32 %v9022, %v8104
      %v9024 = vadd.f32 %v9023, %v8105
      %v9025 = vadd.f32 %v9024, %v8106
      %v9026 = vadd.f32 %v9025, %v8107
      %v9027 = vadd.f32 %v9026, %v8108
      %v9028 = vadd.f32 %v9027, %v8109
      %v9029 = vrot.slane %v9028, 4
      %v9030 = vadd.f32 %v9028, %v9029
      %v9031 = vrot.slane %v9030, 2
      %v9032 = vadd.f32 %v9030, %v9031
      %v9033 = vrot.slane %v9032, 1
      %v9034 = vadd.f32 %v9032, %v9033
      %v9035 = vadd.f32 %v8110, %v8111
      %v9036 = vadd.f32 %v9035, %v8112
      %v9037 = vadd.f32 %v9036, %v8113
      %v9038 = vadd.f32 %v9037, %v8114
      %v9039 = vadd.f32 %v9038, %v8115
      %v9040 = vadd.f32 %v9039, %v8116
      %v9041 = vadd.f32 %v9040, %v8117
      %v9042 = vadd.f32 %v9041, %v8118
      %v9043 = vadd.f32 %v9042, %v8119
      %v9044 = vadd.f32 %v9043, %v8120
      %v9045 = vadd.f32 %v9044, %v8121
      %v9046 = vadd.f32 %v9045, %v8122
      %v9047 = vadd.f32 %v9046, %v8123
      %v9048 = vadd.f32 %v9047, %v8124
      %v9049 = vadd.f32 %v9048, %v8125
      %v9050 = vadd.f32 %v9049, %v8126
      %v9051 = vadd.f32 %v9050, %v8127
      %v9052 = vadd.f32 %v9051, %v8128
      %v9053 = vadd.f32 %v9052, %v8129
      %v9054 = vadd.f32 %v9053, %v8130
      %v9055 = vadd.f32 %v9054, %v8131
      %v9056 = vadd.f32 %v9055, %v8132
      %v9057 = vadd.f32 %v9056, %v8133
      %v9058 = vadd.f32 %v9057, %v8134
      %v9059 = vrot.slane %v9058, 4
      %v9060 = vadd.f32 %v9058, %v9059
      %v9061 = vrot.slane %v9060, 2
      %v9062 = vadd.f32 %v9060, %v9061
      %v9063 = vrot.slane %v9062, 1
      %v9064 = vadd.f32 %v9062, %v9063
      %vm9065 = vcmask 1040384
      %v9066 = vsel %vm9065, %v8164, %v8194
      %vm9067 = vcmask 1041408
      %v9068 = vsel %vm9067, %v9066, %v8224
      %vm9069 = vcmask 1042432
      %v9070 = vsel %vm9069, %v9068, %v8254
      %vm9071 = vcmask 1043456
      %v9072 = vsel %vm9071, %v9070, %v8284
      %vm9073 = vcmask 1044480
      %v9074 = vsel %vm9073, %v9072, %v8314
      %vm9075 = vcmask 1045504
      %v9076 = vsel %vm9075, %v9074, %v8344
      %vm9077 = vcmask 1046528
      %v9078 = vsel %vm9077, %v9076, %v8374
      %v9079 = vsel %vm9065, %v8404, %v8434
      %v9080 = vsel %vm9067, %v9079, %v8464
      %v9081 = vsel %vm9069, %v9080, %v8494
      %v9082 = vsel %vm9071, %v9081, %v8524
      %v9083 = vsel %vm9073, %v9082, %v8554
      %v9084 = vsel %vm9075, %v9083, %v8584
      %v9085 = vsel %vm9077, %v9084, %v8614
      %v9086 = vsel %vm9065, %v8644, %v8674
      %v9087 = vsel %vm9067, %v9086, %v8704
      %v9088 = vsel %vm9069, %v9087, %v8734
      %v9089 = vsel %vm9071, %v9088, %v8764
      %v9090 = vsel %vm9073, %v9089, %v8794
      %v9091 = vsel %vm9075, %v9090, %v8824
      %v9092 = vsel %vm9077, %v9091, %v8854
      %v9093 = vsel %vm9065, %v8884, %v8914
      %v9094 = vsel %vm9067, %v9093, %v8944
      %v9095 = vsel %vm9069, %v9094, %v8974
      %v9096 = vsel %vm9071, %v9095, %v9004
      %v9097 = vsel %vm9073, %v9096, %v9034
      %v9098 = vsel %vm9075, %v9097, %v9064
      %v9099 = vmul.f32 %v9078, 0.0051020407
      %v9100 = vmul.f32 %v9085, 0.0051020407
      %v9101 = vmul.f32 %v9092, 0.0051020407
      %v9102 = vmul.f32 %v9098, 0.0051020407
      %v9103 = vld [vmem:[%s8] sm:$0xff]
      %v9104 = vld [vmem:[%s8 + $0x8] sm:$0xff]
      %v9105 = vld [vmem:[%s8 + $0x10] sm:$0xff]
      %v9106 = vld [vmem:[%s8 + $0x18] sm:$0xff]
      %v9107 = vld [vmem:[%s8 + $0x20] sm:$0xff]
      %v9108 = vld [vmem:[%s8 + $0x28] sm:$0xff]
      %v9109 = vld [vmem:[%s8 + $0x30] sm:$0xff]
      %v9110 = vld [vmem:[%s8 + $0x38] sm:$0xff]
      %v9115 = vrot.slane %v9099, 1
      %v9116 = vrot.slane %v9100, 1
      %v9117 = vsel %vm9077, %v9115, %v9116
      %v9118 = vrot.slane %v9101, 1
      %v9119 = vsel %vm9077, %v9116, %v9118
      %v9120 = vrot.slane %v9102, 1
      %v9121 = vsel %vm9077, %v9118, %v9120
      %9122 = vrot.lane.b32.xlu0 %v9115, 127
      %v9123 = vpop.permute.xlu0 %9122
      %9124 = vrot.lane.b32.xlu0 %v9117, 127
      %v9125 = vpop.permute.xlu0 %9124
      %9126 = vrot.lane.b32.xlu0 %v9119, 127
      %v9127 = vpop.permute.xlu0 %9126
      %9128 = vrot.lane.b32.xlu0 %v9121, 127
      %v9129 = vpop.permute.xlu0 %9128
      %9130 = vrot.lane.b32.xlu0 %v9120, 127
      %v9131 = vpop.permute.xlu0 %9130
      %v9137 = vrot.slane %v9099, 2
      %v9138 = vrot.slane %v9100, 2
      %v9139 = vsel %vm9075, %v9137, %v9138
      %v9140 = vrot.slane %v9101, 2
      %v9141 = vsel %vm9075, %v9138, %v9140
      %v9142 = vrot.slane %v9102, 2
      %v9143 = vsel %vm9075, %v9140, %v9142
      %9144 = vrot.lane.b32.xlu0 %v9137, 126
      %v9145 = vpop.permute.xlu0 %9144
      %9146 = vrot.lane.b32.xlu0 %v9139, 126
      %v9147 = vpop.permute.xlu0 %9146
      %9148 = vrot.lane.b32.xlu0 %v9141, 126
      %v9149 = vpop.permute.xlu0 %9148
      %9150 = vrot.lane.b32.xlu0 %v9143, 126
      %v9151 = vpop.permute.xlu0 %9150
      %9152 = vrot.lane.b32.xlu0 %v9142, 126
      %v9153 = vpop.permute.xlu0 %9152
      %v9159 = vrot.slane %v9099, 3
      %v9160 = vrot.slane %v9100, 3
      %v9161 = vsel %vm9073, %v9159, %v9160
      %v9162 = vrot.slane %v9101, 3
      %v9163 = vsel %vm9073, %v9160, %v9162
      %v9164 = vrot.slane %v9102, 3
      %v9165 = vsel %vm9073, %v9162, %v9164
      %9166 = vrot.lane.b32.xlu0 %v9159, 125
      %v9167 = vpop.permute.xlu0 %9166
      %9168 = vrot.lane.b32.xlu0 %v9161, 125
      %v9169 = vpop.permute.xlu0 %9168
      %9170 = vrot.lane.b32.xlu0 %v9163, 125
      %v9171 = vpop.permute.xlu0 %9170
      %9172 = vrot.lane.b32.xlu0 %v9165, 125
      %v9173 = vpop.permute.xlu0 %9172
      %9174 = vrot.lane.b32.xlu0 %v9164, 125
      %v9175 = vpop.permute.xlu0 %9174
      %v9181 = vrot.slane %v9099, 4
      %v9182 = vrot.slane %v9100, 4
      %v9183 = vsel %vm9071, %v9181, %v9182
      %v9184 = vrot.slane %v9101, 4
      %v9185 = vsel %vm9071, %v9182, %v9184
      %v9186 = vrot.slane %v9102, 4
      %v9187 = vsel %vm9071, %v9184, %v9186
      %9188 = vrot.lane.b32.xlu0 %v9181, 124
      %v9189 = vpop.permute.xlu0 %9188
      %9190 = vrot.lane.b32.xlu0 %v9183, 124
      %v9191 = vpop.permute.xlu0 %9190
      %9192 = vrot.lane.b32.xlu0 %v9185, 124
      %v9193 = vpop.permute.xlu0 %9192
      %9194 = vrot.lane.b32.xlu0 %v9187, 124
      %v9195 = vpop.permute.xlu0 %9194
      %9196 = vrot.lane.b32.xlu0 %v9186, 124
      %v9197 = vpop.permute.xlu0 %9196
      %v9203 = vrot.slane %v9099, 5
      %v9204 = vrot.slane %v9100, 5
      %v9205 = vsel %vm9069, %v9203, %v9204
      %v9206 = vrot.slane %v9101, 5
      %v9207 = vsel %vm9069, %v9204, %v9206
      %v9208 = vrot.slane %v9102, 5
      %v9209 = vsel %vm9069, %v9206, %v9208
      %9210 = vrot.lane.b32.xlu0 %v9203, 123
      %v9211 = vpop.permute.xlu0 %9210
      %9212 = vrot.lane.b32.xlu0 %v9205, 123
      %v9213 = vpop.permute.xlu0 %9212
      %9214 = vrot.lane.b32.xlu0 %v9207, 123
      %v9215 = vpop.permute.xlu0 %9214
      %9216 = vrot.lane.b32.xlu0 %v9209, 123
      %v9217 = vpop.permute.xlu0 %9216
      %9218 = vrot.lane.b32.xlu0 %v9208, 123
      %v9219 = vpop.permute.xlu0 %9218
      %v9225 = vrot.slane %v9099, 6
      %v9226 = vrot.slane %v9100, 6
      %v9227 = vsel %vm9067, %v9225, %v9226
      %v9228 = vrot.slane %v9101, 6
      %v9229 = vsel %vm9067, %v9226, %v9228
      %v9230 = vrot.slane %v9102, 6
      %v9231 = vsel %vm9067, %v9228, %v9230
      %9232 = vrot.lane.b32.xlu0 %v9225, 122
      %v9233 = vpop.permute.xlu0 %9232
      %9234 = vrot.lane.b32.xlu0 %v9227, 122
      %v9235 = vpop.permute.xlu0 %9234
      %9236 = vrot.lane.b32.xlu0 %v9229, 122
      %v9237 = vpop.permute.xlu0 %9236
      %9238 = vrot.lane.b32.xlu0 %v9231, 122
      %v9239 = vpop.permute.xlu0 %9238
      %9240 = vrot.lane.b32.xlu0 %v9230, 122
      %v9241 = vpop.permute.xlu0 %9240
      %v9247 = vrot.slane %v9099, 7
      %v9248 = vrot.slane %v9100, 7
      %v9249 = vsel %vm9065, %v9247, %v9248
      %v9250 = vrot.slane %v9101, 7
      %v9251 = vsel %vm9065, %v9248, %v9250
      %v9252 = vrot.slane %v9102, 7
      %v9253 = vsel %vm9065, %v9250, %v9252
      %9254 = vrot.lane.b32.xlu0 %v9247, 121
      %v9255 = vpop.permute.xlu0 %9254
      %9256 = vrot.lane.b32.xlu0 %v9249, 121
      %v9257 = vpop.permute.xlu0 %9256
      %9258 = vrot.lane.b32.xlu0 %v9251, 121
      %v9259 = vpop.permute.xlu0 %9258
      %9260 = vrot.lane.b32.xlu0 %v9253, 121
      %v9261 = vpop.permute.xlu0 %9260
      %9266 = vrot.lane.b32.xlu0 %v9099, 120
      %v9267 = vpop.permute.xlu0 %9266
      %9268 = vrot.lane.b32.xlu0 %v9100, 120
      %v9269 = vpop.permute.xlu0 %9268
      %9270 = vrot.lane.b32.xlu0 %v9101, 120
      %v9271 = vpop.permute.xlu0 %9270
      %9272 = vrot.lane.b32.xlu0 %v9102, 120
      %v9273 = vpop.permute.xlu0 %9272
      %9278 = vrot.lane.b32.xlu0 %v9115, 119
      %v9279 = vpop.permute.xlu0 %9278
      %9280 = vrot.lane.b32.xlu0 %v9117, 119
      %v9281 = vpop.permute.xlu0 %9280
      %9282 = vrot.lane.b32.xlu0 %v9119, 119
      %v9283 = vpop.permute.xlu0 %9282
      %9284 = vrot.lane.b32.xlu0 %v9121, 119
      %v9285 = vpop.permute.xlu0 %9284
      %9286 = vrot.lane.b32.xlu0 %v9120, 119
      %v9287 = vpop.permute.xlu0 %9286
      %9293 = vrot.lane.b32.xlu0 %v9137, 118
      %v9294 = vpop.permute.xlu0 %9293
      %9295 = vrot.lane.b32.xlu0 %v9139, 118
      %v9296 = vpop.permute.xlu0 %9295
      %9297 = vrot.lane.b32.xlu0 %v9141, 118
      %v9298 = vpop.permute.xlu0 %9297
      %9299 = vrot.lane.b32.xlu0 %v9143, 118
      %v9300 = vpop.permute.xlu0 %9299
      %9301 = vrot.lane.b32.xlu0 %v9142, 118
      %v9302 = vpop.permute.xlu0 %9301
      %9308 = vrot.lane.b32.xlu0 %v9159, 117
      %v9309 = vpop.permute.xlu0 %9308
      %9310 = vrot.lane.b32.xlu0 %v9161, 117
      %v9311 = vpop.permute.xlu0 %9310
      %9312 = vrot.lane.b32.xlu0 %v9163, 117
      %v9313 = vpop.permute.xlu0 %9312
      %9314 = vrot.lane.b32.xlu0 %v9165, 117
      %v9315 = vpop.permute.xlu0 %9314
      %9316 = vrot.lane.b32.xlu0 %v9164, 117
      %v9317 = vpop.permute.xlu0 %9316
      %9323 = vrot.lane.b32.xlu0 %v9181, 116
      %v9324 = vpop.permute.xlu0 %9323
      %9325 = vrot.lane.b32.xlu0 %v9183, 116
      %v9326 = vpop.permute.xlu0 %9325
      %9327 = vrot.lane.b32.xlu0 %v9185, 116
      %v9328 = vpop.permute.xlu0 %9327
      %9329 = vrot.lane.b32.xlu0 %v9187, 116
      %v9330 = vpop.permute.xlu0 %9329
      %9331 = vrot.lane.b32.xlu0 %v9186, 116
      %v9332 = vpop.permute.xlu0 %9331
      %v9337 = vsel %vm9077, %v9102, %v9123
      %v9338 = vsel %vm9075, %v9131, %v9145
      %v9339 = vsel %vm9073, %v9153, %v9167
      %v9340 = vsel %vm9071, %v9175, %v9189
      %v9341 = vsel %vm9069, %v9197, %v9211
      %v9342 = vsel %vm9067, %v9219, %v9233
      %v9343 = vsel %vm9065, %v9241, %v9255
      %v9344 = vsel %vm9077, %v9273, %v9279
      %v9345 = vsel %vm9075, %v9287, %v9294
      %v9346 = vsel %vm9073, %v9302, %v9309
      %v9347 = vsel %vm9071, %v9317, %v9324
      %v9348 = vld [vmem:[%s2] sm:$0xff]
      %v9349 = vld [vmem:[%s2 + $0x8] sm:$0xff]
      %v9350 = vld [vmem:[%s2 + $0x10] sm:$0xff]
      %v9351 = vld [vmem:[%s2 + $0x18] sm:$0xff]
      %v9352 = vld [vmem:[%s2 + $0x20] sm:$0xff]
      %v9353 = vld [vmem:[%s2 + $0x28] sm:$0xff]
      %v9354 = vld [vmem:[%s2 + $0x30] sm:$0xff]
      %v9355 = vld [vmem:[%s2 + $0x38] sm:$0xff]
      %v9356 = vld [vmem:[%s2 + $0x40] sm:$0xff]
      %v9357 = vld [vmem:[%s2 + $0x48] sm:$0xff]
      %v9358 = vld [vmem:[%s2 + $0x50] sm:$0xff]
      %v9359 = vld [vmem:[%s2 + $0x58] sm:$0xff]
      %v9360 = vld [vmem:[%s2 + $0x60] sm:$0xff]
      %v9361 = vld [vmem:[%s2 + $0x68] sm:$0xff]
      %v9362 = vld [vmem:[%s2 + $0x70] sm:$0xff]
      %v9363 = vld [vmem:[%s2 + $0x78] sm:$0xff]
      %vm9364 = vcmask 154624
      %v9366 = vsel %vm9364, %v9351, 0
      %v9369 = vsel %vm9364, %v9355, 0
      %v9372 = vsel %vm9364, %v9359, 0
      %v9375 = vsel %vm9364, %v9363, 0
      %v9377 = vsel %vm9069, %v9332, 0
      %9379 = vmatprep.subr.mxu0 0.0
      %9380 = vmatpush1.msra.mxu0 %v9099
      %9381 = vmatprep.subr.mxu0 0.0
      %9382 = vmatpush1.msra.mxu0 %v9100
      %9383 = vmatprep.subr.mxu0 0.0
      %9384 = vmatpush1.msra.mxu0 %v9101
      %9385 = vmatprep.subr.mxu0 0.0
      %9386 = vmatpush1.msra.mxu0 %v9337
      %9387 = vmatprep.subr.mxu0 0.0
      %9388 = vmatpush1.msra.mxu0 %v9125
      %9389 = vmatprep.subr.mxu0 0.0
      %9390 = vmatpush1.msra.mxu0 %v9127
      %9391 = vmatprep.subr.mxu0 0.0
      %9392 = vmatpush1.msra.mxu0 %v9129
      %9393 = vmatprep.subr.mxu0 0.0
      %9394 = vmatpush1.msra.mxu0 %v9338
      %9395 = vmatprep.subr.mxu0 0.0
      %9396 = vmatpush1.msra.mxu0 %v9147
      %9397 = vmatprep.subr.mxu0 0.0
      %9398 = vmatpush1.msra.mxu0 %v9149
      %9399 = vmatprep.subr.mxu0 0.0
      %9400 = vmatpush1.msra.mxu0 %v9151
      %9401 = vmatprep.subr.mxu0 0.0
      %9402 = vmatpush1.msra.mxu0 %v9339
      %9403 = vmatprep.subr.mxu0 0.0
      %9404 = vmatpush1.msra.mxu0 %v9169
      %9405 = vmatprep.subr.mxu0 0.0
      %9406 = vmatpush1.msra.mxu0 %v9171
      %9407 = vmatprep.subr.mxu0 0.0
      %9408 = vmatpush1.msra.mxu0 %v9173
      %9409 = vmatprep.subr.mxu0 0.0
      %9410 = vmatpush1.msra.mxu0 %v9340
      %9411 = vmatprep.subr.mxu0 0.0
      %9412 = vmatpush1.msra.mxu0 %v9191
      %9413 = vmatprep.subr.mxu0 0.0
      %9414 = vmatpush1.msra.mxu0 %v9193
      %9415 = vmatprep.subr.mxu0 0.0
      %9416 = vmatpush1.msra.mxu0 %v9195
      %9417 = vmatprep.subr.mxu0 0.0
      %9418 = vmatpush1.msra.mxu0 %v9341
      %9419 = vmatprep.subr.mxu0 0.0
      %9420 = vmatpush1.msra.mxu0 %v9213
      %9421 = vmatprep.subr.mxu0 0.0
      %9422 = vmatpush1.msra.mxu0 %v9215
      %9423 = vmatprep.subr.mxu0 0.0
      %9424 = vmatpush1.msra.mxu0 %v9217
      %9425 = vmatprep.subr.mxu0 0.0
      %9426 = vmatpush1.msra.mxu0 %v9342
      %9427 = vmatprep.subr.mxu0 0.0
      %9428 = vmatpush1.msra.mxu0 %v9235
      %9429 = vmatprep.subr.mxu0 0.0
      %9430 = vmatpush1.msra.mxu0 %v9237
      %9431 = vmatprep.subr.mxu0 0.0
      %9432 = vmatpush1.msra.mxu0 %v9239
      %9433 = vmatprep.subr.mxu0 0.0
      %9434 = vmatpush1.msra.mxu0 %v9343
      %9435 = vmatprep.subr.mxu0 0.0
      %9436 = vmatpush1.msra.mxu0 %v9257
      %9437 = vmatprep.subr.mxu0 0.0
      %9438 = vmatpush1.msra.mxu0 %v9259
      %9439 = vmatprep.subr.mxu0 0.0
      %9440 = vmatpush1.msra.mxu0 %v9261
      %9441 = vmatprep.subr.mxu0 0.0
      %9442 = vmatpush1.msra.mxu0 %v9267
      %9443 = vmatprep.mubr.f32.mxu0 %v9349
      %9444 = vmatmul.mubr.f32.gmra.mrb[0].mxu0 %v9348
      %v9445 = vpop.f32.mrb[0].mxu0
      %v9446 = vadd.f32 0.0, %v9445
      %v9447 = vpop.f32.mrb[0].mxu0
      %9448 = vmatprep.mubr.f32.mxu0 %v9353
      %9449 = vmatmul.mubr.f32.gmra.mrb[0].mxu0 %v9352
      %v9450 = vpop.f32.mrb[0].mxu0
      %v9451 = vadd.f32 0.0, %v9450
      %v9452 = vpop.f32.mrb[0].mxu0
      %9453 = vmatprep.mubr.f32.mxu0 %v9357
      %9454 = vmatmul.mubr.f32.gmra.mrb[0].mxu0 %v9356
      %v9455 = vpop.f32.mrb[0].mxu0
      %v9456 = vadd.f32 0.0, %v9455
      %v9457 = vpop.f32.mrb[0].mxu0
      %9458 = vmatprep.mubr.f32.mxu0 %v9361
      %9459 = vmatmul.mubr.f32.gmra.mrb[0].mxu0 %v9360
      %v9460 = vpop.f32.mrb[0].mxu0
      %v9461 = vadd.f32 0.0, %v9460
      %v9462 = vpop.f32.mrb[0].mxu0
      %9463 = vdwg.mxu0
      %9464 = vmatprep.subr.mxu0 0.0
      %9465 = vmatpush1.msra.mxu0 %v9269
      %9466 = vmatprep.subr.mxu0 0.0
      %9467 = vmatpush1.msra.mxu0 %v9271
      %9468 = vmatprep.subr.mxu0 0.0
      %9469 = vmatpush1.msra.mxu0 %v9344
      %9470 = vmatprep.subr.mxu0 0.0
      %9471 = vmatpush1.msra.mxu0 %v9281
      %9472 = vmatprep.subr.mxu0 0.0
      %9473 = vmatpush1.msra.mxu0 %v9283
      %9474 = vmatprep.subr.mxu0 0.0
      %9475 = vmatpush1.msra.mxu0 %v9285
      %9476 = vmatprep.subr.mxu0 0.0
      %9477 = vmatpush1.msra.mxu0 %v9345
      %9478 = vmatprep.subr.mxu0 0.0
      %9479 = vmatpush1.msra.mxu0 %v9296
      %9480 = vmatprep.subr.mxu0 0.0
      %9481 = vmatpush1.msra.mxu0 %v9298
      %9482 = vmatprep.subr.mxu0 0.0
      %9483 = vmatpush1.msra.mxu0 %v9300
      %9484 = vmatprep.subr.mxu0 0.0
      %9485 = vmatpush1.msra.mxu0 %v9346
      %9486 = vmatprep.subr.mxu0 0.0
      %9487 = vmatpush1.msra.mxu0 %v9311
      %9488 = vmatprep.subr.mxu0 0.0
      %9489 = vmatpush1.msra.mxu0 %v9313
      %9490 = vmatprep.subr.mxu0 0.0
      %9491 = vmatpush1.msra.mxu0 %v9315
      %9492 = vmatprep.subr.mxu0 0.0
      %9493 = vmatpush1.msra.mxu0 %v9347
      %9494 = vmatprep.subr.mxu0 0.0
      %9495 = vmatpush1.msra.mxu0 %v9326
      %9496 = vmatprep.subr.mxu0 0.0
      %9497 = vmatpush1.msra.mxu0 %v9328
      %9498 = vmatprep.subr.mxu0 0.0
      %9499 = vmatpush1.msra.mxu0 %v9330
      %9500 = vmatprep.subr.mxu0 0.0
      %9501 = vmatpush1.msra.mxu0 %v9377
      %9502 = vmatprep.subr.mxu0 0.0
      %9503 = vmatpush1.msra.mxu0 0.0
      %9504 = vmatprep.subr.mxu0 0.0
      %9505 = vmatpush1.msra.mxu0 0.0
      %9506 = vmatprep.subr.mxu0 0.0
      %9507 = vmatpush1.msra.mxu0 0.0
      %9508 = vmatprep.subr.mxu0 0.0
      %9509 = vmatpush1.msra.mxu0 0.0
      %9510 = vmatprep.subr.mxu0 0.0
      %9511 = vmatpush1.msra.mxu0 0.0
      %9512 = vmatprep.subr.mxu0 0.0
      %9513 = vmatpush1.msra.mxu0 0.0
      %9514 = vmatprep.subr.mxu0 0.0
      %9515 = vmatpush1.msra.mxu0 0.0
      %9516 = vmatprep.subr.mxu0 0.0
      %9517 = vmatpush1.msra.mxu0 0.0
      %9518 = vmatprep.subr.mxu0 0.0
      %9519 = vmatpush1.msra.mxu0 0.0
      %9520 = vmatprep.subr.mxu0 0.0
      %9521 = vmatpush1.msra.mxu0 0.0
      %9522 = vmatprep.subr.mxu0 0.0
      %9523 = vmatpush1.msra.mxu0 0.0
      %9524 = vmatprep.subr.mxu0 0.0
      %9525 = vmatpush1.msra.mxu0 0.0
      %9526 = vmatprep.subr.mxu0 0.0
      %9527 = vmatpush1.msra.mxu0 0.0
      %9528 = vmatprep.mubr.f32.mxu0 %v9366
      %9529 = vmatmul.mubr.f32.gmra.mrb[0].mxu0 %v9350
      %v9530 = vpop.f32.mrb[0].mxu0
      %v9531 = vadd.f32 %v9446, %v9530
      %v9532 = vpop.f32.mrb[0].mxu0
      %9533 = vmatprep.mubr.f32.mxu0 %v9369
      %9534 = vmatmul.mubr.f32.gmra.mrb[0].mxu0 %v9354
      %v9535 = vpop.f32.mrb[0].mxu0
      %v9536 = vadd.f32 %v9451, %v9535
      %v9537 = vpop.f32.mrb[0].mxu0
      %9538 = vmatprep.mubr.f32.mxu0 %v9372
      %9539 = vmatmul.mubr.f32.gmra.mrb[0].mxu0 %v9358
      %v9540 = vpop.f32.mrb[0].mxu0
      %v9541 = vadd.f32 %v9456, %v9540
      %v9542 = vpop.f32.mrb[0].mxu0
      %9543 = vmatprep.mubr.f32.mxu0 %v9375
      %9544 = vmatmul.mubr.f32.gmra.mrb[0].mxu0 %v9362
      %v9545 = vpop.f32.mrb[0].mxu0
      %v9546 = vadd.f32 %v9461, %v9545
      %v9547 = vpop.f32.mrb[0].mxu0
      %9548 = vdwg.mxu0
      %v9549 = vld [vmem:[%s3] sm:$0xff]
      %v9550 = vld [vmem:[%s3 + $0x8] sm:$0xff]
      %v9551 = vld [vmem:[%s3 + $0x10] sm:$0xff]
      %v9552 = vld [vmem:[%s3 + $0x18] sm:$0xff]
      %v9553 = vld [vmem:[%s3 + $0x20] sm:$0xff]
      %v9554 = vld [vmem:[%s3 + $0x28] sm:$0xff]
      %v9555 = vld [vmem:[%s3 + $0x30] sm:$0xff]
      %v9556 = vld [vmem:[%s3 + $0x38] sm:$0xff]
      %v9557 = vld [vmem:[%s3 + $0x40] sm:$0xff]
      %v9558 = vld [vmem:[%s3 + $0x48] sm:$0xff]
      %v9559 = vld [vmem:[%s3 + $0x50] sm:$0xff]
      %v9560 = vld [vmem:[%s3 + $0x58] sm:$0xff]
      %v9561 = vld [vmem:[%s3 + $0x60] sm:$0xff]
      %v9562 = vld [vmem:[%s3 + $0x68] sm:$0xff]
      %v9563 = vld [vmem:[%s3 + $0x70] sm:$0xf]
      %9565 = vset.pattern.permute.xlu0 0
      %9566 = vperm.xlu0 %9565, %v9103
      %v9567 = vpop.permute.xlu0 %9566
      %9570 = vset.pattern.permute.xlu0 0
      %9571 = vperm.xlu0 %9570, %v9104
      %v9572 = vpop.permute.xlu0 %9571
      %9575 = vset.pattern.permute.xlu0 0
      %9576 = vperm.xlu0 %9575, %v9105
      %v9577 = vpop.permute.xlu0 %9576
      %9580 = vset.pattern.permute.xlu0 0
      %9581 = vperm.xlu0 %9580, %v9106
      %v9582 = vpop.permute.xlu0 %9581
      %vm9584 = vcmask 949248
      %v9586 = vsel %vm9584, %v9531, 0
      %v9589 = vsel %vm9584, %v9536, 0
      %v9592 = vsel %vm9584, %v9541, 0
      %v9595 = vsel %vm9584, %v9546, 0
      %v9598 = vsel %vm9071, %v9563, 0
      %9600 = vmatprep.subr.mxu0 0.0
      %9601 = vmatpush1.msra.mxu0 %v9549
      %9602 = vmatprep.subr.mxu0 0.0
      %9603 = vmatpush1.msra.mxu0 %v9550
      %9604 = vmatprep.subr.mxu0 0.0
      %9605 = vmatpush1.msra.mxu0 %v9551
      %9606 = vmatprep.subr.mxu0 0.0
      %9607 = vmatpush1.msra.mxu0 %v9552
      %9608 = vmatprep.subr.mxu0 0.0
      %9609 = vmatpush1.msra.mxu0 %v9553
      %9610 = vmatprep.subr.mxu0 0.0
      %9611 = vmatpush1.msra.mxu0 %v9554
      %9612 = vmatprep.subr.mxu0 0.0
      %9613 = vmatpush1.msra.mxu0 %v9555
      %9614 = vmatprep.subr.mxu0 0.0
      %9615 = vmatpush1.msra.mxu0 %v9556
      %9616 = vmatprep.subr.mxu0 0.0
      %9617 = vmatpush1.msra.mxu0 %v9557
      %9618 = vmatprep.subr.mxu0 0.0
      %9619 = vmatpush1.msra.mxu0 %v9558
      %9620 = vmatprep.subr.mxu0 0.0
      %9621 = vmatpush1.msra.mxu0 %v9559
      %9622 = vmatprep.subr.mxu0 0.0
      %9623 = vmatpush1.msra.mxu0 %v9560
      %9624 = vmatprep.subr.mxu0 0.0
      %9625 = vmatpush1.msra.mxu0 %v9561
      %9626 = vmatprep.subr.mxu0 0.0
      %9627 = vmatpush1.msra.mxu0 %v9562
      %9628 = vmatprep.subr.mxu0 0.0
      %9629 = vmatpush1.msra.mxu0 %v9598
      %9630 = vmatprep.subr.mxu0 0.0
      %9631 = vmatpush1.msra.mxu0 0.0
      %9632 = vmatprep.subr.mxu0 0.0
      %9633 = vmatpush1.msra.mxu0 0.0
      %9634 = vmatprep.subr.mxu0 0.0
      %9635 = vmatpush1.msra.mxu0 0.0
      %9636 = vmatprep.subr.mxu0 0.0
      %9637 = vmatpush1.msra.mxu0 0.0
      %9638 = vmatprep.subr.mxu0 0.0
      %9639 = vmatpush1.msra.mxu0 0.0
      %9640 = vmatprep.subr.mxu0 0.0
      %9641 = vmatpush1.msra.mxu0 0.0
      %9642 = vmatprep.subr.mxu0 0.0
      %9643 = vmatpush1.msra.mxu0 0.0
      %9644 = vmatprep.subr.mxu0 0.0
      %9645 = vmatpush1.msra.mxu0 0.0
      %9646 = vmatprep.subr.mxu0 0.0
      %9647 = vmatpush1.msra.mxu0 0.0
      %9648 = vmatprep.subr.mxu0 0.0
      %9649 = vmatpush1.msra.mxu0 0.0
      %9650 = vmatprep.subr.mxu0 0.0
      %9651 = vmatpush1.msra.mxu0 0.0
      %9652 = vmatprep.subr.mxu0 0.0
      %9653 = vmatpush1.msra.mxu0 0.0
      %9654 = vmatprep.subr.mxu0 0.0
      %9655 = vmatpush1.msra.mxu0 0.0
      %9656 = vmatprep.subr.mxu0 0.0
      %9657 = vmatpush1.msra.mxu0 0.0
      %9658 = vmatprep.subr.mxu0 0.0
      %9659 = vmatpush1.msra.mxu0 0.0
      %9660 = vmatprep.subr.mxu0 0.0
      %9661 = vmatpush1.msra.mxu0 0.0
      %9662 = vmatprep.subr.mxu0 0.0
      %9663 = vmatpush1.msra.mxu0 0.0
      %9664 = vmatprep.mubr.f32.mxu0 0.0
      %9665 = vmatmul.mubr.f32.gmra.mrb[0].mxu0 %v9586
      %v9666 = vpop.f32.mrb[0].mxu0
      %v9667 = vadd.f32 %v9567, %v9666
      %v9668 = vpop.f32.mrb[0].mxu0
      %9669 = vmatprep.mubr.f32.mxu0 0.0
      %9670 = vmatmul.mubr.f32.gmra.mrb[0].mxu0 %v9589
      %v9671 = vpop.f32.mrb[0].mxu0
      %v9672 = vadd.f32 %v9572, %v9671
      %v9673 = vpop.f32.mrb[0].mxu0
      %9674 = vmatprep.mubr.f32.mxu0 0.0
      %9675 = vmatmul.mubr.f32.gmra.mrb[0].mxu0 %v9592
      %v9676 = vpop.f32.mrb[0].mxu0
      %v9677 = vadd.f32 %v9577, %v9676
      %v9678 = vpop.f32.mrb[0].mxu0
      %9679 = vmatprep.mubr.f32.mxu0 0.0
      %9680 = vmatmul.mubr.f32.gmra.mrb[0].mxu0 %v9595
      %v9681 = vpop.f32.mrb[0].mxu0
      %v9682 = vadd.f32 %v9582, %v9681
      %v9683 = vpop.f32.mrb[0].mxu0
      %9684 = vdwg.mxu0
      %9689 = vrot.lane.b32.xlu0 %v9667, 127
      %v9690 = vpop.permute.xlu0 %9689
      %9691 = vrot.lane.b32.xlu0 %v9672, 127
      %v9692 = vpop.permute.xlu0 %9691
      %9693 = vrot.lane.b32.xlu0 %v9677, 127
      %v9694 = vpop.permute.xlu0 %9693
      %9695 = vrot.lane.b32.xlu0 %v9682, 127
      %v9696 = vpop.permute.xlu0 %9695
      %v9701 = vmax.f32 %v9667, %v9690
      %v9702 = vmax.f32 %v9672, %v9692
      %v9703 = vmax.f32 %v9677, %v9694
      %v9704 = vmax.f32 %v9682, %v9696
      %9705 = vrot.lane.b32.xlu0 %v9667, 126
      %v9706 = vpop.permute.xlu0 %9705
      %9707 = vrot.lane.b32.xlu0 %v9672, 126
      %v9708 = vpop.permute.xlu0 %9707
      %9709 = vrot.lane.b32.xlu0 %v9677, 126
      %v9710 = vpop.permute.xlu0 %9709
      %9711 = vrot.lane.b32.xlu0 %v9682, 126
      %v9712 = vpop.permute.xlu0 %9711
      %v9717 = vmax.f32 %v9701, %v9706
      %v9718 = vmax.f32 %v9702, %v9708
      %v9719 = vmax.f32 %v9703, %v9710
      %v9720 = vmax.f32 %v9704, %v9712
      %v9721 = vrot.slane %v9667, 1
      %v9722 = vrot.slane %v9672, 1
      %v9723 = vsel %vm9077, %v9721, %v9722
      %v9724 = vrot.slane %v9677, 1
      %v9725 = vsel %vm9077, %v9722, %v9724
      %v9726 = vrot.slane %v9682, 1
      %v9727 = vsel %vm9077, %v9724, %v9726
      %v9732 = vmax.f32 %v9717, %v9723
      %v9733 = vmax.f32 %v9718, %v9725
      %v9734 = vmax.f32 %v9719, %v9727
      %v9735 = vmax.f32 %v9720, %v9726
      %9736 = vrot.lane.b32.xlu0 %v9723, 127
      %v9737 = vpop.permute.xlu0 %9736
      %9738 = vrot.lane.b32.xlu0 %v9725, 127
      %v9739 = vpop.permute.xlu0 %9738
      %9740 = vrot.lane.b32.xlu0 %v9727, 127
      %v9741 = vpop.permute.xlu0 %9740
      %9742 = vrot.lane.b32.xlu0 %v9726, 127
      %v9743 = vpop.permute.xlu0 %9742
      %v9748 = vmax.f32 %v9732, %v9737
      %v9749 = vmax.f32 %v9733, %v9739
      %v9750 = vmax.f32 %v9734, %v9741
      %v9751 = vmax.f32 %v9735, %v9743
      %9752 = vrot.lane.b32.xlu0 %v9723, 126
      %v9753 = vpop.permute.xlu0 %9752
      %9754 = vrot.lane.b32.xlu0 %v9725, 126
      %v9755 = vpop.permute.xlu0 %9754
      %9756 = vrot.lane.b32.xlu0 %v9727, 126
      %v9757 = vpop.permute.xlu0 %9756
      %9758 = vrot.lane.b32.xlu0 %v9726, 126
      %v9759 = vpop.permute.xlu0 %9758
      %v9764 = vmax.f32 %v9748, %v9753
      %v9765 = vmax.f32 %v9749, %v9755
      %v9766 = vmax.f32 %v9750, %v9757
      %v9767 = vmax.f32 %v9751, %v9759
      %v9768 = vrot.slane %v9667, 2
      %v9769 = vrot.slane %v9672, 2
      %v9770 = vsel %vm9075, %v9768, %v9769
      %v9771 = vrot.slane %v9677, 2
      %v9772 = vsel %vm9075, %v9769, %v9771
      %v9773 = vrot.slane %v9682, 2
      %v9774 = vsel %vm9075, %v9771, %v9773
      %v9779 = vmax.f32 %v9764, %v9770
      %v9780 = vmax.f32 %v9765, %v9772
      %v9781 = vmax.f32 %v9766, %v9774
      %v9782 = vmax.f32 %v9767, %v9773
      %9783 = vrot.lane.b32.xlu0 %v9770, 127
      %v9784 = vpop.permute.xlu0 %9783
      %9785 = vrot.lane.b32.xlu0 %v9772, 127
      %v9786 = vpop.permute.xlu0 %9785
      %9787 = vrot.lane.b32.xlu0 %v9774, 127
      %v9788 = vpop.permute.xlu0 %9787
      %9789 = vrot.lane.b32.xlu0 %v9773, 127
      %v9790 = vpop.permute.xlu0 %9789
      %v9795 = vmax.f32 %v9779, %v9784
      %v9796 = vmax.f32 %v9780, %v9786
      %v9797 = vmax.f32 %v9781, %v9788
      %v9798 = vmax.f32 %v9782, %v9790
      %9799 = vrot.lane.b32.xlu0 %v9770, 126
      %v9800 = vpop.permute.xlu0 %9799
      %9801 = vrot.lane.b32.xlu0 %v9772, 126
      %v9802 = vpop.permute.xlu0 %9801
      %9803 = vrot.lane.b32.xlu0 %v9774, 126
      %v9804 = vpop.permute.xlu0 %9803
      %9805 = vrot.lane.b32.xlu0 %v9773, 126
      %v9806 = vpop.permute.xlu0 %9805
      %v9811 = vmax.f32 %v9795, %v9800
      %v9812 = vmax.f32 %v9796, %v9802
      %v9813 = vmax.f32 %v9797, %v9804
      %v9814 = vmax.f32 %v9798, %v9806
      %v9815 = vld [vmem:[%s4] sm:$0xff]
      %v9816 = vld [vmem:[%s4 + $0x8] sm:$0x3]
      %vm9817 = vcmask 244736
      %v9819 = vsel %vm9817, %v9815, 0
      %v9822 = vsel %vm9817, %v9816, 0
      %v9825 = vsel %vm9075, %v9814, 0
      %9827 = vmatprep.subr.mxu0 0.0
      %9828 = vmatpush1.msra.mxu0 %v9811
      %9829 = vmatprep.subr.mxu0 0.0
      %9830 = vmatpush1.msra.mxu0 %v9812
      %9831 = vmatprep.subr.mxu0 0.0
      %9832 = vmatpush1.msra.mxu0 %v9813
      %9833 = vmatprep.subr.mxu0 0.0
      %9834 = vmatpush1.msra.mxu0 %v9825
      %9835 = vmatprep.subr.mxu0 0.0
      %9836 = vmatpush1.msra.mxu0 0.0
      %9837 = vmatprep.subr.mxu0 0.0
      %9838 = vmatpush1.msra.mxu0 0.0
      %9839 = vmatprep.subr.mxu0 0.0
      %9840 = vmatpush1.msra.mxu0 0.0
      %9841 = vmatprep.subr.mxu0 0.0
      %9842 = vmatpush1.msra.mxu0 0.0
      %9843 = vmatprep.subr.mxu0 0.0
      %9844 = vmatpush1.msra.mxu0 0.0
      %9845 = vmatprep.subr.mxu0 0.0
      %9846 = vmatpush1.msra.mxu0 0.0
      %9847 = vmatprep.subr.mxu0 0.0
      %9848 = vmatpush1.msra.mxu0 0.0
      %9849 = vmatprep.subr.mxu0 0.0
      %9850 = vmatpush1.msra.mxu0 0.0
      %9851 = vmatprep.subr.mxu0 0.0
      %9852 = vmatpush1.msra.mxu0 0.0
      %9853 = vmatprep.subr.mxu0 0.0
      %9854 = vmatpush1.msra.mxu0 0.0
      %9855 = vmatprep.subr.mxu0 0.0
      %9856 = vmatpush1.msra.mxu0 0.0
      %9857 = vmatprep.subr.mxu0 0.0
      %9858 = vmatpush1.msra.mxu0 0.0
      %9859 = vmatprep.subr.mxu0 0.0
      %9860 = vmatpush1.msra.mxu0 0.0
      %9861 = vmatprep.subr.mxu0 0.0
      %9862 = vmatpush1.msra.mxu0 0.0
      %9863 = vmatprep.subr.mxu0 0.0
      %9864 = vmatpush1.msra.mxu0 0.0
      %9865 = vmatprep.subr.mxu0 0.0
      %9866 = vmatpush1.msra.mxu0 0.0
      %9867 = vmatprep.subr.mxu0 0.0
      %9868 = vmatpush1.msra.mxu0 0.0
      %9869 = vmatprep.subr.mxu0 0.0
      %9870 = vmatpush1.msra.mxu0 0.0
      %9871 = vmatprep.subr.mxu0 0.0
      %9872 = vmatpush1.msra.mxu0 0.0
      %9873 = vmatprep.subr.mxu0 0.0
      %9874 = vmatpush1.msra.mxu0 0.0
      %9875 = vmatprep.subr.mxu0 0.0
      %9876 = vmatpush1.msra.mxu0 0.0
      %9877 = vmatprep.subr.mxu0 0.0
      %9878 = vmatpush1.msra.mxu0 0.0
      %9879 = vmatprep.subr.mxu0 0.0
      %9880 = vmatpush1.msra.mxu0 0.0
      %9881 = vmatprep.subr.mxu0 0.0
      %9882 = vmatpush1.msra.mxu0 0.0
      %9883 = vmatprep.subr.mxu0 0.0
      %9884 = vmatpush1.msra.mxu0 0.0
      %9885 = vmatprep.subr.mxu0 0.0
      %9886 = vmatpush1.msra.mxu0 0.0
      %9887 = vmatprep.subr.mxu0 0.0
      %9888 = vmatpush1.msra.mxu0 0.0
      %9889 = vmatprep.subr.mxu0 0.0
      %9890 = vmatpush1.msra.mxu0 0.0
      %9891 = vmatprep.mubr.f32.mxu0 0.0
      %9892 = vmatmul.mubr.f32.gmra.mrb[0].mxu0 %v9819
      %v9893 = vpop.f32.mrb[0].mxu0
      %v9894 = vadd.f32 0.0, %v9893
      %v9895 = vpop.f32.mrb[0].mxu0
      %9896 = vmatprep.mubr.f32.mxu0 0.0
      %9897 = vmatmul.mubr.f32.gmra.mrb[0].mxu0 %v9822
      %v9898 = vpop.f32.mrb[0].mxu0
      %v9899 = vadd.f32 0.0, %v9898
      %v9900 = vpop.f32.mrb[0].mxu0
      %9901 = vdwg.mxu0
      %v9902 = vld [vmem:[%s5] sm:$0xff]
      %v9903 = vld [vmem:[%s5 + $0x8] sm:$0xff]
      %v9904 = vld [vmem:[%s5 + $0x10] sm:$0xff]
      %v9905 = vld [vmem:[%s5 + $0x18] sm:$0xff]
      %v9906 = vld [vmem:[%s5 + $0x20] sm:$0xff]
      %v9907 = vld [vmem:[%s5 + $0x28] sm:$0xff]
      %v9908 = vld [vmem:[%s5 + $0x30] sm:$0xff]
      %vm9909 = vcmask 457728
      %v9911 = vsel %vm9909, %v9894, 0
      %v9914 = vsel %vm9909, %v9899, 0
      %9916 = vmatprep.subr.mxu0 0.0
      %9917 = vmatpush1.msra.mxu0 %v9902
      %9918 = vmatprep.subr.mxu0 0.0
      %9919 = vmatpush1.msra.mxu0 %v9903
      %9920 = vmatprep.subr.mxu0 0.0
      %9921 = vmatpush1.msra.mxu0 %v9904
      %9922 = vmatprep.subr.mxu0 0.0
      %9923 = vmatpush1.msra.mxu0 %v9905
      %9924 = vmatprep.subr.mxu0 0.0
      %9925 = vmatpush1.msra.mxu0 %v9906
      %9926 = vmatprep.subr.mxu0 0.0
      %9927 = vmatpush1.msra.mxu0 %v9907
      %9928 = vmatprep.subr.mxu0 0.0
      %9929 = vmatpush1.msra.mxu0 %v9908
      %9930 = vmatprep.subr.mxu0 0.0
      %9931 = vmatpush1.msra.mxu0 0.0
      %9932 = vmatprep.subr.mxu0 0.0
      %9933 = vmatpush1.msra.mxu0 0.0
      %9934 = vmatprep.subr.mxu0 0.0
      %9935 = vmatpush1.msra.mxu0 0.0
      %9936 = vmatprep.subr.mxu0 0.0
      %9937 = vmatpush1.msra.mxu0 0.0
      %9938 = vmatprep.subr.mxu0 0.0
      %9939 = vmatpush1.msra.mxu0 0.0
      %9940 = vmatprep.subr.mxu0 0.0
      %9941 = vmatpush1.msra.mxu0 0.0
      %9942 = vmatprep.subr.mxu0 0.0
      %9943 = vmatpush1.msra.mxu0 0.0
      %9944 = vmatprep.subr.mxu0 0.0
      %9945 = vmatpush1.msra.mxu0 0.0
      %9946 = vmatprep.subr.mxu0 0.0
      %9947 = vmatpush1.msra.mxu0 0.0
      %9948 = vmatprep.subr.mxu0 0.0
      %9949 = vmatpush1.msra.mxu0 0.0
      %9950 = vmatprep.subr.mxu0 0.0
      %9951 = vmatpush1.msra.mxu0 0.0
      %9952 = vmatprep.subr.mxu0 0.0
      %9953 = vmatpush1.msra.mxu0 0.0
      %9954 = vmatprep.subr.mxu0 0.0
      %9955 = vmatpush1.msra.mxu0 0.0
      %9956 = vmatprep.subr.mxu0 0.0
      %9957 = vmatpush1.msra.mxu0 0.0
      %9958 = vmatprep.subr.mxu0 0.0
      %9959 = vmatpush1.msra.mxu0 0.0
      %9960 = vmatprep.subr.mxu0 0.0
      %9961 = vmatpush1.msra.mxu0 0.0
      %9962 = vmatprep.subr.mxu0 0.0
      %9963 = vmatpush1.msra.mxu0 0.0
      %9964 = vmatprep.subr.mxu0 0.0
      %9965 = vmatpush1.msra.mxu0 0.0
      %9966 = vmatprep.subr.mxu0 0.0
      %9967 = vmatpush1.msra.mxu0 0.0
      %9968 = vmatprep.subr.mxu0 0.0
      %9969 = vmatpush1.msra.mxu0 0.0
      %9970 = vmatprep.subr.mxu0 0.0
      %9971 = vmatpush1.msra.mxu0 0.0
      %9972 = vmatprep.subr.mxu0 0.0
      %9973 = vmatpush1.msra.mxu0 0.0
      %9974 = vmatprep.subr.mxu0 0.0
      %9975 = vmatpush1.msra.mxu0 0.0
      %9976 = vmatprep.subr.mxu0 0.0
      %9977 = vmatpush1.msra.mxu0 0.0
      %9978 = vmatprep.subr.mxu0 0.0
      %9979 = vmatpush1.msra.mxu0 0.0
      %9980 = vmatprep.mubr.f32.mxu0 0.0
      %9981 = vmatmul.mubr.f32.gmra.mrb[0].mxu0 %v9911
      %v9982 = vpop.f32.mrb[0].mxu0
      %v9983 = vadd.f32 0.0, %v9982
      %v9984 = vpop.f32.mrb[0].mxu0
      %9985 = vmatprep.mubr.f32.mxu0 0.0
      %9986 = vmatmul.mubr.f32.gmra.mrb[0].mxu0 %v9914
      %v9987 = vpop.f32.mrb[0].mxu0
      %v9988 = vadd.f32 0.0, %v9987
      %v9989 = vpop.f32.mrb[0].mxu0
      %9990 = vdwg.mxu0
      %v9993 = vrot.slane %v9983, 6
      %v9994 = vrot.slane %v9988, 6
      %v9995 = vsel %vm9067, %v9993, %v9994
      %9996 = vrot.lane.b32.xlu0 %v9993, 127
      %v9997 = vpop.permute.xlu0 %9996
      %9998 = vrot.lane.b32.xlu0 %v9995, 127
      %v9999 = vpop.permute.xlu0 %9998
      %v10002 = vrot.slane %v9983, 4
      %v10003 = vrot.slane %v9988, 4
      %v10004 = vsel %vm9071, %v10002, %v10003
      %10005 = vrot.lane.b32.xlu0 %v10002, 126
      %v10006 = vpop.permute.xlu0 %10005
      %10007 = vrot.lane.b32.xlu0 %v10004, 126
      %v10008 = vpop.permute.xlu0 %10007
      %v10011 = vrot.slane %v9983, 2
      %v10012 = vrot.slane %v9988, 2
      %v10013 = vsel %vm9075, %v10011, %v10012
      %10014 = vrot.lane.b32.xlu0 %v10011, 125
      %v10015 = vpop.permute.xlu0 %10014
      %10016 = vrot.lane.b32.xlu0 %v10013, 125
      %v10017 = vpop.permute.xlu0 %10016
      %10020 = vrot.lane.b32.xlu0 %v9983, 124
      %v10021 = vpop.permute.xlu0 %10020
      %10022 = vrot.lane.b32.xlu0 %v9988, 124
      %v10023 = vpop.permute.xlu0 %10022
      %10026 = vrot.lane.b32.xlu0 %v9993, 123
      %v10027 = vpop.permute.xlu0 %10026
      %10028 = vrot.lane.b32.xlu0 %v9995, 123
      %v10029 = vpop.permute.xlu0 %10028
      %10032 = vrot.lane.b32.xlu0 %v10002, 122
      %v10033 = vpop.permute.xlu0 %10032
      %10034 = vrot.lane.b32.xlu0 %v10004, 122
      %v10035 = vpop.permute.xlu0 %10034
      %v10037 = vsel %vm9067, %v9988, %v9997
      %v10038 = vsel %vm9071, %v9999, %v10006
      %v10039 = vsel %vm9075, %v10008, %v10015
      %v10040 = vsel %vm9067, %v10023, %v10027
      %v10041 = vsel %vm9071, %v10029, %v10033
      %v10042 = vld [vmem:[%s6] sm:$0xff]
      %v10043 = vld [vmem:[%s6 + $0x8] sm:$0xff]
      %v10044 = vld [vmem:[%s6 + $0x10] sm:$0xff]
      %v10045 = vld [vmem:[%s6 + $0x18] sm:$0xff]
      %v10046 = vld [vmem:[%s6 + $0x20] sm:$0xff]
      %v10047 = vld [vmem:[%s6 + $0x28] sm:$0xff]
      %v10048 = vld [vmem:[%s6 + $0x30] sm:$0xff]
      %v10049 = vld [vmem:[%s6 + $0x38] sm:$0xff]
      %10050 = vset.pattern.permute.xlu0 1
      %10051 = vperm.xlu0 %10050, %v9103
      %v10052 = vpop.permute.xlu0 %10051
      %10054 = vset.pattern.permute.xlu0 1
      %10055 = vperm.xlu0 %10054, %v9104
      %v10056 = vpop.permute.xlu0 %10055
      %10058 = vset.pattern.permute.xlu0 1
      %10059 = vperm.xlu0 %10058, %v9105
      %v10060 = vpop.permute.xlu0 %10059
      %10062 = vset.pattern.permute.xlu0 1
      %10063 = vperm.xlu0 %10062, %v9106
      %v10064 = vpop.permute.xlu0 %10063
      %10067 = vset.pattern.permute.xlu0 1
      %10068 = vperm.xlu0 %10067, %v9107
      %v10069 = vpop.permute.xlu0 %10068
      %10072 = vset.pattern.permute.xlu0 1
      %10073 = vperm.xlu0 %10072, %v9108
      %v10074 = vpop.permute.xlu0 %10073
      %10077 = vset.pattern.permute.xlu0 1
      %10078 = vperm.xlu0 %10077, %v9109
      %v10079 = vpop.permute.xlu0 %10078
      %10082 = vset.pattern.permute.xlu0 1
      %10083 = vperm.xlu0 %10082, %v9110
      %v10084 = vpop.permute.xlu0 %10083
      %vm10086 = vcmask 572416
      %v10088 = vsel %vm10086, %v10042, 0
      %v10091 = vsel %vm10086, %v10043, 0
      %v10094 = vsel %vm10086, %v10044, 0
      %v10097 = vsel %vm10086, %v10045, 0
      %v10100 = vsel %vm10086, %v10046, 0
      %v10103 = vsel %vm10086, %v10047, 0
      %v10106 = vsel %vm10086, %v10048, 0
      %v10109 = vsel %vm10086, %v10049, 0
      %v10111 = vsel %vm9075, %v10035, 0
      %10113 = vmatprep.subr.mxu0 0.0
      %10114 = vmatpush1.msra.mxu0 %v9983
      %10115 = vmatprep.subr.mxu0 0.0
      %10116 = vmatpush1.msra.mxu0 %v10037
      %10117 = vmatprep.subr.mxu0 0.0
      %10118 = vmatpush1.msra.mxu0 %v10038
      %10119 = vmatprep.subr.mxu0 0.0
      %10120 = vmatpush1.msra.mxu0 %v10039
      %10121 = vmatprep.subr.mxu0 0.0
      %10122 = vmatpush1.msra.mxu0 %v10017
      %10123 = vmatprep.subr.mxu0 0.0
      %10124 = vmatpush1.msra.mxu0 %v10021
      %10125 = vmatprep.subr.mxu0 0.0
      %10126 = vmatpush1.msra.mxu0 %v10040
      %10127 = vmatprep.subr.mxu0 0.0
      %10128 = vmatpush1.msra.mxu0 %v10041
      %10129 = vmatprep.subr.mxu0 0.0
      %10130 = vmatpush1.msra.mxu0 %v10111
      %10131 = vmatprep.subr.mxu0 0.0
      %10132 = vmatpush1.msra.mxu0 0.0
      %10133 = vmatprep.subr.mxu0 0.0
      %10134 = vmatpush1.msra.mxu0 0.0
      %10135 = vmatprep.subr.mxu0 0.0
      %10136 = vmatpush1.msra.mxu0 0.0
      %10137 = vmatprep.subr.mxu0 0.0
      %10138 = vmatpush1.msra.mxu0 0.0
      %10139 = vmatprep.subr.mxu0 0.0
      %10140 = vmatpush1.msra.mxu0 0.0
      %10141 = vmatprep.subr.mxu0 0.0
      %10142 = vmatpush1.msra.mxu0 0.0
      %10143 = vmatprep.subr.mxu0 0.0
      %10144 = vmatpush1.msra.mxu0 0.0
      %10145 = vmatprep.subr.mxu0 0.0
      %10146 = vmatpush1.msra.mxu0 0.0
      %10147 = vmatprep.subr.mxu0 0.0
      %10148 = vmatpush1.msra.mxu0 0.0
      %10149 = vmatprep.subr.mxu0 0.0
      %10150 = vmatpush1.msra.mxu0 0.0
      %10151 = vmatprep.subr.mxu0 0.0
      %10152 = vmatpush1.msra.mxu0 0.0
      %10153 = vmatprep.subr.mxu0 0.0
      %10154 = vmatpush1.msra.mxu0 0.0
      %10155 = vmatprep.subr.mxu0 0.0
      %10156 = vmatpush1.msra.mxu0 0.0
      %10157 = vmatprep.subr.mxu0 0.0
      %10158 = vmatpush1.msra.mxu0 0.0
      %10159 = vmatprep.subr.mxu0 0.0
      %10160 = vmatpush1.msra.mxu0 0.0
      %10161 = vmatprep.subr.mxu0 0.0
      %10162 = vmatpush1.msra.mxu0 0.0
      %10163 = vmatprep.subr.mxu0 0.0
      %10164 = vmatpush1.msra.mxu0 0.0
      %10165 = vmatprep.subr.mxu0 0.0
      %10166 = vmatpush1.msra.mxu0 0.0
      %10167 = vmatprep.subr.mxu0 0.0
      %10168 = vmatpush1.msra.mxu0 0.0
      %10169 = vmatprep.subr.mxu0 0.0
      %10170 = vmatpush1.msra.mxu0 0.0
      %10171 = vmatprep.subr.mxu0 0.0
      %10172 = vmatpush1.msra.mxu0 0.0
      %10173 = vmatprep.subr.mxu0 0.0
      %10174 = vmatpush1.msra.mxu0 0.0
      %10175 = vmatprep.subr.mxu0 0.0
      %10176 = vmatpush1.msra.mxu0 0.0
      %10177 = vmatprep.mubr.f32.mxu0 0.0
      %10178 = vmatmul.mubr.f32.gmra.mrb[0].mxu0 %v10088
      %v10179 = vpop.f32.mrb[0].mxu0
      %v10180 = vadd.f32 %v10052, %v10179
      %v10181 = vpop.f32.mrb[0].mxu0
      %10182 = vmatprep.mubr.f32.mxu0 0.0
      %10183 = vmatmul.mubr.f32.gmra.mrb[0].mxu0 %v10091
      %v10184 = vpop.f32.mrb[0].mxu0
      %v10185 = vadd.f32 %v10056, %v10184
      %v10186 = vpop.f32.mrb[0].mxu0
      %10187 = vmatprep.mubr.f32.mxu0 0.0
      %10188 = vmatmul.mubr.f32.gmra.mrb[0].mxu0 %v10094
      %v10189 = vpop.f32.mrb[0].mxu0
      %v10190 = vadd.f32 %v10060, %v10189
      %v10191 = vpop.f32.mrb[0].mxu0
      %10192 = vmatprep.mubr.f32.mxu0 0.0
      %10193 = vmatmul.mubr.f32.gmra.mrb[0].mxu0 %v10097
      %v10194 = vpop.f32.mrb[0].mxu0
      %v10195 = vadd.f32 %v10064, %v10194
      %v10196 = vpop.f32.mrb[0].mxu0
      %10197 = vmatprep.mubr.f32.mxu0 0.0
      %10198 = vmatmul.mubr.f32.gmra.mrb[0].mxu0 %v10100
      %v10199 = vpop.f32.mrb[0].mxu0
      %v10200 = vadd.f32 %v10069, %v10199
      %v10201 = vpop.f32.mrb[0].mxu0
      %10202 = vmatprep.mubr.f32.mxu0 0.0
      %10203 = vmatmul.mubr.f32.gmra.mrb[0].mxu0 %v10103
      %v10204 = vpop.f32.mrb[0].mxu0
      %v10205 = vadd.f32 %v10074, %v10204
      %v10206 = vpop.f32.mrb[0].mxu0
      %10207 = vmatprep.mubr.f32.mxu0 0.0
      %10208 = vmatmul.mubr.f32.gmra.mrb[0].mxu0 %v10106
      %v10209 = vpop.f32.mrb[0].mxu0
      %v10210 = vadd.f32 %v10079, %v10209
      %v10211 = vpop.f32.mrb[0].mxu0
      %10212 = vmatprep.mubr.f32.mxu0 0.0
      %10213 = vmatmul.mubr.f32.gmra.mrb[0].mxu0 %v10109
      %v10214 = vpop.f32.mrb[0].mxu0
      %v10215 = vadd.f32 %v10084, %v10214
      %v10216 = vpop.f32.mrb[0].mxu0
      %10217 = vdwg.mxu0
      %10226 = vrot.lane.b32.xlu0 %v10180, 127
      %v10227 = vpop.permute.xlu0 %10226
      %10228 = vrot.lane.b32.xlu0 %v10185, 127
      %v10229 = vpop.permute.xlu0 %10228
      %10230 = vrot.lane.b32.xlu0 %v10190, 127
      %v10231 = vpop.permute.xlu0 %10230
      %10232 = vrot.lane.b32.xlu0 %v10195, 127
      %v10233 = vpop.permute.xlu0 %10232
      %10234 = vrot.lane.b32.xlu0 %v10200, 127
      %v10235 = vpop.permute.xlu0 %10234
      %10236 = vrot.lane.b32.xlu0 %v10205, 127
      %v10237 = vpop.permute.xlu0 %10236
      %10238 = vrot.lane.b32.xlu0 %v10210, 127
      %v10239 = vpop.permute.xlu0 %10238
      %10240 = vrot.lane.b32.xlu0 %v10215, 127
      %v10241 = vpop.permute.xlu0 %10240
      %10250 = vrot.lane.b32.xlu0 %v10180, 126
      %v10251 = vpop.permute.xlu0 %10250
      %10252 = vrot.lane.b32.xlu0 %v10185, 126
      %v10253 = vpop.permute.xlu0 %10252
      %10254 = vrot.lane.b32.xlu0 %v10190, 126
      %v10255 = vpop.permute.xlu0 %10254
      %10256 = vrot.lane.b32.xlu0 %v10195, 126
      %v10257 = vpop.permute.xlu0 %10256
      %10258 = vrot.lane.b32.xlu0 %v10200, 126
      %v10259 = vpop.permute.xlu0 %10258
      %10260 = vrot.lane.b32.xlu0 %v10205, 126
      %v10261 = vpop.permute.xlu0 %10260
      %10262 = vrot.lane.b32.xlu0 %v10210, 126
      %v10263 = vpop.permute.xlu0 %10262
      %10264 = vrot.lane.b32.xlu0 %v10215, 126
      %v10265 = vpop.permute.xlu0 %10264
      %10274 = vrot.lane.b32.xlu0 %v10180, 125
      %v10275 = vpop.permute.xlu0 %10274
      %10276 = vrot.lane.b32.xlu0 %v10185, 125
      %v10277 = vpop.permute.xlu0 %10276
      %10278 = vrot.lane.b32.xlu0 %v10190, 125
      %v10279 = vpop.permute.xlu0 %10278
      %10280 = vrot.lane.b32.xlu0 %v10195, 125
      %v10281 = vpop.permute.xlu0 %10280
      %10282 = vrot.lane.b32.xlu0 %v10200, 125
      %v10283 = vpop.permute.xlu0 %10282
      %10284 = vrot.lane.b32.xlu0 %v10205, 125
      %v10285 = vpop.permute.xlu0 %10284
      %10286 = vrot.lane.b32.xlu0 %v10210, 125
      %v10287 = vpop.permute.xlu0 %10286
      %10288 = vrot.lane.b32.xlu0 %v10215, 125
      %v10289 = vpop.permute.xlu0 %10288
      %10298 = vrot.lane.b32.xlu0 %v10180, 124
      %v10299 = vpop.permute.xlu0 %10298
      %10300 = vrot.lane.b32.xlu0 %v10185, 124
      %v10301 = vpop.permute.xlu0 %10300
      %10302 = vrot.lane.b32.xlu0 %v10190, 124
      %v10303 = vpop.permute.xlu0 %10302
      %10304 = vrot.lane.b32.xlu0 %v10195, 124
      %v10305 = vpop.permute.xlu0 %10304
      %10306 = vrot.lane.b32.xlu0 %v10200, 124
      %v10307 = vpop.permute.xlu0 %10306
      %10308 = vrot.lane.b32.xlu0 %v10205, 124
      %v10309 = vpop.permute.xlu0 %10308
      %10310 = vrot.lane.b32.xlu0 %v10210, 124
      %v10311 = vpop.permute.xlu0 %10310
      %10312 = vrot.lane.b32.xlu0 %v10215, 124
      %v10313 = vpop.permute.xlu0 %10312
      %v10322 = vld [vmem:[%s7] sm:$0xff]
      %v10323 = vld [vmem:[%s7 + $0x8] sm:$0xff]
      %v10324 = vld [vmem:[%s7 + $0x10] sm:$0xff]
      %v10325 = vld [vmem:[%s7 + $0x18] sm:$0xff]
      %v10326 = vld [vmem:[%s7 + $0x20] sm:$0xff]
      %v10327 = vld [vmem:[%s7 + $0x28] sm:$0xff]
      %v10328 = vld [vmem:[%s7 + $0x30] sm:$0xff]
      %v10329 = vld [vmem:[%s7 + $0x38] sm:$0xff]
      %v10330 = vld [vmem:[%s7 + $0x40] sm:$0xff]
      %v10331 = vld [vmem:[%s7 + $0x48] sm:$0xff]
      %v10332 = vld [vmem:[%s7 + $0x50] sm:$0xff]
      %v10333 = vld [vmem:[%s7 + $0x58] sm:$0xff]
      %v10334 = vld [vmem:[%s7 + $0x60] sm:$0xff]
      %v10335 = vld [vmem:[%s7 + $0x68] sm:$0xff]
      %v10336 = vld [vmem:[%s7 + $0x70] sm:$0xff]
      %v10337 = vld [vmem:[%s7 + $0x78] sm:$0xff]
      %v10338 = vld [vmem:[%s7 + $0x80] sm:$0xff]
      %v10339 = vld [vmem:[%s7 + $0x88] sm:$0xff]
      %v10340 = vld [vmem:[%s7 + $0x90] sm:$0xff]
      %v10341 = vld [vmem:[%s7 + $0x98] sm:$0xff]
      %v10342 = vld [vmem:[%s7 + $0xa0] sm:$0xff]
      %v10343 = vld [vmem:[%s7 + $0xa8] sm:$0xff]
      %v10344 = vld [vmem:[%s7 + $0xb0] sm:$0xff]
      %v10345 = vld [vmem:[%s7 + $0xb8] sm:$0xff]
      %10346 = vset.pattern.permute.xlu0 2
      %10347 = vperm.xlu0 %10346, %v9103
      %v10348 = vpop.permute.xlu0 %10347
      %10350 = vset.pattern.permute.xlu0 2
      %10351 = vperm.xlu0 %10350, %v9104
      %v10352 = vpop.permute.xlu0 %10351
      %10354 = vset.pattern.permute.xlu0 2
      %10355 = vperm.xlu0 %10354, %v9105
      %v10356 = vpop.permute.xlu0 %10355
      %10358 = vset.pattern.permute.xlu0 2
      %10359 = vperm.xlu0 %10358, %v9106
      %v10360 = vpop.permute.xlu0 %10359
      %10362 = vset.pattern.permute.xlu0 2
      %10363 = vperm.xlu0 %10362, %v9107
      %v10364 = vpop.permute.xlu0 %10363
      %10366 = vset.pattern.permute.xlu0 2
      %10367 = vperm.xlu0 %10366, %v9108
      %v10368 = vpop.permute.xlu0 %10367
      %10370 = vset.pattern.permute.xlu0 2
      %10371 = vperm.xlu0 %10370, %v9109
      %v10372 = vpop.permute.xlu0 %10371
      %10374 = vset.pattern.permute.xlu0 2
      %10375 = vperm.xlu0 %10374, %v9110
      %v10376 = vpop.permute.xlu0 %10375
      %vm10378 = vcmask 523264
      %v10380 = vsel %vm10378, %v10324, 0
      %v10383 = vsel %vm10378, %v10327, 0
      %v10386 = vsel %vm10378, %v10330, 0
      %v10389 = vsel %vm10378, %v10333, 0
      %v10392 = vsel %vm10378, %v10336, 0
      %v10395 = vsel %vm10378, %v10339, 0
      %v10398 = vsel %vm10378, %v10342, 0
      %v10401 = vsel %vm10378, %v10345, 0
      %10403 = vmatprep.subr.mxu0 0.0
      %10404 = vmatpush1.msra.mxu0 %v10180
      %10405 = vmatprep.subr.mxu0 0.0
      %10406 = vmatpush1.msra.mxu0 %v10185
      %10407 = vmatprep.subr.mxu0 0.0
      %10408 = vmatpush1.msra.mxu0 %v10190
      %10409 = vmatprep.subr.mxu0 0.0
      %10410 = vmatpush1.msra.mxu0 %v10195
      %10411 = vmatprep.subr.mxu0 0.0
      %10412 = vmatpush1.msra.mxu0 %v10200
      %10413 = vmatprep.subr.mxu0 0.0
      %10414 = vmatpush1.msra.mxu0 %v10205
      %10415 = vmatprep.subr.mxu0 0.0
      %10416 = vmatpush1.msra.mxu0 %v10210
      %10417 = vmatprep.subr.mxu0 0.0
      %10418 = vmatpush1.msra.mxu0 %v10215
      %10419 = vmatprep.subr.mxu0 0.0
      %10420 = vmatpush1.msra.mxu0 %v10227
      %10421 = vmatprep.subr.mxu0 0.0
      %10422 = vmatpush1.msra.mxu0 %v10229
      %10423 = vmatprep.subr.mxu0 0.0
      %10424 = vmatpush1.msra.mxu0 %v10231
      %10425 = vmatprep.subr.mxu0 0.0
      %10426 = vmatpush1.msra.mxu0 %v10233
      %10427 = vmatprep.subr.mxu0 0.0
      %10428 = vmatpush1.msra.mxu0 %v10235
      %10429 = vmatprep.subr.mxu0 0.0
      %10430 = vmatpush1.msra.mxu0 %v10237
      %10431 = vmatprep.subr.mxu0 0.0
      %10432 = vmatpush1.msra.mxu0 %v10239
      %10433 = vmatprep.subr.mxu0 0.0
      %10434 = vmatpush1.msra.mxu0 %v10241
      %10435 = vmatprep.subr.mxu0 0.0
      %10436 = vmatpush1.msra.mxu0 %v10251
      %10437 = vmatprep.subr.mxu0 0.0
      %10438 = vmatpush1.msra.mxu0 %v10253
      %10439 = vmatprep.subr.mxu0 0.0
      %10440 = vmatpush1.msra.mxu0 %v10255
      %10441 = vmatprep.subr.mxu0 0.0
      %10442 = vmatpush1.msra.mxu0 %v10257
      %10443 = vmatprep.subr.mxu0 0.0
      %10444 = vmatpush1.msra.mxu0 %v10259
      %10445 = vmatprep.subr.mxu0 0.0
      %10446 = vmatpush1.msra.mxu0 %v10261
      %10447 = vmatprep.subr.mxu0 0.0
      %10448 = vmatpush1.msra.mxu0 %v10263
      %10449 = vmatprep.subr.mxu0 0.0
      %10450 = vmatpush1.msra.mxu0 %v10265
      %10451 = vmatprep.subr.mxu0 0.0
      %10452 = vmatpush1.msra.mxu0 %v10275
      %10453 = vmatprep.subr.mxu0 0.0
      %10454 = vmatpush1.msra.mxu0 %v10277
      %10455 = vmatprep.subr.mxu0 0.0
      %10456 = vmatpush1.msra.mxu0 %v10279
      %10457 = vmatprep.subr.mxu0 0.0
      %10458 = vmatpush1.msra.mxu0 %v10281
      %10459 = vmatprep.subr.mxu0 0.0
      %10460 = vmatpush1.msra.mxu0 %v10283
      %10461 = vmatprep.subr.mxu0 0.0
      %10462 = vmatpush1.msra.mxu0 %v10285
      %10463 = vmatprep.subr.mxu0 0.0
      %10464 = vmatpush1.msra.mxu0 %v10287
      %10465 = vmatprep.subr.mxu0 0.0
      %10466 = vmatpush1.msra.mxu0 %v10289
      %10467 = vmatprep.mubr.f32.mxu0 %v10323
      %10468 = vmatmul.mubr.f32.gmra.mrb[0].mxu0 %v10322
      %v10469 = vpop.f32.mrb[0].mxu0
      %v10470 = vadd.f32 %v10348, %v10469
      %v10471 = vpop.f32.mrb[0].mxu0
      %10472 = vmatprep.mubr.f32.mxu0 %v10326
      %10473 = vmatmul.mubr.f32.gmra.mrb[0].mxu0 %v10325
      %v10474 = vpop.f32.mrb[0].mxu0
      %v10475 = vadd.f32 %v10352, %v10474
      %v10476 = vpop.f32.mrb[0].mxu0
      %10477 = vmatprep.mubr.f32.mxu0 %v10329
      %10478 = vmatmul.mubr.f32.gmra.mrb[0].mxu0 %v10328
      %v10479 = vpop.f32.mrb[0].mxu0
      %v10480 = vadd.f32 %v10356, %v10479
      %v10481 = vpop.f32.mrb[0].mxu0
      %10482 = vmatprep.mubr.f32.mxu0 %v10332
      %10483 = vmatmul.mubr.f32.gmra.mrb[0].mxu0 %v10331
      %v10484 = vpop.f32.mrb[0].mxu0
      %v10485 = vadd.f32 %v10360, %v10484
      %v10486 = vpop.f32.mrb[0].mxu0
      %10487 = vmatprep.mubr.f32.mxu0 %v10335
      %10488 = vmatmul.mubr.f32.gmra.mrb[0].mxu0 %v10334
      %v10489 = vpop.f32.mrb[0].mxu0
      %v10490 = vadd.f32 %v10364, %v10489
      %v10491 = vpop.f32.mrb[0].mxu0
      %10492 = vmatprep.mubr.f32.mxu0 %v10338
      %10493 = vmatmul.mubr.f32.gmra.mrb[0].mxu0 %v10337
      %v10494 = vpop.f32.mrb[0].mxu0
      %v10495 = vadd.f32 %v10368, %v10494
      %v10496 = vpop.f32.mrb[0].mxu0
      %10497 = vmatprep.mubr.f32.mxu0 %v10341
      %10498 = vmatmul.mubr.f32.gmra.mrb[0].mxu0 %v10340
      %v10499 = vpop.f32.mrb[0].mxu0
      %v10500 = vadd.f32 %v10372, %v10499
      %v10501 = vpop.f32.mrb[0].mxu0
      %10502 = vmatprep.mubr.f32.mxu0 %v10344
      %10503 = vmatmul.mubr.f32.gmra.mrb[0].mxu0 %v10343
      %v10504 = vpop.f32.mrb[0].mxu0
      %v10505 = vadd.f32 %v10376, %v10504
      %v10506 = vpop.f32.mrb[0].mxu0
      %10507 = vdwg.mxu0
      %10508 = vmatprep.subr.mxu0 0.0
      %10509 = vmatpush1.msra.mxu0 %v10299
      %10510 = vmatprep.subr.mxu0 0.0
      %10511 = vmatpush1.msra.mxu0 %v10301
      %10512 = vmatprep.subr.mxu0 0.0
      %10513 = vmatpush1.msra.mxu0 %v10303
      %10514 = vmatprep.subr.mxu0 0.0
      %10515 = vmatpush1.msra.mxu0 %v10305
      %10516 = vmatprep.subr.mxu0 0.0
      %10517 = vmatpush1.msra.mxu0 %v10307
      %10518 = vmatprep.subr.mxu0 0.0
      %10519 = vmatpush1.msra.mxu0 %v10309
      %10520 = vmatprep.subr.mxu0 0.0
      %10521 = vmatpush1.msra.mxu0 %v10311
      %10522 = vmatprep.subr.mxu0 0.0
      %10523 = vmatpush1.msra.mxu0 %v10313
      %10524 = vmatprep.subr.mxu0 0.0
      %10525 = vmatpush1.msra.mxu0 0.0
      %10526 = vmatprep.subr.mxu0 0.0
      %10527 = vmatpush1.msra.mxu0 0.0
      %10528 = vmatprep.subr.mxu0 0.0
      %10529 = vmatpush1.msra.mxu0 0.0
      %10530 = vmatprep.subr.mxu0 0.0
      %10531 = vmatpush1.msra.mxu0 0.0
      %10532 = vmatprep.subr.mxu0 0.0
      %10533 = vmatpush1.msra.mxu0 0.0
      %10534 = vmatprep.subr.mxu0 0.0
      %10535 = vmatpush1.msra.mxu0 0.0
      %10536 = vmatprep.subr.mxu0 0.0
      %10537 = vmatpush1.msra.mxu0 0.0
      %10538 = vmatprep.subr.mxu0 0.0
      %10539 = vmatpush1.msra.mxu0 0.0
      %10540 = vmatprep.subr.mxu0 0.0
      %10541 = vmatpush1.msra.mxu0 0.0
      %10542 = vmatprep.subr.mxu0 0.0
      %10543 = vmatpush1.msra.mxu0 0.0
      %10544 = vmatprep.subr.mxu0 0.0
      %10545 = vmatpush1.msra.mxu0 0.0
      %10546 = vmatprep.subr.mxu0 0.0
      %10547 = vmatpush1.msra.mxu0 0.0
      %10548 = vmatprep.subr.mxu0 0.0
      %10549 = vmatpush1.msra.mxu0 0.0
      %10550 = vmatprep.subr.mxu0 0.0
      %10551 = vmatpush1.msra.mxu0 0.0
      %10552 = vmatprep.subr.mxu0 0.0
      %10553 = vmatpush1.msra.mxu0 0.0
      %10554 = vmatprep.subr.mxu0 0.0
      %10555 = vmatpush1.msra.mxu0 0.0
      %10556 = vmatprep.subr.mxu0 0.0
      %10557 = vmatpush1.msra.mxu0 0.0
      %10558 = vmatprep.subr.mxu0 0.0
      %10559 = vmatpush1.msra.mxu0 0.0
      %10560 = vmatprep.subr.mxu0 0.0
      %10561 = vmatpush1.msra.mxu0 0.0
      %10562 = vmatprep.subr.mxu0 0.0
      %10563 = vmatpush1.msra.mxu0 0.0
      %10564 = vmatprep.subr.mxu0 0.0
      %10565 = vmatpush1.msra.mxu0 0.0
      %10566 = vmatprep.subr.mxu0 0.0
      %10567 = vmatpush1.msra.mxu0 0.0
      %10568 = vmatprep.subr.mxu0 0.0
      %10569 = vmatpush1.msra.mxu0 0.0
      %10570 = vmatprep.subr.mxu0 0.0
      %10571 = vmatpush1.msra.mxu0 0.0
      %10572 = vmatprep.mubr.f32.mxu0 0.0
      %10573 = vmatmul.mubr.f32.gmra.mrb[0].mxu0 %v10380
      %v10574 = vpop.f32.mrb[0].mxu0
      %v10575 = vadd.f32 %v10470, %v10574
      %v10576 = vpop.f32.mrb[0].mxu0
      %10577 = vmatprep.mubr.f32.mxu0 0.0
      %10578 = vmatmul.mubr.f32.gmra.mrb[0].mxu0 %v10383
      %v10579 = vpop.f32.mrb[0].mxu0
      %v10580 = vadd.f32 %v10475, %v10579
      %v10581 = vpop.f32.mrb[0].mxu0
      %10582 = vmatprep.mubr.f32.mxu0 0.0
      %10583 = vmatmul.mubr.f32.gmra.mrb[0].mxu0 %v10386
      %v10584 = vpop.f32.mrb[0].mxu0
      %v10585 = vadd.f32 %v10480, %v10584
      %v10586 = vpop.f32.mrb[0].mxu0
      %10587 = vmatprep.mubr.f32.mxu0 0.0
      %10588 = vmatmul.mubr.f32.gmra.mrb[0].mxu0 %v10389
      %v10589 = vpop.f32.mrb[0].mxu0
      %v10590 = vadd.f32 %v10485, %v10589
      %v10591 = vpop.f32.mrb[0].mxu0
      %10592 = vmatprep.mubr.f32.mxu0 0.0
      %10593 = vmatmul.mubr.f32.gmra.mrb[0].mxu0 %v10392
      %v10594 = vpop.f32.mrb[0].mxu0
      %v10595 = vadd.f32 %v10490, %v10594
      %v10596 = vpop.f32.mrb[0].mxu0
      %10597 = vmatprep.mubr.f32.mxu0 0.0
      %10598 = vmatmul.mubr.f32.gmra.mrb[0].mxu0 %v10395
      %v10599 = vpop.f32.mrb[0].mxu0
      %v10600 = vadd.f32 %v10495, %v10599
      %v10601 = vpop.f32.mrb[0].mxu0
      %10602 = vmatprep.mubr.f32.mxu0 0.0
      %10603 = vmatmul.mubr.f32.gmra.mrb[0].mxu0 %v10398
      %v10604 = vpop.f32.mrb[0].mxu0
      %v10605 = vadd.f32 %v10500, %v10604
      %v10606 = vpop.f32.mrb[0].mxu0
      %10607 = vmatprep.mubr.f32.mxu0 0.0
      %10608 = vmatmul.mubr.f32.gmra.mrb[0].mxu0 %v10401
      %v10609 = vpop.f32.mrb[0].mxu0
      %v10610 = vadd.f32 %v10505, %v10609
      %v10611 = vpop.f32.mrb[0].mxu0
      %10612 = vdwg.mxu0
      %vm10613 = vcmask 72704
      %v10614 = vsel %vm10613, %v10575, 0.0
      %10615 = vadd.xlane.f32.xlu0 %v10614
      %v10616 = vpop.xlane.xlu0 %10615
      %v10617 = vsel %vm10613, %v10580, 0.0
      %10618 = vadd.xlane.f32.xlu0 %v10617
      %v10619 = vpop.xlane.xlu0 %10618
      %v10620 = vsel %vm10613, %v10585, 0.0
      %10621 = vadd.xlane.f32.xlu0 %v10620
      %v10622 = vpop.xlane.xlu0 %10621
      %v10623 = vsel %vm10613, %v10590, 0.0
      %10624 = vadd.xlane.f32.xlu0 %v10623
      %v10625 = vpop.xlane.xlu0 %10624
      %v10626 = vsel %vm10613, %v10595, 0.0
      %10627 = vadd.xlane.f32.xlu0 %v10626
      %v10628 = vpop.xlane.xlu0 %10627
      %v10629 = vsel %vm10613, %v10600, 0.0
      %10630 = vadd.xlane.f32.xlu0 %v10629
      %v10631 = vpop.xlane.xlu0 %10630
      %v10632 = vsel %vm10613, %v10605, 0.0
      %10633 = vadd.xlane.f32.xlu0 %v10632
      %v10634 = vpop.xlane.xlu0 %10633
      %v10635 = vsel %vm10613, %v10610, 0.0
      %10636 = vadd.xlane.f32.xlu0 %v10635
      %v10637 = vpop.xlane.xlu0 %10636
      %v10638 = vrcp.pop 9.0
      %v10639 = vmul.f32 %v10616, %v10638
      %v10640 = vmul.f32 %v10619, %v10638
      %v10641 = vmul.f32 %v10622, %v10638
      %v10642 = vmul.f32 %v10625, %v10638
      %v10643 = vmul.f32 %v10628, %v10638
      %v10644 = vmul.f32 %v10631, %v10638
      %v10645 = vmul.f32 %v10634, %v10638
      %v10646 = vmul.f32 %v10637, %v10638
      %v10647 = vmul.f32 %v10639, %v9103
      %v10648 = vmul.f32 %v10640, %v9104
      %v10649 = vmul.f32 %v10641, %v9105
      %v10650 = vmul.f32 %v10642, %v9106
      %v10651 = vmul.f32 %v10643, %v9107
      %v10652 = vmul.f32 %v10644, %v9108
      %v10653 = vmul.f32 %v10645, %v9109
      %v10654 = vmul.f32 %v10646, %v9110
      %10663 = vrot.lane.b32.xlu0 %v10647, 125
      %v10664 = vpop.permute.xlu0 %10663
      %10665 = vrot.lane.b32.xlu0 %v10648, 125
      %v10666 = vpop.permute.xlu0 %10665
      %10667 = vrot.lane.b32.xlu0 %v10649, 125
      %v10668 = vpop.permute.xlu0 %10667
      %10669 = vrot.lane.b32.xlu0 %v10650, 125
      %v10670 = vpop.permute.xlu0 %10669
      %10671 = vrot.lane.b32.xlu0 %v10651, 125
      %v10672 = vpop.permute.xlu0 %10671
      %10673 = vrot.lane.b32.xlu0 %v10652, 125
      %v10674 = vpop.permute.xlu0 %10673
      %10675 = vrot.lane.b32.xlu0 %v10653, 125
      %v10676 = vpop.permute.xlu0 %10675
      %10677 = vrot.lane.b32.xlu0 %v10654, 125
      %v10678 = vpop.permute.xlu0 %10677
      %vm10687 = vcmask 7168
      %v10688 = vsel %vm10687, %v10664, 0.0
      %v10689 = vsel %vm10687, %v10666, 0.0
      %v10690 = vadd.f32 %v10688, %v10689
      %v10691 = vsel %vm10687, %v10668, 0.0
      %v10692 = vadd.f32 %v10690, %v10691
      %v10693 = vsel %vm10687, %v10670, 0.0
      %v10694 = vadd.f32 %v10692, %v10693
      %v10695 = vsel %vm10687, %v10672, 0.0
      %v10696 = vadd.f32 %v10694, %v10695
      %v10697 = vsel %vm10687, %v10674, 0.0
      %v10698 = vadd.f32 %v10696, %v10697
      %v10699 = vsel %vm10687, %v10676, 0.0
      %v10700 = vadd.f32 %v10698, %v10699
      %v10701 = vsel %vm10687, %v10678, 0.0
      %v10702 = vadd.f32 %v10700, %v10701
      %10703 = vadd.xlane.f32.xlu0 %v10702
      %v10704 = vpop.xlane.xlu0 %10703
      %v10705 = vrot.slane %v10704, 4
      %v10706 = vadd.f32 %v10704, %v10705
      %v10707 = vrot.slane %v10706, 2
      %v10708 = vadd.f32 %v10706, %v10707
      %v10709 = vrot.slane %v10708, 1
      %v10710 = vadd.f32 %v10708, %v10709
      %s10711 = vtos %v10710
      %v10712 = vstv %s10711
      %v10713 = vadd.f32 %v10712, %v9103
      %10715 = vrot.lane.b32.xlu0 %v10713, 124
      %v10716 = vpop.permute.xlu0 %10715
      %vm10718 = vcmask 0
      %10719 = vst.msk [vmem:[%s328] sm:$0x1] %vm10718, %v10716
      %p10720 = scmp.lt.s32.totalorder %s20, 1
      %s10721 = scalar_select %p10720, %s20, 1
      %s10722 = scalar_lea.vmem %s9, %s10721
      // Predicated region
      $region57: #{_lambda_.1} parent=55 // pred_check
        %p10723 = pneg %p232
      $region58: #{_lambda_.1} parent=55 // pred_check_branch
        %10725 = sbr.rel (%p10723) target = $region60
      $region59: #{_lambda_.1} parent=55 // pred_region
        _
      $region60: #{_lambda_.1} parent=55 // pred_fallthru
        _
    $region56: #{_lambda_.1} parent=5 // pred_fallthru
      _
    %p10726 = scmp.le.s32.totalorder 2, %s15
    // Predicated region
    $region61: #{_lambda_.1} parent=5 // pred_check
      %p10727 = pneg %p10726
    $region62: #{_lambda_.1} parent=5 // pred_check_branch
      %10729 = sbr.rel (%p10727) target = $region64
    $region63: #{_lambda_.1} parent=5 // pred_region
      %s10730 = ssub.s32 %s15, 2
      // Predicated region
      $region65: #{_lambda_.1} parent=63 // pred_check
        %p10731 = pneg %p238
      $region66: #{_lambda_.1} parent=63 // pred_check_branch
        %10733 = sbr.rel (%p10731) target = $region68
      $region67: #{_lambda_.1} parent=63 // pred_region
        %p10734 = scmp.lt.s32.totalorder %s21, 1
        %s10735 = scalar_select %p10734, %s21, 1
        %s10736 = scalar_lea.vmem %s9, %s10735
      $region68: #{_lambda_.1} parent=63 // pred_fallthru
        _
    $region64: #{_lambda_.1} parent=5 // pred_fallthru
      _
  $region6: #{_lambda_.1} parent=0 // loop_footer
    %s19 = sadd.s32 1, %s15
  $region7: #{_lambda_.1} parent=0 // loop_footer_branch
    %14 = sbr.rel target = $region3
  $region8: #{_lambda_.1} parent=0 // loop_exit
    _

</llo_original>
